<compile_context>
chip_gen: v5e
topology: v5e:2x2
jax: 0.10.0
libtpu: 0.0.40
codegen_flags: <defaults>
</compile_context>

<pallas_src>
import functools
import math

import jax
import jax.numpy as jnp
from jax.experimental import pallas as pl
from jax.experimental.pallas import tpu as pltpu

_MXU_DTYPE = jnp.bfloat16     # MXU input dtype (f32 accumulation); vector math stays f32 (v5e-safe)
_LANE = 128                   # tiny class dims are padded to this for lane-dense stores

_GRID_PARAMS = pltpu.CompilerParams(
    dimension_semantics=("parallel",),          # batch-tile axis -> megacore split on v7x
    vmem_limit_bytes=32 * 1024 * 1024,
)


# ----------------------------------------------------------------------------
# In-kernel helpers
# ----------------------------------------------------------------------------
def _mm(x, w):
    """MXU matmul with bf16 inputs and f32 accumulation."""
    return jnp.dot(x.astype(_MXU_DTYPE), w.astype(_MXU_DTYPE),
                   preferred_element_type=jnp.float32)


def _layernorm(y, g, b, eps):
    mean = jnp.mean(y, axis=-1, keepdims=True)
    var = jnp.mean(jnp.square(y - mean), axis=-1, keepdims=True)
    return (y - mean) * jax.lax.rsqrt(var + eps) * g + b


# ----------------------------------------------------------------------------
# Fused whole-network kernel (per batch tile of Bt rows)
# ----------------------------------------------------------------------------
def _fused_kernel(xp_ref,
                  c1w_ref, c1b_ref, c2w_ref, c2b_ref,
                  pw_ref, pb_ref,
                  wqkv_ref, bqkv_ref, wo_ref, bo_ref, ln1g_ref, ln1b_ref,
                  w1_ref, b1_ref, w2_ref, b2_ref, ln2g_ref, ln2b_ref,
                  cw_ref, cb_ref, tw_ref, tb_ref,
                  g1w_ref, g1b_ref, g2w_ref, g2b_ref,
                  out_ref, gate_ref,
                  *, nhead, n_layers, eps):
    xp = xp_ref[...]                                   # (Bt, S+4, Cin) f32, 2 zero rows per side
    Bt, Sp4, Cin = xp.shape
    S = Sp4 - 4

    # ------------------------- CNN branch -------------------------
    # conv1 evaluated on S+2 positions (one beyond each end); those two rows are then zeroed so
    # they serve as conv2's zero padding (no in-kernel concat needed). Matmul rows = Bt*(S+2).
    h = (_mm(xp[:, 0:S + 2, :].reshape(Bt * (S + 2), Cin), c1w_ref[0]) +
         _mm(xp[:, 1:S + 3, :].reshape(Bt * (S + 2), Cin), c1w_ref[1]) +
         _mm(xp[:, 2:S + 4, :].reshape(Bt * (S + 2), Cin), c1w_ref[2]) + c1b_ref[...])
    C1 = h.shape[1]
    h = jnp.maximum(h, 0.0).reshape(Bt, S + 2, C1)
    row = jax.lax.broadcasted_iota(jnp.int32, (Bt, S + 2, 1), 1)
    h = jnp.where((row == 0) | (row == S + 1), 0.0, h)
    g = (_mm(h[:, 0:S, :].reshape(Bt * S, C1), c2w_ref[0]) +
         _mm(h[:, 1:S + 1, :].reshape(Bt * S, C1), c2w_ref[1]) +
         _mm(h[:, 2:S + 2, :].reshape(Bt * S, C1), c2w_ref[2]) + c2b_ref[...])
    C2 = g.shape[1]
    g = jnp.maximum(g, 0.0).reshape(Bt, S, C2)
    f_cnn = jnp.mean(g, axis=1)                        # (Bt, 128) fused adaptive-avg-pool

    # ---------------------- Transformer branch ----------------------
    D = pw_ref.shape[1]
    dh = D // nhead
    x = xp[:, 2:S + 2, :].reshape(Bt * S, Cin)         # real rows, reused from the padded block
    t = _mm(x, pw_ref[...]) + pb_ref[...]              # input projection, (Bt*S, D)

    for li in range(n_layers):
        # Self-attention (softmax scale pre-folded into q columns of wqkv/bqkv).
        qkv = _mm(t, wqkv_ref[li]) + bqkv_ref[li]      # (Bt*S, 3D)
        wo = wo_ref[li]                                # (D, D)
        acc = bo_ref[li]                               # (1, D) -> broadcasts over rows
        for hd in range(nhead):
            q = qkv[:, hd * dh:(hd + 1) * dh].reshape(Bt, S, dh).astype(_MXU_DTYPE)
            k = qkv[:, D + hd * dh:D + (hd + 1) * dh].reshape(Bt, S, dh).astype(_MXU_DTYPE)
            v = qkv[:, 2 * D + hd * dh:2 * D + (hd + 1) * dh].reshape(Bt, S, dh).astype(_MXU_DTYPE)
            s = jnp.einsum("bqd,bkd->bqk", q, k,
                           preferred_element_type=jnp.float32)       # (Bt, S, S)
            s = s - jnp.max(s, axis=-1, keepdims=True)
            p = jnp.exp(s)
            p = p / jnp.sum(p, axis=-1, keepdims=True)               # exact softmax
            o_h = jnp.einsum("bqk,bkd->bqd", p.astype(_MXU_DTYPE), v,
                             preferred_element_type=jnp.float32)     # (Bt, S, dh)
            # concat-free head merge: concat(o_h) @ W_o == sum_h o_h @ W_o[h*dh:(h+1)*dh, :]
            acc = acc + _mm(o_h.reshape(Bt * S, dh), wo[hd * dh:(hd + 1) * dh, :])
        t = _layernorm(t + acc, ln1g_ref[li], ln1b_ref[li], eps)     # post-norm

        # FFN: lin1 + ReLU (bf16 intermediate) + lin2 + residual + LayerNorm.
        hff = jnp.maximum(_mm(t, w1_ref[li]) + b1_ref[li], 0.0).astype(_MXU_DTYPE)
        hff = _mm(hff, w2_ref[li]) + b2_ref[li]
        t = _layernorm(t + hff, ln2g_ref[li], ln2b_ref[li], eps)

    f_trans = jnp.mean(t.reshape(Bt, S, D), axis=1)    # (Bt, D) fused seq-mean

    # --------------------------- Fused head ---------------------------
    log_cnn = _mm(f_cnn, cw_ref[...]) + cb_ref[...]    # (Bt, Cpad)
    log_trans = _mm(f_trans, tw_ref[...]) + tb_ref[...]
    g1w = g1w_ref[...]
    nc = f_cnn.shape[1]
    # concat-free gate input: [f_cnn, f_trans] @ Wg1 == f_cnn @ Wg1[:nc] + f_trans @ Wg1[nc:nc+D]
    gh = jnp.maximum(_mm(f_cnn, g1w[0:nc, :]) + _mm(f_trans, g1w[nc:nc + D, :])
                     + g1b_ref[...], 0.0)
    gate = jax.nn.sigmoid(_mm(gh, g2w_ref[...]) + g2b_ref[...])
    out_ref[...] = gate * log_cnn + (1.0 - gate) * log_trans
    gate_ref[...] = gate


# ----------------------------------------------------------------------------
# Wrapper: one pallas_call for the whole forward, grid over batch tiles
# ----------------------------------------------------------------------------
_WEIGHT_KEYS = (
    "conv1_w", "conv1_b", "conv2_w", "conv2_b",
    "proj_w", "proj_b",
    "wqkv", "bqkv", "wo", "bo", "ln1_g", "ln1_b",
    "w1", "b1", "w2", "b2", "ln2_g", "ln2_b",
    "cnn_fc_w", "cnn_fc_b", "trans_fc_w", "trans_fc_b",
    "gate1_w", "gate1_b", "gate2_w", "gate2_b",
)


def _const_index_map(rank):
    return lambda b: (0,) * rank


def _pick_bt(B, S):
    """Batch tile so the flattened matmul M-dim (Bt*S) targets ~256 rows (v6e/v7x MXU fill);
    Bt must equal B or be a multiple of 8 (block-shape constraint on the 2D outputs)."""
    target = max(1, 256 // max(S, 1))
    if B <= target:
        return B
    for bt in range(min(B, target), 0, -1):
        if B % bt == 0 and bt % 8 == 0:
            return bt
    return B


def hybrid_gated_net(params, x, *, nhead=4, num_classes=3):
    B, S, Cin = x.shape
    n_layers = params["wqkv"].shape[0]
    cpad = params["cnn_fc_w"].shape[1]
    Bt = _pick_bt(B, S)
    nb = B // Bt

    # TODO(synk): 2-row zero halo for the convs (tiny host-side pad; reused as transformer input).
    xp = jnp.pad(x, ((0, 0), (2, 2), (0, 0)))

    weights = [params[k] for k in _WEIGHT_KEYS]
    in_specs = [pl.BlockSpec((Bt, S + 4, Cin), lambda b: (b, 0, 0))]
    in_specs += [pl.BlockSpec(w.shape, _const_index_map(w.ndim)) for w in weights]
    out_specs = (pl.BlockSpec((Bt, cpad), lambda b: (b, 0)),
                 pl.BlockSpec((Bt, cpad), lambda b: (b, 0)))
    out_shape = (jax.ShapeDtypeStruct((B, cpad), jnp.float32),
                 jax.ShapeDtypeStruct((B, cpad), jnp.float32))

    out_p, gate_p = pl.pallas_call(
        functools.partial(_fused_kernel, nhead=nhead, n_layers=n_layers, eps=1e-5),
        grid=(nb,),
        in_specs=in_specs,
        out_specs=out_specs,
        out_shape=out_shape,
        compiler_params=_GRID_PARAMS,
    )(xp, *weights)
    return out_p[:, :num_classes], gate_p[:, :num_classes]


# ----------------------------------------------------------------------------
# Parameters: raw (x @ W convention) init + one-time host-side conversion to kernel layout
# ----------------------------------------------------------------------------
def init_params(key, in_features, num_classes, d_model=64, nhead=4, d_ff=2048, n_layers=2):
    keys = iter(jax.random.split(key, 64))

    def w(shape, scale=0.05):
        return scale * jax.random.normal(next(keys), shape, jnp.float32)

    p = {}
    p["conv1_w"], p["conv1_b"] = w((64, in_features, 3)), w((64,))
    p["conv2_w"], p["conv2_b"] = w((128, 64, 3)), w((128,))
    p["cnn_fc_w"], p["cnn_fc_b"] = w((128, num_classes)), w((num_classes,))
    p["proj_w"], p["proj_b"] = w((in_features, d_model)), w((d_model,))
    p["layers"] = []
    for _ in range(n_layers):
        p["layers"].append(dict(
            in_proj_w=w((d_model, 3 * d_model)), in_proj_b=w((3 * d_model,)),
            out_proj_w=w((d_model, d_model)), out_proj_b=w((d_model,)),
            lin1_w=w((d_model, d_ff)), lin1_b=w((d_ff,)),
            lin2_w=w((d_ff, d_model)), lin2_b=w((d_model,)),
            ln1_g=jnp.ones((d_model,), jnp.float32), ln1_b=jnp.zeros((d_model,), jnp.float32),
            ln2_g=jnp.ones((d_model,), jnp.float32), ln2_b=jnp.zeros((d_model,), jnp.float32),
        ))
    p["trans_fc_w"], p["trans_fc_b"] = w((d_model, num_classes)), w((num_classes,))
    p["gate1_w"], p["gate1_b"] = w((128 + d_model, 64)), w((64,))
    p["gate2_w"], p["gate2_b"] = w((64, num_classes)), w((num_classes,))
    return p


def prepare_params(raw, *, nhead=4, num_classes=3):
    """One-time conversion: conv taps stacked (3,Cin,Cout), per-layer weights stacked on a
    leading layer axis, softmax scale folded into q, bf16 matmul weights, (1,N)/(L,1,N) f32
    biases, class dims padded to a full 128-lane block."""
    cpad = ((num_classes + _LANE - 1) // _LANE) * _LANE
    d_model = raw["proj_w"].shape[1]

    def as_bias(b):
        return b.reshape(1, -1).astype(jnp.float32)

    def pad_cols(w_mat, b_vec):
        k, c = w_mat.shape
        wp = jnp.zeros((k, cpad), jnp.float32).at[:, :c].set(w_mat)
        bp = jnp.zeros((cpad,), jnp.float32).at[:c].set(b_vec)
        return wp.astype(_MXU_DTYPE), bp.reshape(1, -1)

    p = {}
    p["conv1_w"] = jnp.transpose(raw["conv1_w"], (2, 1, 0)).astype(_MXU_DTYPE)   # (3, Cin, 64)
    p["conv1_b"] = as_bias(raw["conv1_b"])
    p["conv2_w"] = jnp.transpose(raw["conv2_w"], (2, 1, 0)).astype(_MXU_DTYPE)   # (3, 64, 128)
    p["conv2_b"] = as_bias(raw["conv2_b"])
    p["proj_w"] = raw["proj_w"].astype(_MXU_DTYPE)
    p["proj_b"] = as_bias(raw["proj_b"])
    p["cnn_fc_w"], p["cnn_fc_b"] = pad_cols(raw["cnn_fc_w"], raw["cnn_fc_b"])
    p["trans_fc_w"], p["trans_fc_b"] = pad_cols(raw["trans_fc_w"], raw["trans_fc_b"])
    p["gate1_w"] = raw["gate1_w"].astype(_MXU_DTYPE)
    p["gate1_b"] = as_bias(raw["gate1_b"])
    p["gate2_w"], p["gate2_b"] = pad_cols(raw["gate2_w"], raw["gate2_b"])

    scale = 1.0 / math.sqrt(d_model // nhead)
    qscale = jnp.concatenate([jnp.full((d_model,), scale, jnp.float32),
                              jnp.ones((2 * d_model,), jnp.float32)])

    def stack(fn, dtype):
        return jnp.stack([fn(lp) for lp in raw["layers"]]).astype(dtype)

    p["wqkv"] = stack(lambda lp: lp["in_proj_w"] * qscale[None, :], _MXU_DTYPE)
    p["bqkv"] = stack(lambda lp: (lp["in_proj_b"] * qscale).reshape(1, -1), jnp.float32)
    p["wo"] = stack(lambda lp: lp["out_proj_w"], _MXU_DTYPE)
    p["bo"] = stack(lambda lp: lp["out_proj_b"].reshape(1, -1), jnp.float32)
    p["ln1_g"] = stack(lambda lp: lp["ln1_g"].reshape(1, -1), jnp.float32)
    p["ln1_b"] = stack(lambda lp: lp["ln1_b"].reshape(1, -1), jnp.float32)
    p["w1"] = stack(lambda lp: lp["lin1_w"], _MXU_DTYPE)
    p["b1"] = stack(lambda lp: lp["lin1_b"].reshape(1, -1), jnp.float32)
    p["w2"] = stack(lambda lp: lp["lin2_w"], _MXU_DTYPE)
    p["b2"] = stack(lambda lp: lp["lin2_b"].reshape(1, -1), jnp.float32)
    p["ln2_g"] = stack(lambda lp: lp["ln2_g"].reshape(1, -1), jnp.float32)
    p["ln2_b"] = stack(lambda lp: lp["ln2_b"].reshape(1, -1), jnp.float32)
    return p


if __name__ == "__main__":
    key = jax.random.PRNGKey(0)
    pkey, xkey = jax.random.split(key)

    B, S, IN_FEATURES, NUM_CLASSES = 2, 8, 4, 3
    D_MODEL, NHEAD = 64, 4

    raw = init_params(pkey, IN_FEATURES, NUM_CLASSES, d_model=D_MODEL, nhead=NHEAD)
    params = prepare_params(raw, nhead=NHEAD, num_classes=NUM_CLASSES)
    x_seq = jax.random.normal(xkey, (B, S, IN_FEATURES), jnp.float32)

    forward = jax.jit(functools.partial(hybrid_gated_net, nhead=NHEAD, num_classes=NUM_CLASSES))
    out, gate = forward(params, x_seq)
    jax.block_until_ready((out, gate))
    assert out.shape == (B, NUM_CLASSES) and gate.shape == (B, NUM_CLASSES)
    print("KERNEL_OK")
</pallas_src>

<mosaic_0001>
module attributes {stable_mosaic.version = 11 : i64} {
  func.func @_fused_kernel(%arg0: i32, %arg1: memref<2x12x4xf32, #tpu.memory_space<vmem>>, %arg2: memref<3x4x64xbf16, #tpu.memory_space<vmem>>, %arg3: memref<1x64xf32, #tpu.memory_space<vmem>>, %arg4: memref<3x64x128xbf16, #tpu.memory_space<vmem>>, %arg5: memref<1x128xf32, #tpu.memory_space<vmem>>, %arg6: memref<4x64xbf16, #tpu.memory_space<vmem>>, %arg7: memref<1x64xf32, #tpu.memory_space<vmem>>, %arg8: memref<2x64x192xbf16, #tpu.memory_space<vmem>>, %arg9: memref<2x1x192xf32, #tpu.memory_space<vmem>>, %arg10: memref<2x64x64xbf16, #tpu.memory_space<vmem>>, %arg11: memref<2x1x64xf32, #tpu.memory_space<vmem>>, %arg12: memref<2x1x64xf32, #tpu.memory_space<vmem>>, %arg13: memref<2x1x64xf32, #tpu.memory_space<vmem>>, %arg14: memref<2x64x2048xbf16, #tpu.memory_space<vmem>>, %arg15: memref<2x1x2048xf32, #tpu.memory_space<vmem>>, %arg16: memref<2x2048x64xbf16, #tpu.memory_space<vmem>>, %arg17: memref<2x1x64xf32, #tpu.memory_space<vmem>>, %arg18: memref<2x1x64xf32, #tpu.memory_space<vmem>>, %arg19: memref<2x1x64xf32, #tpu.memory_space<vmem>>, %arg20: memref<128x128xbf16, #tpu.memory_space<vmem>>, %arg21: memref<1x128xf32, #tpu.memory_space<vmem>>, %arg22: memref<64x128xbf16, #tpu.memory_space<vmem>>, %arg23: memref<1x128xf32, #tpu.memory_space<vmem>>, %arg24: memref<192x64xbf16, #tpu.memory_space<vmem>>, %arg25: memref<1x64xf32, #tpu.memory_space<vmem>>, %arg26: memref<64x128xbf16, #tpu.memory_space<vmem>>, %arg27: memref<1x128xf32, #tpu.memory_space<vmem>>, %arg28: memref<2x128xf32, #tpu.memory_space<vmem>>, %arg29: memref<2x128xf32, #tpu.memory_space<vmem>>) attributes {dimension_semantics = [#tpu.dimension_semantics<parallel>], iteration_bounds = array<i64: 1>, scalar_prefetch = 0 : i64, scratch_operands = 0 : i64, tpu.core_type = #tpu.core_type<tc>, window_params = [{transform_indices = @transform_0, window_bounds = array<i64: 2, 12, 4>}, {pipeline_mode = #tpu.pipeline_mode<synchronous>, transform_indices = @transform_1, window_bounds = array<i64: 3, 4, 64>}, {pipeline_mode = #tpu.pipeline_mode<synchronous>, transform_indices = @transform_2, window_bounds = array<i64: 1, 64>}, {pipeline_mode = #tpu.pipeline_mode<synchronous>, transform_indices = @transform_3, window_bounds = array<i64: 3, 64, 128>}, {pipeline_mode = #tpu.pipeline_mode<synchronous>, transform_indices = @transform_4, window_bounds = array<i64: 1, 128>}, {pipeline_mode = #tpu.pipeline_mode<synchronous>, transform_indices = @transform_5, window_bounds = array<i64: 4, 64>}, {pipeline_mode = #tpu.pipeline_mode<synchronous>, transform_indices = @transform_6, window_bounds = array<i64: 1, 64>}, {pipeline_mode = #tpu.pipeline_mode<synchronous>, transform_indices = @transform_7, window_bounds = array<i64: 2, 64, 192>}, {pipeline_mode = #tpu.pipeline_mode<synchronous>, transform_indices = @transform_8, window_bounds = array<i64: 2, 1, 192>}, {pipeline_mode = #tpu.pipeline_mode<synchronous>, transform_indices = @transform_9, window_bounds = array<i64: 2, 64, 64>}, {pipeline_mode = #tpu.pipeline_mode<synchronous>, transform_indices = @transform_10, window_bounds = array<i64: 2, 1, 64>}, {pipeline_mode = #tpu.pipeline_mode<synchronous>, transform_indices = @transform_11, window_bounds = array<i64: 2, 1, 64>}, {pipeline_mode = #tpu.pipeline_mode<synchronous>, transform_indices = @transform_12, window_bounds = array<i64: 2, 1, 64>}, {pipeline_mode = #tpu.pipeline_mode<synchronous>, transform_indices = @transform_13, window_bounds = array<i64: 2, 64, 2048>}, {pipeline_mode = #tpu.pipeline_mode<synchronous>, transform_indices = @transform_14, window_bounds = array<i64: 2, 1, 2048>}, {pipeline_mode = #tpu.pipeline_mode<synchronous>, transform_indices = @transform_15, window_bounds = array<i64: 2, 2048, 64>}, {pipeline_mode = #tpu.pipeline_mode<synchronous>, transform_indices = @transform_16, window_bounds = array<i64: 2, 1, 64>}, {pipeline_mode = #tpu.pipeline_mode<synchronous>, transform_indices = @transform_17, window_bounds = array<i64: 2, 1, 64>}, {pipeline_mode = #tpu.pipeline_mode<synchronous>, transform_indices = @transform_18, window_bounds = array<i64: 2, 1, 64>}, {pipeline_mode = #tpu.pipeline_mode<synchronous>, transform_indices = @transform_19, window_bounds = array<i64: 128, 128>}, {pipeline_mode = #tpu.pipeline_mode<synchronous>, transform_indices = @transform_20, window_bounds = array<i64: 1, 128>}, {pipeline_mode = #tpu.pipeline_mode<synchronous>, transform_indices = @transform_21, window_bounds = array<i64: 64, 128>}, {pipeline_mode = #tpu.pipeline_mode<synchronous>, transform_indices = @transform_22, window_bounds = array<i64: 1, 128>}, {pipeline_mode = #tpu.pipeline_mode<synchronous>, transform_indices = @transform_23, window_bounds = array<i64: 192, 64>}, {pipeline_mode = #tpu.pipeline_mode<synchronous>, transform_indices = @transform_24, window_bounds = array<i64: 1, 64>}, {pipeline_mode = #tpu.pipeline_mode<synchronous>, transform_indices = @transform_25, window_bounds = array<i64: 64, 128>}, {pipeline_mode = #tpu.pipeline_mode<synchronous>, transform_indices = @transform_26, window_bounds = array<i64: 1, 128>}, {transform_indices = @transform_27, window_bounds = array<i64: 2, 128>}, {transform_indices = @transform_28, window_bounds = array<i64: 2, 128>}]} {
    %c0 = arith.constant 0 : index
    %c0_0 = arith.constant 0 : index
    %c0_1 = arith.constant 0 : index
    %0 = vector.load %arg1[%c0, %c0_0, %c0_1] : memref<2x12x4xf32, #tpu.memory_space<vmem>>, vector<2x12x4xf32>
    %1 = vector.extract_strided_slice %0 {offsets = [0, 0, 0], sizes = [2, 10, 4], strides = [1, 1, 1]} : vector<2x12x4xf32> to vector<2x10x4xf32>
    %2 = vector.shape_cast %1 : vector<2x10x4xf32> to vector<20x4xf32>
    %c0_2 = arith.constant 0 : index
    %c0_3 = arith.constant 0 : index
    %c0_4 = arith.constant 0 : index
    %3 = vector.load %arg2[%c0_2, %c0_3, %c0_4] : memref<3x4x64xbf16, #tpu.memory_space<vmem>>, vector<1x4x64xbf16>
    %4 = vector.shape_cast %3 : vector<1x4x64xbf16> to vector<4x64xbf16>
    %5 = arith.truncf %2 : vector<20x4xf32> to vector<20x4xbf16>
    %cst = arith.constant dense<0.000000e+00> : vector<20x64xf32>
    %6 = tpu.matmul %5, %4, %cst {dimension_numbers = #tpu.dot_dimension_numbers<[1], [0], [0], [1], [0, 0, 1, 1], [], []>} : vector<20x4xbf16>, vector<4x64xbf16>, vector<20x64xf32> -> vector<20x64xf32>
    %7 = vector.extract_strided_slice %0 {offsets = [0, 1, 0], sizes = [2, 10, 4], strides = [1, 1, 1]} : vector<2x12x4xf32> to vector<2x10x4xf32>
    %8 = vector.shape_cast %7 : vector<2x10x4xf32> to vector<20x4xf32>
    %c1 = arith.constant 1 : index
    %c0_5 = arith.constant 0 : index
    %c0_6 = arith.constant 0 : index
    %9 = vector.load %arg2[%c1, %c0_5, %c0_6] : memref<3x4x64xbf16, #tpu.memory_space<vmem>>, vector<1x4x64xbf16>
    %10 = vector.shape_cast %9 : vector<1x4x64xbf16> to vector<4x64xbf16>
    %11 = arith.truncf %8 : vector<20x4xf32> to vector<20x4xbf16>
    %cst_7 = arith.constant dense<0.000000e+00> : vector<20x64xf32>
    %12 = tpu.matmul %11, %10, %cst_7 {dimension_numbers = #tpu.dot_dimension_numbers<[1], [0], [0], [1], [0, 0, 1, 1], [], []>} : vector<20x4xbf16>, vector<4x64xbf16>, vector<20x64xf32> -> vector<20x64xf32>
    %13 = arith.addf %6, %12 : vector<20x64xf32>
    %14 = vector.extract_strided_slice %0 {offsets = [0, 2, 0], sizes = [2, 10, 4], strides = [1, 1, 1]} : vector<2x12x4xf32> to vector<2x10x4xf32>
    %15 = vector.shape_cast %14 : vector<2x10x4xf32> to vector<20x4xf32>
    %c2 = arith.constant 2 : index
    %c0_8 = arith.constant 0 : index
    %c0_9 = arith.constant 0 : index
    %16 = vector.load %arg2[%c2, %c0_8, %c0_9] : memref<3x4x64xbf16, #tpu.memory_space<vmem>>, vector<1x4x64xbf16>
    %17 = vector.shape_cast %16 : vector<1x4x64xbf16> to vector<4x64xbf16>
    %18 = arith.truncf %15 : vector<20x4xf32> to vector<20x4xbf16>
    %cst_10 = arith.constant dense<0.000000e+00> : vector<20x64xf32>
    %19 = tpu.matmul %18, %17, %cst_10 {dimension_numbers = #tpu.dot_dimension_numbers<[1], [0], [0], [1], [0, 0, 1, 1], [], []>} : vector<20x4xbf16>, vector<4x64xbf16>, vector<20x64xf32> -> vector<20x64xf32>
    %20 = arith.addf %13, %19 : vector<20x64xf32>
    %c0_11 = arith.constant 0 : index
    %c0_12 = arith.constant 0 : index
    %21 = vector.load %arg3[%c0_11, %c0_12] : memref<1x64xf32, #tpu.memory_space<vmem>>, vector<1x64xf32>
    %22 = vector.broadcast %21 : vector<1x64xf32> to vector<20x64xf32>
    %23 = arith.addf %20, %22 : vector<20x64xf32>
    %cst_13 = arith.constant 0.000000e+00 : f32
    %24 = vector.broadcast %cst_13 : f32 to vector<20x64xf32>
    %25 = arith.maximumf %23, %24 : vector<20x64xf32>
    %26 = vector.shape_cast %25 : vector<20x64xf32> to vector<2x10x64xf32>
    %27 = tpu.iota {dimensions = array<i32: 1>} : vector<2x10x1xi32>
    %c0_i32 = arith.constant 0 : i32
    %28 = vector.broadcast %c0_i32 : i32 to vector<2x10x1xi32>
    %29 = arith.cmpi eq, %27, %28 : vector<2x10x1xi32>
    %c9_i32 = arith.constant 9 : i32
    %30 = vector.broadcast %c9_i32 : i32 to vector<2x10x1xi32>
    %31 = arith.cmpi eq, %27, %30 : vector<2x10x1xi32>
    %32 = arith.ori %29, %31 : vector<2x10x1xi1>
    %cst_14 = arith.constant 0.000000e+00 : f32
    %33 = vector.shape_cast %32 : vector<2x10x1xi1> to vector<2x10x1xi1>
    %34 = vector.broadcast %33 : vector<2x10x1xi1> to vector<2x10x64xi1>
    %35 = vector.broadcast %cst_14 : f32 to vector<2x10x64xf32>
    %36 = arith.select %34, %35, %26 : vector<2x10x64xi1>, vector<2x10x64xf32>
    %37 = vector.extract_strided_slice %36 {offsets = [0, 0, 0], sizes = [2, 8, 64], strides = [1, 1, 1]} : vector<2x10x64xf32> to vector<2x8x64xf32>
    %38 = vector.shape_cast %37 : vector<2x8x64xf32> to vector<16x64xf32>
    %c0_15 = arith.constant 0 : index
    %c0_16 = arith.constant 0 : index
    %c0_17 = arith.constant 0 : index
    %39 = vector.load %arg4[%c0_15, %c0_16, %c0_17] : memref<3x64x128xbf16, #tpu.memory_space<vmem>>, vector<1x64x128xbf16>
    %40 = vector.shape_cast %39 : vector<1x64x128xbf16> to vector<64x128xbf16>
    %41 = arith.truncf %38 : vector<16x64xf32> to vector<16x64xbf16>
    %cst_18 = arith.constant dense<0.000000e+00> : vector<16x128xf32>
    %42 = tpu.matmul %41, %40, %cst_18 {dimension_numbers = #tpu.dot_dimension_numbers<[1], [0], [0], [1], [0, 0, 1, 1], [], []>} : vector<16x64xbf16>, vector<64x128xbf16>, vector<16x128xf32> -> vector<16x128xf32>
    %43 = vector.extract_strided_slice %36 {offsets = [0, 1, 0], sizes = [2, 8, 64], strides = [1, 1, 1]} : vector<2x10x64xf32> to vector<2x8x64xf32>
    %44 = vector.shape_cast %43 : vector<2x8x64xf32> to vector<16x64xf32>
    %c1_19 = arith.constant 1 : index
    %c0_20 = arith.constant 0 : index
    %c0_21 = arith.constant 0 : index
    %45 = vector.load %arg4[%c1_19, %c0_20, %c0_21] : memref<3x64x128xbf16, #tpu.memory_space<vmem>>, vector<1x64x128xbf16>
    %46 = vector.shape_cast %45 : vector<1x64x128xbf16> to vector<64x128xbf16>
    %47 = arith.truncf %44 : vector<16x64xf32> to vector<16x64xbf16>
    %cst_22 = arith.constant dense<0.000000e+00> : vector<16x128xf32>
    %48 = tpu.matmul %47, %46, %cst_22 {dimension_numbers = #tpu.dot_dimension_numbers<[1], [0], [0], [1], [0, 0, 1, 1], [], []>} : vector<16x64xbf16>, vector<64x128xbf16>, vector<16x128xf32> -> vector<16x128xf32>
    %49 = arith.addf %42, %48 : vector<16x128xf32>
    %50 = vector.extract_strided_slice %36 {offsets = [0, 2, 0], sizes = [2, 8, 64], strides = [1, 1, 1]} : vector<2x10x64xf32> to vector<2x8x64xf32>
    %51 = vector.shape_cast %50 : vector<2x8x64xf32> to vector<16x64xf32>
    %c2_23 = arith.constant 2 : index
    %c0_24 = arith.constant 0 : index
    %c0_25 = arith.constant 0 : index
    %52 = vector.load %arg4[%c2_23, %c0_24, %c0_25] : memref<3x64x128xbf16, #tpu.memory_space<vmem>>, vector<1x64x128xbf16>
    %53 = vector.shape_cast %52 : vector<1x64x128xbf16> to vector<64x128xbf16>
    %54 = arith.truncf %51 : vector<16x64xf32> to vector<16x64xbf16>
    %cst_26 = arith.constant dense<0.000000e+00> : vector<16x128xf32>
    %55 = tpu.matmul %54, %53, %cst_26 {dimension_numbers = #tpu.dot_dimension_numbers<[1], [0], [0], [1], [0, 0, 1, 1], [], []>} : vector<16x64xbf16>, vector<64x128xbf16>, vector<16x128xf32> -> vector<16x128xf32>
    %56 = arith.addf %49, %55 : vector<16x128xf32>
    %c0_27 = arith.constant 0 : index
    %c0_28 = arith.constant 0 : index
    %57 = vector.load %arg5[%c0_27, %c0_28] : memref<1x128xf32, #tpu.memory_space<vmem>>, vector<1x128xf32>
    %58 = vector.broadcast %57 : vector<1x128xf32> to vector<16x128xf32>
    %59 = arith.addf %56, %58 : vector<16x128xf32>
    %cst_29 = arith.constant 0.000000e+00 : f32
    %60 = vector.broadcast %cst_29 : f32 to vector<16x128xf32>
    %61 = arith.maximumf %59, %60 : vector<16x128xf32>
    %62 = vector.shape_cast %61 : vector<16x128xf32> to vector<2x8x128xf32>
    %cst_30 = arith.constant dense<0.000000e+00> : vector<2x128xf32>
    %63 = vector.multi_reduction <add>, %62, %cst_30 [1] : vector<2x8x128xf32> to vector<2x128xf32>
    %cst_31 = arith.constant 8.000000e+00 : f32
    %64 = vector.broadcast %cst_31 : f32 to vector<2x128xf32>
    %65 = arith.divf %63, %64 : vector<2x128xf32>
    %66 = vector.extract_strided_slice %0 {offsets = [0, 2, 0], sizes = [2, 8, 4], strides = [1, 1, 1]} : vector<2x12x4xf32> to vector<2x8x4xf32>
    %67 = vector.shape_cast %66 : vector<2x8x4xf32> to vector<16x4xf32>
    %c0_32 = arith.constant 0 : index
    %c0_33 = arith.constant 0 : index
    %68 = vector.load %arg6[%c0_32, %c0_33] : memref<4x64xbf16, #tpu.memory_space<vmem>>, vector<4x64xbf16>
    %69 = arith.truncf %67 : vector<16x4xf32> to vector<16x4xbf16>
    %cst_34 = arith.constant dense<0.000000e+00> : vector<16x64xf32>
    %70 = tpu.matmul %69, %68, %cst_34 {dimension_numbers = #tpu.dot_dimension_numbers<[1], [0], [0], [1], [0, 0, 1, 1], [], []>} : vector<16x4xbf16>, vector<4x64xbf16>, vector<16x64xf32> -> vector<16x64xf32>
    %c0_35 = arith.constant 0 : index
    %c0_36 = arith.constant 0 : index
    %71 = vector.load %arg7[%c0_35, %c0_36] : memref<1x64xf32, #tpu.memory_space<vmem>>, vector<1x64xf32>
    %72 = vector.broadcast %71 : vector<1x64xf32> to vector<16x64xf32>
    %73 = arith.addf %70, %72 : vector<16x64xf32>
    %c0_37 = arith.constant 0 : index
    %c0_38 = arith.constant 0 : index
    %c0_39 = arith.constant 0 : index
    %74 = vector.load %arg8[%c0_37, %c0_38, %c0_39] : memref<2x64x192xbf16, #tpu.memory_space<vmem>>, vector<1x64x192xbf16>
    %75 = vector.shape_cast %74 : vector<1x64x192xbf16> to vector<64x192xbf16>
    %76 = arith.truncf %73 : vector<16x64xf32> to vector<16x64xbf16>
    %cst_40 = arith.constant dense<0.000000e+00> : vector<16x192xf32>
    %77 = tpu.matmul %76, %75, %cst_40 {dimension_numbers = #tpu.dot_dimension_numbers<[1], [0], [0], [1], [0, 0, 1, 1], [], []>} : vector<16x64xbf16>, vector<64x192xbf16>, vector<16x192xf32> -> vector<16x192xf32>
    %c0_41 = arith.constant 0 : index
    %c0_42 = arith.constant 0 : index
    %c0_43 = arith.constant 0 : index
    %78 = vector.load %arg9[%c0_41, %c0_42, %c0_43] : memref<2x1x192xf32, #tpu.memory_space<vmem>>, vector<1x1x192xf32>
    %79 = vector.shape_cast %78 : vector<1x1x192xf32> to vector<1x192xf32>
    %80 = vector.broadcast %79 : vector<1x192xf32> to vector<16x192xf32>
    %81 = arith.addf %77, %80 : vector<16x192xf32>
    %c0_44 = arith.constant 0 : index
    %c0_45 = arith.constant 0 : index
    %c0_46 = arith.constant 0 : index
    %82 = vector.load %arg10[%c0_44, %c0_45, %c0_46] : memref<2x64x64xbf16, #tpu.memory_space<vmem>>, vector<1x64x64xbf16>
    %83 = vector.shape_cast %82 : vector<1x64x64xbf16> to vector<64x64xbf16>
    %c0_47 = arith.constant 0 : index
    %c0_48 = arith.constant 0 : index
    %c0_49 = arith.constant 0 : index
    %84 = vector.load %arg11[%c0_47, %c0_48, %c0_49] : memref<2x1x64xf32, #tpu.memory_space<vmem>>, vector<1x1x64xf32>
    %85 = vector.shape_cast %84 : vector<1x1x64xf32> to vector<1x64xf32>
    %86 = vector.extract_strided_slice %81 {offsets = [0, 0], sizes = [16, 16], strides = [1, 1]} : vector<16x192xf32> to vector<16x16xf32>
    %87 = vector.shape_cast %86 : vector<16x16xf32> to vector<2x8x16xf32>
    %88 = arith.truncf %87 : vector<2x8x16xf32> to vector<2x8x16xbf16>
    %89 = vector.extract_strided_slice %81 {offsets = [0, 64], sizes = [16, 16], strides = [1, 1]} : vector<16x192xf32> to vector<16x16xf32>
    %90 = vector.shape_cast %89 : vector<16x16xf32> to vector<2x8x16xf32>
    %91 = arith.truncf %90 : vector<2x8x16xf32> to vector<2x8x16xbf16>
    %92 = vector.extract_strided_slice %81 {offsets = [0, 128], sizes = [16, 16], strides = [1, 1]} : vector<16x192xf32> to vector<16x16xf32>
    %93 = vector.shape_cast %92 : vector<16x16xf32> to vector<2x8x16xf32>
    %94 = arith.truncf %93 : vector<2x8x16xf32> to vector<2x8x16xbf16>
    "tpu.trace_start"() <{level = 10 : i32, message = "bqd,bkd->bqk"}> : () -> ()
    %cst_50 = arith.constant dense<0.000000e+00> : vector<2x8x8xf32>
    %95 = tpu.matmul %88, %91, %cst_50 {dimension_numbers = #tpu.dot_dimension_numbers<[2], [2], [1], [1], [0, 0, 0, 1, 1, 1], [0], [0]>} : vector<2x8x16xbf16>, vector<2x8x16xbf16>, vector<2x8x8xf32> -> vector<2x8x8xf32>
    "tpu.trace_stop"() : () -> ()
    %cst_51 = arith.constant dense<0xFF800000> : vector<2x8xf32>
    %96 = vector.multi_reduction <maximumf>, %95, %cst_51 [2] : vector<2x8x8xf32> to vector<2x8xf32>
    %97 = vector.shape_cast %96 : vector<2x8xf32> to vector<2x8x1xf32>
    %98 = vector.broadcast %97 : vector<2x8x1xf32> to vector<2x8x8xf32>
    %99 = arith.subf %95, %98 : vector<2x8x8xf32>
    %100 = math.exp %99 : vector<2x8x8xf32>
    %cst_52 = arith.constant dense<0.000000e+00> : vector<2x8xf32>
    %101 = vector.multi_reduction <add>, %100, %cst_52 [2] : vector<2x8x8xf32> to vector<2x8xf32>
    %102 = vector.shape_cast %101 : vector<2x8xf32> to vector<2x8x1xf32>
    %103 = vector.broadcast %102 : vector<2x8x1xf32> to vector<2x8x8xf32>
    %104 = arith.divf %100, %103 : vector<2x8x8xf32>
    %105 = arith.truncf %104 : vector<2x8x8xf32> to vector<2x8x8xbf16>
    "tpu.trace_start"() <{level = 10 : i32, message = "bqk,bkd->bqd"}> : () -> ()
    %cst_53 = arith.constant dense<0.000000e+00> : vector<2x8x16xf32>
    %106 = tpu.matmul %105, %94, %cst_53 {dimension_numbers = #tpu.dot_dimension_numbers<[2], [1], [1], [2], [0, 0, 0, 1, 1, 2], [0], [0]>} : vector<2x8x8xbf16>, vector<2x8x16xbf16>, vector<2x8x16xf32> -> vector<2x8x16xf32>
    "tpu.trace_stop"() : () -> ()
    %107 = vector.shape_cast %106 : vector<2x8x16xf32> to vector<16x16xf32>
    %108 = vector.extract_strided_slice %83 {offsets = [0, 0], sizes = [16, 64], strides = [1, 1]} : vector<64x64xbf16> to vector<16x64xbf16>
    %109 = arith.truncf %107 : vector<16x16xf32> to vector<16x16xbf16>
    %cst_54 = arith.constant dense<0.000000e+00> : vector<16x64xf32>
    %110 = tpu.matmul %109, %108, %cst_54 {dimension_numbers = #tpu.dot_dimension_numbers<[1], [0], [0], [1], [0, 0, 1, 1], [], []>} : vector<16x16xbf16>, vector<16x64xbf16>, vector<16x64xf32> -> vector<16x64xf32>
    %111 = vector.broadcast %85 : vector<1x64xf32> to vector<16x64xf32>
    %112 = arith.addf %111, %110 : vector<16x64xf32>
    %113 = vector.extract_strided_slice %81 {offsets = [0, 16], sizes = [16, 16], strides = [1, 1]} : vector<16x192xf32> to vector<16x16xf32>
    %114 = vector.shape_cast %113 : vector<16x16xf32> to vector<2x8x16xf32>
    %115 = arith.truncf %114 : vector<2x8x16xf32> to vector<2x8x16xbf16>
    %116 = vector.extract_strided_slice %81 {offsets = [0, 80], sizes = [16, 16], strides = [1, 1]} : vector<16x192xf32> to vector<16x16xf32>
    %117 = vector.shape_cast %116 : vector<16x16xf32> to vector<2x8x16xf32>
    %118 = arith.truncf %117 : vector<2x8x16xf32> to vector<2x8x16xbf16>
    %119 = vector.extract_strided_slice %81 {offsets = [0, 144], sizes = [16, 16], strides = [1, 1]} : vector<16x192xf32> to vector<16x16xf32>
    %120 = vector.shape_cast %119 : vector<16x16xf32> to vector<2x8x16xf32>
    %121 = arith.truncf %120 : vector<2x8x16xf32> to vector<2x8x16xbf16>
    "tpu.trace_start"() <{level = 10 : i32, message = "bqd,bkd->bqk"}> : () -> ()
    %cst_55 = arith.constant dense<0.000000e+00> : vector<2x8x8xf32>
    %122 = tpu.matmul %115, %118, %cst_55 {dimension_numbers = #tpu.dot_dimension_numbers<[2], [2], [1], [1], [0, 0, 0, 1, 1, 1], [0], [0]>} : vector<2x8x16xbf16>, vector<2x8x16xbf16>, vector<2x8x8xf32> -> vector<2x8x8xf32>
    "tpu.trace_stop"() : () -> ()
    %cst_56 = arith.constant dense<0xFF800000> : vector<2x8xf32>
    %123 = vector.multi_reduction <maximumf>, %122, %cst_56 [2] : vector<2x8x8xf32> to vector<2x8xf32>
    %124 = vector.shape_cast %123 : vector<2x8xf32> to vector<2x8x1xf32>
    %125 = vector.broadcast %124 : vector<2x8x1xf32> to vector<2x8x8xf32>
    %126 = arith.subf %122, %125 : vector<2x8x8xf32>
    %127 = math.exp %126 : vector<2x8x8xf32>
    %cst_57 = arith.constant dense<0.000000e+00> : vector<2x8xf32>
    %128 = vector.multi_reduction <add>, %127, %cst_57 [2] : vector<2x8x8xf32> to vector<2x8xf32>
    %129 = vector.shape_cast %128 : vector<2x8xf32> to vector<2x8x1xf32>
    %130 = vector.broadcast %129 : vector<2x8x1xf32> to vector<2x8x8xf32>
    %131 = arith.divf %127, %130 : vector<2x8x8xf32>
    %132 = arith.truncf %131 : vector<2x8x8xf32> to vector<2x8x8xbf16>
    "tpu.trace_start"() <{level = 10 : i32, message = "bqk,bkd->bqd"}> : () -> ()
    %cst_58 = arith.constant dense<0.000000e+00> : vector<2x8x16xf32>
    %133 = tpu.matmul %132, %121, %cst_58 {dimension_numbers = #tpu.dot_dimension_numbers<[2], [1], [1], [2], [0, 0, 0, 1, 1, 2], [0], [0]>} : vector<2x8x8xbf16>, vector<2x8x16xbf16>, vector<2x8x16xf32> -> vector<2x8x16xf32>
    "tpu.trace_stop"() : () -> ()
    %134 = vector.shape_cast %133 : vector<2x8x16xf32> to vector<16x16xf32>
    %135 = vector.extract_strided_slice %83 {offsets = [16, 0], sizes = [16, 64], strides = [1, 1]} : vector<64x64xbf16> to vector<16x64xbf16>
    %136 = arith.truncf %134 : vector<16x16xf32> to vector<16x16xbf16>
    %cst_59 = arith.constant dense<0.000000e+00> : vector<16x64xf32>
    %137 = tpu.matmul %136, %135, %cst_59 {dimension_numbers = #tpu.dot_dimension_numbers<[1], [0], [0], [1], [0, 0, 1, 1], [], []>} : vector<16x16xbf16>, vector<16x64xbf16>, vector<16x64xf32> -> vector<16x64xf32>
    %138 = arith.addf %112, %137 : vector<16x64xf32>
    %139 = vector.extract_strided_slice %81 {offsets = [0, 32], sizes = [16, 16], strides = [1, 1]} : vector<16x192xf32> to vector<16x16xf32>
    %140 = vector.shape_cast %139 : vector<16x16xf32> to vector<2x8x16xf32>
    %141 = arith.truncf %140 : vector<2x8x16xf32> to vector<2x8x16xbf16>
    %142 = vector.extract_strided_slice %81 {offsets = [0, 96], sizes = [16, 16], strides = [1, 1]} : vector<16x192xf32> to vector<16x16xf32>
    %143 = vector.shape_cast %142 : vector<16x16xf32> to vector<2x8x16xf32>
    %144 = arith.truncf %143 : vector<2x8x16xf32> to vector<2x8x16xbf16>
    %145 = vector.extract_strided_slice %81 {offsets = [0, 160], sizes = [16, 16], strides = [1, 1]} : vector<16x192xf32> to vector<16x16xf32>
    %146 = vector.shape_cast %145 : vector<16x16xf32> to vector<2x8x16xf32>
    %147 = arith.truncf %146 : vector<2x8x16xf32> to vector<2x8x16xbf16>
    "tpu.trace_start"() <{level = 10 : i32, message = "bqd,bkd->bqk"}> : () -> ()
    %cst_60 = arith.constant dense<0.000000e+00> : vector<2x8x8xf32>
    %148 = tpu.matmul %141, %144, %cst_60 {dimension_numbers = #tpu.dot_dimension_numbers<[2], [2], [1], [1], [0, 0, 0, 1, 1, 1], [0], [0]>} : vector<2x8x16xbf16>, vector<2x8x16xbf16>, vector<2x8x8xf32> -> vector<2x8x8xf32>
    "tpu.trace_stop"() : () -> ()
    %cst_61 = arith.constant dense<0xFF800000> : vector<2x8xf32>
    %149 = vector.multi_reduction <maximumf>, %148, %cst_61 [2] : vector<2x8x8xf32> to vector<2x8xf32>
    %150 = vector.shape_cast %149 : vector<2x8xf32> to vector<2x8x1xf32>
    %151 = vector.broadcast %150 : vector<2x8x1xf32> to vector<2x8x8xf32>
    %152 = arith.subf %148, %151 : vector<2x8x8xf32>
    %153 = math.exp %152 : vector<2x8x8xf32>
    %cst_62 = arith.constant dense<0.000000e+00> : vector<2x8xf32>
    %154 = vector.multi_reduction <add>, %153, %cst_62 [2] : vector<2x8x8xf32> to vector<2x8xf32>
    %155 = vector.shape_cast %154 : vector<2x8xf32> to vector<2x8x1xf32>
    %156 = vector.broadcast %155 : vector<2x8x1xf32> to vector<2x8x8xf32>
    %157 = arith.divf %153, %156 : vector<2x8x8xf32>
    %158 = arith.truncf %157 : vector<2x8x8xf32> to vector<2x8x8xbf16>
    "tpu.trace_start"() <{level = 10 : i32, message = "bqk,bkd->bqd"}> : () -> ()
    %cst_63 = arith.constant dense<0.000000e+00> : vector<2x8x16xf32>
    %159 = tpu.matmul %158, %147, %cst_63 {dimension_numbers = #tpu.dot_dimension_numbers<[2], [1], [1], [2], [0, 0, 0, 1, 1, 2], [0], [0]>} : vector<2x8x8xbf16>, vector<2x8x16xbf16>, vector<2x8x16xf32> -> vector<2x8x16xf32>
    "tpu.trace_stop"() : () -> ()
    %160 = vector.shape_cast %159 : vector<2x8x16xf32> to vector<16x16xf32>
    %161 = vector.extract_strided_slice %83 {offsets = [32, 0], sizes = [16, 64], strides = [1, 1]} : vector<64x64xbf16> to vector<16x64xbf16>
    %162 = arith.truncf %160 : vector<16x16xf32> to vector<16x16xbf16>
    %cst_64 = arith.constant dense<0.000000e+00> : vector<16x64xf32>
    %163 = tpu.matmul %162, %161, %cst_64 {dimension_numbers = #tpu.dot_dimension_numbers<[1], [0], [0], [1], [0, 0, 1, 1], [], []>} : vector<16x16xbf16>, vector<16x64xbf16>, vector<16x64xf32> -> vector<16x64xf32>
    %164 = arith.addf %138, %163 : vector<16x64xf32>
    %165 = vector.extract_strided_slice %81 {offsets = [0, 48], sizes = [16, 16], strides = [1, 1]} : vector<16x192xf32> to vector<16x16xf32>
    %166 = vector.shape_cast %165 : vector<16x16xf32> to vector<2x8x16xf32>
    %167 = arith.truncf %166 : vector<2x8x16xf32> to vector<2x8x16xbf16>
    %168 = vector.extract_strided_slice %81 {offsets = [0, 112], sizes = [16, 16], strides = [1, 1]} : vector<16x192xf32> to vector<16x16xf32>
    %169 = vector.shape_cast %168 : vector<16x16xf32> to vector<2x8x16xf32>
    %170 = arith.truncf %169 : vector<2x8x16xf32> to vector<2x8x16xbf16>
    %171 = vector.extract_strided_slice %81 {offsets = [0, 176], sizes = [16, 16], strides = [1, 1]} : vector<16x192xf32> to vector<16x16xf32>
    %172 = vector.shape_cast %171 : vector<16x16xf32> to vector<2x8x16xf32>
    %173 = arith.truncf %172 : vector<2x8x16xf32> to vector<2x8x16xbf16>
    "tpu.trace_start"() <{level = 10 : i32, message = "bqd,bkd->bqk"}> : () -> ()
    %cst_65 = arith.constant dense<0.000000e+00> : vector<2x8x8xf32>
    %174 = tpu.matmul %167, %170, %cst_65 {dimension_numbers = #tpu.dot_dimension_numbers<[2], [2], [1], [1], [0, 0, 0, 1, 1, 1], [0], [0]>} : vector<2x8x16xbf16>, vector<2x8x16xbf16>, vector<2x8x8xf32> -> vector<2x8x8xf32>
    "tpu.trace_stop"() : () -> ()
    %cst_66 = arith.constant dense<0xFF800000> : vector<2x8xf32>
    %175 = vector.multi_reduction <maximumf>, %174, %cst_66 [2] : vector<2x8x8xf32> to vector<2x8xf32>
    %176 = vector.shape_cast %175 : vector<2x8xf32> to vector<2x8x1xf32>
    %177 = vector.broadcast %176 : vector<2x8x1xf32> to vector<2x8x8xf32>
    %178 = arith.subf %174, %177 : vector<2x8x8xf32>
    %179 = math.exp %178 : vector<2x8x8xf32>
    %cst_67 = arith.constant dense<0.000000e+00> : vector<2x8xf32>
    %180 = vector.multi_reduction <add>, %179, %cst_67 [2] : vector<2x8x8xf32> to vector<2x8xf32>
    %181 = vector.shape_cast %180 : vector<2x8xf32> to vector<2x8x1xf32>
    %182 = vector.broadcast %181 : vector<2x8x1xf32> to vector<2x8x8xf32>
    %183 = arith.divf %179, %182 : vector<2x8x8xf32>
    %184 = arith.truncf %183 : vector<2x8x8xf32> to vector<2x8x8xbf16>
    "tpu.trace_start"() <{level = 10 : i32, message = "bqk,bkd->bqd"}> : () -> ()
    %cst_68 = arith.constant dense<0.000000e+00> : vector<2x8x16xf32>
    %185 = tpu.matmul %184, %173, %cst_68 {dimension_numbers = #tpu.dot_dimension_numbers<[2], [1], [1], [2], [0, 0, 0, 1, 1, 2], [0], [0]>} : vector<2x8x8xbf16>, vector<2x8x16xbf16>, vector<2x8x16xf32> -> vector<2x8x16xf32>
    "tpu.trace_stop"() : () -> ()
    %186 = vector.shape_cast %185 : vector<2x8x16xf32> to vector<16x16xf32>
    %187 = vector.extract_strided_slice %83 {offsets = [48, 0], sizes = [16, 64], strides = [1, 1]} : vector<64x64xbf16> to vector<16x64xbf16>
    %188 = arith.truncf %186 : vector<16x16xf32> to vector<16x16xbf16>
    %cst_69 = arith.constant dense<0.000000e+00> : vector<16x64xf32>
    %189 = tpu.matmul %188, %187, %cst_69 {dimension_numbers = #tpu.dot_dimension_numbers<[1], [0], [0], [1], [0, 0, 1, 1], [], []>} : vector<16x16xbf16>, vector<16x64xbf16>, vector<16x64xf32> -> vector<16x64xf32>
    %190 = arith.addf %164, %189 : vector<16x64xf32>
    %191 = arith.addf %73, %190 : vector<16x64xf32>
    %c0_70 = arith.constant 0 : index
    %c0_71 = arith.constant 0 : index
    %c0_72 = arith.constant 0 : index
    %192 = vector.load %arg12[%c0_70, %c0_71, %c0_72] : memref<2x1x64xf32, #tpu.memory_space<vmem>>, vector<1x1x64xf32>
    %193 = vector.shape_cast %192 : vector<1x1x64xf32> to vector<1x64xf32>
    %c0_73 = arith.constant 0 : index
    %c0_74 = arith.constant 0 : index
    %c0_75 = arith.constant 0 : index
    %194 = vector.load %arg13[%c0_73, %c0_74, %c0_75] : memref<2x1x64xf32, #tpu.memory_space<vmem>>, vector<1x1x64xf32>
    %195 = vector.shape_cast %194 : vector<1x1x64xf32> to vector<1x64xf32>
    %cst_76 = arith.constant dense<0.000000e+00> : vector<16xf32>
    %196 = vector.multi_reduction <add>, %191, %cst_76 [1] : vector<16x64xf32> to vector<16xf32>
    %197 = vector.shape_cast %196 : vector<16xf32> to vector<16x1xf32>
    %cst_77 = arith.constant 6.400000e+01 : f32
    %198 = vector.broadcast %cst_77 : f32 to vector<16x1xf32>
    %199 = arith.divf %197, %198 : vector<16x1xf32>
    %200 = vector.broadcast %199 : vector<16x1xf32> to vector<16x64xf32>
    %201 = arith.subf %191, %200 : vector<16x64xf32>
    %202 = arith.mulf %201, %201 : vector<16x64xf32>
    %cst_78 = arith.constant dense<0.000000e+00> : vector<16xf32>
    %203 = vector.multi_reduction <add>, %202, %cst_78 [1] : vector<16x64xf32> to vector<16xf32>
    %204 = vector.shape_cast %203 : vector<16xf32> to vector<16x1xf32>
    %cst_79 = arith.constant 6.400000e+01 : f32
    %205 = vector.broadcast %cst_79 : f32 to vector<16x1xf32>
    %206 = arith.divf %204, %205 : vector<16x1xf32>
    %207 = vector.broadcast %199 : vector<16x1xf32> to vector<16x64xf32>
    %208 = arith.subf %191, %207 : vector<16x64xf32>
    %cst_80 = arith.constant 9.99999974E-6 : f32
    %209 = vector.broadcast %cst_80 : f32 to vector<16x1xf32>
    %210 = arith.addf %206, %209 : vector<16x1xf32>
    %211 = math.rsqrt %210 : vector<16x1xf32>
    %212 = vector.broadcast %211 : vector<16x1xf32> to vector<16x64xf32>
    %213 = arith.mulf %208, %212 : vector<16x64xf32>
    %214 = vector.broadcast %193 : vector<1x64xf32> to vector<16x64xf32>
    %215 = arith.mulf %213, %214 : vector<16x64xf32>
    %216 = vector.broadcast %195 : vector<1x64xf32> to vector<16x64xf32>
    %217 = arith.addf %215, %216 : vector<16x64xf32>
    %c0_81 = arith.constant 0 : index
    %c0_82 = arith.constant 0 : index
    %c0_83 = arith.constant 0 : index
    %218 = vector.load %arg14[%c0_81, %c0_82, %c0_83] : memref<2x64x2048xbf16, #tpu.memory_space<vmem>>, vector<1x64x2048xbf16>
    %219 = vector.shape_cast %218 : vector<1x64x2048xbf16> to vector<64x2048xbf16>
    %220 = arith.truncf %217 : vector<16x64xf32> to vector<16x64xbf16>
    %cst_84 = arith.constant dense<0.000000e+00> : vector<16x2048xf32>
    %221 = tpu.matmul %220, %219, %cst_84 {dimension_numbers = #tpu.dot_dimension_numbers<[1], [0], [0], [1], [0, 0, 1, 1], [], []>} : vector<16x64xbf16>, vector<64x2048xbf16>, vector<16x2048xf32> -> vector<16x2048xf32>
    %c0_85 = arith.constant 0 : index
    %c0_86 = arith.constant 0 : index
    %c0_87 = arith.constant 0 : index
    %222 = vector.load %arg15[%c0_85, %c0_86, %c0_87] : memref<2x1x2048xf32, #tpu.memory_space<vmem>>, vector<1x1x2048xf32>
    %223 = vector.shape_cast %222 : vector<1x1x2048xf32> to vector<1x2048xf32>
    %224 = vector.broadcast %223 : vector<1x2048xf32> to vector<16x2048xf32>
    %225 = arith.addf %221, %224 : vector<16x2048xf32>
    %cst_88 = arith.constant 0.000000e+00 : f32
    %226 = vector.broadcast %cst_88 : f32 to vector<16x2048xf32>
    %227 = arith.maximumf %225, %226 : vector<16x2048xf32>
    %228 = arith.truncf %227 : vector<16x2048xf32> to vector<16x2048xbf16>
    %c0_89 = arith.constant 0 : index
    %c0_90 = arith.constant 0 : index
    %c0_91 = arith.constant 0 : index
    %229 = vector.load %arg16[%c0_89, %c0_90, %c0_91] : memref<2x2048x64xbf16, #tpu.memory_space<vmem>>, vector<1x2048x64xbf16>
    %230 = vector.shape_cast %229 : vector<1x2048x64xbf16> to vector<2048x64xbf16>
    %cst_92 = arith.constant dense<0.000000e+00> : vector<16x64xf32>
    %231 = tpu.matmul %228, %230, %cst_92 {dimension_numbers = #tpu.dot_dimension_numbers<[1], [0], [0], [1], [0, 0, 1, 1], [], []>} : vector<16x2048xbf16>, vector<2048x64xbf16>, vector<16x64xf32> -> vector<16x64xf32>
    %c0_93 = arith.constant 0 : index
    %c0_94 = arith.constant 0 : index
    %c0_95 = arith.constant 0 : index
    %232 = vector.load %arg17[%c0_93, %c0_94, %c0_95] : memref<2x1x64xf32, #tpu.memory_space<vmem>>, vector<1x1x64xf32>
    %233 = vector.shape_cast %232 : vector<1x1x64xf32> to vector<1x64xf32>
    %234 = vector.broadcast %233 : vector<1x64xf32> to vector<16x64xf32>
    %235 = arith.addf %231, %234 : vector<16x64xf32>
    %236 = arith.addf %217, %235 : vector<16x64xf32>
    %c0_96 = arith.constant 0 : index
    %c0_97 = arith.constant 0 : index
    %c0_98 = arith.constant 0 : index
    %237 = vector.load %arg18[%c0_96, %c0_97, %c0_98] : memref<2x1x64xf32, #tpu.memory_space<vmem>>, vector<1x1x64xf32>
    %238 = vector.shape_cast %237 : vector<1x1x64xf32> to vector<1x64xf32>
    %c0_99 = arith.constant 0 : index
    %c0_100 = arith.constant 0 : index
    %c0_101 = arith.constant 0 : index
    %239 = vector.load %arg19[%c0_99, %c0_100, %c0_101] : memref<2x1x64xf32, #tpu.memory_space<vmem>>, vector<1x1x64xf32>
    %240 = vector.shape_cast %239 : vector<1x1x64xf32> to vector<1x64xf32>
    %cst_102 = arith.constant dense<0.000000e+00> : vector<16xf32>
    %241 = vector.multi_reduction <add>, %236, %cst_102 [1] : vector<16x64xf32> to vector<16xf32>
    %242 = vector.shape_cast %241 : vector<16xf32> to vector<16x1xf32>
    %cst_103 = arith.constant 6.400000e+01 : f32
    %243 = vector.broadcast %cst_103 : f32 to vector<16x1xf32>
    %244 = arith.divf %242, %243 : vector<16x1xf32>
    %245 = vector.broadcast %244 : vector<16x1xf32> to vector<16x64xf32>
    %246 = arith.subf %236, %245 : vector<16x64xf32>
    %247 = arith.mulf %246, %246 : vector<16x64xf32>
    %cst_104 = arith.constant dense<0.000000e+00> : vector<16xf32>
    %248 = vector.multi_reduction <add>, %247, %cst_104 [1] : vector<16x64xf32> to vector<16xf32>
    %249 = vector.shape_cast %248 : vector<16xf32> to vector<16x1xf32>
    %cst_105 = arith.constant 6.400000e+01 : f32
    %250 = vector.broadcast %cst_105 : f32 to vector<16x1xf32>
    %251 = arith.divf %249, %250 : vector<16x1xf32>
    %252 = vector.broadcast %244 : vector<16x1xf32> to vector<16x64xf32>
    %253 = arith.subf %236, %252 : vector<16x64xf32>
    %cst_106 = arith.constant 9.99999974E-6 : f32
    %254 = vector.broadcast %cst_106 : f32 to vector<16x1xf32>
    %255 = arith.addf %251, %254 : vector<16x1xf32>
    %256 = math.rsqrt %255 : vector<16x1xf32>
    %257 = vector.broadcast %256 : vector<16x1xf32> to vector<16x64xf32>
    %258 = arith.mulf %253, %257 : vector<16x64xf32>
    %259 = vector.broadcast %238 : vector<1x64xf32> to vector<16x64xf32>
    %260 = arith.mulf %258, %259 : vector<16x64xf32>
    %261 = vector.broadcast %240 : vector<1x64xf32> to vector<16x64xf32>
    %262 = arith.addf %260, %261 : vector<16x64xf32>
    %c1_107 = arith.constant 1 : index
    %c0_108 = arith.constant 0 : index
    %c0_109 = arith.constant 0 : index
    %263 = vector.load %arg8[%c1_107, %c0_108, %c0_109] : memref<2x64x192xbf16, #tpu.memory_space<vmem>>, vector<1x64x192xbf16>
    %264 = vector.shape_cast %263 : vector<1x64x192xbf16> to vector<64x192xbf16>
    %265 = arith.truncf %262 : vector<16x64xf32> to vector<16x64xbf16>
    %cst_110 = arith.constant dense<0.000000e+00> : vector<16x192xf32>
    %266 = tpu.matmul %265, %264, %cst_110 {dimension_numbers = #tpu.dot_dimension_numbers<[1], [0], [0], [1], [0, 0, 1, 1], [], []>} : vector<16x64xbf16>, vector<64x192xbf16>, vector<16x192xf32> -> vector<16x192xf32>
    %c1_111 = arith.constant 1 : index
    %c0_112 = arith.constant 0 : index
    %c0_113 = arith.constant 0 : index
    %267 = vector.load %arg9[%c1_111, %c0_112, %c0_113] : memref<2x1x192xf32, #tpu.memory_space<vmem>>, vector<1x1x192xf32>
    %268 = vector.shape_cast %267 : vector<1x1x192xf32> to vector<1x192xf32>
    %269 = vector.broadcast %268 : vector<1x192xf32> to vector<16x192xf32>
    %270 = arith.addf %266, %269 : vector<16x192xf32>
    %c1_114 = arith.constant 1 : index
    %c0_115 = arith.constant 0 : index
    %c0_116 = arith.constant 0 : index
    %271 = vector.load %arg10[%c1_114, %c0_115, %c0_116] : memref<2x64x64xbf16, #tpu.memory_space<vmem>>, vector<1x64x64xbf16>
    %272 = vector.shape_cast %271 : vector<1x64x64xbf16> to vector<64x64xbf16>
    %c1_117 = arith.constant 1 : index
    %c0_118 = arith.constant 0 : index
    %c0_119 = arith.constant 0 : index
    %273 = vector.load %arg11[%c1_117, %c0_118, %c0_119] : memref<2x1x64xf32, #tpu.memory_space<vmem>>, vector<1x1x64xf32>
    %274 = vector.shape_cast %273 : vector<1x1x64xf32> to vector<1x64xf32>
    %275 = vector.extract_strided_slice %270 {offsets = [0, 0], sizes = [16, 16], strides = [1, 1]} : vector<16x192xf32> to vector<16x16xf32>
    %276 = vector.shape_cast %275 : vector<16x16xf32> to vector<2x8x16xf32>
    %277 = arith.truncf %276 : vector<2x8x16xf32> to vector<2x8x16xbf16>
    %278 = vector.extract_strided_slice %270 {offsets = [0, 64], sizes = [16, 16], strides = [1, 1]} : vector<16x192xf32> to vector<16x16xf32>
    %279 = vector.shape_cast %278 : vector<16x16xf32> to vector<2x8x16xf32>
    %280 = arith.truncf %279 : vector<2x8x16xf32> to vector<2x8x16xbf16>
    %281 = vector.extract_strided_slice %270 {offsets = [0, 128], sizes = [16, 16], strides = [1, 1]} : vector<16x192xf32> to vector<16x16xf32>
    %282 = vector.shape_cast %281 : vector<16x16xf32> to vector<2x8x16xf32>
    %283 = arith.truncf %282 : vector<2x8x16xf32> to vector<2x8x16xbf16>
    "tpu.trace_start"() <{level = 10 : i32, message = "bqd,bkd->bqk"}> : () -> ()
    %cst_120 = arith.constant dense<0.000000e+00> : vector<2x8x8xf32>
    %284 = tpu.matmul %277, %280, %cst_120 {dimension_numbers = #tpu.dot_dimension_numbers<[2], [2], [1], [1], [0, 0, 0, 1, 1, 1], [0], [0]>} : vector<2x8x16xbf16>, vector<2x8x16xbf16>, vector<2x8x8xf32> -> vector<2x8x8xf32>
    "tpu.trace_stop"() : () -> ()
    %cst_121 = arith.constant dense<0xFF800000> : vector<2x8xf32>
    %285 = vector.multi_reduction <maximumf>, %284, %cst_121 [2] : vector<2x8x8xf32> to vector<2x8xf32>
    %286 = vector.shape_cast %285 : vector<2x8xf32> to vector<2x8x1xf32>
    %287 = vector.broadcast %286 : vector<2x8x1xf32> to vector<2x8x8xf32>
    %288 = arith.subf %284, %287 : vector<2x8x8xf32>
    %289 = math.exp %288 : vector<2x8x8xf32>
    %cst_122 = arith.constant dense<0.000000e+00> : vector<2x8xf32>
    %290 = vector.multi_reduction <add>, %289, %cst_122 [2] : vector<2x8x8xf32> to vector<2x8xf32>
    %291 = vector.shape_cast %290 : vector<2x8xf32> to vector<2x8x1xf32>
    %292 = vector.broadcast %291 : vector<2x8x1xf32> to vector<2x8x8xf32>
    %293 = arith.divf %289, %292 : vector<2x8x8xf32>
    %294 = arith.truncf %293 : vector<2x8x8xf32> to vector<2x8x8xbf16>
    "tpu.trace_start"() <{level = 10 : i32, message = "bqk,bkd->bqd"}> : () -> ()
    %cst_123 = arith.constant dense<0.000000e+00> : vector<2x8x16xf32>
    %295 = tpu.matmul %294, %283, %cst_123 {dimension_numbers = #tpu.dot_dimension_numbers<[2], [1], [1], [2], [0, 0, 0, 1, 1, 2], [0], [0]>} : vector<2x8x8xbf16>, vector<2x8x16xbf16>, vector<2x8x16xf32> -> vector<2x8x16xf32>
    "tpu.trace_stop"() : () -> ()
    %296 = vector.shape_cast %295 : vector<2x8x16xf32> to vector<16x16xf32>
    %297 = vector.extract_strided_slice %272 {offsets = [0, 0], sizes = [16, 64], strides = [1, 1]} : vector<64x64xbf16> to vector<16x64xbf16>
    %298 = arith.truncf %296 : vector<16x16xf32> to vector<16x16xbf16>
    %cst_124 = arith.constant dense<0.000000e+00> : vector<16x64xf32>
    %299 = tpu.matmul %298, %297, %cst_124 {dimension_numbers = #tpu.dot_dimension_numbers<[1], [0], [0], [1], [0, 0, 1, 1], [], []>} : vector<16x16xbf16>, vector<16x64xbf16>, vector<16x64xf32> -> vector<16x64xf32>
    %300 = vector.broadcast %274 : vector<1x64xf32> to vector<16x64xf32>
    %301 = arith.addf %300, %299 : vector<16x64xf32>
    %302 = vector.extract_strided_slice %270 {offsets = [0, 16], sizes = [16, 16], strides = [1, 1]} : vector<16x192xf32> to vector<16x16xf32>
    %303 = vector.shape_cast %302 : vector<16x16xf32> to vector<2x8x16xf32>
    %304 = arith.truncf %303 : vector<2x8x16xf32> to vector<2x8x16xbf16>
    %305 = vector.extract_strided_slice %270 {offsets = [0, 80], sizes = [16, 16], strides = [1, 1]} : vector<16x192xf32> to vector<16x16xf32>
    %306 = vector.shape_cast %305 : vector<16x16xf32> to vector<2x8x16xf32>
    %307 = arith.truncf %306 : vector<2x8x16xf32> to vector<2x8x16xbf16>
    %308 = vector.extract_strided_slice %270 {offsets = [0, 144], sizes = [16, 16], strides = [1, 1]} : vector<16x192xf32> to vector<16x16xf32>
    %309 = vector.shape_cast %308 : vector<16x16xf32> to vector<2x8x16xf32>
    %310 = arith.truncf %309 : vector<2x8x16xf32> to vector<2x8x16xbf16>
    "tpu.trace_start"() <{level = 10 : i32, message = "bqd,bkd->bqk"}> : () -> ()
    %cst_125 = arith.constant dense<0.000000e+00> : vector<2x8x8xf32>
    %311 = tpu.matmul %304, %307, %cst_125 {dimension_numbers = #tpu.dot_dimension_numbers<[2], [2], [1], [1], [0, 0, 0, 1, 1, 1], [0], [0]>} : vector<2x8x16xbf16>, vector<2x8x16xbf16>, vector<2x8x8xf32> -> vector<2x8x8xf32>
    "tpu.trace_stop"() : () -> ()
    %cst_126 = arith.constant dense<0xFF800000> : vector<2x8xf32>
    %312 = vector.multi_reduction <maximumf>, %311, %cst_126 [2] : vector<2x8x8xf32> to vector<2x8xf32>
    %313 = vector.shape_cast %312 : vector<2x8xf32> to vector<2x8x1xf32>
    %314 = vector.broadcast %313 : vector<2x8x1xf32> to vector<2x8x8xf32>
    %315 = arith.subf %311, %314 : vector<2x8x8xf32>
    %316 = math.exp %315 : vector<2x8x8xf32>
    %cst_127 = arith.constant dense<0.000000e+00> : vector<2x8xf32>
    %317 = vector.multi_reduction <add>, %316, %cst_127 [2] : vector<2x8x8xf32> to vector<2x8xf32>
    %318 = vector.shape_cast %317 : vector<2x8xf32> to vector<2x8x1xf32>
    %319 = vector.broadcast %318 : vector<2x8x1xf32> to vector<2x8x8xf32>
    %320 = arith.divf %316, %319 : vector<2x8x8xf32>
    %321 = arith.truncf %320 : vector<2x8x8xf32> to vector<2x8x8xbf16>
    "tpu.trace_start"() <{level = 10 : i32, message = "bqk,bkd->bqd"}> : () -> ()
    %cst_128 = arith.constant dense<0.000000e+00> : vector<2x8x16xf32>
    %322 = tpu.matmul %321, %310, %cst_128 {dimension_numbers = #tpu.dot_dimension_numbers<[2], [1], [1], [2], [0, 0, 0, 1, 1, 2], [0], [0]>} : vector<2x8x8xbf16>, vector<2x8x16xbf16>, vector<2x8x16xf32> -> vector<2x8x16xf32>
    "tpu.trace_stop"() : () -> ()
    %323 = vector.shape_cast %322 : vector<2x8x16xf32> to vector<16x16xf32>
    %324 = vector.extract_strided_slice %272 {offsets = [16, 0], sizes = [16, 64], strides = [1, 1]} : vector<64x64xbf16> to vector<16x64xbf16>
    %325 = arith.truncf %323 : vector<16x16xf32> to vector<16x16xbf16>
    %cst_129 = arith.constant dense<0.000000e+00> : vector<16x64xf32>
    %326 = tpu.matmul %325, %324, %cst_129 {dimension_numbers = #tpu.dot_dimension_numbers<[1], [0], [0], [1], [0, 0, 1, 1], [], []>} : vector<16x16xbf16>, vector<16x64xbf16>, vector<16x64xf32> -> vector<16x64xf32>
    %327 = arith.addf %301, %326 : vector<16x64xf32>
    %328 = vector.extract_strided_slice %270 {offsets = [0, 32], sizes = [16, 16], strides = [1, 1]} : vector<16x192xf32> to vector<16x16xf32>
    %329 = vector.shape_cast %328 : vector<16x16xf32> to vector<2x8x16xf32>
    %330 = arith.truncf %329 : vector<2x8x16xf32> to vector<2x8x16xbf16>
    %331 = vector.extract_strided_slice %270 {offsets = [0, 96], sizes = [16, 16], strides = [1, 1]} : vector<16x192xf32> to vector<16x16xf32>
    %332 = vector.shape_cast %331 : vector<16x16xf32> to vector<2x8x16xf32>
    %333 = arith.truncf %332 : vector<2x8x16xf32> to vector<2x8x16xbf16>
    %334 = vector.extract_strided_slice %270 {offsets = [0, 160], sizes = [16, 16], strides = [1, 1]} : vector<16x192xf32> to vector<16x16xf32>
    %335 = vector.shape_cast %334 : vector<16x16xf32> to vector<2x8x16xf32>
    %336 = arith.truncf %335 : vector<2x8x16xf32> to vector<2x8x16xbf16>
    "tpu.trace_start"() <{level = 10 : i32, message = "bqd,bkd->bqk"}> : () -> ()
    %cst_130 = arith.constant dense<0.000000e+00> : vector<2x8x8xf32>
    %337 = tpu.matmul %330, %333, %cst_130 {dimension_numbers = #tpu.dot_dimension_numbers<[2], [2], [1], [1], [0, 0, 0, 1, 1, 1], [0], [0]>} : vector<2x8x16xbf16>, vector<2x8x16xbf16>, vector<2x8x8xf32> -> vector<2x8x8xf32>
    "tpu.trace_stop"() : () -> ()
    %cst_131 = arith.constant dense<0xFF800000> : vector<2x8xf32>
    %338 = vector.multi_reduction <maximumf>, %337, %cst_131 [2] : vector<2x8x8xf32> to vector<2x8xf32>
    %339 = vector.shape_cast %338 : vector<2x8xf32> to vector<2x8x1xf32>
    %340 = vector.broadcast %339 : vector<2x8x1xf32> to vector<2x8x8xf32>
    %341 = arith.subf %337, %340 : vector<2x8x8xf32>
    %342 = math.exp %341 : vector<2x8x8xf32>
    %cst_132 = arith.constant dense<0.000000e+00> : vector<2x8xf32>
    %343 = vector.multi_reduction <add>, %342, %cst_132 [2] : vector<2x8x8xf32> to vector<2x8xf32>
    %344 = vector.shape_cast %343 : vector<2x8xf32> to vector<2x8x1xf32>
    %345 = vector.broadcast %344 : vector<2x8x1xf32> to vector<2x8x8xf32>
    %346 = arith.divf %342, %345 : vector<2x8x8xf32>
    %347 = arith.truncf %346 : vector<2x8x8xf32> to vector<2x8x8xbf16>
    "tpu.trace_start"() <{level = 10 : i32, message = "bqk,bkd->bqd"}> : () -> ()
    %cst_133 = arith.constant dense<0.000000e+00> : vector<2x8x16xf32>
    %348 = tpu.matmul %347, %336, %cst_133 {dimension_numbers = #tpu.dot_dimension_numbers<[2], [1], [1], [2], [0, 0, 0, 1, 1, 2], [0], [0]>} : vector<2x8x8xbf16>, vector<2x8x16xbf16>, vector<2x8x16xf32> -> vector<2x8x16xf32>
    "tpu.trace_stop"() : () -> ()
    %349 = vector.shape_cast %348 : vector<2x8x16xf32> to vector<16x16xf32>
    %350 = vector.extract_strided_slice %272 {offsets = [32, 0], sizes = [16, 64], strides = [1, 1]} : vector<64x64xbf16> to vector<16x64xbf16>
    %351 = arith.truncf %349 : vector<16x16xf32> to vector<16x16xbf16>
    %cst_134 = arith.constant dense<0.000000e+00> : vector<16x64xf32>
    %352 = tpu.matmul %351, %350, %cst_134 {dimension_numbers = #tpu.dot_dimension_numbers<[1], [0], [0], [1], [0, 0, 1, 1], [], []>} : vector<16x16xbf16>, vector<16x64xbf16>, vector<16x64xf32> -> vector<16x64xf32>
    %353 = arith.addf %327, %352 : vector<16x64xf32>
    %354 = vector.extract_strided_slice %270 {offsets = [0, 48], sizes = [16, 16], strides = [1, 1]} : vector<16x192xf32> to vector<16x16xf32>
    %355 = vector.shape_cast %354 : vector<16x16xf32> to vector<2x8x16xf32>
    %356 = arith.truncf %355 : vector<2x8x16xf32> to vector<2x8x16xbf16>
    %357 = vector.extract_strided_slice %270 {offsets = [0, 112], sizes = [16, 16], strides = [1, 1]} : vector<16x192xf32> to vector<16x16xf32>
    %358 = vector.shape_cast %357 : vector<16x16xf32> to vector<2x8x16xf32>
    %359 = arith.truncf %358 : vector<2x8x16xf32> to vector<2x8x16xbf16>
    %360 = vector.extract_strided_slice %270 {offsets = [0, 176], sizes = [16, 16], strides = [1, 1]} : vector<16x192xf32> to vector<16x16xf32>
    %361 = vector.shape_cast %360 : vector<16x16xf32> to vector<2x8x16xf32>
    %362 = arith.truncf %361 : vector<2x8x16xf32> to vector<2x8x16xbf16>
    "tpu.trace_start"() <{level = 10 : i32, message = "bqd,bkd->bqk"}> : () -> ()
    %cst_135 = arith.constant dense<0.000000e+00> : vector<2x8x8xf32>
    %363 = tpu.matmul %356, %359, %cst_135 {dimension_numbers = #tpu.dot_dimension_numbers<[2], [2], [1], [1], [0, 0, 0, 1, 1, 1], [0], [0]>} : vector<2x8x16xbf16>, vector<2x8x16xbf16>, vector<2x8x8xf32> -> vector<2x8x8xf32>
    "tpu.trace_stop"() : () -> ()
    %cst_136 = arith.constant dense<0xFF800000> : vector<2x8xf32>
    %364 = vector.multi_reduction <maximumf>, %363, %cst_136 [2] : vector<2x8x8xf32> to vector<2x8xf32>
    %365 = vector.shape_cast %364 : vector<2x8xf32> to vector<2x8x1xf32>
    %366 = vector.broadcast %365 : vector<2x8x1xf32> to vector<2x8x8xf32>
    %367 = arith.subf %363, %366 : vector<2x8x8xf32>
    %368 = math.exp %367 : vector<2x8x8xf32>
    %cst_137 = arith.constant dense<0.000000e+00> : vector<2x8xf32>
    %369 = vector.multi_reduction <add>, %368, %cst_137 [2] : vector<2x8x8xf32> to vector<2x8xf32>
    %370 = vector.shape_cast %369 : vector<2x8xf32> to vector<2x8x1xf32>
    %371 = vector.broadcast %370 : vector<2x8x1xf32> to vector<2x8x8xf32>
    %372 = arith.divf %368, %371 : vector<2x8x8xf32>
    %373 = arith.truncf %372 : vector<2x8x8xf32> to vector<2x8x8xbf16>
    "tpu.trace_start"() <{level = 10 : i32, message = "bqk,bkd->bqd"}> : () -> ()
    %cst_138 = arith.constant dense<0.000000e+00> : vector<2x8x16xf32>
    %374 = tpu.matmul %373, %362, %cst_138 {dimension_numbers = #tpu.dot_dimension_numbers<[2], [1], [1], [2], [0, 0, 0, 1, 1, 2], [0], [0]>} : vector<2x8x8xbf16>, vector<2x8x16xbf16>, vector<2x8x16xf32> -> vector<2x8x16xf32>
    "tpu.trace_stop"() : () -> ()
    %375 = vector.shape_cast %374 : vector<2x8x16xf32> to vector<16x16xf32>
    %376 = vector.extract_strided_slice %272 {offsets = [48, 0], sizes = [16, 64], strides = [1, 1]} : vector<64x64xbf16> to vector<16x64xbf16>
    %377 = arith.truncf %375 : vector<16x16xf32> to vector<16x16xbf16>
    %cst_139 = arith.constant dense<0.000000e+00> : vector<16x64xf32>
    %378 = tpu.matmul %377, %376, %cst_139 {dimension_numbers = #tpu.dot_dimension_numbers<[1], [0], [0], [1], [0, 0, 1, 1], [], []>} : vector<16x16xbf16>, vector<16x64xbf16>, vector<16x64xf32> -> vector<16x64xf32>
    %379 = arith.addf %353, %378 : vector<16x64xf32>
    %380 = arith.addf %262, %379 : vector<16x64xf32>
    %c1_140 = arith.constant 1 : index
    %c0_141 = arith.constant 0 : index
    %c0_142 = arith.constant 0 : index
    %381 = vector.load %arg12[%c1_140, %c0_141, %c0_142] : memref<2x1x64xf32, #tpu.memory_space<vmem>>, vector<1x1x64xf32>
    %382 = vector.shape_cast %381 : vector<1x1x64xf32> to vector<1x64xf32>
    %c1_143 = arith.constant 1 : index
    %c0_144 = arith.constant 0 : index
    %c0_145 = arith.constant 0 : index
    %383 = vector.load %arg13[%c1_143, %c0_144, %c0_145] : memref<2x1x64xf32, #tpu.memory_space<vmem>>, vector<1x1x64xf32>
    %384 = vector.shape_cast %383 : vector<1x1x64xf32> to vector<1x64xf32>
    %cst_146 = arith.constant dense<0.000000e+00> : vector<16xf32>
    %385 = vector.multi_reduction <add>, %380, %cst_146 [1] : vector<16x64xf32> to vector<16xf32>
    %386 = vector.shape_cast %385 : vector<16xf32> to vector<16x1xf32>
    %cst_147 = arith.constant 6.400000e+01 : f32
    %387 = vector.broadcast %cst_147 : f32 to vector<16x1xf32>
    %388 = arith.divf %386, %387 : vector<16x1xf32>
    %389 = vector.broadcast %388 : vector<16x1xf32> to vector<16x64xf32>
    %390 = arith.subf %380, %389 : vector<16x64xf32>
    %391 = arith.mulf %390, %390 : vector<16x64xf32>
    %cst_148 = arith.constant dense<0.000000e+00> : vector<16xf32>
    %392 = vector.multi_reduction <add>, %391, %cst_148 [1] : vector<16x64xf32> to vector<16xf32>
    %393 = vector.shape_cast %392 : vector<16xf32> to vector<16x1xf32>
    %cst_149 = arith.constant 6.400000e+01 : f32
    %394 = vector.broadcast %cst_149 : f32 to vector<16x1xf32>
    %395 = arith.divf %393, %394 : vector<16x1xf32>
    %396 = vector.broadcast %388 : vector<16x1xf32> to vector<16x64xf32>
    %397 = arith.subf %380, %396 : vector<16x64xf32>
    %cst_150 = arith.constant 9.99999974E-6 : f32
    %398 = vector.broadcast %cst_150 : f32 to vector<16x1xf32>
    %399 = arith.addf %395, %398 : vector<16x1xf32>
    %400 = math.rsqrt %399 : vector<16x1xf32>
    %401 = vector.broadcast %400 : vector<16x1xf32> to vector<16x64xf32>
    %402 = arith.mulf %397, %401 : vector<16x64xf32>
    %403 = vector.broadcast %382 : vector<1x64xf32> to vector<16x64xf32>
    %404 = arith.mulf %402, %403 : vector<16x64xf32>
    %405 = vector.broadcast %384 : vector<1x64xf32> to vector<16x64xf32>
    %406 = arith.addf %404, %405 : vector<16x64xf32>
    %c1_151 = arith.constant 1 : index
    %c0_152 = arith.constant 0 : index
    %c0_153 = arith.constant 0 : index
    %407 = vector.load %arg14[%c1_151, %c0_152, %c0_153] : memref<2x64x2048xbf16, #tpu.memory_space<vmem>>, vector<1x64x2048xbf16>
    %408 = vector.shape_cast %407 : vector<1x64x2048xbf16> to vector<64x2048xbf16>
    %409 = arith.truncf %406 : vector<16x64xf32> to vector<16x64xbf16>
    %cst_154 = arith.constant dense<0.000000e+00> : vector<16x2048xf32>
    %410 = tpu.matmul %409, %408, %cst_154 {dimension_numbers = #tpu.dot_dimension_numbers<[1], [0], [0], [1], [0, 0, 1, 1], [], []>} : vector<16x64xbf16>, vector<64x2048xbf16>, vector<16x2048xf32> -> vector<16x2048xf32>
    %c1_155 = arith.constant 1 : index
    %c0_156 = arith.constant 0 : index
    %c0_157 = arith.constant 0 : index
    %411 = vector.load %arg15[%c1_155, %c0_156, %c0_157] : memref<2x1x2048xf32, #tpu.memory_space<vmem>>, vector<1x1x2048xf32>
    %412 = vector.shape_cast %411 : vector<1x1x2048xf32> to vector<1x2048xf32>
    %413 = vector.broadcast %412 : vector<1x2048xf32> to vector<16x2048xf32>
    %414 = arith.addf %410, %413 : vector<16x2048xf32>
    %cst_158 = arith.constant 0.000000e+00 : f32
    %415 = vector.broadcast %cst_158 : f32 to vector<16x2048xf32>
    %416 = arith.maximumf %414, %415 : vector<16x2048xf32>
    %417 = arith.truncf %416 : vector<16x2048xf32> to vector<16x2048xbf16>
    %c1_159 = arith.constant 1 : index
    %c0_160 = arith.constant 0 : index
    %c0_161 = arith.constant 0 : index
    %418 = vector.load %arg16[%c1_159, %c0_160, %c0_161] : memref<2x2048x64xbf16, #tpu.memory_space<vmem>>, vector<1x2048x64xbf16>
    %419 = vector.shape_cast %418 : vector<1x2048x64xbf16> to vector<2048x64xbf16>
    %cst_162 = arith.constant dense<0.000000e+00> : vector<16x64xf32>
    %420 = tpu.matmul %417, %419, %cst_162 {dimension_numbers = #tpu.dot_dimension_numbers<[1], [0], [0], [1], [0, 0, 1, 1], [], []>} : vector<16x2048xbf16>, vector<2048x64xbf16>, vector<16x64xf32> -> vector<16x64xf32>
    %c1_163 = arith.constant 1 : index
    %c0_164 = arith.constant 0 : index
    %c0_165 = arith.constant 0 : index
    %421 = vector.load %arg17[%c1_163, %c0_164, %c0_165] : memref<2x1x64xf32, #tpu.memory_space<vmem>>, vector<1x1x64xf32>
    %422 = vector.shape_cast %421 : vector<1x1x64xf32> to vector<1x64xf32>
    %423 = vector.broadcast %422 : vector<1x64xf32> to vector<16x64xf32>
    %424 = arith.addf %420, %423 : vector<16x64xf32>
    %425 = arith.addf %406, %424 : vector<16x64xf32>
    %c1_166 = arith.constant 1 : index
    %c0_167 = arith.constant 0 : index
    %c0_168 = arith.constant 0 : index
    %426 = vector.load %arg18[%c1_166, %c0_167, %c0_168] : memref<2x1x64xf32, #tpu.memory_space<vmem>>, vector<1x1x64xf32>
    %427 = vector.shape_cast %426 : vector<1x1x64xf32> to vector<1x64xf32>
    %c1_169 = arith.constant 1 : index
    %c0_170 = arith.constant 0 : index
    %c0_171 = arith.constant 0 : index
    %428 = vector.load %arg19[%c1_169, %c0_170, %c0_171] : memref<2x1x64xf32, #tpu.memory_space<vmem>>, vector<1x1x64xf32>
    %429 = vector.shape_cast %428 : vector<1x1x64xf32> to vector<1x64xf32>
    %cst_172 = arith.constant dense<0.000000e+00> : vector<16xf32>
    %430 = vector.multi_reduction <add>, %425, %cst_172 [1] : vector<16x64xf32> to vector<16xf32>
    %431 = vector.shape_cast %430 : vector<16xf32> to vector<16x1xf32>
    %cst_173 = arith.constant 6.400000e+01 : f32
    %432 = vector.broadcast %cst_173 : f32 to vector<16x1xf32>
    %433 = arith.divf %431, %432 : vector<16x1xf32>
    %434 = vector.broadcast %433 : vector<16x1xf32> to vector<16x64xf32>
    %435 = arith.subf %425, %434 : vector<16x64xf32>
    %436 = arith.mulf %435, %435 : vector<16x64xf32>
    %cst_174 = arith.constant dense<0.000000e+00> : vector<16xf32>
    %437 = vector.multi_reduction <add>, %436, %cst_174 [1] : vector<16x64xf32> to vector<16xf32>
    %438 = vector.shape_cast %437 : vector<16xf32> to vector<16x1xf32>
    %cst_175 = arith.constant 6.400000e+01 : f32
    %439 = vector.broadcast %cst_175 : f32 to vector<16x1xf32>
    %440 = arith.divf %438, %439 : vector<16x1xf32>
    %441 = vector.broadcast %433 : vector<16x1xf32> to vector<16x64xf32>
    %442 = arith.subf %425, %441 : vector<16x64xf32>
    %cst_176 = arith.constant 9.99999974E-6 : f32
    %443 = vector.broadcast %cst_176 : f32 to vector<16x1xf32>
    %444 = arith.addf %440, %443 : vector<16x1xf32>
    %445 = math.rsqrt %444 : vector<16x1xf32>
    %446 = vector.broadcast %445 : vector<16x1xf32> to vector<16x64xf32>
    %447 = arith.mulf %442, %446 : vector<16x64xf32>
    %448 = vector.broadcast %427 : vector<1x64xf32> to vector<16x64xf32>
    %449 = arith.mulf %447, %448 : vector<16x64xf32>
    %450 = vector.broadcast %429 : vector<1x64xf32> to vector<16x64xf32>
    %451 = arith.addf %449, %450 : vector<16x64xf32>
    %452 = vector.shape_cast %451 : vector<16x64xf32> to vector<2x8x64xf32>
    %cst_177 = arith.constant dense<0.000000e+00> : vector<2x64xf32>
    %453 = vector.multi_reduction <add>, %452, %cst_177 [1] : vector<2x8x64xf32> to vector<2x64xf32>
    %cst_178 = arith.constant 8.000000e+00 : f32
    %454 = vector.broadcast %cst_178 : f32 to vector<2x64xf32>
    %455 = arith.divf %453, %454 : vector<2x64xf32>
    %c0_179 = arith.constant 0 : index
    %c0_180 = arith.constant 0 : index
    %456 = vector.load %arg20[%c0_179, %c0_180] : memref<128x128xbf16, #tpu.memory_space<vmem>>, vector<128x128xbf16>
    %457 = arith.truncf %65 : vector<2x128xf32> to vector<2x128xbf16>
    %cst_181 = arith.constant dense<0.000000e+00> : vector<2x128xf32>
    %458 = tpu.matmul %457, %456, %cst_181 {dimension_numbers = #tpu.dot_dimension_numbers<[1], [0], [0], [1], [0, 0, 1, 1], [], []>} : vector<2x128xbf16>, vector<128x128xbf16>, vector<2x128xf32> -> vector<2x128xf32>
    %c0_182 = arith.constant 0 : index
    %c0_183 = arith.constant 0 : index
    %459 = vector.load %arg21[%c0_182, %c0_183] : memref<1x128xf32, #tpu.memory_space<vmem>>, vector<1x128xf32>
    %460 = vector.broadcast %459 : vector<1x128xf32> to vector<2x128xf32>
    %461 = arith.addf %458, %460 : vector<2x128xf32>
    %c0_184 = arith.constant 0 : index
    %c0_185 = arith.constant 0 : index
    %462 = vector.load %arg22[%c0_184, %c0_185] : memref<64x128xbf16, #tpu.memory_space<vmem>>, vector<64x128xbf16>
    %463 = arith.truncf %455 : vector<2x64xf32> to vector<2x64xbf16>
    %cst_186 = arith.constant dense<0.000000e+00> : vector<2x128xf32>
    %464 = tpu.matmul %463, %462, %cst_186 {dimension_numbers = #tpu.dot_dimension_numbers<[1], [0], [0], [1], [0, 0, 1, 1], [], []>} : vector<2x64xbf16>, vector<64x128xbf16>, vector<2x128xf32> -> vector<2x128xf32>
    %c0_187 = arith.constant 0 : index
    %c0_188 = arith.constant 0 : index
    %465 = vector.load %arg23[%c0_187, %c0_188] : memref<1x128xf32, #tpu.memory_space<vmem>>, vector<1x128xf32>
    %466 = vector.broadcast %465 : vector<1x128xf32> to vector<2x128xf32>
    %467 = arith.addf %464, %466 : vector<2x128xf32>
    %c0_189 = arith.constant 0 : index
    %c0_190 = arith.constant 0 : index
    %468 = vector.load %arg24[%c0_189, %c0_190] : memref<192x64xbf16, #tpu.memory_space<vmem>>, vector<192x64xbf16>
    %469 = vector.extract_strided_slice %468 {offsets = [0, 0], sizes = [128, 64], strides = [1, 1]} : vector<192x64xbf16> to vector<128x64xbf16>
    %470 = arith.truncf %65 : vector<2x128xf32> to vector<2x128xbf16>
    %cst_191 = arith.constant dense<0.000000e+00> : vector<2x64xf32>
    %471 = tpu.matmul %470, %469, %cst_191 {dimension_numbers = #tpu.dot_dimension_numbers<[1], [0], [0], [1], [0, 0, 1, 1], [], []>} : vector<2x128xbf16>, vector<128x64xbf16>, vector<2x64xf32> -> vector<2x64xf32>
    %472 = vector.extract_strided_slice %468 {offsets = [128, 0], sizes = [64, 64], strides = [1, 1]} : vector<192x64xbf16> to vector<64x64xbf16>
    %473 = arith.truncf %455 : vector<2x64xf32> to vector<2x64xbf16>
    %cst_192 = arith.constant dense<0.000000e+00> : vector<2x64xf32>
    %474 = tpu.matmul %473, %472, %cst_192 {dimension_numbers = #tpu.dot_dimension_numbers<[1], [0], [0], [1], [0, 0, 1, 1], [], []>} : vector<2x64xbf16>, vector<64x64xbf16>, vector<2x64xf32> -> vector<2x64xf32>
    %475 = arith.addf %471, %474 : vector<2x64xf32>
    %c0_193 = arith.constant 0 : index
    %c0_194 = arith.constant 0 : index
    %476 = vector.load %arg25[%c0_193, %c0_194] : memref<1x64xf32, #tpu.memory_space<vmem>>, vector<1x64xf32>
    %477 = vector.broadcast %476 : vector<1x64xf32> to vector<2x64xf32>
    %478 = arith.addf %475, %477 : vector<2x64xf32>
    %cst_195 = arith.constant 0.000000e+00 : f32
    %479 = vector.broadcast %cst_195 : f32 to vector<2x64xf32>
    %480 = arith.maximumf %478, %479 : vector<2x64xf32>
    %c0_196 = arith.constant 0 : index
    %c0_197 = arith.constant 0 : index
    %481 = vector.load %arg26[%c0_196, %c0_197] : memref<64x128xbf16, #tpu.memory_space<vmem>>, vector<64x128xbf16>
    %482 = arith.truncf %480 : vector<2x64xf32> to vector<2x64xbf16>
    %cst_198 = arith.constant dense<0.000000e+00> : vector<2x128xf32>
    %483 = tpu.matmul %482, %481, %cst_198 {dimension_numbers = #tpu.dot_dimension_numbers<[1], [0], [0], [1], [0, 0, 1, 1], [], []>} : vector<2x64xbf16>, vector<64x128xbf16>, vector<2x128xf32> -> vector<2x128xf32>
    %c0_199 = arith.constant 0 : index
    %c0_200 = arith.constant 0 : index
    %484 = vector.load %arg27[%c0_199, %c0_200] : memref<1x128xf32, #tpu.memory_space<vmem>>, vector<1x128xf32>
    %485 = vector.broadcast %484 : vector<1x128xf32> to vector<2x128xf32>
    %486 = arith.addf %483, %485 : vector<2x128xf32>
    %487 = arith.negf %486 : vector<2x128xf32>
    %488 = math.exp %487 : vector<2x128xf32>
    %cst_201 = arith.constant 1.000000e+00 : f32
    %489 = vector.broadcast %cst_201 : f32 to vector<2x128xf32>
    %490 = arith.addf %489, %488 : vector<2x128xf32>
    %491 = arith.divf %489, %490 : vector<2x128xf32>
    %492 = arith.mulf %491, %461 : vector<2x128xf32>
    %cst_202 = arith.constant 1.000000e+00 : f32
    %493 = vector.broadcast %cst_202 : f32 to vector<2x128xf32>
    %494 = arith.subf %493, %491 : vector<2x128xf32>
    %495 = arith.mulf %494, %467 : vector<2x128xf32>
    %496 = arith.addf %492, %495 : vector<2x128xf32>
    %c0_203 = arith.constant 0 : index
    %c0_204 = arith.constant 0 : index
    %497 = vector.load %arg28[%c0_203, %c0_204] : memref<2x128xf32, #tpu.memory_space<vmem>>, vector<2x128xf32>
    tpu.vector_store %arg28[%c0_203, %c0_204], %496 {strides = array<i32>} : memref<2x128xf32, #tpu.memory_space<vmem>>, vector<2x128xf32>,
    %c0_205 = arith.constant 0 : index
    %c0_206 = arith.constant 0 : index
    %498 = vector.load %arg29[%c0_205, %c0_206] : memref<2x128xf32, #tpu.memory_space<vmem>>, vector<2x128xf32>
    tpu.vector_store %arg29[%c0_205, %c0_206], %491 {strides = array<i32>} : memref<2x128xf32, #tpu.memory_space<vmem>>, vector<2x128xf32>,
    return
  }
  func.func @transform_0(%arg0: i32) -> (i32, i32, i32) {
    %c0_i32 = arith.constant 0 : i32
    %c0_i32_0 = arith.constant 0 : i32
    %c0_i32_1 = arith.constant 0 : i32
    return %arg0, %c0_i32, %c0_i32_0 : i32, i32, i32
  }
  func.func @transform_1(%arg0: i32) -> (i32, i32, i32) {
    %c0_i32 = arith.constant 0 : i32
    %c0_i32_0 = arith.constant 0 : i32
    %c0_i32_1 = arith.constant 0 : i32
    %c0_i32_2 = arith.constant 0 : i32
    return %c0_i32, %c0_i32_0, %c0_i32_1 : i32, i32, i32
  }
  func.func @transform_2(%arg0: i32) -> (i32, i32) {
    %c0_i32 = arith.constant 0 : i32
    %c0_i32_0 = arith.constant 0 : i32
    %c0_i32_1 = arith.constant 0 : i32
    return %c0_i32, %c0_i32_0 : i32, i32
  }
  func.func @transform_3(%arg0: i32) -> (i32, i32, i32) {
    %c0_i32 = arith.constant 0 : i32
    %c0_i32_0 = arith.constant 0 : i32
    %c0_i32_1 = arith.constant 0 : i32
    %c0_i32_2 = arith.constant 0 : i32
    return %c0_i32, %c0_i32_0, %c0_i32_1 : i32, i32, i32
  }
  func.func @transform_4(%arg0: i32) -> (i32, i32) {
    %c0_i32 = arith.constant 0 : i32
    %c0_i32_0 = arith.constant 0 : i32
    %c0_i32_1 = arith.constant 0 : i32
    return %c0_i32, %c0_i32_0 : i32, i32
  }
  func.func @transform_5(%arg0: i32) -> (i32, i32) {
    %c0_i32 = arith.constant 0 : i32
    %c0_i32_0 = arith.constant 0 : i32
    %c0_i32_1 = arith.constant 0 : i32
    return %c0_i32, %c0_i32_0 : i32, i32
  }
  func.func @transform_6(%arg0: i32) -> (i32, i32) {
    %c0_i32 = arith.constant 0 : i32
    %c0_i32_0 = arith.constant 0 : i32
    %c0_i32_1 = arith.constant 0 : i32
    return %c0_i32, %c0_i32_0 : i32, i32
  }
  func.func @transform_7(%arg0: i32) -> (i32, i32, i32) {
    %c0_i32 = arith.constant 0 : i32
    %c0_i32_0 = arith.constant 0 : i32
    %c0_i32_1 = arith.constant 0 : i32
    %c0_i32_2 = arith.constant 0 : i32
    return %c0_i32, %c0_i32_0, %c0_i32_1 : i32, i32, i32
  }
  func.func @transform_8(%arg0: i32) -> (i32, i32, i32) {
    %c0_i32 = arith.constant 0 : i32
    %c0_i32_0 = arith.constant 0 : i32
    %c0_i32_1 = arith.constant 0 : i32
    %c0_i32_2 = arith.constant 0 : i32
    return %c0_i32, %c0_i32_0, %c0_i32_1 : i32, i32, i32
  }
  func.func @transform_9(%arg0: i32) -> (i32, i32, i32) {
    %c0_i32 = arith.constant 0 : i32
    %c0_i32_0 = arith.constant 0 : i32
    %c0_i32_1 = arith.constant 0 : i32
    %c0_i32_2 = arith.constant 0 : i32
    return %c0_i32, %c0_i32_0, %c0_i32_1 : i32, i32, i32
  }
  func.func @transform_10(%arg0: i32) -> (i32, i32, i32) {
    %c0_i32 = arith.constant 0 : i32
    %c0_i32_0 = arith.constant 0 : i32
    %c0_i32_1 = arith.constant 0 : i32
    %c0_i32_2 = arith.constant 0 : i32
    return %c0_i32, %c0_i32_0, %c0_i32_1 : i32, i32, i32
  }
  func.func @transform_11(%arg0: i32) -> (i32, i32, i32) {
    %c0_i32 = arith.constant 0 : i32
    %c0_i32_0 = arith.constant 0 : i32
    %c0_i32_1 = arith.constant 0 : i32
    %c0_i32_2 = arith.constant 0 : i32
    return %c0_i32, %c0_i32_0, %c0_i32_1 : i32, i32, i32
  }
  func.func @transform_12(%arg0: i32) -> (i32, i32, i32) {
    %c0_i32 = arith.constant 0 : i32
    %c0_i32_0 = arith.constant 0 : i32
    %c0_i32_1 = arith.constant 0 : i32
    %c0_i32_2 = arith.constant 0 : i32
    return %c0_i32, %c0_i32_0, %c0_i32_1 : i32, i32, i32
  }
  func.func @transform_13(%arg0: i32) -> (i32, i32, i32) {
    %c0_i32 = arith.constant 0 : i32
    %c0_i32_0 = arith.constant 0 : i32
    %c0_i32_1 = arith.constant 0 : i32
    %c0_i32_2 = arith.constant 0 : i32
    return %c0_i32, %c0_i32_0, %c0_i32_1 : i32, i32, i32
  }
  func.func @transform_14(%arg0: i32) -> (i32, i32, i32) {
    %c0_i32 = arith.constant 0 : i32
    %c0_i32_0 = arith.constant 0 : i32
    %c0_i32_1 = arith.constant 0 : i32
    %c0_i32_2 = arith.constant 0 : i32
    return %c0_i32, %c0_i32_0, %c0_i32_1 : i32, i32, i32
  }
  func.func @transform_15(%arg0: i32) -> (i32, i32, i32) {
    %c0_i32 = arith.constant 0 : i32
    %c0_i32_0 = arith.constant 0 : i32
    %c0_i32_1 = arith.constant 0 : i32
    %c0_i32_2 = arith.constant 0 : i32
    return %c0_i32, %c0_i32_0, %c0_i32_1 : i32, i32, i32
  }
  func.func @transform_16(%arg0: i32) -> (i32, i32, i32) {
    %c0_i32 = arith.constant 0 : i32
    %c0_i32_0 = arith.constant 0 : i32
    %c0_i32_1 = arith.constant 0 : i32
    %c0_i32_2 = arith.constant 0 : i32
    return %c0_i32, %c0_i32_0, %c0_i32_1 : i32, i32, i32
  }
  func.func @transform_17(%arg0: i32) -> (i32, i32, i32) {
    %c0_i32 = arith.constant 0 : i32
    %c0_i32_0 = arith.constant 0 : i32
    %c0_i32_1 = arith.constant 0 : i32
    %c0_i32_2 = arith.constant 0 : i32
    return %c0_i32, %c0_i32_0, %c0_i32_1 : i32, i32, i32
  }
  func.func @transform_18(%arg0: i32) -> (i32, i32, i32) {
    %c0_i32 = arith.constant 0 : i32
    %c0_i32_0 = arith.constant 0 : i32
    %c0_i32_1 = arith.constant 0 : i32
    %c0_i32_2 = arith.constant 0 : i32
    return %c0_i32, %c0_i32_0, %c0_i32_1 : i32, i32, i32
  }
  func.func @transform_19(%arg0: i32) -> (i32, i32) {
    %c0_i32 = arith.constant 0 : i32
    %c0_i32_0 = arith.constant 0 : i32
    %c0_i32_1 = arith.constant 0 : i32
    return %c0_i32, %c0_i32_0 : i32, i32
  }
  func.func @transform_20(%arg0: i32) -> (i32, i32) {
    %c0_i32 = arith.constant 0 : i32
    %c0_i32_0 = arith.constant 0 : i32
    %c0_i32_1 = arith.constant 0 : i32
    return %c0_i32, %c0_i32_0 : i32, i32
  }
  func.func @transform_21(%arg0: i32) -> (i32, i32) {
    %c0_i32 = arith.constant 0 : i32
    %c0_i32_0 = arith.constant 0 : i32
    %c0_i32_1 = arith.constant 0 : i32
    return %c0_i32, %c0_i32_0 : i32, i32
  }
  func.func @transform_22(%arg0: i32) -> (i32, i32) {
    %c0_i32 = arith.constant 0 : i32
    %c0_i32_0 = arith.constant 0 : i32
    %c0_i32_1 = arith.constant 0 : i32
    return %c0_i32, %c0_i32_0 : i32, i32
  }
  func.func @transform_23(%arg0: i32) -> (i32, i32) {
    %c0_i32 = arith.constant 0 : i32
    %c0_i32_0 = arith.constant 0 : i32
    %c0_i32_1 = arith.constant 0 : i32
    return %c0_i32, %c0_i32_0 : i32, i32
  }
  func.func @transform_24(%arg0: i32) -> (i32, i32) {
    %c0_i32 = arith.constant 0 : i32
    %c0_i32_0 = arith.constant 0 : i32
    %c0_i32_1 = arith.constant 0 : i32
    return %c0_i32, %c0_i32_0 : i32, i32
  }
  func.func @transform_25(%arg0: i32) -> (i32, i32) {
    %c0_i32 = arith.constant 0 : i32
    %c0_i32_0 = arith.constant 0 : i32
    %c0_i32_1 = arith.constant 0 : i32
    return %c0_i32, %c0_i32_0 : i32, i32
  }
  func.func @transform_26(%arg0: i32) -> (i32, i32) {
    %c0_i32 = arith.constant 0 : i32
    %c0_i32_0 = arith.constant 0 : i32
    %c0_i32_1 = arith.constant 0 : i32
    return %c0_i32, %c0_i32_0 : i32, i32
  }
  func.func @transform_27(%arg0: i32) -> (i32, i32) {
    %c0_i32 = arith.constant 0 : i32
    %c0_i32_0 = arith.constant 0 : i32
    return %arg0, %c0_i32 : i32, i32
  }
  func.func @transform_28(%arg0: i32) -> (i32, i32) {
    %c0_i32 = arith.constant 0 : i32
    %c0_i32_0 = arith.constant 0 : i32
    return %arg0, %c0_i32 : i32, i32
  }
}

</mosaic_0001>

<llo_original>
// kernel: hybrid_gated_net.1
$region0: #{hybrid_gated_net.1}
  #allocation0 [shape = 'u32[]', space=smem, size = 0x4, offset = 0x4, fixed_abs, tag = 'smem constant byte address 0x4 - core index']
  #allocation1 [shape = 'u32[72,128]{1,0:T(1,128)}', space=vmem, size = 0x9000, scoped, tag = 'internal scratch']
  %s0 = inlined_call_operand.vmem [shape: f32[2,12,4], index: 0, kind: input, shape index: {}]
  %s1 = inlined_call_operand.vmem [shape: bf16[3,4,64], index: 1, kind: input, shape index: {}]
  %s2 = inlined_call_operand.vmem [shape: f32[1,64], index: 2, kind: input, shape index: {}]
  %s3 = inlined_call_operand.vmem [shape: bf16[3,64,128], index: 3, kind: input, shape index: {}]
  %s4 = inlined_call_operand.vmem [shape: f32[1,128], index: 4, kind: input, shape index: {}]
  %s5 = inlined_call_operand.vmem [shape: bf16[4,64], index: 5, kind: input, shape index: {}]
  %s6 = inlined_call_operand.vmem [shape: f32[1,64], index: 6, kind: input, shape index: {}]
  %s7 = inlined_call_operand.vmem [shape: bf16[2,64,192], index: 7, kind: input, shape index: {}]
  %s8 = inlined_call_operand.vmem [shape: f32[2,1,192], index: 8, kind: input, shape index: {}]
  %s9 = inlined_call_operand.vmem [shape: bf16[2,64,64], index: 9, kind: input, shape index: {}]
  %s10 = inlined_call_operand.vmem [shape: f32[2,1,64], index: 10, kind: input, shape index: {}]
  %s11 = inlined_call_operand.vmem [shape: f32[2,1,64], index: 11, kind: input, shape index: {}]
  %s12 = inlined_call_operand.vmem [shape: f32[2,1,64], index: 12, kind: input, shape index: {}]
  %s13 = inlined_call_operand.vmem [shape: bf16[2,64,2048], index: 13, kind: input, shape index: {}]
  %s14 = inlined_call_operand.vmem [shape: f32[2,1,2048], index: 14, kind: input, shape index: {}]
  %s15 = inlined_call_operand.vmem [shape: bf16[2,2048,64], index: 15, kind: input, shape index: {}]
  %s16 = inlined_call_operand.vmem [shape: f32[2,1,64], index: 16, kind: input, shape index: {}]
  %s17 = inlined_call_operand.vmem [shape: f32[2,1,64], index: 17, kind: input, shape index: {}]
  %s18 = inlined_call_operand.vmem [shape: f32[2,1,64], index: 18, kind: input, shape index: {}]
  %s19 = inlined_call_operand.vmem [shape: bf16[128,128], index: 19, kind: input, shape index: {}]
  %s20 = inlined_call_operand.vmem [shape: f32[1,128], index: 20, kind: input, shape index: {}]
  %s21 = inlined_call_operand.vmem [shape: bf16[64,128], index: 21, kind: input, shape index: {}]
  %s22 = inlined_call_operand.vmem [shape: f32[1,128], index: 22, kind: input, shape index: {}]
  %s23 = inlined_call_operand.vmem [shape: bf16[192,64], index: 23, kind: input, shape index: {}]
  %s24 = inlined_call_operand.vmem [shape: f32[1,64], index: 24, kind: input, shape index: {}]
  %s25 = inlined_call_operand.vmem [shape: bf16[64,128], index: 25, kind: input, shape index: {}]
  %s26 = inlined_call_operand.vmem [shape: f32[1,128], index: 26, kind: input, shape index: {}]
  %s27 = inlined_call_operand.hbm [shape: f32[2,128], index: 27, kind: output, shape index: {0}]
  %s28 = inlined_call_operand.hbm [shape: f32[2,128], index: 28, kind: output, shape index: {1}]
  %29 = xla_tuple %s27, %s28
  %s30 = sld [smem:[#allocation0]]
  $region126: #{hybrid_gated_net.1} parent=0
    _
  %s32 = ssub.s32 1, %s30
  %s33 = scalar_select 0, %s32, %s30
  $region1: #{hybrid_gated_net.1} parent=0
    #allocation2 [shape = 'u8[1024]{0}', space=vmem, size = 0x400, scoped, tag = 'output window, operand 0, single buffered']
    #allocation3 [shape = 's32[1]{0}', space=sflag, size = 0x4, scoped, tag = 'scoped memory for hybrid_gated_net.1']
    #allocation4 [shape = 'u8[1024]{0}', space=vmem, size = 0x400, scoped, tag = 'output window, operand 1, single buffered']
    #allocation5 [shape = 's32[1]{0}', space=sflag, size = 0x4, scoped, tag = 'scoped memory for hybrid_gated_net.1']
    %34 = vsyncpa [#allocation3], 0
    %35 = vsyncpa [#allocation5], 0
    // Predicated region
    $region2: #{hybrid_gated_net.1} parent=1 // pred_check
      _
    $region3: #{hybrid_gated_net.1} parent=1 // pred_check_branch
      %37 = sbr.rel (0) target = $region5
    $region4: #{hybrid_gated_net.1} parent=1 // pred_region
      _
    $region5: #{hybrid_gated_net.1} parent=1 // pred_fallthru
      _
    // Predicated region
    $region6: #{hybrid_gated_net.1} parent=1 // pred_check
      _
    $region7: #{hybrid_gated_net.1} parent=1 // pred_check_branch
      %39 = sbr.rel (0) target = $region9
    $region8: #{hybrid_gated_net.1} parent=1 // pred_region
      _
    $region9: #{hybrid_gated_net.1} parent=1 // pred_fallthru
      _
    // Predicated region
    $region10: #{hybrid_gated_net.1} parent=1 // pred_check
      _
    $region11: #{hybrid_gated_net.1} parent=1 // pred_check_branch
      %41 = sbr.rel (0) target = $region13
    $region12: #{hybrid_gated_net.1} parent=1 // pred_region
      _
    $region13: #{hybrid_gated_net.1} parent=1 // pred_fallthru
      _
    // Predicated region
    $region14: #{hybrid_gated_net.1} parent=1 // pred_check
      _
    $region15: #{hybrid_gated_net.1} parent=1 // pred_check_branch
      %43 = sbr.rel (0) target = $region17
    $region16: #{hybrid_gated_net.1} parent=1 // pred_region
      _
    $region17: #{hybrid_gated_net.1} parent=1 // pred_fallthru
      _
    // Predicated region
    $region18: #{hybrid_gated_net.1} parent=1 // pred_check
      _
    $region19: #{hybrid_gated_net.1} parent=1 // pred_check_branch
      %45 = sbr.rel (0) target = $region21
    $region20: #{hybrid_gated_net.1} parent=1 // pred_region
      _
    $region21: #{hybrid_gated_net.1} parent=1 // pred_fallthru
      _
    // Predicated region
    $region22: #{hybrid_gated_net.1} parent=1 // pred_check
      _
    $region23: #{hybrid_gated_net.1} parent=1 // pred_check_branch
      %47 = sbr.rel (0) target = $region25
    $region24: #{hybrid_gated_net.1} parent=1 // pred_region
      _
    $region25: #{hybrid_gated_net.1} parent=1 // pred_fallthru
      _
    // Predicated region
    $region26: #{hybrid_gated_net.1} parent=1 // pred_check
      _
    $region27: #{hybrid_gated_net.1} parent=1 // pred_check_branch
      %49 = sbr.rel (0) target = $region29
    $region28: #{hybrid_gated_net.1} parent=1 // pred_region
      _
    $region29: #{hybrid_gated_net.1} parent=1 // pred_fallthru
      _
    // Predicated region
    $region30: #{hybrid_gated_net.1} parent=1 // pred_check
      _
    $region31: #{hybrid_gated_net.1} parent=1 // pred_check_branch
      %51 = sbr.rel (0) target = $region33
    $region32: #{hybrid_gated_net.1} parent=1 // pred_region
      _
    $region33: #{hybrid_gated_net.1} parent=1 // pred_fallthru
      _
    // Predicated region
    $region34: #{hybrid_gated_net.1} parent=1 // pred_check
      _
    $region35: #{hybrid_gated_net.1} parent=1 // pred_check_branch
      %53 = sbr.rel (0) target = $region37
    $region36: #{hybrid_gated_net.1} parent=1 // pred_region
      _
    $region37: #{hybrid_gated_net.1} parent=1 // pred_fallthru
      _
    // Predicated region
    $region38: #{hybrid_gated_net.1} parent=1 // pred_check
      _
    $region39: #{hybrid_gated_net.1} parent=1 // pred_check_branch
      %55 = sbr.rel (0) target = $region41
    $region40: #{hybrid_gated_net.1} parent=1 // pred_region
      _
    $region41: #{hybrid_gated_net.1} parent=1 // pred_fallthru
      _
    // Predicated region
    $region42: #{hybrid_gated_net.1} parent=1 // pred_check
      _
    $region43: #{hybrid_gated_net.1} parent=1 // pred_check_branch
      %57 = sbr.rel (0) target = $region45
    $region44: #{hybrid_gated_net.1} parent=1 // pred_region
      _
    $region45: #{hybrid_gated_net.1} parent=1 // pred_fallthru
      _
    // Predicated region
    $region46: #{hybrid_gated_net.1} parent=1 // pred_check
      _
    $region47: #{hybrid_gated_net.1} parent=1 // pred_check_branch
      %59 = sbr.rel (0) target = $region49
    $region48: #{hybrid_gated_net.1} parent=1 // pred_region
      _
    $region49: #{hybrid_gated_net.1} parent=1 // pred_fallthru
      _
    // Predicated region
    $region50: #{hybrid_gated_net.1} parent=1 // pred_check
      _
    $region51: #{hybrid_gated_net.1} parent=1 // pred_check_branch
      %61 = sbr.rel (0) target = $region53
    $region52: #{hybrid_gated_net.1} parent=1 // pred_region
      _
    $region53: #{hybrid_gated_net.1} parent=1 // pred_fallthru
      _
    // Predicated region
    $region54: #{hybrid_gated_net.1} parent=1 // pred_check
      _
    $region55: #{hybrid_gated_net.1} parent=1 // pred_check_branch
      %63 = sbr.rel (0) target = $region57
    $region56: #{hybrid_gated_net.1} parent=1 // pred_region
      _
    $region57: #{hybrid_gated_net.1} parent=1 // pred_fallthru
      _
    // Predicated region
    $region58: #{hybrid_gated_net.1} parent=1 // pred_check
      _
    $region59: #{hybrid_gated_net.1} parent=1 // pred_check_branch
      %65 = sbr.rel (0) target = $region61
    $region60: #{hybrid_gated_net.1} parent=1 // pred_region
      _
    $region61: #{hybrid_gated_net.1} parent=1 // pred_fallthru
      _
    // Predicated region
    $region62: #{hybrid_gated_net.1} parent=1 // pred_check
      _
    $region63: #{hybrid_gated_net.1} parent=1 // pred_check_branch
      %67 = sbr.rel (0) target = $region65
    $region64: #{hybrid_gated_net.1} parent=1 // pred_region
      _
    $region65: #{hybrid_gated_net.1} parent=1 // pred_fallthru
      _
    // Predicated region
    $region66: #{hybrid_gated_net.1} parent=1 // pred_check
      _
    $region67: #{hybrid_gated_net.1} parent=1 // pred_check_branch
      %69 = sbr.rel (0) target = $region69
    $region68: #{hybrid_gated_net.1} parent=1 // pred_region
      _
    $region69: #{hybrid_gated_net.1} parent=1 // pred_fallthru
      _
    // Predicated region
    $region70: #{hybrid_gated_net.1} parent=1 // pred_check
      _
    $region71: #{hybrid_gated_net.1} parent=1 // pred_check_branch
      %71 = sbr.rel (0) target = $region73
    $region72: #{hybrid_gated_net.1} parent=1 // pred_region
      _
    $region73: #{hybrid_gated_net.1} parent=1 // pred_fallthru
      _
    // Predicated region
    $region74: #{hybrid_gated_net.1} parent=1 // pred_check
      _
    $region75: #{hybrid_gated_net.1} parent=1 // pred_check_branch
      %73 = sbr.rel (0) target = $region77
    $region76: #{hybrid_gated_net.1} parent=1 // pred_region
      _
    $region77: #{hybrid_gated_net.1} parent=1 // pred_fallthru
      _
    // Predicated region
    $region78: #{hybrid_gated_net.1} parent=1 // pred_check
      _
    $region79: #{hybrid_gated_net.1} parent=1 // pred_check_branch
      %75 = sbr.rel (0) target = $region81
    $region80: #{hybrid_gated_net.1} parent=1 // pred_region
      _
    $region81: #{hybrid_gated_net.1} parent=1 // pred_fallthru
      _
    // Predicated region
    $region82: #{hybrid_gated_net.1} parent=1 // pred_check
      _
    $region83: #{hybrid_gated_net.1} parent=1 // pred_check_branch
      %77 = sbr.rel (0) target = $region85
    $region84: #{hybrid_gated_net.1} parent=1 // pred_region
      _
    $region85: #{hybrid_gated_net.1} parent=1 // pred_fallthru
      _
    // Predicated region
    $region86: #{hybrid_gated_net.1} parent=1 // pred_check
      _
    $region87: #{hybrid_gated_net.1} parent=1 // pred_check_branch
      %79 = sbr.rel (0) target = $region89
    $region88: #{hybrid_gated_net.1} parent=1 // pred_region
      _
    $region89: #{hybrid_gated_net.1} parent=1 // pred_fallthru
      _
    // Predicated region
    $region90: #{hybrid_gated_net.1} parent=1 // pred_check
      _
    $region91: #{hybrid_gated_net.1} parent=1 // pred_check_branch
      %81 = sbr.rel (0) target = $region93
    $region92: #{hybrid_gated_net.1} parent=1 // pred_region
      _
    $region93: #{hybrid_gated_net.1} parent=1 // pred_fallthru
      _
    // Predicated region
    $region94: #{hybrid_gated_net.1} parent=1 // pred_check
      _
    $region95: #{hybrid_gated_net.1} parent=1 // pred_check_branch
      %83 = sbr.rel (0) target = $region97
    $region96: #{hybrid_gated_net.1} parent=1 // pred_region
      _
    $region97: #{hybrid_gated_net.1} parent=1 // pred_fallthru
      _
    // Predicated region
    $region98: #{hybrid_gated_net.1} parent=1 // pred_check
      _
    $region99: #{hybrid_gated_net.1} parent=1 // pred_check_branch
      %85 = sbr.rel (0) target = $region101
    $region100: #{hybrid_gated_net.1} parent=1 // pred_region
      _
    $region101: #{hybrid_gated_net.1} parent=1 // pred_fallthru
      _
    // Predicated region
    $region102: #{hybrid_gated_net.1} parent=1 // pred_check
      _
    $region103: #{hybrid_gated_net.1} parent=1 // pred_check_branch
      %87 = sbr.rel (0) target = $region105
    $region104: #{hybrid_gated_net.1} parent=1 // pred_region
      _
    $region105: #{hybrid_gated_net.1} parent=1 // pred_fallthru
      _
    // Predicated region
    $region106: #{hybrid_gated_net.1} parent=1 // pred_check
      _
    $region107: #{hybrid_gated_net.1} parent=1 // pred_check_branch
      %89 = sbr.rel (0) target = $region109
    $region108: #{hybrid_gated_net.1} parent=1 // pred_region
      _
    $region109: #{hybrid_gated_net.1} parent=1 // pred_fallthru
      _
    %v91 = vld [vmem:[%s0] sm:$0xff]
    %v92 = vld [vmem:[%s0 + $0x8] sm:$0xf]
    %v93 = vld [vmem:[%s0 + $0x10] sm:$0xff]
    %v94 = vld [vmem:[%s0 + $0x18] sm:$0xf]
    %v99 = vrot.slane %v91, 2
    %v100 = vrot.slane %v91, 4
    %v101 = vrot.slane %v91, 6
    %v102 = vrot.slane %v93, 2
    %v103 = vrot.slane %v93, 4
    %v104 = vrot.slane %v93, 6
    %v105 = vld [vmem:[%s1] sm:$0x3]
    %106 = vst [vmem:[#allocation1] ss:$4 sm:$0xff] %v91
    %s107 = scalar_lea.vmem [#allocation1], 1
    %108 = vst [vmem:[%s107] ss:$4 sm:$0xff] %v99
    %s109 = scalar_lea.vmem [#allocation1], 2
    %110 = vst [vmem:[%s109] ss:$4 sm:$0xff] %v100
    %s111 = scalar_lea.vmem [#allocation1], 3
    %112 = vst [vmem:[%s111] ss:$4 sm:$0xff] %v101
    %s113 = scalar_lea.vmem [#allocation1], 32
    %114 = vst [vmem:[%s113] ss:$4 sm:$0xff] %v92
    %s115 = scalar_lea.vmem [#allocation1], 33
    %116 = vst [vmem:[%s115] ss:$4 sm:$0xff] %v93
    %s117 = scalar_lea.vmem [#allocation1], 34
    %118 = vst [vmem:[%s117] ss:$4 sm:$0xff] %v102
    %s119 = scalar_lea.vmem [#allocation1], 35
    %120 = vst [vmem:[%s119] ss:$4 sm:$0xff] %v103
    %v121 = vld.sshfl [vmem:[#allocation1] sm:$0xff pattern:$0x73625140]
    %v122 = vld.sshfl [vmem:[#allocation1 + $0x20] sm:$0xff pattern:$0x73625140]
    %123 = vst [vmem:[#allocation1] ss:$4 sm:$0xff] %v104
    %124 = vst [vmem:[%s107] ss:$4 sm:$0xff] %v94
    %v125 = vld.sshfl [vmem:[#allocation1] sm:$0xff pattern:$0x73625140]
    %v129 = vpack.c.bf16 %v122, %v121
    %v130 = vpack.c.bf16 %v125, %v125
    %v131 = vrot.slane %v92, 2
    %v132 = vrot.slane %v94, 2
    %vm133 = vcmask 1040384
    %vm134 = vcmask 1042434
    %vm135 = vmor %vm133, %vm134
    %vm136 = vcmask 1044484
    %vm137 = vmor %vm135, %vm136
    %vm138 = vcmask 1046534
    %vm139 = vmor %vm137, %vm138
    %v140 = vrot.slane %v91, 7
    %v141 = vrot.slane %v140, 2
    %v142 = vrot.slane %v99, 7
    %v143 = vsel %vm139, %v141, %v142
    %v144 = vrot.slane %v142, 2
    %v145 = vrot.slane %v100, 7
    %v146 = vsel %vm139, %v144, %v145
    %v147 = vrot.slane %v145, 2
    %v148 = vrot.slane %v101, 7
    %v149 = vsel %vm139, %v147, %v148
    %v150 = vrot.slane %v148, 2
    %v151 = vrot.slane %v92, 7
    %v152 = vsel %vm139, %v150, %v151
    %v153 = vrot.slane %v151, 2
    %v154 = vrot.slane %v131, 7
    %v155 = vsel %vm139, %v153, %v154
    %v156 = vrot.slane %v93, 7
    %v157 = vrot.slane %v156, 2
    %v158 = vrot.slane %v102, 7
    %v159 = vsel %vm139, %v157, %v158
    %v160 = vrot.slane %v158, 2
    %v161 = vrot.slane %v103, 7
    %v162 = vsel %vm139, %v160, %v161
    %v163 = vrot.slane %v161, 2
    %v164 = vrot.slane %v104, 7
    %v165 = vsel %vm139, %v163, %v164
    %v166 = vrot.slane %v164, 2
    %v167 = vrot.slane %v94, 7
    %v168 = vsel %vm139, %v166, %v167
    %v169 = vrot.slane %v167, 2
    %v170 = vrot.slane %v132, 7
    %v171 = vsel %vm139, %v169, %v170
    %s172 = scalar_lea.vmem %s1, 2
    %v173 = vld [vmem:[%s172] sm:$0x3]
    %174 = vst [vmem:[#allocation1] ss:$4 sm:$0xff] %v143
    %s175 = scalar_lea.vmem [#allocation1], 1
    %176 = vst [vmem:[%s175] ss:$4 sm:$0xff] %v146
    %s177 = scalar_lea.vmem [#allocation1], 2
    %178 = vst [vmem:[%s177] ss:$4 sm:$0xff] %v149
    %s179 = scalar_lea.vmem [#allocation1], 3
    %180 = vst [vmem:[%s179] ss:$4 sm:$0xff] %v152
    %s181 = scalar_lea.vmem [#allocation1], 32
    %182 = vst [vmem:[%s181] ss:$4 sm:$0xff] %v155
    %s183 = scalar_lea.vmem [#allocation1], 33
    %184 = vst [vmem:[%s183] ss:$4 sm:$0xff] %v159
    %s185 = scalar_lea.vmem [#allocation1], 34
    %186 = vst [vmem:[%s185] ss:$4 sm:$0xff] %v162
    %s187 = scalar_lea.vmem [#allocation1], 35
    %188 = vst [vmem:[%s187] ss:$4 sm:$0xff] %v165
    %v189 = vld.sshfl [vmem:[#allocation1] sm:$0xff pattern:$0x73625140]
    %v190 = vld.sshfl [vmem:[#allocation1 + $0x20] sm:$0xff pattern:$0x73625140]
    %191 = vst [vmem:[#allocation1] ss:$4 sm:$0xff] %v168
    %192 = vst [vmem:[%s175] ss:$4 sm:$0xff] %v171
    %v193 = vld.sshfl [vmem:[#allocation1] sm:$0xff pattern:$0x73625140]
    %v197 = vpack.c.bf16 %v190, %v189
    %v198 = vpack.c.bf16 %v193, %v193
    %vm199 = vcmask 31744
    %v201 = vsel %vm199, %v197, 0
    %v204 = vsel %vm199, %v198, 0
    %vm206 = vcmask 1041408
    %v208 = vsel %vm206, %v173, 0
    %210 = vmatpush.bf16.msra.mxu0 0
    %211 = vmatpush.bf16.msra.mxu0 0
    %212 = vmatpush.bf16.msra.mxu0 0
    %213 = vmatpush.bf16.msra.mxu0 0
    %214 = vmatpush.bf16.msra.mxu0 0
    %215 = vmatpush.bf16.msra.mxu0 0
    %216 = vmatpush.bf16.msra.mxu0 0
    %217 = vmatpush.bf16.msra.mxu0 %v208
    %218 = vmatmul.bf16.gmra.mxu0 %v201
    %v219 = vpop.f32.mrf.mxu0
    %v220 = vadd.f32 0.0, %v219
    %v221 = vpop.f32.mrf.mxu0
    %v222 = vadd.f32 0.0, %v221
    %223 = vmatmul.bf16.gmra.mxu0 %v204
    %v224 = vpop.f32.mrf.mxu0
    %v225 = vadd.f32 0.0, %v224
    %v226 = vpop.f32.mrf.mxu0
    %227 = vdwg.mxu0
    %v229 = vsel %vm199, %v129, 0
    %v232 = vsel %vm199, %v130, 0
    %v235 = vsel %vm206, %v105, 0
    %237 = vmatpush.bf16.msra.mxu0 0
    %238 = vmatpush.bf16.msra.mxu0 0
    %239 = vmatpush.bf16.msra.mxu0 0
    %240 = vmatpush.bf16.msra.mxu0 0
    %241 = vmatpush.bf16.msra.mxu0 0
    %242 = vmatpush.bf16.msra.mxu0 0
    %243 = vmatpush.bf16.msra.mxu0 0
    %244 = vmatpush.bf16.msra.mxu0 %v235
    %245 = vmatmul.bf16.gmra.mxu0 %v229
    %v246 = vpop.f32.mrf.mxu0
    %v247 = vadd.f32 %v220, %v246
    %v248 = vpop.f32.mrf.mxu0
    %v249 = vadd.f32 %v222, %v248
    %250 = vmatmul.bf16.gmra.mxu0 %v232
    %v251 = vpop.f32.mrf.mxu0
    %v252 = vadd.f32 %v225, %v251
    %v253 = vpop.f32.mrf.mxu0
    %254 = vdwg.mxu0
    %255 = vst.sshfl [vmem:[#allocation1] sm:$0xff pattern:$0x73625140] %v91
    %256 = vst.sshfl [vmem:[#allocation1 + $0x20] sm:$0xff pattern:$0x73625140] %v92
    %s257 = scalar_lea.vmem [#allocation1], 1
    %v258 = vld [vmem:[%s257] ss:$4 sm:$0xff]
    %s259 = scalar_lea.vmem [#allocation1], 2
    %v260 = vld [vmem:[%s259] ss:$4 sm:$0xff]
    %s261 = scalar_lea.vmem [#allocation1], 3
    %v262 = vld [vmem:[%s261] ss:$4 sm:$0xff]
    %s263 = scalar_lea.vmem [#allocation1], 32
    %v264 = vld [vmem:[%s263] ss:$4 sm:$0xff]
    %s265 = scalar_lea.vmem [#allocation1], 33
    %v266 = vld [vmem:[%s265] ss:$4 sm:$0xff]
    %267 = vst.sshfl [vmem:[#allocation1] sm:$0xff pattern:$0x73625140] %v93
    %268 = vst.sshfl [vmem:[#allocation1 + $0x20] sm:$0xff pattern:$0x73625140] %v94
    %v269 = vld [vmem:[%s257] ss:$4 sm:$0xff]
    %v270 = vld [vmem:[%s259] ss:$4 sm:$0xff]
    %v271 = vld [vmem:[%s261] ss:$4 sm:$0xff]
    %v272 = vld [vmem:[%s263] ss:$4 sm:$0xff]
    %v273 = vld [vmem:[%s265] ss:$4 sm:$0xff]
    %s274 = scalar_lea.vmem %s1, 4
    %v275 = vld [vmem:[%s274] sm:$0x3]
    %276 = vst [vmem:[#allocation1] ss:$4 sm:$0xff] %v258
    %s277 = scalar_lea.vmem [#allocation1], 1
    %278 = vst [vmem:[%s277] ss:$4 sm:$0xff] %v260
    %s279 = scalar_lea.vmem [#allocation1], 2
    %280 = vst [vmem:[%s279] ss:$4 sm:$0xff] %v262
    %s281 = scalar_lea.vmem [#allocation1], 3
    %282 = vst [vmem:[%s281] ss:$4 sm:$0xff] %v264
    %s283 = scalar_lea.vmem [#allocation1], 32
    %284 = vst [vmem:[%s283] ss:$4 sm:$0xff] %v266
    %s285 = scalar_lea.vmem [#allocation1], 33
    %286 = vst [vmem:[%s285] ss:$4 sm:$0xff] %v269
    %s287 = scalar_lea.vmem [#allocation1], 34
    %288 = vst [vmem:[%s287] ss:$4 sm:$0xff] %v270
    %s289 = scalar_lea.vmem [#allocation1], 35
    %290 = vst [vmem:[%s289] ss:$4 sm:$0xff] %v271
    %v291 = vld.sshfl [vmem:[#allocation1] sm:$0xff pattern:$0x73625140]
    %v292 = vld.sshfl [vmem:[#allocation1 + $0x20] sm:$0xff pattern:$0x73625140]
    %293 = vst [vmem:[#allocation1] ss:$4 sm:$0xff] %v272
    %294 = vst [vmem:[%s277] ss:$4 sm:$0xff] %v273
    %v295 = vld.sshfl [vmem:[#allocation1] sm:$0xff pattern:$0x73625140]
    %v299 = vpack.c.bf16 %v292, %v291
    %v300 = vpack.c.bf16 %v295, %v295
    %v302 = vsel %vm199, %v299, 0
    %v305 = vsel %vm199, %v300, 0
    %v308 = vsel %vm206, %v275, 0
    %310 = vmatpush.bf16.msra.mxu0 0
    %311 = vmatpush.bf16.msra.mxu0 0
    %312 = vmatpush.bf16.msra.mxu0 0
    %313 = vmatpush.bf16.msra.mxu0 0
    %314 = vmatpush.bf16.msra.mxu0 0
    %315 = vmatpush.bf16.msra.mxu0 0
    %316 = vmatpush.bf16.msra.mxu0 0
    %317 = vmatpush.bf16.msra.mxu0 %v308
    %318 = vmatmul.bf16.gmra.mxu0 %v302
    %v319 = vpop.f32.mrf.mxu0
    %v320 = vadd.f32 0.0, %v319
    %v321 = vpop.f32.mrf.mxu0
    %v322 = vadd.f32 0.0, %v321
    %323 = vmatmul.bf16.gmra.mxu0 %v305
    %v324 = vpop.f32.mrf.mxu0
    %v325 = vadd.f32 0.0, %v324
    %v326 = vpop.f32.mrf.mxu0
    %327 = vdwg.mxu0
    %v328 = vadd.f32 %v247, %v320
    %v329 = vadd.f32 %v249, %v322
    %v330 = vadd.f32 %v252, %v325
    %v331 = vld [vmem:[%s2] sm:$0x1]
    %v333 = vperm.slane %v331, 0
    %v335 = vadd.f32 %v328, %v333
    %v336 = vadd.f32 %v329, %v333
    %v337 = vadd.f32 %v330, %v333
    %v338 = vmax.f32 %v335, 0.0
    %v339 = vmax.f32 %v336, 0.0
    %v340 = vmax.f32 %v337, 0.0
    %v344 = vrot.slane %v338, 2
    %v345 = vrot.slane %v338, 4
    %v346 = vrot.slane %v338, 6
    %v347 = vrot.slane %v339, 2
    %v348 = vrot.slane %v339, 4
    %v349 = vrot.slane %v339, 6
    %v350 = vrot.slane %v340, 2
    %v351 = vlaneseq
    %v352 = vshrl.u32 %v351, 7
    %v353 = vadd.s32 %v352, 8
    %vm354 = vcmp.eq.s32.totalorder %v352, 0
    %vm355 = vcmp.eq.s32.totalorder %v353, 0
    %vm356 = vcmp.eq.s32.totalorder %v352, 9
    %vm357 = vcmp.eq.s32.totalorder %v353, 9
    %vm358 = vmor %vm354, %vm356
    %vm359 = vmor %vm355, %vm357
    %v360 = vsel %vm358, 1, 0
    %v361 = vsel %vm359, 1, 0
    %vm362 = vcmp.eq.s32.totalorder %v360, 1
    %vm363 = vcmp.eq.s32.totalorder %v361, 1
    %364 = vst [vmem:[#allocation1] ss:$4 sm:$0xff] %v338
    %s365 = scalar_lea.vmem [#allocation1], 1
    %366 = vst [vmem:[%s365] ss:$4 sm:$0xff] %v344
    %s367 = scalar_lea.vmem [#allocation1], 2
    %368 = vst [vmem:[%s367] ss:$4 sm:$0xff] %v345
    %s369 = scalar_lea.vmem [#allocation1], 3
    %370 = vst [vmem:[%s369] ss:$4 sm:$0xff] %v346
    %s371 = scalar_lea.vmem [#allocation1], 32
    %372 = vst [vmem:[%s371] ss:$4 sm:$0xff] %v339
    %v373 = vld.sshfl [vmem:[#allocation1] sm:$0xff pattern:$0x73625140]
    %v374 = vld.sshfl [vmem:[#allocation1 + $0x20] sm:$0xff pattern:$0x73625140]
    %375 = vst [vmem:[#allocation1] ss:$4 sm:$0xff] %v347
    %376 = vst [vmem:[%s365] ss:$4 sm:$0xff] %v348
    %377 = vst [vmem:[%s367] ss:$4 sm:$0xff] %v349
    %378 = vst [vmem:[%s369] ss:$4 sm:$0xff] %v340
    %379 = vst [vmem:[%s371] ss:$4 sm:$0xff] %v350
    %v380 = vld.sshfl [vmem:[#allocation1] sm:$0xff pattern:$0x73625140]
    %v381 = vld.sshfl [vmem:[#allocation1 + $0x20] sm:$0xff pattern:$0x73625140]
    %v386 = vsel %vm362, 0.0, %v373
    %v387 = vsel %vm363, 0.0, %v374
    %v388 = vsel %vm362, 0.0, %v380
    %v389 = vsel %vm363, 0.0, %v381
    %v390 = vld [vmem:[%s3] sm:$0xf]
    %v391 = vld [vmem:[%s3 + $0x4] sm:$0xf]
    %v392 = vld [vmem:[%s3 + $0x8] sm:$0xf]
    %v393 = vld [vmem:[%s3 + $0xc] sm:$0xf]
    %v394 = vld [vmem:[%s3 + $0x10] sm:$0xf]
    %v395 = vld [vmem:[%s3 + $0x14] sm:$0xf]
    %v396 = vld [vmem:[%s3 + $0x18] sm:$0xf]
    %v397 = vld [vmem:[%s3 + $0x1c] sm:$0xf]
    %v398 = vpack.c.bf16 %v388, %v386
    %vm403 = vcmask 1046528
    %v404 = vrot.slane %v386, 1
    %v405 = vrot.slane %v387, 1
    %v406 = vsel %vm403, %v404, %v405
    %v407 = vrot.slane %v388, 1
    %v408 = vrot.slane %v389, 1
    %v409 = vsel %vm403, %v407, %v408
    %s412 = scalar_lea.vmem %s3, 32
    %v413 = vld [vmem:[%s412] sm:$0xf]
    %v414 = vld [vmem:[%s412 + $0x4] sm:$0xf]
    %v415 = vld [vmem:[%s412 + $0x8] sm:$0xf]
    %v416 = vld [vmem:[%s412 + $0xc] sm:$0xf]
    %v417 = vld [vmem:[%s412 + $0x10] sm:$0xf]
    %v418 = vld [vmem:[%s412 + $0x14] sm:$0xf]
    %v419 = vld [vmem:[%s412 + $0x18] sm:$0xf]
    %v420 = vld [vmem:[%s412 + $0x1c] sm:$0xf]
    %v421 = vpack.c.bf16 %v409, %v406
    %v430 = vunpack.c.l.b16 %v413
    %v431 = vunpack.c.l.b16 %v414
    %v432 = vunpack.c.l.b16 %v415
    %v433 = vunpack.c.l.b16 %v416
    %v434 = vunpack.c.l.b16 %v417
    %v435 = vunpack.c.l.b16 %v418
    %v436 = vunpack.c.l.b16 %v419
    %v437 = vunpack.c.l.b16 %v420
    %v438 = vpack.c.b16 %v431, %v430
    %v439 = vpack.c.b16 %v433, %v432
    %v440 = vpack.c.b16 %v435, %v434
    %v441 = vpack.c.b16 %v437, %v436
    %vm446 = vcmask 523264
    %v448 = vsel %vm446, %v421, 0
    %450 = vmatpush.bf16.msra.mxu0 0
    %451 = vmatpush.bf16.msra.mxu0 0
    %452 = vmatpush.bf16.msra.mxu0 0
    %453 = vmatpush.bf16.msra.mxu0 0
    %454 = vmatpush.bf16.msra.mxu0 %v441
    %455 = vmatpush.bf16.msra.mxu0 %v440
    %456 = vmatpush.bf16.msra.mxu0 %v439
    %457 = vmatpush.bf16.msra.mxu0 %v438
    %458 = vmatmul.bf16.gmra.mxu0 %v448
    %v459 = vpop.f32.mrf.mxu0
    %v460 = vadd.f32 0.0, %v459
    %v461 = vpop.f32.mrf.mxu0
    %v462 = vadd.f32 0.0, %v461
    %463 = vdwg.mxu0
    %v472 = vunpack.c.l.b16 %v390
    %v473 = vunpack.c.l.b16 %v391
    %v474 = vunpack.c.l.b16 %v392
    %v475 = vunpack.c.l.b16 %v393
    %v476 = vunpack.c.l.b16 %v394
    %v477 = vunpack.c.l.b16 %v395
    %v478 = vunpack.c.l.b16 %v396
    %v479 = vunpack.c.l.b16 %v397
    %v480 = vpack.c.b16 %v473, %v472
    %v481 = vpack.c.b16 %v475, %v474
    %v482 = vpack.c.b16 %v477, %v476
    %v483 = vpack.c.b16 %v479, %v478
    %v489 = vsel %vm446, %v398, 0
    %491 = vmatpush.bf16.msra.mxu0 0
    %492 = vmatpush.bf16.msra.mxu0 0
    %493 = vmatpush.bf16.msra.mxu0 0
    %494 = vmatpush.bf16.msra.mxu0 0
    %495 = vmatpush.bf16.msra.mxu0 %v483
    %496 = vmatpush.bf16.msra.mxu0 %v482
    %497 = vmatpush.bf16.msra.mxu0 %v481
    %498 = vmatpush.bf16.msra.mxu0 %v480
    %499 = vmatmul.bf16.gmra.mxu0 %v489
    %v500 = vpop.f32.mrf.mxu0
    %v501 = vadd.f32 %v460, %v500
    %v502 = vpop.f32.mrf.mxu0
    %v503 = vadd.f32 %v462, %v502
    %504 = vdwg.mxu0
    %vm505 = vcmask 1045504
    %v506 = vrot.slane %v386, 2
    %v507 = vrot.slane %v387, 2
    %v508 = vsel %vm505, %v506, %v507
    %v509 = vrot.slane %v388, 2
    %v510 = vrot.slane %v389, 2
    %v511 = vsel %vm505, %v509, %v510
    %s514 = scalar_lea.vmem %s3, 64
    %v515 = vld [vmem:[%s514] sm:$0xf]
    %v516 = vld [vmem:[%s514 + $0x4] sm:$0xf]
    %v517 = vld [vmem:[%s514 + $0x8] sm:$0xf]
    %v518 = vld [vmem:[%s514 + $0xc] sm:$0xf]
    %v519 = vld [vmem:[%s514 + $0x10] sm:$0xf]
    %v520 = vld [vmem:[%s514 + $0x14] sm:$0xf]
    %v521 = vld [vmem:[%s514 + $0x18] sm:$0xf]
    %v522 = vld [vmem:[%s514 + $0x1c] sm:$0xf]
    %v523 = vpack.c.bf16 %v511, %v508
    %v532 = vunpack.c.l.b16 %v515
    %v533 = vunpack.c.l.b16 %v516
    %v534 = vunpack.c.l.b16 %v517
    %v535 = vunpack.c.l.b16 %v518
    %v536 = vunpack.c.l.b16 %v519
    %v537 = vunpack.c.l.b16 %v520
    %v538 = vunpack.c.l.b16 %v521
    %v539 = vunpack.c.l.b16 %v522
    %v540 = vpack.c.b16 %v533, %v532
    %v541 = vpack.c.b16 %v535, %v534
    %v542 = vpack.c.b16 %v537, %v536
    %v543 = vpack.c.b16 %v539, %v538
    %v549 = vsel %vm446, %v523, 0
    %551 = vmatpush.bf16.msra.mxu0 0
    %552 = vmatpush.bf16.msra.mxu0 0
    %553 = vmatpush.bf16.msra.mxu0 0
    %554 = vmatpush.bf16.msra.mxu0 0
    %555 = vmatpush.bf16.msra.mxu0 %v543
    %556 = vmatpush.bf16.msra.mxu0 %v542
    %557 = vmatpush.bf16.msra.mxu0 %v541
    %558 = vmatpush.bf16.msra.mxu0 %v540
    %559 = vmatmul.bf16.gmra.mxu0 %v549
    %v560 = vpop.f32.mrf.mxu0
    %v561 = vadd.f32 0.0, %v560
    %v562 = vpop.f32.mrf.mxu0
    %v563 = vadd.f32 0.0, %v562
    %564 = vdwg.mxu0
    %v565 = vadd.f32 %v501, %v561
    %v566 = vadd.f32 %v503, %v563
    %v567 = vld [vmem:[%s4] sm:$0x1]
    %v569 = vperm.slane %v567, 0
    %v571 = vadd.f32 %v565, %v569
    %v572 = vadd.f32 %v566, %v569
    %v573 = vmax.f32 %v571, 0.0
    %v574 = vmax.f32 %v572, 0.0
    %v575 = vrot.slane %v573, 4
    %v576 = vadd.f32 %v573, %v575
    %v577 = vrot.slane %v576, 2
    %v578 = vadd.f32 %v576, %v577
    %v579 = vrot.slane %v578, 1
    %v580 = vadd.f32 %v578, %v579
    %v581 = vrot.slane %v574, 4
    %v582 = vadd.f32 %v574, %v581
    %v583 = vrot.slane %v582, 2
    %v584 = vadd.f32 %v582, %v583
    %v585 = vrot.slane %v584, 1
    %v586 = vadd.f32 %v584, %v585
    %v587 = vrcp.pop 8.0
    %v588 = vmul.f32 8.0, %v587
    %v589 = vsub.f32 1.0, %v588
    %v590 = vmul.f32 %v587, %v589
    %v591 = vadd.f32 %v587, %v590
    %vm592 = vweird.f32 %v587
    %v593 = vsel %vm592, %v587, %v591
    %v594 = vmul.f32 %v580, %v593
    %v595 = vmul.f32 %v586, %v593
    %v596 = vsel %vm505, %v99, %v131
    %v597 = vsel %vm505, %v102, %v132
    %v600 = vld [vmem:[%s5] sm:$0x3]
    %v601 = vpack.c.bf16 %v597, %v596
    %v602 = vld [vmem:[%s6] sm:$0x1]
    %v604 = vperm.slane %v602, 0
    %v607 = vsel %vm199, %v601, 0
    %v610 = vsel %vm206, %v600, 0
    %612 = vmatpush.bf16.msra.mxu0 0
    %613 = vmatpush.bf16.msra.mxu0 0
    %614 = vmatpush.bf16.msra.mxu0 0
    %615 = vmatpush.bf16.msra.mxu0 0
    %616 = vmatpush.bf16.msra.mxu0 0
    %617 = vmatpush.bf16.msra.mxu0 0
    %618 = vmatpush.bf16.msra.mxu0 0
    %619 = vmatpush.bf16.msra.mxu0 %v610
    %620 = vmatmul.bf16.gmra.mxu0 %v607
    %v621 = vpop.f32.mrf.mxu0
    %v622 = vadd.f32 %v604, %v621
    %v623 = vpop.f32.mrf.mxu0
    %v624 = vadd.f32 %v604, %v623
    %625 = vdwg.mxu0
    %v626 = vld [vmem:[%s7] sm:$0xff]
    %v627 = vld [vmem:[%s7 + $0x8] sm:$0xff]
    %v628 = vld [vmem:[%s7 + $0x10] sm:$0xff]
    %v629 = vld [vmem:[%s7 + $0x18] sm:$0xff]
    %v630 = vld [vmem:[%s7 + $0x20] sm:$0xff]
    %v631 = vld [vmem:[%s7 + $0x28] sm:$0xff]
    %v632 = vld [vmem:[%s7 + $0x30] sm:$0xff]
    %v633 = vld [vmem:[%s7 + $0x38] sm:$0xff]
    %v634 = vpack.c.bf16 %v624, %v622
    %v635 = vld [vmem:[%s8] sm:$0x3]
    %v637 = vperm.slane %v635, 0
    %v638 = vperm.slane %v635, 1
    %v649 = vunpack.c.l.b16 %v626
    %v650 = vunpack.c.h.b16 %v626
    %v651 = vunpack.c.l.b16 %v627
    %v652 = vunpack.c.h.b16 %v627
    %v653 = vunpack.c.l.b16 %v628
    %v654 = vunpack.c.h.b16 %v628
    %v655 = vunpack.c.l.b16 %v629
    %v656 = vunpack.c.h.b16 %v629
    %v657 = vunpack.c.l.b16 %v630
    %v658 = vunpack.c.h.b16 %v630
    %v659 = vunpack.c.l.b16 %v631
    %v660 = vunpack.c.h.b16 %v631
    %v661 = vunpack.c.l.b16 %v632
    %v662 = vunpack.c.h.b16 %v632
    %v663 = vunpack.c.l.b16 %v633
    %v664 = vunpack.c.h.b16 %v633
    %v665 = vpack.c.b16 %v651, %v649
    %v666 = vpack.c.b16 %v652, %v650
    %v667 = vpack.c.b16 %v655, %v653
    %v668 = vpack.c.b16 %v656, %v654
    %v669 = vpack.c.b16 %v659, %v657
    %v670 = vpack.c.b16 %v660, %v658
    %v671 = vpack.c.b16 %v663, %v661
    %v672 = vpack.c.b16 %v664, %v662
    %v682 = vsel %vm446, %v634, 0
    %684 = vmatpush.bf16.msra.mxu0 0
    %685 = vmatpush.bf16.msra.mxu0 0
    %686 = vmatpush.bf16.msra.mxu0 0
    %687 = vmatpush.bf16.msra.mxu0 0
    %688 = vmatpush.bf16.msra.mxu0 %v671
    %689 = vmatpush.bf16.msra.mxu0 %v669
    %690 = vmatpush.bf16.msra.mxu0 %v667
    %691 = vmatpush.bf16.msra.mxu0 %v665
    %692 = vmatmul.bf16.gmra.mxu0 %v682
    %v693 = vpop.f32.mrf.mxu0
    %v694 = vadd.f32 %v637, %v693
    %v695 = vpop.f32.mrf.mxu0
    %v696 = vadd.f32 %v637, %v695
    %697 = vdwg.mxu0
    %698 = vmatpush.bf16.msra.mxu0 0
    %699 = vmatpush.bf16.msra.mxu0 0
    %700 = vmatpush.bf16.msra.mxu0 0
    %701 = vmatpush.bf16.msra.mxu0 0
    %702 = vmatpush.bf16.msra.mxu0 %v672
    %703 = vmatpush.bf16.msra.mxu0 %v670
    %704 = vmatpush.bf16.msra.mxu0 %v668
    %705 = vmatpush.bf16.msra.mxu0 %v666
    %706 = vmatmul.bf16.gmra.mxu0 %v682
    %v707 = vpop.f32.mrf.mxu0
    %v708 = vadd.f32 %v638, %v707
    %v709 = vpop.f32.mrf.mxu0
    %v710 = vadd.f32 %v638, %v709
    %711 = vdwg.mxu0
    %v712 = vld [vmem:[%s9] sm:$0xf]
    %v713 = vld [vmem:[%s9 + $0x4] sm:$0xf]
    %v714 = vld [vmem:[%s9 + $0x8] sm:$0xf]
    %v715 = vld [vmem:[%s9 + $0xc] sm:$0xf]
    %v716 = vld [vmem:[%s9 + $0x10] sm:$0xf]
    %v717 = vld [vmem:[%s9 + $0x14] sm:$0xf]
    %v718 = vld [vmem:[%s9 + $0x18] sm:$0xf]
    %v719 = vld [vmem:[%s9 + $0x1c] sm:$0xf]
    %v720 = vld [vmem:[%s10] sm:$0x1]
    %v721 = vpack.c.bf16 %v694, %v694
    %v722 = vpack.c.bf16 %v696, %v696
    %v723 = vpack.c.bf16 %v708, %v708
    %v724 = vpack.c.bf16 %v710, %v710
    %v726 = vunpack.c.l.b16 %v721
    %v727 = vpack.c.b16 %v726, %v726
    %728 = vrot.lane.b32.xlu0 %v727, 64
    %v729 = vpop.permute.xlu0 %728
    %vm730 = vcmask 130048
    %v732 = vsel %vm730, %v721, 0
    %v735 = vsel %vm730, %v729, 0
    %737 = vmatpush.bf16.xpose.msra.mxu0 0
    %738 = vmatpush.bf16.xpose.msra.mxu0 0
    %739 = vmatpush.bf16.xpose.msra.mxu0 0
    %740 = vmatpush.bf16.xpose.msra.mxu0 0
    %741 = vmatpush.bf16.xpose.msra.mxu0 0
    %742 = vmatpush.bf16.xpose.msra.mxu0 0
    %743 = vmatpush.bf16.xpose.msra.mxu0 0
    %744 = vmatpush.bf16.xpose.msra.mxu0 %v735
    %745 = vmatmul.bf16.gmra.mxu0 %v732
    %v746 = vpop.f32.mrf.mxu0
    %v747 = vadd.f32 0.0, %v746
    %v748 = vpop.f32.mrf.mxu0
    %749 = vdwg.mxu0
    %v751 = vunpack.c.l.b16 %v722
    %v752 = vpack.c.b16 %v751, %v751
    %753 = vrot.lane.b32.xlu0 %v752, 64
    %v754 = vpop.permute.xlu0 %753
    %v756 = vsel %vm730, %v722, 0
    %v759 = vsel %vm730, %v754, 0
    %761 = vmatpush.bf16.xpose.msra.mxu0 0
    %762 = vmatpush.bf16.xpose.msra.mxu0 0
    %763 = vmatpush.bf16.xpose.msra.mxu0 0
    %764 = vmatpush.bf16.xpose.msra.mxu0 0
    %765 = vmatpush.bf16.xpose.msra.mxu0 0
    %766 = vmatpush.bf16.xpose.msra.mxu0 0
    %767 = vmatpush.bf16.xpose.msra.mxu0 0
    %768 = vmatpush.bf16.xpose.msra.mxu0 %v759
    %769 = vmatmul.bf16.gmra.mxu0 %v756
    %v770 = vpop.f32.mrf.mxu0
    %v771 = vadd.f32 0.0, %v770
    %v772 = vpop.f32.mrf.mxu0
    %773 = vdwg.mxu0
    %vm774 = vcmask 64512
    %v775 = vsel %vm774, %v747, -inf
    %776 = vmax.xlane.f32.xlu0 %v775
    %v777 = vpop.xlane.xlu0 %776
    %v778 = vsel %vm774, %v771, -inf
    %779 = vmax.xlane.f32.xlu0 %v778
    %v780 = vpop.xlane.xlu0 %779
    %v781 = vsub.f32 %v747, %v777
    %v782 = vsub.f32 %v771, %v780
    %v783 = vmul.f32 %v781, 1.442695
    %v784 = vpow.pop %v783
    %v785 = vmul.f32 %v782, 1.442695
    %v786 = vpow.pop %v785
    %v787 = vsel %vm774, %v784, 0.0
    %788 = vadd.xlane.f32.xlu0 %v787
    %v789 = vpop.xlane.xlu0 %788
    %v790 = vsel %vm774, %v786, 0.0
    %791 = vadd.xlane.f32.xlu0 %v790
    %v792 = vpop.xlane.xlu0 %791
    %v793 = vrcp.pop %v789
    %v794 = vmul.f32 %v789, %v793
    %v795 = vsub.f32 1.0, %v794
    %v796 = vmul.f32 %v793, %v795
    %v797 = vadd.f32 %v793, %v796
    %vm798 = vweird.f32 %v789
    %vm799 = vweird.f32 %v793
    %vm800 = vmor %vm798, %vm799
    %v801 = vsel %vm800, %v793, %v797
    %v802 = vand.u32 2147483647, %v789
    %vm803 = vcmp.eq.f32.partialorder %v802, 8.507059e+37
    %v804 = vand.u32 %v789, 2147483648
    %v805 = vor.u32 1.1754944e-38, %v804
    %v806 = vsel %vm803, %v805, %v801
    %v807 = vmul.f32 %v784, %v806
    %v808 = vrcp.pop %v792
    %v809 = vmul.f32 %v792, %v808
    %v810 = vsub.f32 1.0, %v809
    %v811 = vmul.f32 %v808, %v810
    %v812 = vadd.f32 %v808, %v811
    %vm813 = vweird.f32 %v792
    %vm814 = vweird.f32 %v808
    %vm815 = vmor %vm813, %vm814
    %v816 = vsel %vm815, %v808, %v812
    %v817 = vand.u32 2147483647, %v792
    %vm818 = vcmp.eq.f32.partialorder %v817, 8.507059e+37
    %v819 = vand.u32 %v792, 2147483648
    %v820 = vor.u32 1.1754944e-38, %v819
    %v821 = vsel %vm818, %v820, %v816
    %v822 = vmul.f32 %v786, %v821
    %v823 = vpack.c.bf16 %v807, %v807
    %v824 = vpack.c.bf16 %v822, %v822
    %v826 = vsel %vm774, %v823, 0
    %vm828 = vcmask 1043456
    %v830 = vsel %vm828, %v723, 0
    %832 = vmatpush.bf16.msra.mxu0 0
    %833 = vmatpush.bf16.msra.mxu0 0
    %834 = vmatpush.bf16.msra.mxu0 0
    %835 = vmatpush.bf16.msra.mxu0 0
    %836 = vmatpush.bf16.msra.mxu0 0
    %837 = vmatpush.bf16.msra.mxu0 0
    %838 = vmatpush.bf16.msra.mxu0 0
    %839 = vmatpush.bf16.msra.mxu0 %v830
    %840 = vmatmul.bf16.gmra.mxu0 %v826
    %v841 = vpop.f32.mrf.mxu0
    %v842 = vadd.f32 0.0, %v841
    %v843 = vpop.f32.mrf.mxu0
    %844 = vdwg.mxu0
    %v846 = vsel %vm774, %v824, 0
    %v849 = vsel %vm828, %v724, 0
    %851 = vmatpush.bf16.msra.mxu0 0
    %852 = vmatpush.bf16.msra.mxu0 0
    %853 = vmatpush.bf16.msra.mxu0 0
    %854 = vmatpush.bf16.msra.mxu0 0
    %855 = vmatpush.bf16.msra.mxu0 0
    %856 = vmatpush.bf16.msra.mxu0 0
    %857 = vmatpush.bf16.msra.mxu0 0
    %858 = vmatpush.bf16.msra.mxu0 %v849
    %859 = vmatmul.bf16.gmra.mxu0 %v846
    %v860 = vpop.f32.mrf.mxu0
    %v861 = vadd.f32 0.0, %v860
    %v862 = vpop.f32.mrf.mxu0
    %863 = vdwg.mxu0
    %v864 = vpack.c.bf16 %v861, %v842
    %v867 = vunpack.c.l.b16 %v712
    %v868 = vunpack.c.l.b16 %v713
    %v869 = vpack.c.b16 %v868, %v867
    %v872 = vsel %vm730, %v864, 0
    %874 = vmatpush.bf16.msra.mxu0 0
    %875 = vmatpush.bf16.msra.mxu0 0
    %876 = vmatpush.bf16.msra.mxu0 0
    %877 = vmatpush.bf16.msra.mxu0 0
    %878 = vmatpush.bf16.msra.mxu0 0
    %879 = vmatpush.bf16.msra.mxu0 0
    %880 = vmatpush.bf16.msra.mxu0 0
    %881 = vmatpush.bf16.msra.mxu0 %v869
    %882 = vmatmul.bf16.gmra.mxu0 %v872
    %v883 = vpop.f32.mrf.mxu0
    %v884 = vadd.f32 0.0, %v883
    %v885 = vpop.f32.mrf.mxu0
    %v886 = vadd.f32 0.0, %v885
    %887 = vdwg.mxu0
    %v889 = vperm.slane %v720, 0
    %v891 = vadd.f32 %v889, %v884
    %v892 = vadd.f32 %v889, %v886
    %893 = vrot.lane.b32.xlu0 %v727, 112
    %v894 = vpop.permute.xlu0 %893
    %895 = vrot.lane.b32.xlu0 %v727, 48
    %v896 = vpop.permute.xlu0 %895
    %v898 = vsel %vm730, %v894, 0
    %v901 = vsel %vm730, %v896, 0
    %903 = vmatpush.bf16.xpose.msra.mxu0 0
    %904 = vmatpush.bf16.xpose.msra.mxu0 0
    %905 = vmatpush.bf16.xpose.msra.mxu0 0
    %906 = vmatpush.bf16.xpose.msra.mxu0 0
    %907 = vmatpush.bf16.xpose.msra.mxu0 0
    %908 = vmatpush.bf16.xpose.msra.mxu0 0
    %909 = vmatpush.bf16.xpose.msra.mxu0 0
    %910 = vmatpush.bf16.xpose.msra.mxu0 %v901
    %911 = vmatmul.bf16.gmra.mxu0 %v898
    %v912 = vpop.f32.mrf.mxu0
    %v913 = vadd.f32 0.0, %v912
    %v914 = vpop.f32.mrf.mxu0
    %915 = vdwg.mxu0
    %916 = vrot.lane.b32.xlu0 %v752, 112
    %v917 = vpop.permute.xlu0 %916
    %918 = vrot.lane.b32.xlu0 %v752, 48
    %v919 = vpop.permute.xlu0 %918
    %v921 = vsel %vm730, %v917, 0
    %v924 = vsel %vm730, %v919, 0
    %926 = vmatpush.bf16.xpose.msra.mxu0 0
    %927 = vmatpush.bf16.xpose.msra.mxu0 0
    %928 = vmatpush.bf16.xpose.msra.mxu0 0
    %929 = vmatpush.bf16.xpose.msra.mxu0 0
    %930 = vmatpush.bf16.xpose.msra.mxu0 0
    %931 = vmatpush.bf16.xpose.msra.mxu0 0
    %932 = vmatpush.bf16.xpose.msra.mxu0 0
    %933 = vmatpush.bf16.xpose.msra.mxu0 %v924
    %934 = vmatmul.bf16.gmra.mxu0 %v921
    %v935 = vpop.f32.mrf.mxu0
    %v936 = vadd.f32 0.0, %v935
    %v937 = vpop.f32.mrf.mxu0
    %938 = vdwg.mxu0
    %v939 = vsel %vm774, %v913, -inf
    %940 = vmax.xlane.f32.xlu0 %v939
    %v941 = vpop.xlane.xlu0 %940
    %v942 = vsel %vm774, %v936, -inf
    %943 = vmax.xlane.f32.xlu0 %v942
    %v944 = vpop.xlane.xlu0 %943
    %v945 = vsub.f32 %v913, %v941
    %v946 = vsub.f32 %v936, %v944
    %v947 = vmul.f32 %v945, 1.442695
    %v948 = vpow.pop %v947
    %v949 = vmul.f32 %v946, 1.442695
    %v950 = vpow.pop %v949
    %v951 = vsel %vm774, %v948, 0.0
    %952 = vadd.xlane.f32.xlu0 %v951
    %v953 = vpop.xlane.xlu0 %952
    %v954 = vsel %vm774, %v950, 0.0
    %955 = vadd.xlane.f32.xlu0 %v954
    %v956 = vpop.xlane.xlu0 %955
    %v957 = vrcp.pop %v953
    %v958 = vmul.f32 %v953, %v957
    %v959 = vsub.f32 1.0, %v958
    %v960 = vmul.f32 %v957, %v959
    %v961 = vadd.f32 %v957, %v960
    %vm962 = vweird.f32 %v953
    %vm963 = vweird.f32 %v957
    %vm964 = vmor %vm962, %vm963
    %v965 = vsel %vm964, %v957, %v961
    %v966 = vand.u32 2147483647, %v953
    %vm967 = vcmp.eq.f32.partialorder %v966, 8.507059e+37
    %v968 = vand.u32 %v953, 2147483648
    %v969 = vor.u32 1.1754944e-38, %v968
    %v970 = vsel %vm967, %v969, %v965
    %v971 = vmul.f32 %v948, %v970
    %v972 = vrcp.pop %v956
    %v973 = vmul.f32 %v956, %v972
    %v974 = vsub.f32 1.0, %v973
    %v975 = vmul.f32 %v972, %v974
    %v976 = vadd.f32 %v972, %v975
    %vm977 = vweird.f32 %v956
    %vm978 = vweird.f32 %v972
    %vm979 = vmor %vm977, %vm978
    %v980 = vsel %vm979, %v972, %v976
    %v981 = vand.u32 2147483647, %v956
    %vm982 = vcmp.eq.f32.partialorder %v981, 8.507059e+37
    %v983 = vand.u32 %v956, 2147483648
    %v984 = vor.u32 1.1754944e-38, %v983
    %v985 = vsel %vm982, %v984, %v980
    %v986 = vmul.f32 %v950, %v985
    %v987 = vpack.c.bf16 %v971, %v971
    %v988 = vpack.c.bf16 %v986, %v986
    %v990 = vunpack.c.l.b16 %v723
    %v991 = vpack.c.b16 %v990, %v990
    %992 = vrot.lane.b32.xlu0 %v991, 112
    %v993 = vpop.permute.xlu0 %992
    %v995 = vsel %vm774, %v987, 0
    %v998 = vsel %vm828, %v993, 0
    %1000 = vmatpush.bf16.msra.mxu0 0
    %1001 = vmatpush.bf16.msra.mxu0 0
    %1002 = vmatpush.bf16.msra.mxu0 0
    %1003 = vmatpush.bf16.msra.mxu0 0
    %1004 = vmatpush.bf16.msra.mxu0 0
    %1005 = vmatpush.bf16.msra.mxu0 0
    %1006 = vmatpush.bf16.msra.mxu0 0
    %1007 = vmatpush.bf16.msra.mxu0 %v998
    %1008 = vmatmul.bf16.gmra.mxu0 %v995
    %v1009 = vpop.f32.mrf.mxu0
    %v1010 = vadd.f32 0.0, %v1009
    %v1011 = vpop.f32.mrf.mxu0
    %1012 = vdwg.mxu0
    %v1014 = vunpack.c.l.b16 %v724
    %v1015 = vpack.c.b16 %v1014, %v1014
    %1016 = vrot.lane.b32.xlu0 %v1015, 112
    %v1017 = vpop.permute.xlu0 %1016
    %v1019 = vsel %vm774, %v988, 0
    %v1022 = vsel %vm828, %v1017, 0
    %1024 = vmatpush.bf16.msra.mxu0 0
    %1025 = vmatpush.bf16.msra.mxu0 0
    %1026 = vmatpush.bf16.msra.mxu0 0
    %1027 = vmatpush.bf16.msra.mxu0 0
    %1028 = vmatpush.bf16.msra.mxu0 0
    %1029 = vmatpush.bf16.msra.mxu0 0
    %1030 = vmatpush.bf16.msra.mxu0 0
    %1031 = vmatpush.bf16.msra.mxu0 %v1022
    %1032 = vmatmul.bf16.gmra.mxu0 %v1019
    %v1033 = vpop.f32.mrf.mxu0
    %v1034 = vadd.f32 0.0, %v1033
    %v1035 = vpop.f32.mrf.mxu0
    %1036 = vdwg.mxu0
    %v1037 = vpack.c.bf16 %v1034, %v1010
    %v1040 = vunpack.c.l.b16 %v714
    %v1041 = vunpack.c.l.b16 %v715
    %v1042 = vpack.c.b16 %v1041, %v1040
    %v1045 = vsel %vm730, %v1037, 0
    %1047 = vmatpush.bf16.msra.mxu0 0
    %1048 = vmatpush.bf16.msra.mxu0 0
    %1049 = vmatpush.bf16.msra.mxu0 0
    %1050 = vmatpush.bf16.msra.mxu0 0
    %1051 = vmatpush.bf16.msra.mxu0 0
    %1052 = vmatpush.bf16.msra.mxu0 0
    %1053 = vmatpush.bf16.msra.mxu0 0
    %1054 = vmatpush.bf16.msra.mxu0 %v1042
    %1055 = vmatmul.bf16.gmra.mxu0 %v1045
    %v1056 = vpop.f32.mrf.mxu0
    %v1057 = vadd.f32 0.0, %v1056
    %v1058 = vpop.f32.mrf.mxu0
    %v1059 = vadd.f32 0.0, %v1058
    %1060 = vdwg.mxu0
    %v1061 = vadd.f32 %v891, %v1057
    %v1062 = vadd.f32 %v892, %v1059
    %1063 = vrot.lane.b32.xlu0 %v727, 96
    %v1064 = vpop.permute.xlu0 %1063
    %1065 = vrot.lane.b32.xlu0 %v727, 32
    %v1066 = vpop.permute.xlu0 %1065
    %v1068 = vsel %vm730, %v1064, 0
    %v1071 = vsel %vm730, %v1066, 0
    %1073 = vmatpush.bf16.xpose.msra.mxu0 0
    %1074 = vmatpush.bf16.xpose.msra.mxu0 0
    %1075 = vmatpush.bf16.xpose.msra.mxu0 0
    %1076 = vmatpush.bf16.xpose.msra.mxu0 0
    %1077 = vmatpush.bf16.xpose.msra.mxu0 0
    %1078 = vmatpush.bf16.xpose.msra.mxu0 0
    %1079 = vmatpush.bf16.xpose.msra.mxu0 0
    %1080 = vmatpush.bf16.xpose.msra.mxu0 %v1071
    %1081 = vmatmul.bf16.gmra.mxu0 %v1068
    %v1082 = vpop.f32.mrf.mxu0
    %v1083 = vadd.f32 0.0, %v1082
    %v1084 = vpop.f32.mrf.mxu0
    %1085 = vdwg.mxu0
    %1086 = vrot.lane.b32.xlu0 %v752, 96
    %v1087 = vpop.permute.xlu0 %1086
    %1088 = vrot.lane.b32.xlu0 %v752, 32
    %v1089 = vpop.permute.xlu0 %1088
    %v1091 = vsel %vm730, %v1087, 0
    %v1094 = vsel %vm730, %v1089, 0
    %1096 = vmatpush.bf16.xpose.msra.mxu0 0
    %1097 = vmatpush.bf16.xpose.msra.mxu0 0
    %1098 = vmatpush.bf16.xpose.msra.mxu0 0
    %1099 = vmatpush.bf16.xpose.msra.mxu0 0
    %1100 = vmatpush.bf16.xpose.msra.mxu0 0
    %1101 = vmatpush.bf16.xpose.msra.mxu0 0
    %1102 = vmatpush.bf16.xpose.msra.mxu0 0
    %1103 = vmatpush.bf16.xpose.msra.mxu0 %v1094
    %1104 = vmatmul.bf16.gmra.mxu0 %v1091
    %v1105 = vpop.f32.mrf.mxu0
    %v1106 = vadd.f32 0.0, %v1105
    %v1107 = vpop.f32.mrf.mxu0
    %1108 = vdwg.mxu0
    %v1109 = vsel %vm774, %v1083, -inf
    %1110 = vmax.xlane.f32.xlu0 %v1109
    %v1111 = vpop.xlane.xlu0 %1110
    %v1112 = vsel %vm774, %v1106, -inf
    %1113 = vmax.xlane.f32.xlu0 %v1112
    %v1114 = vpop.xlane.xlu0 %1113
    %v1115 = vsub.f32 %v1083, %v1111
    %v1116 = vsub.f32 %v1106, %v1114
    %v1117 = vmul.f32 %v1115, 1.442695
    %v1118 = vpow.pop %v1117
    %v1119 = vmul.f32 %v1116, 1.442695
    %v1120 = vpow.pop %v1119
    %v1121 = vsel %vm774, %v1118, 0.0
    %1122 = vadd.xlane.f32.xlu0 %v1121
    %v1123 = vpop.xlane.xlu0 %1122
    %v1124 = vsel %vm774, %v1120, 0.0
    %1125 = vadd.xlane.f32.xlu0 %v1124
    %v1126 = vpop.xlane.xlu0 %1125
    %v1127 = vrcp.pop %v1123
    %v1128 = vmul.f32 %v1123, %v1127
    %v1129 = vsub.f32 1.0, %v1128
    %v1130 = vmul.f32 %v1127, %v1129
    %v1131 = vadd.f32 %v1127, %v1130
    %vm1132 = vweird.f32 %v1123
    %vm1133 = vweird.f32 %v1127
    %vm1134 = vmor %vm1132, %vm1133
    %v1135 = vsel %vm1134, %v1127, %v1131
    %v1136 = vand.u32 2147483647, %v1123
    %vm1137 = vcmp.eq.f32.partialorder %v1136, 8.507059e+37
    %v1138 = vand.u32 %v1123, 2147483648
    %v1139 = vor.u32 1.1754944e-38, %v1138
    %v1140 = vsel %vm1137, %v1139, %v1135
    %v1141 = vmul.f32 %v1118, %v1140
    %v1142 = vrcp.pop %v1126
    %v1143 = vmul.f32 %v1126, %v1142
    %v1144 = vsub.f32 1.0, %v1143
    %v1145 = vmul.f32 %v1142, %v1144
    %v1146 = vadd.f32 %v1142, %v1145
    %vm1147 = vweird.f32 %v1126
    %vm1148 = vweird.f32 %v1142
    %vm1149 = vmor %vm1147, %vm1148
    %v1150 = vsel %vm1149, %v1142, %v1146
    %v1151 = vand.u32 2147483647, %v1126
    %vm1152 = vcmp.eq.f32.partialorder %v1151, 8.507059e+37
    %v1153 = vand.u32 %v1126, 2147483648
    %v1154 = vor.u32 1.1754944e-38, %v1153
    %v1155 = vsel %vm1152, %v1154, %v1150
    %v1156 = vmul.f32 %v1120, %v1155
    %v1157 = vpack.c.bf16 %v1141, %v1141
    %v1158 = vpack.c.bf16 %v1156, %v1156
    %1159 = vrot.lane.b32.xlu0 %v991, 96
    %v1160 = vpop.permute.xlu0 %1159
    %v1162 = vsel %vm774, %v1157, 0
    %v1165 = vsel %vm828, %v1160, 0
    %1167 = vmatpush.bf16.msra.mxu0 0
    %1168 = vmatpush.bf16.msra.mxu0 0
    %1169 = vmatpush.bf16.msra.mxu0 0
    %1170 = vmatpush.bf16.msra.mxu0 0
    %1171 = vmatpush.bf16.msra.mxu0 0
    %1172 = vmatpush.bf16.msra.mxu0 0
    %1173 = vmatpush.bf16.msra.mxu0 0
    %1174 = vmatpush.bf16.msra.mxu0 %v1165
    %1175 = vmatmul.bf16.gmra.mxu0 %v1162
    %v1176 = vpop.f32.mrf.mxu0
    %v1177 = vadd.f32 0.0, %v1176
    %v1178 = vpop.f32.mrf.mxu0
    %1179 = vdwg.mxu0
    %1180 = vrot.lane.b32.xlu0 %v1015, 96
    %v1181 = vpop.permute.xlu0 %1180
    %v1183 = vsel %vm774, %v1158, 0
    %v1186 = vsel %vm828, %v1181, 0
    %1188 = vmatpush.bf16.msra.mxu0 0
    %1189 = vmatpush.bf16.msra.mxu0 0
    %1190 = vmatpush.bf16.msra.mxu0 0
    %1191 = vmatpush.bf16.msra.mxu0 0
    %1192 = vmatpush.bf16.msra.mxu0 0
    %1193 = vmatpush.bf16.msra.mxu0 0
    %1194 = vmatpush.bf16.msra.mxu0 0
    %1195 = vmatpush.bf16.msra.mxu0 %v1186
    %1196 = vmatmul.bf16.gmra.mxu0 %v1183
    %v1197 = vpop.f32.mrf.mxu0
    %v1198 = vadd.f32 0.0, %v1197
    %v1199 = vpop.f32.mrf.mxu0
    %1200 = vdwg.mxu0
    %v1201 = vpack.c.bf16 %v1198, %v1177
    %v1204 = vunpack.c.l.b16 %v716
    %v1205 = vunpack.c.l.b16 %v717
    %v1206 = vpack.c.b16 %v1205, %v1204
    %v1209 = vsel %vm730, %v1201, 0
    %1211 = vmatpush.bf16.msra.mxu0 0
    %1212 = vmatpush.bf16.msra.mxu0 0
    %1213 = vmatpush.bf16.msra.mxu0 0
    %1214 = vmatpush.bf16.msra.mxu0 0
    %1215 = vmatpush.bf16.msra.mxu0 0
    %1216 = vmatpush.bf16.msra.mxu0 0
    %1217 = vmatpush.bf16.msra.mxu0 0
    %1218 = vmatpush.bf16.msra.mxu0 %v1206
    %1219 = vmatmul.bf16.gmra.mxu0 %v1209
    %v1220 = vpop.f32.mrf.mxu0
    %v1221 = vadd.f32 0.0, %v1220
    %v1222 = vpop.f32.mrf.mxu0
    %v1223 = vadd.f32 0.0, %v1222
    %1224 = vdwg.mxu0
    %v1225 = vadd.f32 %v1061, %v1221
    %v1226 = vadd.f32 %v1062, %v1223
    %1227 = vrot.lane.b32.xlu0 %v727, 80
    %v1228 = vpop.permute.xlu0 %1227
    %1229 = vrot.lane.b32.xlu0 %v727, 16
    %v1230 = vpop.permute.xlu0 %1229
    %v1232 = vsel %vm730, %v1228, 0
    %v1235 = vsel %vm730, %v1230, 0
    %1237 = vmatpush.bf16.xpose.msra.mxu0 0
    %1238 = vmatpush.bf16.xpose.msra.mxu0 0
    %1239 = vmatpush.bf16.xpose.msra.mxu0 0
    %1240 = vmatpush.bf16.xpose.msra.mxu0 0
    %1241 = vmatpush.bf16.xpose.msra.mxu0 0
    %1242 = vmatpush.bf16.xpose.msra.mxu0 0
    %1243 = vmatpush.bf16.xpose.msra.mxu0 0
    %1244 = vmatpush.bf16.xpose.msra.mxu0 %v1235
    %1245 = vmatmul.bf16.gmra.mxu0 %v1232
    %v1246 = vpop.f32.mrf.mxu0
    %v1247 = vadd.f32 0.0, %v1246
    %v1248 = vpop.f32.mrf.mxu0
    %1249 = vdwg.mxu0
    %1250 = vrot.lane.b32.xlu0 %v752, 80
    %v1251 = vpop.permute.xlu0 %1250
    %1252 = vrot.lane.b32.xlu0 %v752, 16
    %v1253 = vpop.permute.xlu0 %1252
    %v1255 = vsel %vm730, %v1251, 0
    %v1258 = vsel %vm730, %v1253, 0
    %1260 = vmatpush.bf16.xpose.msra.mxu0 0
    %1261 = vmatpush.bf16.xpose.msra.mxu0 0
    %1262 = vmatpush.bf16.xpose.msra.mxu0 0
    %1263 = vmatpush.bf16.xpose.msra.mxu0 0
    %1264 = vmatpush.bf16.xpose.msra.mxu0 0
    %1265 = vmatpush.bf16.xpose.msra.mxu0 0
    %1266 = vmatpush.bf16.xpose.msra.mxu0 0
    %1267 = vmatpush.bf16.xpose.msra.mxu0 %v1258
    %1268 = vmatmul.bf16.gmra.mxu0 %v1255
    %v1269 = vpop.f32.mrf.mxu0
    %v1270 = vadd.f32 0.0, %v1269
    %v1271 = vpop.f32.mrf.mxu0
    %1272 = vdwg.mxu0
    %v1273 = vsel %vm774, %v1247, -inf
    %1274 = vmax.xlane.f32.xlu0 %v1273
    %v1275 = vpop.xlane.xlu0 %1274
    %v1276 = vsel %vm774, %v1270, -inf
    %1277 = vmax.xlane.f32.xlu0 %v1276
    %v1278 = vpop.xlane.xlu0 %1277
    %v1279 = vsub.f32 %v1247, %v1275
    %v1280 = vsub.f32 %v1270, %v1278
    %v1281 = vmul.f32 %v1279, 1.442695
    %v1282 = vpow.pop %v1281
    %v1283 = vmul.f32 %v1280, 1.442695
    %v1284 = vpow.pop %v1283
    %v1285 = vsel %vm774, %v1282, 0.0
    %1286 = vadd.xlane.f32.xlu0 %v1285
    %v1287 = vpop.xlane.xlu0 %1286
    %v1288 = vsel %vm774, %v1284, 0.0
    %1289 = vadd.xlane.f32.xlu0 %v1288
    %v1290 = vpop.xlane.xlu0 %1289
    %v1291 = vrcp.pop %v1287
    %v1292 = vmul.f32 %v1287, %v1291
    %v1293 = vsub.f32 1.0, %v1292
    %v1294 = vmul.f32 %v1291, %v1293
    %v1295 = vadd.f32 %v1291, %v1294
    %vm1296 = vweird.f32 %v1287
    %vm1297 = vweird.f32 %v1291
    %vm1298 = vmor %vm1296, %vm1297
    %v1299 = vsel %vm1298, %v1291, %v1295
    %v1300 = vand.u32 2147483647, %v1287
    %vm1301 = vcmp.eq.f32.partialorder %v1300, 8.507059e+37
    %v1302 = vand.u32 %v1287, 2147483648
    %v1303 = vor.u32 1.1754944e-38, %v1302
    %v1304 = vsel %vm1301, %v1303, %v1299
    %v1305 = vmul.f32 %v1282, %v1304
    %v1306 = vrcp.pop %v1290
    %v1307 = vmul.f32 %v1290, %v1306
    %v1308 = vsub.f32 1.0, %v1307
    %v1309 = vmul.f32 %v1306, %v1308
    %v1310 = vadd.f32 %v1306, %v1309
    %vm1311 = vweird.f32 %v1290
    %vm1312 = vweird.f32 %v1306
    %vm1313 = vmor %vm1311, %vm1312
    %v1314 = vsel %vm1313, %v1306, %v1310
    %v1315 = vand.u32 2147483647, %v1290
    %vm1316 = vcmp.eq.f32.partialorder %v1315, 8.507059e+37
    %v1317 = vand.u32 %v1290, 2147483648
    %v1318 = vor.u32 1.1754944e-38, %v1317
    %v1319 = vsel %vm1316, %v1318, %v1314
    %v1320 = vmul.f32 %v1284, %v1319
    %v1321 = vpack.c.bf16 %v1305, %v1305
    %v1322 = vpack.c.bf16 %v1320, %v1320
    %1323 = vrot.lane.b32.xlu0 %v991, 80
    %v1324 = vpop.permute.xlu0 %1323
    %v1326 = vsel %vm774, %v1321, 0
    %v1329 = vsel %vm828, %v1324, 0
    %1331 = vmatpush.bf16.msra.mxu0 0
    %1332 = vmatpush.bf16.msra.mxu0 0
    %1333 = vmatpush.bf16.msra.mxu0 0
    %1334 = vmatpush.bf16.msra.mxu0 0
    %1335 = vmatpush.bf16.msra.mxu0 0
    %1336 = vmatpush.bf16.msra.mxu0 0
    %1337 = vmatpush.bf16.msra.mxu0 0
    %1338 = vmatpush.bf16.msra.mxu0 %v1329
    %1339 = vmatmul.bf16.gmra.mxu0 %v1326
    %v1340 = vpop.f32.mrf.mxu0
    %v1341 = vadd.f32 0.0, %v1340
    %v1342 = vpop.f32.mrf.mxu0
    %1343 = vdwg.mxu0
    %1344 = vrot.lane.b32.xlu0 %v1015, 80
    %v1345 = vpop.permute.xlu0 %1344
    %v1347 = vsel %vm774, %v1322, 0
    %v1350 = vsel %vm828, %v1345, 0
    %1352 = vmatpush.bf16.msra.mxu0 0
    %1353 = vmatpush.bf16.msra.mxu0 0
    %1354 = vmatpush.bf16.msra.mxu0 0
    %1355 = vmatpush.bf16.msra.mxu0 0
    %1356 = vmatpush.bf16.msra.mxu0 0
    %1357 = vmatpush.bf16.msra.mxu0 0
    %1358 = vmatpush.bf16.msra.mxu0 0
    %1359 = vmatpush.bf16.msra.mxu0 %v1350
    %1360 = vmatmul.bf16.gmra.mxu0 %v1347
    %v1361 = vpop.f32.mrf.mxu0
    %v1362 = vadd.f32 0.0, %v1361
    %v1363 = vpop.f32.mrf.mxu0
    %1364 = vdwg.mxu0
    %v1365 = vpack.c.bf16 %v1362, %v1341
    %v1368 = vunpack.c.l.b16 %v718
    %v1369 = vunpack.c.l.b16 %v719
    %v1370 = vpack.c.b16 %v1369, %v1368
    %v1373 = vsel %vm730, %v1365, 0
    %1375 = vmatpush.bf16.msra.mxu0 0
    %1376 = vmatpush.bf16.msra.mxu0 0
    %1377 = vmatpush.bf16.msra.mxu0 0
    %1378 = vmatpush.bf16.msra.mxu0 0
    %1379 = vmatpush.bf16.msra.mxu0 0
    %1380 = vmatpush.bf16.msra.mxu0 0
    %1381 = vmatpush.bf16.msra.mxu0 0
    %1382 = vmatpush.bf16.msra.mxu0 %v1370
    %1383 = vmatmul.bf16.gmra.mxu0 %v1373
    %v1384 = vpop.f32.mrf.mxu0
    %v1385 = vadd.f32 0.0, %v1384
    %v1386 = vpop.f32.mrf.mxu0
    %v1387 = vadd.f32 0.0, %v1386
    %1388 = vdwg.mxu0
    %v1389 = vadd.f32 %v1225, %v1385
    %v1390 = vadd.f32 %v1226, %v1387
    %v1391 = vadd.f32 %v622, %v1389
    %v1392 = vadd.f32 %v624, %v1390
    %v1393 = vld [vmem:[%s11] sm:$0x1]
    %v1394 = vld [vmem:[%s12] sm:$0x1]
    %v1395 = vsel %vm446, %v1391, 0.0
    %1396 = vadd.xlane.f32.xlu0 %v1395
    %v1397 = vpop.xlane.xlu0 %1396
    %v1398 = vsel %vm446, %v1392, 0.0
    %1399 = vadd.xlane.f32.xlu0 %v1398
    %v1400 = vpop.xlane.xlu0 %1399
    %v1401 = vrcp.pop 64.0
    %v1402 = vmul.f32 64.0, %v1401
    %v1403 = vsub.f32 1.0, %v1402
    %v1404 = vmul.f32 %v1401, %v1403
    %v1405 = vadd.f32 %v1401, %v1404
    %vm1406 = vweird.f32 %v1401
    %v1407 = vsel %vm1406, %v1401, %v1405
    %v1408 = vmul.f32 %v1397, %v1407
    %v1409 = vmul.f32 %v1400, %v1407
    %v1410 = vsub.f32 %v1391, %v1408
    %v1411 = vsub.f32 %v1392, %v1409
    %v1412 = vmul.f32 %v1410, %v1410
    %v1413 = vmul.f32 %v1411, %v1411
    %v1414 = vsel %vm446, %v1412, 0.0
    %1415 = vadd.xlane.f32.xlu0 %v1414
    %v1416 = vpop.xlane.xlu0 %1415
    %v1417 = vsel %vm446, %v1413, 0.0
    %1418 = vadd.xlane.f32.xlu0 %v1417
    %v1419 = vpop.xlane.xlu0 %1418
    %v1420 = vmul.f32 %v1416, %v1407
    %v1421 = vmul.f32 %v1419, %v1407
    %v1422 = vadd.f32 %v1420, 1e-05
    %v1423 = vadd.f32 %v1421, 1e-05
    %v1424 = vrsqrt.pop %v1422
    %v1425 = vmul.f32 %v1424, %v1422
    %v1426 = vmul.f32 %v1425, %v1424
    %v1427 = vmul.f32 0.5, %v1426
    %v1428 = vsub.f32 1.5, %v1427
    %v1429 = vmul.f32 %v1424, %v1428
    %vm1430 = vweird.f32 %v1422
    %vm1431 = vweird.f32 %v1424
    %vm1432 = vmor %vm1430, %vm1431
    %v1433 = vsel %vm1432, %v1424, %v1429
    %v1434 = vrsqrt.pop %v1423
    %v1435 = vmul.f32 %v1434, %v1423
    %v1436 = vmul.f32 %v1435, %v1434
    %v1437 = vmul.f32 0.5, %v1436
    %v1438 = vsub.f32 1.5, %v1437
    %v1439 = vmul.f32 %v1434, %v1438
    %vm1440 = vweird.f32 %v1423
    %vm1441 = vweird.f32 %v1434
    %vm1442 = vmor %vm1440, %vm1441
    %v1443 = vsel %vm1442, %v1434, %v1439
    %v1444 = vmul.f32 %v1410, %v1433
    %v1445 = vmul.f32 %v1411, %v1443
    %v1447 = vperm.slane %v1393, 0
    %v1449 = vmul.f32 %v1444, %v1447
    %v1450 = vmul.f32 %v1445, %v1447
    %v1452 = vperm.slane %v1394, 0
    %v1454 = vadd.f32 %v1449, %v1452
    %v1455 = vadd.f32 %v1450, %v1452
    %v1456 = vld [vmem:[%s13] sm:$0xff]
    %v1457 = vld [vmem:[%s13 + $0x8] sm:$0xff]
    %v1458 = vld [vmem:[%s13 + $0x10] sm:$0xff]
    %v1459 = vld [vmem:[%s13 + $0x18] sm:$0xff]
    %v1460 = vld [vmem:[%s13 + $0x20] sm:$0xff]
    %v1461 = vld [vmem:[%s13 + $0x28] sm:$0xff]
    %v1462 = vld [vmem:[%s13 + $0x30] sm:$0xff]
    %v1463 = vld [vmem:[%s13 + $0x38] sm:$0xff]
    %v1464 = vld [vmem:[%s13 + $0x40] sm:$0xff]
    %v1465 = vld [vmem:[%s13 + $0x48] sm:$0xff]
    %v1466 = vld [vmem:[%s13 + $0x50] sm:$0xff]
    %v1467 = vld [vmem:[%s13 + $0x58] sm:$0xff]
    %v1468 = vld [vmem:[%s13 + $0x60] sm:$0xff]
    %v1469 = vld [vmem:[%s13 + $0x68] sm:$0xff]
    %v1470 = vld [vmem:[%s13 + $0x70] sm:$0xff]
    %v1471 = vld [vmem:[%s13 + $0x78] sm:$0xff]
    %v1472 = vld [vmem:[%s13 + $0x80] sm:$0xff]
    %v1473 = vld [vmem:[%s13 + $0x88] sm:$0xff]
    %v1474 = vld [vmem:[%s13 + $0x90] sm:$0xff]
    %v1475 = vld [vmem:[%s13 + $0x98] sm:$0xff]
    %v1476 = vld [vmem:[%s13 + $0xa0] sm:$0xff]
    %v1477 = vld [vmem:[%s13 + $0xa8] sm:$0xff]
    %v1478 = vld [vmem:[%s13 + $0xb0] sm:$0xff]
    %v1479 = vld [vmem:[%s13 + $0xb8] sm:$0xff]
    %v1480 = vld [vmem:[%s13 + $0xc0] sm:$0xff]
    %v1481 = vld [vmem:[%s13 + $0xc8] sm:$0xff]
    %v1482 = vld [vmem:[%s13 + $0xd0] sm:$0xff]
    %v1483 = vld [vmem:[%s13 + $0xd8] sm:$0xff]
    %v1484 = vld [vmem:[%s13 + $0xe0] sm:$0xff]
    %v1485 = vld [vmem:[%s13 + $0xe8] sm:$0xff]
    %v1486 = vld [vmem:[%s13 + $0xf0] sm:$0xff]
    %v1487 = vld [vmem:[%s13 + $0xf8] sm:$0xff]
    %v1488 = vld [vmem:[%s13 + $0x100] sm:$0xff]
    %v1489 = vld [vmem:[%s13 + $0x108] sm:$0xff]
    %v1490 = vld [vmem:[%s13 + $0x110] sm:$0xff]
    %v1491 = vld [vmem:[%s13 + $0x118] sm:$0xff]
    %v1492 = vld [vmem:[%s13 + $0x120] sm:$0xff]
    %v1493 = vld [vmem:[%s13 + $0x128] sm:$0xff]
    %v1494 = vld [vmem:[%s13 + $0x130] sm:$0xff]
    %v1495 = vld [vmem:[%s13 + $0x138] sm:$0xff]
    %v1496 = vld [vmem:[%s13 + $0x140] sm:$0xff]
    %v1497 = vld [vmem:[%s13 + $0x148] sm:$0xff]
    %v1498 = vld [vmem:[%s13 + $0x150] sm:$0xff]
    %v1499 = vld [vmem:[%s13 + $0x158] sm:$0xff]
    %v1500 = vld [vmem:[%s13 + $0x160] sm:$0xff]
    %v1501 = vld [vmem:[%s13 + $0x168] sm:$0xff]
    %v1502 = vld [vmem:[%s13 + $0x170] sm:$0xff]
    %v1503 = vld [vmem:[%s13 + $0x178] sm:$0xff]
    %v1504 = vld [vmem:[%s13 + $0x180] sm:$0xff]
    %v1505 = vld [vmem:[%s13 + $0x188] sm:$0xff]
    %v1506 = vld [vmem:[%s13 + $0x190] sm:$0xff]
    %v1507 = vld [vmem:[%s13 + $0x198] sm:$0xff]
    %v1508 = vld [vmem:[%s13 + $0x1a0] sm:$0xff]
    %v1509 = vld [vmem:[%s13 + $0x1a8] sm:$0xff]
    %v1510 = vld [vmem:[%s13 + $0x1b0] sm:$0xff]
    %v1511 = vld [vmem:[%s13 + $0x1b8] sm:$0xff]
    %v1512 = vld [vmem:[%s13 + $0x1c0] sm:$0xff]
    %v1513 = vld [vmem:[%s13 + $0x1c8] sm:$0xff]
    %v1514 = vld [vmem:[%s13 + $0x1d0] sm:$0xff]
    %v1515 = vld [vmem:[%s13 + $0x1d8] sm:$0xff]
    %v1516 = vld [vmem:[%s13 + $0x1e0] sm:$0xff]
    %v1517 = vld [vmem:[%s13 + $0x1e8] sm:$0xff]
    %v1518 = vld [vmem:[%s13 + $0x1f0] sm:$0xff]
    %v1519 = vld [vmem:[%s13 + $0x1f8] sm:$0xff]
    %v1520 = vpack.c.bf16 %v1455, %v1454
    %v1521 = vld [vmem:[%s14] sm:$0xff]
    %v1522 = vld [vmem:[%s14 + $0x8] sm:$0xff]
    %v1525 = vperm.slane %v1521, 0
    %v1526 = vperm.slane %v1521, 1
    %v1527 = vperm.slane %v1521, 2
    %v1528 = vperm.slane %v1521, 3
    %v1529 = vperm.slane %v1521, 4
    %v1530 = vperm.slane %v1521, 5
    %v1531 = vperm.slane %v1521, 6
    %v1532 = vperm.slane %v1521, 7
    %v1533 = vperm.slane %v1522, 0
    %v1534 = vperm.slane %v1522, 1
    %v1535 = vperm.slane %v1522, 2
    %v1536 = vperm.slane %v1522, 3
    %v1537 = vperm.slane %v1522, 4
    %v1538 = vperm.slane %v1522, 5
    %v1539 = vperm.slane %v1522, 6
    %v1540 = vperm.slane %v1522, 7
    %v1621 = vunpack.c.l.b16 %v1456
    %v1622 = vunpack.c.h.b16 %v1456
    %v1623 = vunpack.c.l.b16 %v1457
    %v1624 = vunpack.c.h.b16 %v1457
    %v1625 = vunpack.c.l.b16 %v1458
    %v1626 = vunpack.c.h.b16 %v1458
    %v1627 = vunpack.c.l.b16 %v1459
    %v1628 = vunpack.c.h.b16 %v1459
    %v1629 = vunpack.c.l.b16 %v1460
    %v1630 = vunpack.c.h.b16 %v1460
    %v1631 = vunpack.c.l.b16 %v1461
    %v1632 = vunpack.c.h.b16 %v1461
    %v1633 = vunpack.c.l.b16 %v1462
    %v1634 = vunpack.c.h.b16 %v1462
    %v1635 = vunpack.c.l.b16 %v1463
    %v1636 = vunpack.c.h.b16 %v1463
    %v1637 = vunpack.c.l.b16 %v1464
    %v1638 = vunpack.c.h.b16 %v1464
    %v1639 = vunpack.c.l.b16 %v1465
    %v1640 = vunpack.c.h.b16 %v1465
    %v1641 = vunpack.c.l.b16 %v1466
    %v1642 = vunpack.c.h.b16 %v1466
    %v1643 = vunpack.c.l.b16 %v1467
    %v1644 = vunpack.c.h.b16 %v1467
    %v1645 = vunpack.c.l.b16 %v1468
    %v1646 = vunpack.c.h.b16 %v1468
    %v1647 = vunpack.c.l.b16 %v1469
    %v1648 = vunpack.c.h.b16 %v1469
    %v1649 = vunpack.c.l.b16 %v1470
    %v1650 = vunpack.c.h.b16 %v1470
    %v1651 = vunpack.c.l.b16 %v1471
    %v1652 = vunpack.c.h.b16 %v1471
    %v1653 = vunpack.c.l.b16 %v1472
    %v1654 = vunpack.c.h.b16 %v1472
    %v1655 = vunpack.c.l.b16 %v1473
    %v1656 = vunpack.c.h.b16 %v1473
    %v1657 = vunpack.c.l.b16 %v1474
    %v1658 = vunpack.c.h.b16 %v1474
    %v1659 = vunpack.c.l.b16 %v1475
    %v1660 = vunpack.c.h.b16 %v1475
    %v1661 = vunpack.c.l.b16 %v1476
    %v1662 = vunpack.c.h.b16 %v1476
    %v1663 = vunpack.c.l.b16 %v1477
    %v1664 = vunpack.c.h.b16 %v1477
    %v1665 = vunpack.c.l.b16 %v1478
    %v1666 = vunpack.c.h.b16 %v1478
    %v1667 = vunpack.c.l.b16 %v1479
    %v1668 = vunpack.c.h.b16 %v1479
    %v1669 = vunpack.c.l.b16 %v1480
    %v1670 = vunpack.c.h.b16 %v1480
    %v1671 = vunpack.c.l.b16 %v1481
    %v1672 = vunpack.c.h.b16 %v1481
    %v1673 = vunpack.c.l.b16 %v1482
    %v1674 = vunpack.c.h.b16 %v1482
    %v1675 = vunpack.c.l.b16 %v1483
    %v1676 = vunpack.c.h.b16 %v1483
    %v1677 = vunpack.c.l.b16 %v1484
    %v1678 = vunpack.c.h.b16 %v1484
    %v1679 = vunpack.c.l.b16 %v1485
    %v1680 = vunpack.c.h.b16 %v1485
    %v1681 = vunpack.c.l.b16 %v1486
    %v1682 = vunpack.c.h.b16 %v1486
    %v1683 = vunpack.c.l.b16 %v1487
    %v1684 = vunpack.c.h.b16 %v1487
    %v1685 = vunpack.c.l.b16 %v1488
    %v1686 = vunpack.c.h.b16 %v1488
    %v1687 = vunpack.c.l.b16 %v1489
    %v1688 = vunpack.c.h.b16 %v1489
    %v1689 = vunpack.c.l.b16 %v1490
    %v1690 = vunpack.c.h.b16 %v1490
    %v1691 = vunpack.c.l.b16 %v1491
    %v1692 = vunpack.c.h.b16 %v1491
    %v1693 = vunpack.c.l.b16 %v1492
    %v1694 = vunpack.c.h.b16 %v1492
    %v1695 = vunpack.c.l.b16 %v1493
    %v1696 = vunpack.c.h.b16 %v1493
    %v1697 = vunpack.c.l.b16 %v1494
    %v1698 = vunpack.c.h.b16 %v1494
    %v1699 = vunpack.c.l.b16 %v1495
    %v1700 = vunpack.c.h.b16 %v1495
    %v1701 = vunpack.c.l.b16 %v1496
    %v1702 = vunpack.c.h.b16 %v1496
    %v1703 = vunpack.c.l.b16 %v1497
    %v1704 = vunpack.c.h.b16 %v1497
    %v1705 = vunpack.c.l.b16 %v1498
    %v1706 = vunpack.c.h.b16 %v1498
    %v1707 = vunpack.c.l.b16 %v1499
    %v1708 = vunpack.c.h.b16 %v1499
    %v1709 = vunpack.c.l.b16 %v1500
    %v1710 = vunpack.c.h.b16 %v1500
    %v1711 = vunpack.c.l.b16 %v1501
    %v1712 = vunpack.c.h.b16 %v1501
    %v1713 = vunpack.c.l.b16 %v1502
    %v1714 = vunpack.c.h.b16 %v1502
    %v1715 = vunpack.c.l.b16 %v1503
    %v1716 = vunpack.c.h.b16 %v1503
    %v1717 = vunpack.c.l.b16 %v1504
    %v1718 = vunpack.c.h.b16 %v1504
    %v1719 = vunpack.c.l.b16 %v1505
    %v1720 = vunpack.c.h.b16 %v1505
    %v1721 = vunpack.c.l.b16 %v1506
    %v1722 = vunpack.c.h.b16 %v1506
    %v1723 = vunpack.c.l.b16 %v1507
    %v1724 = vunpack.c.h.b16 %v1507
    %v1725 = vunpack.c.l.b16 %v1508
    %v1726 = vunpack.c.h.b16 %v1508
    %v1727 = vunpack.c.l.b16 %v1509
    %v1728 = vunpack.c.h.b16 %v1509
    %v1729 = vunpack.c.l.b16 %v1510
    %v1730 = vunpack.c.h.b16 %v1510
    %v1731 = vunpack.c.l.b16 %v1511
    %v1732 = vunpack.c.h.b16 %v1511
    %v1733 = vunpack.c.l.b16 %v1512
    %v1734 = vunpack.c.h.b16 %v1512
    %v1735 = vunpack.c.l.b16 %v1513
    %v1736 = vunpack.c.h.b16 %v1513
    %v1737 = vunpack.c.l.b16 %v1514
    %v1738 = vunpack.c.h.b16 %v1514
    %v1739 = vunpack.c.l.b16 %v1515
    %v1740 = vunpack.c.h.b16 %v1515
    %v1741 = vunpack.c.l.b16 %v1516
    %v1742 = vunpack.c.h.b16 %v1516
    %v1743 = vunpack.c.l.b16 %v1517
    %v1744 = vunpack.c.h.b16 %v1517
    %v1745 = vunpack.c.l.b16 %v1518
    %v1746 = vunpack.c.h.b16 %v1518
    %v1747 = vunpack.c.l.b16 %v1519
    %v1748 = vunpack.c.h.b16 %v1519
    %v1749 = vpack.c.b16 %v1637, %v1621
    %v1750 = vpack.c.b16 %v1638, %v1622
    %v1751 = vpack.c.b16 %v1639, %v1623
    %v1752 = vpack.c.b16 %v1640, %v1624
    %v1753 = vpack.c.b16 %v1641, %v1625
    %v1754 = vpack.c.b16 %v1642, %v1626
    %v1755 = vpack.c.b16 %v1643, %v1627
    %v1756 = vpack.c.b16 %v1644, %v1628
    %v1757 = vpack.c.b16 %v1645, %v1629
    %v1758 = vpack.c.b16 %v1646, %v1630
    %v1759 = vpack.c.b16 %v1647, %v1631
    %v1760 = vpack.c.b16 %v1648, %v1632
    %v1761 = vpack.c.b16 %v1649, %v1633
    %v1762 = vpack.c.b16 %v1650, %v1634
    %v1763 = vpack.c.b16 %v1651, %v1635
    %v1764 = vpack.c.b16 %v1652, %v1636
    %v1765 = vpack.c.b16 %v1669, %v1653
    %v1766 = vpack.c.b16 %v1670, %v1654
    %v1767 = vpack.c.b16 %v1671, %v1655
    %v1768 = vpack.c.b16 %v1672, %v1656
    %v1769 = vpack.c.b16 %v1673, %v1657
    %v1770 = vpack.c.b16 %v1674, %v1658
    %v1771 = vpack.c.b16 %v1675, %v1659
    %v1772 = vpack.c.b16 %v1676, %v1660
    %v1773 = vpack.c.b16 %v1677, %v1661
    %v1774 = vpack.c.b16 %v1678, %v1662
    %v1775 = vpack.c.b16 %v1679, %v1663
    %v1776 = vpack.c.b16 %v1680, %v1664
    %v1777 = vpack.c.b16 %v1681, %v1665
    %v1778 = vpack.c.b16 %v1682, %v1666
    %v1779 = vpack.c.b16 %v1683, %v1667
    %v1780 = vpack.c.b16 %v1684, %v1668
    %v1781 = vpack.c.b16 %v1701, %v1685
    %v1782 = vpack.c.b16 %v1702, %v1686
    %v1783 = vpack.c.b16 %v1703, %v1687
    %v1784 = vpack.c.b16 %v1704, %v1688
    %v1785 = vpack.c.b16 %v1705, %v1689
    %v1786 = vpack.c.b16 %v1706, %v1690
    %v1787 = vpack.c.b16 %v1707, %v1691
    %v1788 = vpack.c.b16 %v1708, %v1692
    %v1789 = vpack.c.b16 %v1709, %v1693
    %v1790 = vpack.c.b16 %v1710, %v1694
    %v1791 = vpack.c.b16 %v1711, %v1695
    %v1792 = vpack.c.b16 %v1712, %v1696
    %v1793 = vpack.c.b16 %v1713, %v1697
    %v1794 = vpack.c.b16 %v1714, %v1698
    %v1795 = vpack.c.b16 %v1715, %v1699
    %v1796 = vpack.c.b16 %v1716, %v1700
    %v1797 = vpack.c.b16 %v1733, %v1717
    %v1798 = vpack.c.b16 %v1734, %v1718
    %v1799 = vpack.c.b16 %v1735, %v1719
    %v1800 = vpack.c.b16 %v1736, %v1720
    %v1801 = vpack.c.b16 %v1737, %v1721
    %v1802 = vpack.c.b16 %v1738, %v1722
    %v1803 = vpack.c.b16 %v1739, %v1723
    %v1804 = vpack.c.b16 %v1740, %v1724
    %v1805 = vpack.c.b16 %v1741, %v1725
    %v1806 = vpack.c.b16 %v1742, %v1726
    %v1807 = vpack.c.b16 %v1743, %v1727
    %v1808 = vpack.c.b16 %v1744, %v1728
    %v1809 = vpack.c.b16 %v1745, %v1729
    %v1810 = vpack.c.b16 %v1746, %v1730
    %v1811 = vpack.c.b16 %v1747, %v1731
    %v1812 = vpack.c.b16 %v1748, %v1732
    %v1878 = vsel %vm446, %v1520, 0
    %1880 = vmatpush.bf16.msra.mxu0 0
    %1881 = vmatpush.bf16.msra.mxu0 0
    %1882 = vmatpush.bf16.msra.mxu0 0
    %1883 = vmatpush.bf16.msra.mxu0 0
    %1884 = vmatpush.bf16.msra.mxu0 %v1797
    %1885 = vmatpush.bf16.msra.mxu0 %v1781
    %1886 = vmatpush.bf16.msra.mxu0 %v1765
    %1887 = vmatpush.bf16.msra.mxu0 %v1749
    %1888 = vmatmul.bf16.gmra.mxu0 %v1878
    %v1889 = vpop.f32.mrf.mxu0
    %v1890 = vadd.f32 %v1525, %v1889
    %v1891 = vpop.f32.mrf.mxu0
    %v1892 = vadd.f32 %v1525, %v1891
    %1893 = vdwg.mxu0
    %1894 = vmatpush.bf16.msra.mxu0 0
    %1895 = vmatpush.bf16.msra.mxu0 0
    %1896 = vmatpush.bf16.msra.mxu0 0
    %1897 = vmatpush.bf16.msra.mxu0 0
    %1898 = vmatpush.bf16.msra.mxu0 %v1798
    %1899 = vmatpush.bf16.msra.mxu0 %v1782
    %1900 = vmatpush.bf16.msra.mxu0 %v1766
    %1901 = vmatpush.bf16.msra.mxu0 %v1750
    %1902 = vmatmul.bf16.gmra.mxu0 %v1878
    %v1903 = vpop.f32.mrf.mxu0
    %v1904 = vadd.f32 %v1526, %v1903
    %v1905 = vpop.f32.mrf.mxu0
    %v1906 = vadd.f32 %v1526, %v1905
    %1907 = vdwg.mxu0
    %1908 = vmatpush.bf16.msra.mxu0 0
    %1909 = vmatpush.bf16.msra.mxu0 0
    %1910 = vmatpush.bf16.msra.mxu0 0
    %1911 = vmatpush.bf16.msra.mxu0 0
    %1912 = vmatpush.bf16.msra.mxu0 %v1799
    %1913 = vmatpush.bf16.msra.mxu0 %v1783
    %1914 = vmatpush.bf16.msra.mxu0 %v1767
    %1915 = vmatpush.bf16.msra.mxu0 %v1751
    %1916 = vmatmul.bf16.gmra.mxu0 %v1878
    %v1917 = vpop.f32.mrf.mxu0
    %v1918 = vadd.f32 %v1527, %v1917
    %v1919 = vpop.f32.mrf.mxu0
    %v1920 = vadd.f32 %v1527, %v1919
    %1921 = vdwg.mxu0
    %1922 = vmatpush.bf16.msra.mxu0 0
    %1923 = vmatpush.bf16.msra.mxu0 0
    %1924 = vmatpush.bf16.msra.mxu0 0
    %1925 = vmatpush.bf16.msra.mxu0 0
    %1926 = vmatpush.bf16.msra.mxu0 %v1800
    %1927 = vmatpush.bf16.msra.mxu0 %v1784
    %1928 = vmatpush.bf16.msra.mxu0 %v1768
    %1929 = vmatpush.bf16.msra.mxu0 %v1752
    %1930 = vmatmul.bf16.gmra.mxu0 %v1878
    %v1931 = vpop.f32.mrf.mxu0
    %v1932 = vadd.f32 %v1528, %v1931
    %v1933 = vpop.f32.mrf.mxu0
    %v1934 = vadd.f32 %v1528, %v1933
    %1935 = vdwg.mxu0
    %1936 = vmatpush.bf16.msra.mxu0 0
    %1937 = vmatpush.bf16.msra.mxu0 0
    %1938 = vmatpush.bf16.msra.mxu0 0
    %1939 = vmatpush.bf16.msra.mxu0 0
    %1940 = vmatpush.bf16.msra.mxu0 %v1801
    %1941 = vmatpush.bf16.msra.mxu0 %v1785
    %1942 = vmatpush.bf16.msra.mxu0 %v1769
    %1943 = vmatpush.bf16.msra.mxu0 %v1753
    %1944 = vmatmul.bf16.gmra.mxu0 %v1878
    %v1945 = vpop.f32.mrf.mxu0
    %v1946 = vadd.f32 %v1529, %v1945
    %v1947 = vpop.f32.mrf.mxu0
    %v1948 = vadd.f32 %v1529, %v1947
    %1949 = vdwg.mxu0
    %1950 = vmatpush.bf16.msra.mxu0 0
    %1951 = vmatpush.bf16.msra.mxu0 0
    %1952 = vmatpush.bf16.msra.mxu0 0
    %1953 = vmatpush.bf16.msra.mxu0 0
    %1954 = vmatpush.bf16.msra.mxu0 %v1802
    %1955 = vmatpush.bf16.msra.mxu0 %v1786
    %1956 = vmatpush.bf16.msra.mxu0 %v1770
    %1957 = vmatpush.bf16.msra.mxu0 %v1754
    %1958 = vmatmul.bf16.gmra.mxu0 %v1878
    %v1959 = vpop.f32.mrf.mxu0
    %v1960 = vadd.f32 %v1530, %v1959
    %v1961 = vpop.f32.mrf.mxu0
    %v1962 = vadd.f32 %v1530, %v1961
    %1963 = vdwg.mxu0
    %1964 = vmatpush.bf16.msra.mxu0 0
    %1965 = vmatpush.bf16.msra.mxu0 0
    %1966 = vmatpush.bf16.msra.mxu0 0
    %1967 = vmatpush.bf16.msra.mxu0 0
    %1968 = vmatpush.bf16.msra.mxu0 %v1803
    %1969 = vmatpush.bf16.msra.mxu0 %v1787
    %1970 = vmatpush.bf16.msra.mxu0 %v1771
    %1971 = vmatpush.bf16.msra.mxu0 %v1755
    %1972 = vmatmul.bf16.gmra.mxu0 %v1878
    %v1973 = vpop.f32.mrf.mxu0
    %v1974 = vadd.f32 %v1531, %v1973
    %v1975 = vpop.f32.mrf.mxu0
    %v1976 = vadd.f32 %v1531, %v1975
    %1977 = vdwg.mxu0
    %1978 = vmatpush.bf16.msra.mxu0 0
    %1979 = vmatpush.bf16.msra.mxu0 0
    %1980 = vmatpush.bf16.msra.mxu0 0
    %1981 = vmatpush.bf16.msra.mxu0 0
    %1982 = vmatpush.bf16.msra.mxu0 %v1804
    %1983 = vmatpush.bf16.msra.mxu0 %v1788
    %1984 = vmatpush.bf16.msra.mxu0 %v1772
    %1985 = vmatpush.bf16.msra.mxu0 %v1756
    %1986 = vmatmul.bf16.gmra.mxu0 %v1878
    %v1987 = vpop.f32.mrf.mxu0
    %v1988 = vadd.f32 %v1532, %v1987
    %v1989 = vpop.f32.mrf.mxu0
    %v1990 = vadd.f32 %v1532, %v1989
    %1991 = vdwg.mxu0
    %1992 = vmatpush.bf16.msra.mxu0 0
    %1993 = vmatpush.bf16.msra.mxu0 0
    %1994 = vmatpush.bf16.msra.mxu0 0
    %1995 = vmatpush.bf16.msra.mxu0 0
    %1996 = vmatpush.bf16.msra.mxu0 %v1805
    %1997 = vmatpush.bf16.msra.mxu0 %v1789
    %1998 = vmatpush.bf16.msra.mxu0 %v1773
    %1999 = vmatpush.bf16.msra.mxu0 %v1757
    %2000 = vmatmul.bf16.gmra.mxu0 %v1878
    %v2001 = vpop.f32.mrf.mxu0
    %v2002 = vadd.f32 %v1533, %v2001
    %v2003 = vpop.f32.mrf.mxu0
    %v2004 = vadd.f32 %v1533, %v2003
    %2005 = vdwg.mxu0
    %2006 = vmatpush.bf16.msra.mxu0 0
    %2007 = vmatpush.bf16.msra.mxu0 0
    %2008 = vmatpush.bf16.msra.mxu0 0
    %2009 = vmatpush.bf16.msra.mxu0 0
    %2010 = vmatpush.bf16.msra.mxu0 %v1806
    %2011 = vmatpush.bf16.msra.mxu0 %v1790
    %2012 = vmatpush.bf16.msra.mxu0 %v1774
    %2013 = vmatpush.bf16.msra.mxu0 %v1758
    %2014 = vmatmul.bf16.gmra.mxu0 %v1878
    %v2015 = vpop.f32.mrf.mxu0
    %v2016 = vadd.f32 %v1534, %v2015
    %v2017 = vpop.f32.mrf.mxu0
    %v2018 = vadd.f32 %v1534, %v2017
    %2019 = vdwg.mxu0
    %2020 = vmatpush.bf16.msra.mxu0 0
    %2021 = vmatpush.bf16.msra.mxu0 0
    %2022 = vmatpush.bf16.msra.mxu0 0
    %2023 = vmatpush.bf16.msra.mxu0 0
    %2024 = vmatpush.bf16.msra.mxu0 %v1807
    %2025 = vmatpush.bf16.msra.mxu0 %v1791
    %2026 = vmatpush.bf16.msra.mxu0 %v1775
    %2027 = vmatpush.bf16.msra.mxu0 %v1759
    %2028 = vmatmul.bf16.gmra.mxu0 %v1878
    %v2029 = vpop.f32.mrf.mxu0
    %v2030 = vadd.f32 %v1535, %v2029
    %v2031 = vpop.f32.mrf.mxu0
    %v2032 = vadd.f32 %v1535, %v2031
    %2033 = vdwg.mxu0
    %2034 = vmatpush.bf16.msra.mxu0 0
    %2035 = vmatpush.bf16.msra.mxu0 0
    %2036 = vmatpush.bf16.msra.mxu0 0
    %2037 = vmatpush.bf16.msra.mxu0 0
    %2038 = vmatpush.bf16.msra.mxu0 %v1808
    %2039 = vmatpush.bf16.msra.mxu0 %v1792
    %2040 = vmatpush.bf16.msra.mxu0 %v1776
    %2041 = vmatpush.bf16.msra.mxu0 %v1760
    %2042 = vmatmul.bf16.gmra.mxu0 %v1878
    %v2043 = vpop.f32.mrf.mxu0
    %v2044 = vadd.f32 %v1536, %v2043
    %v2045 = vpop.f32.mrf.mxu0
    %v2046 = vadd.f32 %v1536, %v2045
    %2047 = vdwg.mxu0
    %2048 = vmatpush.bf16.msra.mxu0 0
    %2049 = vmatpush.bf16.msra.mxu0 0
    %2050 = vmatpush.bf16.msra.mxu0 0
    %2051 = vmatpush.bf16.msra.mxu0 0
    %2052 = vmatpush.bf16.msra.mxu0 %v1809
    %2053 = vmatpush.bf16.msra.mxu0 %v1793
    %2054 = vmatpush.bf16.msra.mxu0 %v1777
    %2055 = vmatpush.bf16.msra.mxu0 %v1761
    %2056 = vmatmul.bf16.gmra.mxu0 %v1878
    %v2057 = vpop.f32.mrf.mxu0
    %v2058 = vadd.f32 %v1537, %v2057
    %v2059 = vpop.f32.mrf.mxu0
    %v2060 = vadd.f32 %v1537, %v2059
    %2061 = vdwg.mxu0
    %2062 = vmatpush.bf16.msra.mxu0 0
    %2063 = vmatpush.bf16.msra.mxu0 0
    %2064 = vmatpush.bf16.msra.mxu0 0
    %2065 = vmatpush.bf16.msra.mxu0 0
    %2066 = vmatpush.bf16.msra.mxu0 %v1810
    %2067 = vmatpush.bf16.msra.mxu0 %v1794
    %2068 = vmatpush.bf16.msra.mxu0 %v1778
    %2069 = vmatpush.bf16.msra.mxu0 %v1762
    %2070 = vmatmul.bf16.gmra.mxu0 %v1878
    %v2071 = vpop.f32.mrf.mxu0
    %v2072 = vadd.f32 %v1538, %v2071
    %v2073 = vpop.f32.mrf.mxu0
    %v2074 = vadd.f32 %v1538, %v2073
    %2075 = vdwg.mxu0
    %2076 = vmatpush.bf16.msra.mxu0 0
    %2077 = vmatpush.bf16.msra.mxu0 0
    %2078 = vmatpush.bf16.msra.mxu0 0
    %2079 = vmatpush.bf16.msra.mxu0 0
    %2080 = vmatpush.bf16.msra.mxu0 %v1811
    %2081 = vmatpush.bf16.msra.mxu0 %v1795
    %2082 = vmatpush.bf16.msra.mxu0 %v1779
    %2083 = vmatpush.bf16.msra.mxu0 %v1763
    %2084 = vmatmul.bf16.gmra.mxu0 %v1878
    %v2085 = vpop.f32.mrf.mxu0
    %v2086 = vadd.f32 %v1539, %v2085
    %v2087 = vpop.f32.mrf.mxu0
    %v2088 = vadd.f32 %v1539, %v2087
    %2089 = vdwg.mxu0
    %2090 = vmatpush.bf16.msra.mxu0 0
    %2091 = vmatpush.bf16.msra.mxu0 0
    %2092 = vmatpush.bf16.msra.mxu0 0
    %2093 = vmatpush.bf16.msra.mxu0 0
    %2094 = vmatpush.bf16.msra.mxu0 %v1812
    %2095 = vmatpush.bf16.msra.mxu0 %v1796
    %2096 = vmatpush.bf16.msra.mxu0 %v1780
    %2097 = vmatpush.bf16.msra.mxu0 %v1764
    %2098 = vmatmul.bf16.gmra.mxu0 %v1878
    %v2099 = vpop.f32.mrf.mxu0
    %v2100 = vadd.f32 %v1540, %v2099
    %v2101 = vpop.f32.mrf.mxu0
    %v2102 = vadd.f32 %v1540, %v2101
    %2103 = vdwg.mxu0
    %v2104 = vmax.f32 %v1890, 0.0
    %v2105 = vmax.f32 %v1904, 0.0
    %v2106 = vmax.f32 %v1918, 0.0
    %v2107 = vmax.f32 %v1932, 0.0
    %v2108 = vmax.f32 %v1946, 0.0
    %v2109 = vmax.f32 %v1960, 0.0
    %v2110 = vmax.f32 %v1974, 0.0
    %v2111 = vmax.f32 %v1988, 0.0
    %v2112 = vmax.f32 %v2002, 0.0
    %v2113 = vmax.f32 %v2016, 0.0
    %v2114 = vmax.f32 %v2030, 0.0
    %v2115 = vmax.f32 %v2044, 0.0
    %v2116 = vmax.f32 %v2058, 0.0
    %v2117 = vmax.f32 %v2072, 0.0
    %v2118 = vmax.f32 %v2086, 0.0
    %v2119 = vmax.f32 %v2100, 0.0
    %v2120 = vmax.f32 %v1892, 0.0
    %v2121 = vmax.f32 %v1906, 0.0
    %v2122 = vmax.f32 %v1920, 0.0
    %v2123 = vmax.f32 %v1934, 0.0
    %v2124 = vmax.f32 %v1948, 0.0
    %v2125 = vmax.f32 %v1962, 0.0
    %v2126 = vmax.f32 %v1976, 0.0
    %v2127 = vmax.f32 %v1990, 0.0
    %v2128 = vmax.f32 %v2004, 0.0
    %v2129 = vmax.f32 %v2018, 0.0
    %v2130 = vmax.f32 %v2032, 0.0
    %v2131 = vmax.f32 %v2046, 0.0
    %v2132 = vmax.f32 %v2060, 0.0
    %v2133 = vmax.f32 %v2074, 0.0
    %v2134 = vmax.f32 %v2088, 0.0
    %v2135 = vmax.f32 %v2102, 0.0
    %v2136 = vpack.c.bf16 %v2120, %v2104
    %v2137 = vpack.c.bf16 %v2121, %v2105
    %v2138 = vpack.c.bf16 %v2122, %v2106
    %v2139 = vpack.c.bf16 %v2123, %v2107
    %v2140 = vpack.c.bf16 %v2124, %v2108
    %v2141 = vpack.c.bf16 %v2125, %v2109
    %v2142 = vpack.c.bf16 %v2126, %v2110
    %v2143 = vpack.c.bf16 %v2127, %v2111
    %v2144 = vpack.c.bf16 %v2128, %v2112
    %v2145 = vpack.c.bf16 %v2129, %v2113
    %v2146 = vpack.c.bf16 %v2130, %v2114
    %v2147 = vpack.c.bf16 %v2131, %v2115
    %v2148 = vpack.c.bf16 %v2132, %v2116
    %v2149 = vpack.c.bf16 %v2133, %v2117
    %v2150 = vpack.c.bf16 %v2134, %v2118
    %v2151 = vpack.c.bf16 %v2135, %v2119
    %v2152 = vld [vmem:[%s15] sm:$0xf]
    %v2153 = vld [vmem:[%s15 + $0x4] sm:$0xf]
    %v2154 = vld [vmem:[%s15 + $0x8] sm:$0xf]
    %v2155 = vld [vmem:[%s15 + $0xc] sm:$0xf]
    %v2156 = vld [vmem:[%s15 + $0x10] sm:$0xf]
    %v2157 = vld [vmem:[%s15 + $0x14] sm:$0xf]
    %v2158 = vld [vmem:[%s15 + $0x18] sm:$0xf]
    %v2159 = vld [vmem:[%s15 + $0x1c] sm:$0xf]
    %v2160 = vld [vmem:[%s15 + $0x20] sm:$0xf]
    %v2161 = vld [vmem:[%s15 + $0x24] sm:$0xf]
    %v2162 = vld [vmem:[%s15 + $0x28] sm:$0xf]
    %v2163 = vld [vmem:[%s15 + $0x2c] sm:$0xf]
    %v2164 = vld [vmem:[%s15 + $0x30] sm:$0xf]
    %v2165 = vld [vmem:[%s15 + $0x34] sm:$0xf]
    %v2166 = vld [vmem:[%s15 + $0x38] sm:$0xf]
    %v2167 = vld [vmem:[%s15 + $0x3c] sm:$0xf]
    %v2168 = vld [vmem:[%s15 + $0x40] sm:$0xf]
    %v2169 = vld [vmem:[%s15 + $0x44] sm:$0xf]
    %v2170 = vld [vmem:[%s15 + $0x48] sm:$0xf]
    %v2171 = vld [vmem:[%s15 + $0x4c] sm:$0xf]
    %v2172 = vld [vmem:[%s15 + $0x50] sm:$0xf]
    %v2173 = vld [vmem:[%s15 + $0x54] sm:$0xf]
    %v2174 = vld [vmem:[%s15 + $0x58] sm:$0xf]
    %v2175 = vld [vmem:[%s15 + $0x5c] sm:$0xf]
    %v2176 = vld [vmem:[%s15 + $0x60] sm:$0xf]
    %v2177 = vld [vmem:[%s15 + $0x64] sm:$0xf]
    %v2178 = vld [vmem:[%s15 + $0x68] sm:$0xf]
    %v2179 = vld [vmem:[%s15 + $0x6c] sm:$0xf]
    %v2180 = vld [vmem:[%s15 + $0x70] sm:$0xf]
    %v2181 = vld [vmem:[%s15 + $0x74] sm:$0xf]
    %v2182 = vld [vmem:[%s15 + $0x78] sm:$0xf]
    %v2183 = vld [vmem:[%s15 + $0x7c] sm:$0xf]
    %v2184 = vld [vmem:[%s15 + $0x80] sm:$0xf]
    %v2185 = vld [vmem:[%s15 + $0x84] sm:$0xf]
    %v2186 = vld [vmem:[%s15 + $0x88] sm:$0xf]
    %v2187 = vld [vmem:[%s15 + $0x8c] sm:$0xf]
    %v2188 = vld [vmem:[%s15 + $0x90] sm:$0xf]
    %v2189 = vld [vmem:[%s15 + $0x94] sm:$0xf]
    %v2190 = vld [vmem:[%s15 + $0x98] sm:$0xf]
    %v2191 = vld [vmem:[%s15 + $0x9c] sm:$0xf]
    %v2192 = vld [vmem:[%s15 + $0xa0] sm:$0xf]
    %v2193 = vld [vmem:[%s15 + $0xa4] sm:$0xf]
    %v2194 = vld [vmem:[%s15 + $0xa8] sm:$0xf]
    %v2195 = vld [vmem:[%s15 + $0xac] sm:$0xf]
    %v2196 = vld [vmem:[%s15 + $0xb0] sm:$0xf]
    %v2197 = vld [vmem:[%s15 + $0xb4] sm:$0xf]
    %v2198 = vld [vmem:[%s15 + $0xb8] sm:$0xf]
    %v2199 = vld [vmem:[%s15 + $0xbc] sm:$0xf]
    %v2200 = vld [vmem:[%s15 + $0xc0] sm:$0xf]
    %v2201 = vld [vmem:[%s15 + $0xc4] sm:$0xf]
    %v2202 = vld [vmem:[%s15 + $0xc8] sm:$0xf]
    %v2203 = vld [vmem:[%s15 + $0xcc] sm:$0xf]
    %v2204 = vld [vmem:[%s15 + $0xd0] sm:$0xf]
    %v2205 = vld [vmem:[%s15 + $0xd4] sm:$0xf]
    %v2206 = vld [vmem:[%s15 + $0xd8] sm:$0xf]
    %v2207 = vld [vmem:[%s15 + $0xdc] sm:$0xf]
    %v2208 = vld [vmem:[%s15 + $0xe0] sm:$0xf]
    %v2209 = vld [vmem:[%s15 + $0xe4] sm:$0xf]
    %v2210 = vld [vmem:[%s15 + $0xe8] sm:$0xf]
    %v2211 = vld [vmem:[%s15 + $0xec] sm:$0xf]
    %v2212 = vld [vmem:[%s15 + $0xf0] sm:$0xf]
    %v2213 = vld [vmem:[%s15 + $0xf4] sm:$0xf]
    %v2214 = vld [vmem:[%s15 + $0xf8] sm:$0xf]
    %v2215 = vld [vmem:[%s15 + $0xfc] sm:$0xf]
    %v2216 = vld [vmem:[%s15 + $0x100] sm:$0xf]
    %v2217 = vld [vmem:[%s15 + $0x104] sm:$0xf]
    %v2218 = vld [vmem:[%s15 + $0x108] sm:$0xf]
    %v2219 = vld [vmem:[%s15 + $0x10c] sm:$0xf]
    %v2220 = vld [vmem:[%s15 + $0x110] sm:$0xf]
    %v2221 = vld [vmem:[%s15 + $0x114] sm:$0xf]
    %v2222 = vld [vmem:[%s15 + $0x118] sm:$0xf]
    %v2223 = vld [vmem:[%s15 + $0x11c] sm:$0xf]
    %v2224 = vld [vmem:[%s15 + $0x120] sm:$0xf]
    %v2225 = vld [vmem:[%s15 + $0x124] sm:$0xf]
    %v2226 = vld [vmem:[%s15 + $0x128] sm:$0xf]
    %v2227 = vld [vmem:[%s15 + $0x12c] sm:$0xf]
    %v2228 = vld [vmem:[%s15 + $0x130] sm:$0xf]
    %v2229 = vld [vmem:[%s15 + $0x134] sm:$0xf]
    %v2230 = vld [vmem:[%s15 + $0x138] sm:$0xf]
    %v2231 = vld [vmem:[%s15 + $0x13c] sm:$0xf]
    %v2232 = vld [vmem:[%s15 + $0x140] sm:$0xf]
    %v2233 = vld [vmem:[%s15 + $0x144] sm:$0xf]
    %v2234 = vld [vmem:[%s15 + $0x148] sm:$0xf]
    %v2235 = vld [vmem:[%s15 + $0x14c] sm:$0xf]
    %v2236 = vld [vmem:[%s15 + $0x150] sm:$0xf]
    %v2237 = vld [vmem:[%s15 + $0x154] sm:$0xf]
    %v2238 = vld [vmem:[%s15 + $0x158] sm:$0xf]
    %v2239 = vld [vmem:[%s15 + $0x15c] sm:$0xf]
    %v2240 = vld [vmem:[%s15 + $0x160] sm:$0xf]
    %v2241 = vld [vmem:[%s15 + $0x164] sm:$0xf]
    %v2242 = vld [vmem:[%s15 + $0x168] sm:$0xf]
    %v2243 = vld [vmem:[%s15 + $0x16c] sm:$0xf]
    %v2244 = vld [vmem:[%s15 + $0x170] sm:$0xf]
    %v2245 = vld [vmem:[%s15 + $0x174] sm:$0xf]
    %v2246 = vld [vmem:[%s15 + $0x178] sm:$0xf]
    %v2247 = vld [vmem:[%s15 + $0x17c] sm:$0xf]
    %v2248 = vld [vmem:[%s15 + $0x180] sm:$0xf]
    %v2249 = vld [vmem:[%s15 + $0x184] sm:$0xf]
    %v2250 = vld [vmem:[%s15 + $0x188] sm:$0xf]
    %v2251 = vld [vmem:[%s15 + $0x18c] sm:$0xf]
    %v2252 = vld [vmem:[%s15 + $0x190] sm:$0xf]
    %v2253 = vld [vmem:[%s15 + $0x194] sm:$0xf]
    %v2254 = vld [vmem:[%s15 + $0x198] sm:$0xf]
    %v2255 = vld [vmem:[%s15 + $0x19c] sm:$0xf]
    %v2256 = vld [vmem:[%s15 + $0x1a0] sm:$0xf]
    %v2257 = vld [vmem:[%s15 + $0x1a4] sm:$0xf]
    %v2258 = vld [vmem:[%s15 + $0x1a8] sm:$0xf]
    %v2259 = vld [vmem:[%s15 + $0x1ac] sm:$0xf]
    %v2260 = vld [vmem:[%s15 + $0x1b0] sm:$0xf]
    %v2261 = vld [vmem:[%s15 + $0x1b4] sm:$0xf]
    %v2262 = vld [vmem:[%s15 + $0x1b8] sm:$0xf]
    %v2263 = vld [vmem:[%s15 + $0x1bc] sm:$0xf]
    %v2264 = vld [vmem:[%s15 + $0x1c0] sm:$0xf]
    %v2265 = vld [vmem:[%s15 + $0x1c4] sm:$0xf]
    %v2266 = vld [vmem:[%s15 + $0x1c8] sm:$0xf]
    %v2267 = vld [vmem:[%s15 + $0x1cc] sm:$0xf]
    %v2268 = vld [vmem:[%s15 + $0x1d0] sm:$0xf]
    %v2269 = vld [vmem:[%s15 + $0x1d4] sm:$0xf]
    %v2270 = vld [vmem:[%s15 + $0x1d8] sm:$0xf]
    %v2271 = vld [vmem:[%s15 + $0x1dc] sm:$0xf]
    %v2272 = vld [vmem:[%s15 + $0x1e0] sm:$0xf]
    %v2273 = vld [vmem:[%s15 + $0x1e4] sm:$0xf]
    %v2274 = vld [vmem:[%s15 + $0x1e8] sm:$0xf]
    %v2275 = vld [vmem:[%s15 + $0x1ec] sm:$0xf]
    %v2276 = vld [vmem:[%s15 + $0x1f0] sm:$0xf]
    %v2277 = vld [vmem:[%s15 + $0x1f4] sm:$0xf]
    %v2278 = vld [vmem:[%s15 + $0x1f8] sm:$0xf]
    %v2279 = vld [vmem:[%s15 + $0x1fc] sm:$0xf]
    %v2280 = vld [vmem:[%s15 + $0x200] sm:$0xf]
    %v2281 = vld [vmem:[%s15 + $0x204] sm:$0xf]
    %v2282 = vld [vmem:[%s15 + $0x208] sm:$0xf]
    %v2283 = vld [vmem:[%s15 + $0x20c] sm:$0xf]
    %v2284 = vld [vmem:[%s15 + $0x210] sm:$0xf]
    %v2285 = vld [vmem:[%s15 + $0x214] sm:$0xf]
    %v2286 = vld [vmem:[%s15 + $0x218] sm:$0xf]
    %v2287 = vld [vmem:[%s15 + $0x21c] sm:$0xf]
    %v2288 = vld [vmem:[%s15 + $0x220] sm:$0xf]
    %v2289 = vld [vmem:[%s15 + $0x224] sm:$0xf]
    %v2290 = vld [vmem:[%s15 + $0x228] sm:$0xf]
    %v2291 = vld [vmem:[%s15 + $0x22c] sm:$0xf]
    %v2292 = vld [vmem:[%s15 + $0x230] sm:$0xf]
    %v2293 = vld [vmem:[%s15 + $0x234] sm:$0xf]
    %v2294 = vld [vmem:[%s15 + $0x238] sm:$0xf]
    %v2295 = vld [vmem:[%s15 + $0x23c] sm:$0xf]
    %v2296 = vld [vmem:[%s15 + $0x240] sm:$0xf]
    %v2297 = vld [vmem:[%s15 + $0x244] sm:$0xf]
    %v2298 = vld [vmem:[%s15 + $0x248] sm:$0xf]
    %v2299 = vld [vmem:[%s15 + $0x24c] sm:$0xf]
    %v2300 = vld [vmem:[%s15 + $0x250] sm:$0xf]
    %v2301 = vld [vmem:[%s15 + $0x254] sm:$0xf]
    %v2302 = vld [vmem:[%s15 + $0x258] sm:$0xf]
    %v2303 = vld [vmem:[%s15 + $0x25c] sm:$0xf]
    %v2304 = vld [vmem:[%s15 + $0x260] sm:$0xf]
    %v2305 = vld [vmem:[%s15 + $0x264] sm:$0xf]
    %v2306 = vld [vmem:[%s15 + $0x268] sm:$0xf]
    %v2307 = vld [vmem:[%s15 + $0x26c] sm:$0xf]
    %v2308 = vld [vmem:[%s15 + $0x270] sm:$0xf]
    %v2309 = vld [vmem:[%s15 + $0x274] sm:$0xf]
    %v2310 = vld [vmem:[%s15 + $0x278] sm:$0xf]
    %v2311 = vld [vmem:[%s15 + $0x27c] sm:$0xf]
    %v2312 = vld [vmem:[%s15 + $0x280] sm:$0xf]
    %v2313 = vld [vmem:[%s15 + $0x284] sm:$0xf]
    %v2314 = vld [vmem:[%s15 + $0x288] sm:$0xf]
    %v2315 = vld [vmem:[%s15 + $0x28c] sm:$0xf]
    %v2316 = vld [vmem:[%s15 + $0x290] sm:$0xf]
    %v2317 = vld [vmem:[%s15 + $0x294] sm:$0xf]
    %v2318 = vld [vmem:[%s15 + $0x298] sm:$0xf]
    %v2319 = vld [vmem:[%s15 + $0x29c] sm:$0xf]
    %v2320 = vld [vmem:[%s15 + $0x2a0] sm:$0xf]
    %v2321 = vld [vmem:[%s15 + $0x2a4] sm:$0xf]
    %v2322 = vld [vmem:[%s15 + $0x2a8] sm:$0xf]
    %v2323 = vld [vmem:[%s15 + $0x2ac] sm:$0xf]
    %v2324 = vld [vmem:[%s15 + $0x2b0] sm:$0xf]
    %v2325 = vld [vmem:[%s15 + $0x2b4] sm:$0xf]
    %v2326 = vld [vmem:[%s15 + $0x2b8] sm:$0xf]
    %v2327 = vld [vmem:[%s15 + $0x2bc] sm:$0xf]
    %v2328 = vld [vmem:[%s15 + $0x2c0] sm:$0xf]
    %v2329 = vld [vmem:[%s15 + $0x2c4] sm:$0xf]
    %v2330 = vld [vmem:[%s15 + $0x2c8] sm:$0xf]
    %v2331 = vld [vmem:[%s15 + $0x2cc] sm:$0xf]
    %v2332 = vld [vmem:[%s15 + $0x2d0] sm:$0xf]
    %v2333 = vld [vmem:[%s15 + $0x2d4] sm:$0xf]
    %v2334 = vld [vmem:[%s15 + $0x2d8] sm:$0xf]
    %v2335 = vld [vmem:[%s15 + $0x2dc] sm:$0xf]
    %v2336 = vld [vmem:[%s15 + $0x2e0] sm:$0xf]
    %v2337 = vld [vmem:[%s15 + $0x2e4] sm:$0xf]
    %v2338 = vld [vmem:[%s15 + $0x2e8] sm:$0xf]
    %v2339 = vld [vmem:[%s15 + $0x2ec] sm:$0xf]
    %v2340 = vld [vmem:[%s15 + $0x2f0] sm:$0xf]
    %v2341 = vld [vmem:[%s15 + $0x2f4] sm:$0xf]
    %v2342 = vld [vmem:[%s15 + $0x2f8] sm:$0xf]
    %v2343 = vld [vmem:[%s15 + $0x2fc] sm:$0xf]
    %v2344 = vld [vmem:[%s15 + $0x300] sm:$0xf]
    %v2345 = vld [vmem:[%s15 + $0x304] sm:$0xf]
    %v2346 = vld [vmem:[%s15 + $0x308] sm:$0xf]
    %v2347 = vld [vmem:[%s15 + $0x30c] sm:$0xf]
    %v2348 = vld [vmem:[%s15 + $0x310] sm:$0xf]
    %v2349 = vld [vmem:[%s15 + $0x314] sm:$0xf]
    %v2350 = vld [vmem:[%s15 + $0x318] sm:$0xf]
    %v2351 = vld [vmem:[%s15 + $0x31c] sm:$0xf]
    %v2352 = vld [vmem:[%s15 + $0x320] sm:$0xf]
    %v2353 = vld [vmem:[%s15 + $0x324] sm:$0xf]
    %v2354 = vld [vmem:[%s15 + $0x328] sm:$0xf]
    %v2355 = vld [vmem:[%s15 + $0x32c] sm:$0xf]
    %v2356 = vld [vmem:[%s15 + $0x330] sm:$0xf]
    %v2357 = vld [vmem:[%s15 + $0x334] sm:$0xf]
    %v2358 = vld [vmem:[%s15 + $0x338] sm:$0xf]
    %v2359 = vld [vmem:[%s15 + $0x33c] sm:$0xf]
    %v2360 = vld [vmem:[%s15 + $0x340] sm:$0xf]
    %v2361 = vld [vmem:[%s15 + $0x344] sm:$0xf]
    %v2362 = vld [vmem:[%s15 + $0x348] sm:$0xf]
    %v2363 = vld [vmem:[%s15 + $0x34c] sm:$0xf]
    %v2364 = vld [vmem:[%s15 + $0x350] sm:$0xf]
    %v2365 = vld [vmem:[%s15 + $0x354] sm:$0xf]
    %v2366 = vld [vmem:[%s15 + $0x358] sm:$0xf]
    %v2367 = vld [vmem:[%s15 + $0x35c] sm:$0xf]
    %v2368 = vld [vmem:[%s15 + $0x360] sm:$0xf]
    %v2369 = vld [vmem:[%s15 + $0x364] sm:$0xf]
    %v2370 = vld [vmem:[%s15 + $0x368] sm:$0xf]
    %v2371 = vld [vmem:[%s15 + $0x36c] sm:$0xf]
    %v2372 = vld [vmem:[%s15 + $0x370] sm:$0xf]
    %v2373 = vld [vmem:[%s15 + $0x374] sm:$0xf]
    %v2374 = vld [vmem:[%s15 + $0x378] sm:$0xf]
    %v2375 = vld [vmem:[%s15 + $0x37c] sm:$0xf]
    %v2376 = vld [vmem:[%s15 + $0x380] sm:$0xf]
    %v2377 = vld [vmem:[%s15 + $0x384] sm:$0xf]
    %v2378 = vld [vmem:[%s15 + $0x388] sm:$0xf]
    %v2379 = vld [vmem:[%s15 + $0x38c] sm:$0xf]
    %v2380 = vld [vmem:[%s15 + $0x390] sm:$0xf]
    %v2381 = vld [vmem:[%s15 + $0x394] sm:$0xf]
    %v2382 = vld [vmem:[%s15 + $0x398] sm:$0xf]
    %v2383 = vld [vmem:[%s15 + $0x39c] sm:$0xf]
    %v2384 = vld [vmem:[%s15 + $0x3a0] sm:$0xf]
    %v2385 = vld [vmem:[%s15 + $0x3a4] sm:$0xf]
    %v2386 = vld [vmem:[%s15 + $0x3a8] sm:$0xf]
    %v2387 = vld [vmem:[%s15 + $0x3ac] sm:$0xf]
    %v2388 = vld [vmem:[%s15 + $0x3b0] sm:$0xf]
    %v2389 = vld [vmem:[%s15 + $0x3b4] sm:$0xf]
    %v2390 = vld [vmem:[%s15 + $0x3b8] sm:$0xf]
    %v2391 = vld [vmem:[%s15 + $0x3bc] sm:$0xf]
    %v2392 = vld [vmem:[%s15 + $0x3c0] sm:$0xf]
    %v2393 = vld [vmem:[%s15 + $0x3c4] sm:$0xf]
    %v2394 = vld [vmem:[%s15 + $0x3c8] sm:$0xf]
    %v2395 = vld [vmem:[%s15 + $0x3cc] sm:$0xf]
    %v2396 = vld [vmem:[%s15 + $0x3d0] sm:$0xf]
    %v2397 = vld [vmem:[%s15 + $0x3d4] sm:$0xf]
    %v2398 = vld [vmem:[%s15 + $0x3d8] sm:$0xf]
    %v2399 = vld [vmem:[%s15 + $0x3dc] sm:$0xf]
    %v2400 = vld [vmem:[%s15 + $0x3e0] sm:$0xf]
    %v2401 = vld [vmem:[%s15 + $0x3e4] sm:$0xf]
    %v2402 = vld [vmem:[%s15 + $0x3e8] sm:$0xf]
    %v2403 = vld [vmem:[%s15 + $0x3ec] sm:$0xf]
    %v2404 = vld [vmem:[%s15 + $0x3f0] sm:$0xf]
    %v2405 = vld [vmem:[%s15 + $0x3f4] sm:$0xf]
    %v2406 = vld [vmem:[%s15 + $0x3f8] sm:$0xf]
    %v2407 = vld [vmem:[%s15 + $0x3fc] sm:$0xf]
    %v2408 = vld [vmem:[%s16] sm:$0x1]
    %v2410 = vperm.slane %v2408, 0
    %v2668 = vunpack.c.l.b16 %v2152
    %v2669 = vunpack.c.l.b16 %v2153
    %v2670 = vunpack.c.l.b16 %v2154
    %v2671 = vunpack.c.l.b16 %v2155
    %v2672 = vunpack.c.l.b16 %v2156
    %v2673 = vunpack.c.l.b16 %v2157
    %v2674 = vunpack.c.l.b16 %v2158
    %v2675 = vunpack.c.l.b16 %v2159
    %v2676 = vunpack.c.l.b16 %v2160
    %v2677 = vunpack.c.l.b16 %v2161
    %v2678 = vunpack.c.l.b16 %v2162
    %v2679 = vunpack.c.l.b16 %v2163
    %v2680 = vunpack.c.l.b16 %v2164
    %v2681 = vunpack.c.l.b16 %v2165
    %v2682 = vunpack.c.l.b16 %v2166
    %v2683 = vunpack.c.l.b16 %v2167
    %v2684 = vunpack.c.l.b16 %v2168
    %v2685 = vunpack.c.l.b16 %v2169
    %v2686 = vunpack.c.l.b16 %v2170
    %v2687 = vunpack.c.l.b16 %v2171
    %v2688 = vunpack.c.l.b16 %v2172
    %v2689 = vunpack.c.l.b16 %v2173
    %v2690 = vunpack.c.l.b16 %v2174
    %v2691 = vunpack.c.l.b16 %v2175
    %v2692 = vunpack.c.l.b16 %v2176
    %v2693 = vunpack.c.l.b16 %v2177
    %v2694 = vunpack.c.l.b16 %v2178
    %v2695 = vunpack.c.l.b16 %v2179
    %v2696 = vunpack.c.l.b16 %v2180
    %v2697 = vunpack.c.l.b16 %v2181
    %v2698 = vunpack.c.l.b16 %v2182
    %v2699 = vunpack.c.l.b16 %v2183
    %v2700 = vunpack.c.l.b16 %v2184
    %v2701 = vunpack.c.l.b16 %v2185
    %v2702 = vunpack.c.l.b16 %v2186
    %v2703 = vunpack.c.l.b16 %v2187
    %v2704 = vunpack.c.l.b16 %v2188
    %v2705 = vunpack.c.l.b16 %v2189
    %v2706 = vunpack.c.l.b16 %v2190
    %v2707 = vunpack.c.l.b16 %v2191
    %v2708 = vunpack.c.l.b16 %v2192
    %v2709 = vunpack.c.l.b16 %v2193
    %v2710 = vunpack.c.l.b16 %v2194
    %v2711 = vunpack.c.l.b16 %v2195
    %v2712 = vunpack.c.l.b16 %v2196
    %v2713 = vunpack.c.l.b16 %v2197
    %v2714 = vunpack.c.l.b16 %v2198
    %v2715 = vunpack.c.l.b16 %v2199
    %v2716 = vunpack.c.l.b16 %v2200
    %v2717 = vunpack.c.l.b16 %v2201
    %v2718 = vunpack.c.l.b16 %v2202
    %v2719 = vunpack.c.l.b16 %v2203
    %v2720 = vunpack.c.l.b16 %v2204
    %v2721 = vunpack.c.l.b16 %v2205
    %v2722 = vunpack.c.l.b16 %v2206
    %v2723 = vunpack.c.l.b16 %v2207
    %v2724 = vunpack.c.l.b16 %v2208
    %v2725 = vunpack.c.l.b16 %v2209
    %v2726 = vunpack.c.l.b16 %v2210
    %v2727 = vunpack.c.l.b16 %v2211
    %v2728 = vunpack.c.l.b16 %v2212
    %v2729 = vunpack.c.l.b16 %v2213
    %v2730 = vunpack.c.l.b16 %v2214
    %v2731 = vunpack.c.l.b16 %v2215
    %v2732 = vunpack.c.l.b16 %v2216
    %v2733 = vunpack.c.l.b16 %v2217
    %v2734 = vunpack.c.l.b16 %v2218
    %v2735 = vunpack.c.l.b16 %v2219
    %v2736 = vunpack.c.l.b16 %v2220
    %v2737 = vunpack.c.l.b16 %v2221
    %v2738 = vunpack.c.l.b16 %v2222
    %v2739 = vunpack.c.l.b16 %v2223
    %v2740 = vunpack.c.l.b16 %v2224
    %v2741 = vunpack.c.l.b16 %v2225
    %v2742 = vunpack.c.l.b16 %v2226
    %v2743 = vunpack.c.l.b16 %v2227
    %v2744 = vunpack.c.l.b16 %v2228
    %v2745 = vunpack.c.l.b16 %v2229
    %v2746 = vunpack.c.l.b16 %v2230
    %v2747 = vunpack.c.l.b16 %v2231
    %v2748 = vunpack.c.l.b16 %v2232
    %v2749 = vunpack.c.l.b16 %v2233
    %v2750 = vunpack.c.l.b16 %v2234
    %v2751 = vunpack.c.l.b16 %v2235
    %v2752 = vunpack.c.l.b16 %v2236
    %v2753 = vunpack.c.l.b16 %v2237
    %v2754 = vunpack.c.l.b16 %v2238
    %v2755 = vunpack.c.l.b16 %v2239
    %v2756 = vunpack.c.l.b16 %v2240
    %v2757 = vunpack.c.l.b16 %v2241
    %v2758 = vunpack.c.l.b16 %v2242
    %v2759 = vunpack.c.l.b16 %v2243
    %v2760 = vunpack.c.l.b16 %v2244
    %v2761 = vunpack.c.l.b16 %v2245
    %v2762 = vunpack.c.l.b16 %v2246
    %v2763 = vunpack.c.l.b16 %v2247
    %v2764 = vunpack.c.l.b16 %v2248
    %v2765 = vunpack.c.l.b16 %v2249
    %v2766 = vunpack.c.l.b16 %v2250
    %v2767 = vunpack.c.l.b16 %v2251
    %v2768 = vunpack.c.l.b16 %v2252
    %v2769 = vunpack.c.l.b16 %v2253
    %v2770 = vunpack.c.l.b16 %v2254
    %v2771 = vunpack.c.l.b16 %v2255
    %v2772 = vunpack.c.l.b16 %v2256
    %v2773 = vunpack.c.l.b16 %v2257
    %v2774 = vunpack.c.l.b16 %v2258
    %v2775 = vunpack.c.l.b16 %v2259
    %v2776 = vunpack.c.l.b16 %v2260
    %v2777 = vunpack.c.l.b16 %v2261
    %v2778 = vunpack.c.l.b16 %v2262
    %v2779 = vunpack.c.l.b16 %v2263
    %v2780 = vunpack.c.l.b16 %v2264
    %v2781 = vunpack.c.l.b16 %v2265
    %v2782 = vunpack.c.l.b16 %v2266
    %v2783 = vunpack.c.l.b16 %v2267
    %v2784 = vunpack.c.l.b16 %v2268
    %v2785 = vunpack.c.l.b16 %v2269
    %v2786 = vunpack.c.l.b16 %v2270
    %v2787 = vunpack.c.l.b16 %v2271
    %v2788 = vunpack.c.l.b16 %v2272
    %v2789 = vunpack.c.l.b16 %v2273
    %v2790 = vunpack.c.l.b16 %v2274
    %v2791 = vunpack.c.l.b16 %v2275
    %v2792 = vunpack.c.l.b16 %v2276
    %v2793 = vunpack.c.l.b16 %v2277
    %v2794 = vunpack.c.l.b16 %v2278
    %v2795 = vunpack.c.l.b16 %v2279
    %v2796 = vunpack.c.l.b16 %v2280
    %v2797 = vunpack.c.l.b16 %v2281
    %v2798 = vunpack.c.l.b16 %v2282
    %v2799 = vunpack.c.l.b16 %v2283
    %v2800 = vunpack.c.l.b16 %v2284
    %v2801 = vunpack.c.l.b16 %v2285
    %v2802 = vunpack.c.l.b16 %v2286
    %v2803 = vunpack.c.l.b16 %v2287
    %v2804 = vunpack.c.l.b16 %v2288
    %v2805 = vunpack.c.l.b16 %v2289
    %v2806 = vunpack.c.l.b16 %v2290
    %v2807 = vunpack.c.l.b16 %v2291
    %v2808 = vunpack.c.l.b16 %v2292
    %v2809 = vunpack.c.l.b16 %v2293
    %v2810 = vunpack.c.l.b16 %v2294
    %v2811 = vunpack.c.l.b16 %v2295
    %v2812 = vunpack.c.l.b16 %v2296
    %v2813 = vunpack.c.l.b16 %v2297
    %v2814 = vunpack.c.l.b16 %v2298
    %v2815 = vunpack.c.l.b16 %v2299
    %v2816 = vunpack.c.l.b16 %v2300
    %v2817 = vunpack.c.l.b16 %v2301
    %v2818 = vunpack.c.l.b16 %v2302
    %v2819 = vunpack.c.l.b16 %v2303
    %v2820 = vunpack.c.l.b16 %v2304
    %v2821 = vunpack.c.l.b16 %v2305
    %v2822 = vunpack.c.l.b16 %v2306
    %v2823 = vunpack.c.l.b16 %v2307
    %v2824 = vunpack.c.l.b16 %v2308
    %v2825 = vunpack.c.l.b16 %v2309
    %v2826 = vunpack.c.l.b16 %v2310
    %v2827 = vunpack.c.l.b16 %v2311
    %v2828 = vunpack.c.l.b16 %v2312
    %v2829 = vunpack.c.l.b16 %v2313
    %v2830 = vunpack.c.l.b16 %v2314
    %v2831 = vunpack.c.l.b16 %v2315
    %v2832 = vunpack.c.l.b16 %v2316
    %v2833 = vunpack.c.l.b16 %v2317
    %v2834 = vunpack.c.l.b16 %v2318
    %v2835 = vunpack.c.l.b16 %v2319
    %v2836 = vunpack.c.l.b16 %v2320
    %v2837 = vunpack.c.l.b16 %v2321
    %v2838 = vunpack.c.l.b16 %v2322
    %v2839 = vunpack.c.l.b16 %v2323
    %v2840 = vunpack.c.l.b16 %v2324
    %v2841 = vunpack.c.l.b16 %v2325
    %v2842 = vunpack.c.l.b16 %v2326
    %v2843 = vunpack.c.l.b16 %v2327
    %v2844 = vunpack.c.l.b16 %v2328
    %v2845 = vunpack.c.l.b16 %v2329
    %v2846 = vunpack.c.l.b16 %v2330
    %v2847 = vunpack.c.l.b16 %v2331
    %v2848 = vunpack.c.l.b16 %v2332
    %v2849 = vunpack.c.l.b16 %v2333
    %v2850 = vunpack.c.l.b16 %v2334
    %v2851 = vunpack.c.l.b16 %v2335
    %v2852 = vunpack.c.l.b16 %v2336
    %v2853 = vunpack.c.l.b16 %v2337
    %v2854 = vunpack.c.l.b16 %v2338
    %v2855 = vunpack.c.l.b16 %v2339
    %v2856 = vunpack.c.l.b16 %v2340
    %v2857 = vunpack.c.l.b16 %v2341
    %v2858 = vunpack.c.l.b16 %v2342
    %v2859 = vunpack.c.l.b16 %v2343
    %v2860 = vunpack.c.l.b16 %v2344
    %v2861 = vunpack.c.l.b16 %v2345
    %v2862 = vunpack.c.l.b16 %v2346
    %v2863 = vunpack.c.l.b16 %v2347
    %v2864 = vunpack.c.l.b16 %v2348
    %v2865 = vunpack.c.l.b16 %v2349
    %v2866 = vunpack.c.l.b16 %v2350
    %v2867 = vunpack.c.l.b16 %v2351
    %v2868 = vunpack.c.l.b16 %v2352
    %v2869 = vunpack.c.l.b16 %v2353
    %v2870 = vunpack.c.l.b16 %v2354
    %v2871 = vunpack.c.l.b16 %v2355
    %v2872 = vunpack.c.l.b16 %v2356
    %v2873 = vunpack.c.l.b16 %v2357
    %v2874 = vunpack.c.l.b16 %v2358
    %v2875 = vunpack.c.l.b16 %v2359
    %v2876 = vunpack.c.l.b16 %v2360
    %v2877 = vunpack.c.l.b16 %v2361
    %v2878 = vunpack.c.l.b16 %v2362
    %v2879 = vunpack.c.l.b16 %v2363
    %v2880 = vunpack.c.l.b16 %v2364
    %v2881 = vunpack.c.l.b16 %v2365
    %v2882 = vunpack.c.l.b16 %v2366
    %v2883 = vunpack.c.l.b16 %v2367
    %v2884 = vunpack.c.l.b16 %v2368
    %v2885 = vunpack.c.l.b16 %v2369
    %v2886 = vunpack.c.l.b16 %v2370
    %v2887 = vunpack.c.l.b16 %v2371
    %v2888 = vunpack.c.l.b16 %v2372
    %v2889 = vunpack.c.l.b16 %v2373
    %v2890 = vunpack.c.l.b16 %v2374
    %v2891 = vunpack.c.l.b16 %v2375
    %v2892 = vunpack.c.l.b16 %v2376
    %v2893 = vunpack.c.l.b16 %v2377
    %v2894 = vunpack.c.l.b16 %v2378
    %v2895 = vunpack.c.l.b16 %v2379
    %v2896 = vunpack.c.l.b16 %v2380
    %v2897 = vunpack.c.l.b16 %v2381
    %v2898 = vunpack.c.l.b16 %v2382
    %v2899 = vunpack.c.l.b16 %v2383
    %v2900 = vunpack.c.l.b16 %v2384
    %v2901 = vunpack.c.l.b16 %v2385
    %v2902 = vunpack.c.l.b16 %v2386
    %v2903 = vunpack.c.l.b16 %v2387
    %v2904 = vunpack.c.l.b16 %v2388
    %v2905 = vunpack.c.l.b16 %v2389
    %v2906 = vunpack.c.l.b16 %v2390
    %v2907 = vunpack.c.l.b16 %v2391
    %v2908 = vunpack.c.l.b16 %v2392
    %v2909 = vunpack.c.l.b16 %v2393
    %v2910 = vunpack.c.l.b16 %v2394
    %v2911 = vunpack.c.l.b16 %v2395
    %v2912 = vunpack.c.l.b16 %v2396
    %v2913 = vunpack.c.l.b16 %v2397
    %v2914 = vunpack.c.l.b16 %v2398
    %v2915 = vunpack.c.l.b16 %v2399
    %v2916 = vunpack.c.l.b16 %v2400
    %v2917 = vunpack.c.l.b16 %v2401
    %v2918 = vunpack.c.l.b16 %v2402
    %v2919 = vunpack.c.l.b16 %v2403
    %v2920 = vunpack.c.l.b16 %v2404
    %v2921 = vunpack.c.l.b16 %v2405
    %v2922 = vunpack.c.l.b16 %v2406
    %v2923 = vunpack.c.l.b16 %v2407
    %v2924 = vpack.c.b16 %v2669, %v2668
    %v2925 = vpack.c.b16 %v2671, %v2670
    %v2926 = vpack.c.b16 %v2673, %v2672
    %v2927 = vpack.c.b16 %v2675, %v2674
    %v2928 = vpack.c.b16 %v2677, %v2676
    %v2929 = vpack.c.b16 %v2679, %v2678
    %v2930 = vpack.c.b16 %v2681, %v2680
    %v2931 = vpack.c.b16 %v2683, %v2682
    %v2932 = vpack.c.b16 %v2685, %v2684
    %v2933 = vpack.c.b16 %v2687, %v2686
    %v2934 = vpack.c.b16 %v2689, %v2688
    %v2935 = vpack.c.b16 %v2691, %v2690
    %v2936 = vpack.c.b16 %v2693, %v2692
    %v2937 = vpack.c.b16 %v2695, %v2694
    %v2938 = vpack.c.b16 %v2697, %v2696
    %v2939 = vpack.c.b16 %v2699, %v2698
    %v2940 = vpack.c.b16 %v2701, %v2700
    %v2941 = vpack.c.b16 %v2703, %v2702
    %v2942 = vpack.c.b16 %v2705, %v2704
    %v2943 = vpack.c.b16 %v2707, %v2706
    %v2944 = vpack.c.b16 %v2709, %v2708
    %v2945 = vpack.c.b16 %v2711, %v2710
    %v2946 = vpack.c.b16 %v2713, %v2712
    %v2947 = vpack.c.b16 %v2715, %v2714
    %v2948 = vpack.c.b16 %v2717, %v2716
    %v2949 = vpack.c.b16 %v2719, %v2718
    %v2950 = vpack.c.b16 %v2721, %v2720
    %v2951 = vpack.c.b16 %v2723, %v2722
    %v2952 = vpack.c.b16 %v2725, %v2724
    %v2953 = vpack.c.b16 %v2727, %v2726
    %v2954 = vpack.c.b16 %v2729, %v2728
    %v2955 = vpack.c.b16 %v2731, %v2730
    %v2956 = vpack.c.b16 %v2733, %v2732
    %v2957 = vpack.c.b16 %v2735, %v2734
    %v2958 = vpack.c.b16 %v2737, %v2736
    %v2959 = vpack.c.b16 %v2739, %v2738
    %v2960 = vpack.c.b16 %v2741, %v2740
    %v2961 = vpack.c.b16 %v2743, %v2742
    %v2962 = vpack.c.b16 %v2745, %v2744
    %v2963 = vpack.c.b16 %v2747, %v2746
    %v2964 = vpack.c.b16 %v2749, %v2748
    %v2965 = vpack.c.b16 %v2751, %v2750
    %v2966 = vpack.c.b16 %v2753, %v2752
    %v2967 = vpack.c.b16 %v2755, %v2754
    %v2968 = vpack.c.b16 %v2757, %v2756
    %v2969 = vpack.c.b16 %v2759, %v2758
    %v2970 = vpack.c.b16 %v2761, %v2760
    %v2971 = vpack.c.b16 %v2763, %v2762
    %v2972 = vpack.c.b16 %v2765, %v2764
    %v2973 = vpack.c.b16 %v2767, %v2766
    %v2974 = vpack.c.b16 %v2769, %v2768
    %v2975 = vpack.c.b16 %v2771, %v2770
    %v2976 = vpack.c.b16 %v2773, %v2772
    %v2977 = vpack.c.b16 %v2775, %v2774
    %v2978 = vpack.c.b16 %v2777, %v2776
    %v2979 = vpack.c.b16 %v2779, %v2778
    %v2980 = vpack.c.b16 %v2781, %v2780
    %v2981 = vpack.c.b16 %v2783, %v2782
    %v2982 = vpack.c.b16 %v2785, %v2784
    %v2983 = vpack.c.b16 %v2787, %v2786
    %v2984 = vpack.c.b16 %v2789, %v2788
    %v2985 = vpack.c.b16 %v2791, %v2790
    %v2986 = vpack.c.b16 %v2793, %v2792
    %v2987 = vpack.c.b16 %v2795, %v2794
    %v2988 = vpack.c.b16 %v2797, %v2796
    %v2989 = vpack.c.b16 %v2799, %v2798
    %v2990 = vpack.c.b16 %v2801, %v2800
    %v2991 = vpack.c.b16 %v2803, %v2802
    %v2992 = vpack.c.b16 %v2805, %v2804
    %v2993 = vpack.c.b16 %v2807, %v2806
    %v2994 = vpack.c.b16 %v2809, %v2808
    %v2995 = vpack.c.b16 %v2811, %v2810
    %v2996 = vpack.c.b16 %v2813, %v2812
    %v2997 = vpack.c.b16 %v2815, %v2814
    %v2998 = vpack.c.b16 %v2817, %v2816
    %v2999 = vpack.c.b16 %v2819, %v2818
    %v3000 = vpack.c.b16 %v2821, %v2820
    %v3001 = vpack.c.b16 %v2823, %v2822
    %v3002 = vpack.c.b16 %v2825, %v2824
    %v3003 = vpack.c.b16 %v2827, %v2826
    %v3004 = vpack.c.b16 %v2829, %v2828
    %v3005 = vpack.c.b16 %v2831, %v2830
    %v3006 = vpack.c.b16 %v2833, %v2832
    %v3007 = vpack.c.b16 %v2835, %v2834
    %v3008 = vpack.c.b16 %v2837, %v2836
    %v3009 = vpack.c.b16 %v2839, %v2838
    %v3010 = vpack.c.b16 %v2841, %v2840
    %v3011 = vpack.c.b16 %v2843, %v2842
    %v3012 = vpack.c.b16 %v2845, %v2844
    %v3013 = vpack.c.b16 %v2847, %v2846
    %v3014 = vpack.c.b16 %v2849, %v2848
    %v3015 = vpack.c.b16 %v2851, %v2850
    %v3016 = vpack.c.b16 %v2853, %v2852
    %v3017 = vpack.c.b16 %v2855, %v2854
    %v3018 = vpack.c.b16 %v2857, %v2856
    %v3019 = vpack.c.b16 %v2859, %v2858
    %v3020 = vpack.c.b16 %v2861, %v2860
    %v3021 = vpack.c.b16 %v2863, %v2862
    %v3022 = vpack.c.b16 %v2865, %v2864
    %v3023 = vpack.c.b16 %v2867, %v2866
    %v3024 = vpack.c.b16 %v2869, %v2868
    %v3025 = vpack.c.b16 %v2871, %v2870
    %v3026 = vpack.c.b16 %v2873, %v2872
    %v3027 = vpack.c.b16 %v2875, %v2874
    %v3028 = vpack.c.b16 %v2877, %v2876
    %v3029 = vpack.c.b16 %v2879, %v2878
    %v3030 = vpack.c.b16 %v2881, %v2880
    %v3031 = vpack.c.b16 %v2883, %v2882
    %v3032 = vpack.c.b16 %v2885, %v2884
    %v3033 = vpack.c.b16 %v2887, %v2886
    %v3034 = vpack.c.b16 %v2889, %v2888
    %v3035 = vpack.c.b16 %v2891, %v2890
    %v3036 = vpack.c.b16 %v2893, %v2892
    %v3037 = vpack.c.b16 %v2895, %v2894
    %v3038 = vpack.c.b16 %v2897, %v2896
    %v3039 = vpack.c.b16 %v2899, %v2898
    %v3040 = vpack.c.b16 %v2901, %v2900
    %v3041 = vpack.c.b16 %v2903, %v2902
    %v3042 = vpack.c.b16 %v2905, %v2904
    %v3043 = vpack.c.b16 %v2907, %v2906
    %v3044 = vpack.c.b16 %v2909, %v2908
    %v3045 = vpack.c.b16 %v2911, %v2910
    %v3046 = vpack.c.b16 %v2913, %v2912
    %v3047 = vpack.c.b16 %v2915, %v2914
    %v3048 = vpack.c.b16 %v2917, %v2916
    %v3049 = vpack.c.b16 %v2919, %v2918
    %v3050 = vpack.c.b16 %v2921, %v2920
    %v3051 = vpack.c.b16 %v2923, %v2922
    %3180 = vmatpush.bf16.msra.mxu0 %v2931
    %3181 = vmatpush.bf16.msra.mxu0 %v2930
    %3182 = vmatpush.bf16.msra.mxu0 %v2929
    %3183 = vmatpush.bf16.msra.mxu0 %v2928
    %3184 = vmatpush.bf16.msra.mxu0 %v2927
    %3185 = vmatpush.bf16.msra.mxu0 %v2926
    %3186 = vmatpush.bf16.msra.mxu0 %v2925
    %3187 = vmatpush.bf16.msra.mxu0 %v2924
    %3188 = vmatmul.bf16.gmra.mxu0 %v2136
    %v3189 = vpop.f32.mrf.mxu0
    %v3190 = vadd.f32 %v2410, %v3189
    %v3191 = vpop.f32.mrf.mxu0
    %v3192 = vadd.f32 %v2410, %v3191
    %3193 = vdwg.mxu0
    %3194 = vmatpush.bf16.msra.mxu0 %v2939
    %3195 = vmatpush.bf16.msra.mxu0 %v2938
    %3196 = vmatpush.bf16.msra.mxu0 %v2937
    %3197 = vmatpush.bf16.msra.mxu0 %v2936
    %3198 = vmatpush.bf16.msra.mxu0 %v2935
    %3199 = vmatpush.bf16.msra.mxu0 %v2934
    %3200 = vmatpush.bf16.msra.mxu0 %v2933
    %3201 = vmatpush.bf16.msra.mxu0 %v2932
    %3202 = vmatmul.bf16.gmra.mxu0 %v2137
    %v3203 = vpop.f32.mrf.mxu0
    %v3204 = vadd.f32 %v3190, %v3203
    %v3205 = vpop.f32.mrf.mxu0
    %v3206 = vadd.f32 %v3192, %v3205
    %3207 = vdwg.mxu0
    %3208 = vmatpush.bf16.msra.mxu0 %v2947
    %3209 = vmatpush.bf16.msra.mxu0 %v2946
    %3210 = vmatpush.bf16.msra.mxu0 %v2945
    %3211 = vmatpush.bf16.msra.mxu0 %v2944
    %3212 = vmatpush.bf16.msra.mxu0 %v2943
    %3213 = vmatpush.bf16.msra.mxu0 %v2942
    %3214 = vmatpush.bf16.msra.mxu0 %v2941
    %3215 = vmatpush.bf16.msra.mxu0 %v2940
    %3216 = vmatmul.bf16.gmra.mxu0 %v2138
    %v3217 = vpop.f32.mrf.mxu0
    %v3218 = vadd.f32 %v3204, %v3217
    %v3219 = vpop.f32.mrf.mxu0
    %v3220 = vadd.f32 %v3206, %v3219
    %3221 = vdwg.mxu0
    %3222 = vmatpush.bf16.msra.mxu0 %v2955
    %3223 = vmatpush.bf16.msra.mxu0 %v2954
    %3224 = vmatpush.bf16.msra.mxu0 %v2953
    %3225 = vmatpush.bf16.msra.mxu0 %v2952
    %3226 = vmatpush.bf16.msra.mxu0 %v2951
    %3227 = vmatpush.bf16.msra.mxu0 %v2950
    %3228 = vmatpush.bf16.msra.mxu0 %v2949
    %3229 = vmatpush.bf16.msra.mxu0 %v2948
    %3230 = vmatmul.bf16.gmra.mxu0 %v2139
    %v3231 = vpop.f32.mrf.mxu0
    %v3232 = vadd.f32 %v3218, %v3231
    %v3233 = vpop.f32.mrf.mxu0
    %v3234 = vadd.f32 %v3220, %v3233
    %3235 = vdwg.mxu0
    %3236 = vmatpush.bf16.msra.mxu0 %v2963
    %3237 = vmatpush.bf16.msra.mxu0 %v2962
    %3238 = vmatpush.bf16.msra.mxu0 %v2961
    %3239 = vmatpush.bf16.msra.mxu0 %v2960
    %3240 = vmatpush.bf16.msra.mxu0 %v2959
    %3241 = vmatpush.bf16.msra.mxu0 %v2958
    %3242 = vmatpush.bf16.msra.mxu0 %v2957
    %3243 = vmatpush.bf16.msra.mxu0 %v2956
    %3244 = vmatmul.bf16.gmra.mxu0 %v2140
    %v3245 = vpop.f32.mrf.mxu0
    %v3246 = vadd.f32 %v3232, %v3245
    %v3247 = vpop.f32.mrf.mxu0
    %v3248 = vadd.f32 %v3234, %v3247
    %3249 = vdwg.mxu0
    %3250 = vmatpush.bf16.msra.mxu0 %v2971
    %3251 = vmatpush.bf16.msra.mxu0 %v2970
    %3252 = vmatpush.bf16.msra.mxu0 %v2969
    %3253 = vmatpush.bf16.msra.mxu0 %v2968
    %3254 = vmatpush.bf16.msra.mxu0 %v2967
    %3255 = vmatpush.bf16.msra.mxu0 %v2966
    %3256 = vmatpush.bf16.msra.mxu0 %v2965
    %3257 = vmatpush.bf16.msra.mxu0 %v2964
    %3258 = vmatmul.bf16.gmra.mxu0 %v2141
    %v3259 = vpop.f32.mrf.mxu0
    %v3260 = vadd.f32 %v3246, %v3259
    %v3261 = vpop.f32.mrf.mxu0
    %v3262 = vadd.f32 %v3248, %v3261
    %3263 = vdwg.mxu0
    %3264 = vmatpush.bf16.msra.mxu0 %v2979
    %3265 = vmatpush.bf16.msra.mxu0 %v2978
    %3266 = vmatpush.bf16.msra.mxu0 %v2977
    %3267 = vmatpush.bf16.msra.mxu0 %v2976
    %3268 = vmatpush.bf16.msra.mxu0 %v2975
    %3269 = vmatpush.bf16.msra.mxu0 %v2974
    %3270 = vmatpush.bf16.msra.mxu0 %v2973
    %3271 = vmatpush.bf16.msra.mxu0 %v2972
    %3272 = vmatmul.bf16.gmra.mxu0 %v2142
    %v3273 = vpop.f32.mrf.mxu0
    %v3274 = vadd.f32 %v3260, %v3273
    %v3275 = vpop.f32.mrf.mxu0
    %v3276 = vadd.f32 %v3262, %v3275
    %3277 = vdwg.mxu0
    %3278 = vmatpush.bf16.msra.mxu0 %v2987
    %3279 = vmatpush.bf16.msra.mxu0 %v2986
    %3280 = vmatpush.bf16.msra.mxu0 %v2985
    %3281 = vmatpush.bf16.msra.mxu0 %v2984
    %3282 = vmatpush.bf16.msra.mxu0 %v2983
    %3283 = vmatpush.bf16.msra.mxu0 %v2982
    %3284 = vmatpush.bf16.msra.mxu0 %v2981
    %3285 = vmatpush.bf16.msra.mxu0 %v2980
    %3286 = vmatmul.bf16.gmra.mxu0 %v2143
    %v3287 = vpop.f32.mrf.mxu0
    %v3288 = vadd.f32 %v3274, %v3287
    %v3289 = vpop.f32.mrf.mxu0
    %v3290 = vadd.f32 %v3276, %v3289
    %3291 = vdwg.mxu0
    %3292 = vmatpush.bf16.msra.mxu0 %v2995
    %3293 = vmatpush.bf16.msra.mxu0 %v2994
    %3294 = vmatpush.bf16.msra.mxu0 %v2993
    %3295 = vmatpush.bf16.msra.mxu0 %v2992
    %3296 = vmatpush.bf16.msra.mxu0 %v2991
    %3297 = vmatpush.bf16.msra.mxu0 %v2990
    %3298 = vmatpush.bf16.msra.mxu0 %v2989
    %3299 = vmatpush.bf16.msra.mxu0 %v2988
    %3300 = vmatmul.bf16.gmra.mxu0 %v2144
    %v3301 = vpop.f32.mrf.mxu0
    %v3302 = vadd.f32 %v3288, %v3301
    %v3303 = vpop.f32.mrf.mxu0
    %v3304 = vadd.f32 %v3290, %v3303
    %3305 = vdwg.mxu0
    %3306 = vmatpush.bf16.msra.mxu0 %v3003
    %3307 = vmatpush.bf16.msra.mxu0 %v3002
    %3308 = vmatpush.bf16.msra.mxu0 %v3001
    %3309 = vmatpush.bf16.msra.mxu0 %v3000
    %3310 = vmatpush.bf16.msra.mxu0 %v2999
    %3311 = vmatpush.bf16.msra.mxu0 %v2998
    %3312 = vmatpush.bf16.msra.mxu0 %v2997
    %3313 = vmatpush.bf16.msra.mxu0 %v2996
    %3314 = vmatmul.bf16.gmra.mxu0 %v2145
    %v3315 = vpop.f32.mrf.mxu0
    %v3316 = vadd.f32 %v3302, %v3315
    %v3317 = vpop.f32.mrf.mxu0
    %v3318 = vadd.f32 %v3304, %v3317
    %3319 = vdwg.mxu0
    %3320 = vmatpush.bf16.msra.mxu0 %v3011
    %3321 = vmatpush.bf16.msra.mxu0 %v3010
    %3322 = vmatpush.bf16.msra.mxu0 %v3009
    %3323 = vmatpush.bf16.msra.mxu0 %v3008
    %3324 = vmatpush.bf16.msra.mxu0 %v3007
    %3325 = vmatpush.bf16.msra.mxu0 %v3006
    %3326 = vmatpush.bf16.msra.mxu0 %v3005
    %3327 = vmatpush.bf16.msra.mxu0 %v3004
    %3328 = vmatmul.bf16.gmra.mxu0 %v2146
    %v3329 = vpop.f32.mrf.mxu0
    %v3330 = vadd.f32 %v3316, %v3329
    %v3331 = vpop.f32.mrf.mxu0
    %v3332 = vadd.f32 %v3318, %v3331
    %3333 = vdwg.mxu0
    %3334 = vmatpush.bf16.msra.mxu0 %v3019
    %3335 = vmatpush.bf16.msra.mxu0 %v3018
    %3336 = vmatpush.bf16.msra.mxu0 %v3017
    %3337 = vmatpush.bf16.msra.mxu0 %v3016
    %3338 = vmatpush.bf16.msra.mxu0 %v3015
    %3339 = vmatpush.bf16.msra.mxu0 %v3014
    %3340 = vmatpush.bf16.msra.mxu0 %v3013
    %3341 = vmatpush.bf16.msra.mxu0 %v3012
    %3342 = vmatmul.bf16.gmra.mxu0 %v2147
    %v3343 = vpop.f32.mrf.mxu0
    %v3344 = vadd.f32 %v3330, %v3343
    %v3345 = vpop.f32.mrf.mxu0
    %v3346 = vadd.f32 %v3332, %v3345
    %3347 = vdwg.mxu0
    %3348 = vmatpush.bf16.msra.mxu0 %v3027
    %3349 = vmatpush.bf16.msra.mxu0 %v3026
    %3350 = vmatpush.bf16.msra.mxu0 %v3025
    %3351 = vmatpush.bf16.msra.mxu0 %v3024
    %3352 = vmatpush.bf16.msra.mxu0 %v3023
    %3353 = vmatpush.bf16.msra.mxu0 %v3022
    %3354 = vmatpush.bf16.msra.mxu0 %v3021
    %3355 = vmatpush.bf16.msra.mxu0 %v3020
    %3356 = vmatmul.bf16.gmra.mxu0 %v2148
    %v3357 = vpop.f32.mrf.mxu0
    %v3358 = vadd.f32 %v3344, %v3357
    %v3359 = vpop.f32.mrf.mxu0
    %v3360 = vadd.f32 %v3346, %v3359
    %3361 = vdwg.mxu0
    %3362 = vmatpush.bf16.msra.mxu0 %v3035
    %3363 = vmatpush.bf16.msra.mxu0 %v3034
    %3364 = vmatpush.bf16.msra.mxu0 %v3033
    %3365 = vmatpush.bf16.msra.mxu0 %v3032
    %3366 = vmatpush.bf16.msra.mxu0 %v3031
    %3367 = vmatpush.bf16.msra.mxu0 %v3030
    %3368 = vmatpush.bf16.msra.mxu0 %v3029
    %3369 = vmatpush.bf16.msra.mxu0 %v3028
    %3370 = vmatmul.bf16.gmra.mxu0 %v2149
    %v3371 = vpop.f32.mrf.mxu0
    %v3372 = vadd.f32 %v3358, %v3371
    %v3373 = vpop.f32.mrf.mxu0
    %v3374 = vadd.f32 %v3360, %v3373
    %3375 = vdwg.mxu0
    %3376 = vmatpush.bf16.msra.mxu0 %v3043
    %3377 = vmatpush.bf16.msra.mxu0 %v3042
    %3378 = vmatpush.bf16.msra.mxu0 %v3041
    %3379 = vmatpush.bf16.msra.mxu0 %v3040
    %3380 = vmatpush.bf16.msra.mxu0 %v3039
    %3381 = vmatpush.bf16.msra.mxu0 %v3038
    %3382 = vmatpush.bf16.msra.mxu0 %v3037
    %3383 = vmatpush.bf16.msra.mxu0 %v3036
    %3384 = vmatmul.bf16.gmra.mxu0 %v2150
    %v3385 = vpop.f32.mrf.mxu0
    %v3386 = vadd.f32 %v3372, %v3385
    %v3387 = vpop.f32.mrf.mxu0
    %v3388 = vadd.f32 %v3374, %v3387
    %3389 = vdwg.mxu0
    %3390 = vmatpush.bf16.msra.mxu0 %v3051
    %3391 = vmatpush.bf16.msra.mxu0 %v3050
    %3392 = vmatpush.bf16.msra.mxu0 %v3049
    %3393 = vmatpush.bf16.msra.mxu0 %v3048
    %3394 = vmatpush.bf16.msra.mxu0 %v3047
    %3395 = vmatpush.bf16.msra.mxu0 %v3046
    %3396 = vmatpush.bf16.msra.mxu0 %v3045
    %3397 = vmatpush.bf16.msra.mxu0 %v3044
    %3398 = vmatmul.bf16.gmra.mxu0 %v2151
    %v3399 = vpop.f32.mrf.mxu0
    %v3400 = vadd.f32 %v3386, %v3399
    %v3401 = vpop.f32.mrf.mxu0
    %v3402 = vadd.f32 %v3388, %v3401
    %3403 = vdwg.mxu0
    %v3404 = vadd.f32 %v1454, %v3400
    %v3405 = vadd.f32 %v1455, %v3402
    %v3406 = vld [vmem:[%s17] sm:$0x1]
    %v3407 = vld [vmem:[%s18] sm:$0x1]
    %v3408 = vsel %vm446, %v3404, 0.0
    %3409 = vadd.xlane.f32.xlu0 %v3408
    %v3410 = vpop.xlane.xlu0 %3409
    %v3411 = vsel %vm446, %v3405, 0.0
    %3412 = vadd.xlane.f32.xlu0 %v3411
    %v3413 = vpop.xlane.xlu0 %3412
    %v3414 = vmul.f32 %v3410, %v1407
    %v3415 = vmul.f32 %v3413, %v1407
    %v3416 = vsub.f32 %v3404, %v3414
    %v3417 = vsub.f32 %v3405, %v3415
    %v3418 = vmul.f32 %v3416, %v3416
    %v3419 = vmul.f32 %v3417, %v3417
    %v3420 = vsel %vm446, %v3418, 0.0
    %3421 = vadd.xlane.f32.xlu0 %v3420
    %v3422 = vpop.xlane.xlu0 %3421
    %v3423 = vsel %vm446, %v3419, 0.0
    %3424 = vadd.xlane.f32.xlu0 %v3423
    %v3425 = vpop.xlane.xlu0 %3424
    %v3426 = vmul.f32 %v3422, %v1407
    %v3427 = vmul.f32 %v3425, %v1407
    %v3428 = vadd.f32 %v3426, 1e-05
    %v3429 = vadd.f32 %v3427, 1e-05
    %v3430 = vrsqrt.pop %v3428
    %v3431 = vmul.f32 %v3430, %v3428
    %v3432 = vmul.f32 %v3431, %v3430
    %v3433 = vmul.f32 0.5, %v3432
    %v3434 = vsub.f32 1.5, %v3433
    %v3435 = vmul.f32 %v3430, %v3434
    %vm3436 = vweird.f32 %v3428
    %vm3437 = vweird.f32 %v3430
    %vm3438 = vmor %vm3436, %vm3437
    %v3439 = vsel %vm3438, %v3430, %v3435
    %v3440 = vrsqrt.pop %v3429
    %v3441 = vmul.f32 %v3440, %v3429
    %v3442 = vmul.f32 %v3441, %v3440
    %v3443 = vmul.f32 0.5, %v3442
    %v3444 = vsub.f32 1.5, %v3443
    %v3445 = vmul.f32 %v3440, %v3444
    %vm3446 = vweird.f32 %v3429
    %vm3447 = vweird.f32 %v3440
    %vm3448 = vmor %vm3446, %vm3447
    %v3449 = vsel %vm3448, %v3440, %v3445
    %v3450 = vmul.f32 %v3416, %v3439
    %v3451 = vmul.f32 %v3417, %v3449
    %v3453 = vperm.slane %v3406, 0
    %v3455 = vmul.f32 %v3450, %v3453
    %v3456 = vmul.f32 %v3451, %v3453
    %v3458 = vperm.slane %v3407, 0
    %v3460 = vadd.f32 %v3455, %v3458
    %v3461 = vadd.f32 %v3456, %v3458
    %s3462 = scalar_lea.vmem %s7, 64
    %v3463 = vld [vmem:[%s3462] sm:$0xff]
    %v3464 = vld [vmem:[%s3462 + $0x8] sm:$0xff]
    %v3465 = vld [vmem:[%s3462 + $0x10] sm:$0xff]
    %v3466 = vld [vmem:[%s3462 + $0x18] sm:$0xff]
    %v3467 = vld [vmem:[%s3462 + $0x20] sm:$0xff]
    %v3468 = vld [vmem:[%s3462 + $0x28] sm:$0xff]
    %v3469 = vld [vmem:[%s3462 + $0x30] sm:$0xff]
    %v3470 = vld [vmem:[%s3462 + $0x38] sm:$0xff]
    %v3471 = vpack.c.bf16 %v3461, %v3460
    %s3472 = scalar_lea.vmem %s8, 2
    %v3473 = vld [vmem:[%s3472] sm:$0x3]
    %v3475 = vperm.slane %v3473, 0
    %v3476 = vperm.slane %v3473, 1
    %v3487 = vunpack.c.l.b16 %v3463
    %v3488 = vunpack.c.h.b16 %v3463
    %v3489 = vunpack.c.l.b16 %v3464
    %v3490 = vunpack.c.h.b16 %v3464
    %v3491 = vunpack.c.l.b16 %v3465
    %v3492 = vunpack.c.h.b16 %v3465
    %v3493 = vunpack.c.l.b16 %v3466
    %v3494 = vunpack.c.h.b16 %v3466
    %v3495 = vunpack.c.l.b16 %v3467
    %v3496 = vunpack.c.h.b16 %v3467
    %v3497 = vunpack.c.l.b16 %v3468
    %v3498 = vunpack.c.h.b16 %v3468
    %v3499 = vunpack.c.l.b16 %v3469
    %v3500 = vunpack.c.h.b16 %v3469
    %v3501 = vunpack.c.l.b16 %v3470
    %v3502 = vunpack.c.h.b16 %v3470
    %v3503 = vpack.c.b16 %v3489, %v3487
    %v3504 = vpack.c.b16 %v3490, %v3488
    %v3505 = vpack.c.b16 %v3493, %v3491
    %v3506 = vpack.c.b16 %v3494, %v3492
    %v3507 = vpack.c.b16 %v3497, %v3495
    %v3508 = vpack.c.b16 %v3498, %v3496
    %v3509 = vpack.c.b16 %v3501, %v3499
    %v3510 = vpack.c.b16 %v3502, %v3500
    %v3520 = vsel %vm446, %v3471, 0
    %3522 = vmatpush.bf16.msra.mxu0 0
    %3523 = vmatpush.bf16.msra.mxu0 0
    %3524 = vmatpush.bf16.msra.mxu0 0
    %3525 = vmatpush.bf16.msra.mxu0 0
    %3526 = vmatpush.bf16.msra.mxu0 %v3509
    %3527 = vmatpush.bf16.msra.mxu0 %v3507
    %3528 = vmatpush.bf16.msra.mxu0 %v3505
    %3529 = vmatpush.bf16.msra.mxu0 %v3503
    %3530 = vmatmul.bf16.gmra.mxu0 %v3520
    %v3531 = vpop.f32.mrf.mxu0
    %v3532 = vadd.f32 %v3475, %v3531
    %v3533 = vpop.f32.mrf.mxu0
    %v3534 = vadd.f32 %v3475, %v3533
    %3535 = vdwg.mxu0
    %3536 = vmatpush.bf16.msra.mxu0 0
    %3537 = vmatpush.bf16.msra.mxu0 0
    %3538 = vmatpush.bf16.msra.mxu0 0
    %3539 = vmatpush.bf16.msra.mxu0 0
    %3540 = vmatpush.bf16.msra.mxu0 %v3510
    %3541 = vmatpush.bf16.msra.mxu0 %v3508
    %3542 = vmatpush.bf16.msra.mxu0 %v3506
    %3543 = vmatpush.bf16.msra.mxu0 %v3504
    %3544 = vmatmul.bf16.gmra.mxu0 %v3520
    %v3545 = vpop.f32.mrf.mxu0
    %v3546 = vadd.f32 %v3476, %v3545
    %v3547 = vpop.f32.mrf.mxu0
    %v3548 = vadd.f32 %v3476, %v3547
    %3549 = vdwg.mxu0
    %s3550 = scalar_lea.vmem %s9, 32
    %v3551 = vld [vmem:[%s3550] sm:$0xf]
    %v3552 = vld [vmem:[%s3550 + $0x4] sm:$0xf]
    %v3553 = vld [vmem:[%s3550 + $0x8] sm:$0xf]
    %v3554 = vld [vmem:[%s3550 + $0xc] sm:$0xf]
    %v3555 = vld [vmem:[%s3550 + $0x10] sm:$0xf]
    %v3556 = vld [vmem:[%s3550 + $0x14] sm:$0xf]
    %v3557 = vld [vmem:[%s3550 + $0x18] sm:$0xf]
    %v3558 = vld [vmem:[%s3550 + $0x1c] sm:$0xf]
    %s3559 = scalar_lea.vmem %s10, 1
    %v3560 = vld [vmem:[%s3559] sm:$0x1]
    %v3561 = vpack.c.bf16 %v3532, %v3532
    %v3562 = vpack.c.bf16 %v3534, %v3534
    %v3563 = vpack.c.bf16 %v3546, %v3546
    %v3564 = vpack.c.bf16 %v3548, %v3548
    %v3566 = vunpack.c.l.b16 %v3561
    %v3567 = vpack.c.b16 %v3566, %v3566
    %3568 = vrot.lane.b32.xlu0 %v3567, 64
    %v3569 = vpop.permute.xlu0 %3568
    %v3571 = vsel %vm730, %v3561, 0
    %v3574 = vsel %vm730, %v3569, 0
    %3576 = vmatpush.bf16.xpose.msra.mxu0 0
    %3577 = vmatpush.bf16.xpose.msra.mxu0 0
    %3578 = vmatpush.bf16.xpose.msra.mxu0 0
    %3579 = vmatpush.bf16.xpose.msra.mxu0 0
    %3580 = vmatpush.bf16.xpose.msra.mxu0 0
    %3581 = vmatpush.bf16.xpose.msra.mxu0 0
    %3582 = vmatpush.bf16.xpose.msra.mxu0 0
    %3583 = vmatpush.bf16.xpose.msra.mxu0 %v3574
    %3584 = vmatmul.bf16.gmra.mxu0 %v3571
    %v3585 = vpop.f32.mrf.mxu0
    %v3586 = vadd.f32 0.0, %v3585
    %v3587 = vpop.f32.mrf.mxu0
    %3588 = vdwg.mxu0
    %v3590 = vunpack.c.l.b16 %v3562
    %v3591 = vpack.c.b16 %v3590, %v3590
    %3592 = vrot.lane.b32.xlu0 %v3591, 64
    %v3593 = vpop.permute.xlu0 %3592
    %v3595 = vsel %vm730, %v3562, 0
    %v3598 = vsel %vm730, %v3593, 0
    %3600 = vmatpush.bf16.xpose.msra.mxu0 0
    %3601 = vmatpush.bf16.xpose.msra.mxu0 0
    %3602 = vmatpush.bf16.xpose.msra.mxu0 0
    %3603 = vmatpush.bf16.xpose.msra.mxu0 0
    %3604 = vmatpush.bf16.xpose.msra.mxu0 0
    %3605 = vmatpush.bf16.xpose.msra.mxu0 0
    %3606 = vmatpush.bf16.xpose.msra.mxu0 0
    %3607 = vmatpush.bf16.xpose.msra.mxu0 %v3598
    %3608 = vmatmul.bf16.gmra.mxu0 %v3595
    %v3609 = vpop.f32.mrf.mxu0
    %v3610 = vadd.f32 0.0, %v3609
    %v3611 = vpop.f32.mrf.mxu0
    %3612 = vdwg.mxu0
    %v3613 = vsel %vm774, %v3586, -inf
    %3614 = vmax.xlane.f32.xlu0 %v3613
    %v3615 = vpop.xlane.xlu0 %3614
    %v3616 = vsel %vm774, %v3610, -inf
    %3617 = vmax.xlane.f32.xlu0 %v3616
    %v3618 = vpop.xlane.xlu0 %3617
    %v3619 = vsub.f32 %v3586, %v3615
    %v3620 = vsub.f32 %v3610, %v3618
    %v3621 = vmul.f32 %v3619, 1.442695
    %v3622 = vpow.pop %v3621
    %v3623 = vmul.f32 %v3620, 1.442695
    %v3624 = vpow.pop %v3623
    %v3625 = vsel %vm774, %v3622, 0.0
    %3626 = vadd.xlane.f32.xlu0 %v3625
    %v3627 = vpop.xlane.xlu0 %3626
    %v3628 = vsel %vm774, %v3624, 0.0
    %3629 = vadd.xlane.f32.xlu0 %v3628
    %v3630 = vpop.xlane.xlu0 %3629
    %v3631 = vrcp.pop %v3627
    %v3632 = vmul.f32 %v3627, %v3631
    %v3633 = vsub.f32 1.0, %v3632
    %v3634 = vmul.f32 %v3631, %v3633
    %v3635 = vadd.f32 %v3631, %v3634
    %vm3636 = vweird.f32 %v3627
    %vm3637 = vweird.f32 %v3631
    %vm3638 = vmor %vm3636, %vm3637
    %v3639 = vsel %vm3638, %v3631, %v3635
    %v3640 = vand.u32 2147483647, %v3627
    %vm3641 = vcmp.eq.f32.partialorder %v3640, 8.507059e+37
    %v3642 = vand.u32 %v3627, 2147483648
    %v3643 = vor.u32 1.1754944e-38, %v3642
    %v3644 = vsel %vm3641, %v3643, %v3639
    %v3645 = vmul.f32 %v3622, %v3644
    %v3646 = vrcp.pop %v3630
    %v3647 = vmul.f32 %v3630, %v3646
    %v3648 = vsub.f32 1.0, %v3647
    %v3649 = vmul.f32 %v3646, %v3648
    %v3650 = vadd.f32 %v3646, %v3649
    %vm3651 = vweird.f32 %v3630
    %vm3652 = vweird.f32 %v3646
    %vm3653 = vmor %vm3651, %vm3652
    %v3654 = vsel %vm3653, %v3646, %v3650
    %v3655 = vand.u32 2147483647, %v3630
    %vm3656 = vcmp.eq.f32.partialorder %v3655, 8.507059e+37
    %v3657 = vand.u32 %v3630, 2147483648
    %v3658 = vor.u32 1.1754944e-38, %v3657
    %v3659 = vsel %vm3656, %v3658, %v3654
    %v3660 = vmul.f32 %v3624, %v3659
    %v3661 = vpack.c.bf16 %v3645, %v3645
    %v3662 = vpack.c.bf16 %v3660, %v3660
    %v3664 = vsel %vm774, %v3661, 0
    %v3667 = vsel %vm828, %v3563, 0
    %3669 = vmatpush.bf16.msra.mxu0 0
    %3670 = vmatpush.bf16.msra.mxu0 0
    %3671 = vmatpush.bf16.msra.mxu0 0
    %3672 = vmatpush.bf16.msra.mxu0 0
    %3673 = vmatpush.bf16.msra.mxu0 0
    %3674 = vmatpush.bf16.msra.mxu0 0
    %3675 = vmatpush.bf16.msra.mxu0 0
    %3676 = vmatpush.bf16.msra.mxu0 %v3667
    %3677 = vmatmul.bf16.gmra.mxu0 %v3664
    %v3678 = vpop.f32.mrf.mxu0
    %v3679 = vadd.f32 0.0, %v3678
    %v3680 = vpop.f32.mrf.mxu0
    %3681 = vdwg.mxu0
    %v3683 = vsel %vm774, %v3662, 0
    %v3686 = vsel %vm828, %v3564, 0
    %3688 = vmatpush.bf16.msra.mxu0 0
    %3689 = vmatpush.bf16.msra.mxu0 0
    %3690 = vmatpush.bf16.msra.mxu0 0
    %3691 = vmatpush.bf16.msra.mxu0 0
    %3692 = vmatpush.bf16.msra.mxu0 0
    %3693 = vmatpush.bf16.msra.mxu0 0
    %3694 = vmatpush.bf16.msra.mxu0 0
    %3695 = vmatpush.bf16.msra.mxu0 %v3686
    %3696 = vmatmul.bf16.gmra.mxu0 %v3683
    %v3697 = vpop.f32.mrf.mxu0
    %v3698 = vadd.f32 0.0, %v3697
    %v3699 = vpop.f32.mrf.mxu0
    %3700 = vdwg.mxu0
    %v3701 = vpack.c.bf16 %v3698, %v3679
    %v3704 = vunpack.c.l.b16 %v3551
    %v3705 = vunpack.c.l.b16 %v3552
    %v3706 = vpack.c.b16 %v3705, %v3704
    %v3709 = vsel %vm730, %v3701, 0
    %3711 = vmatpush.bf16.msra.mxu0 0
    %3712 = vmatpush.bf16.msra.mxu0 0
    %3713 = vmatpush.bf16.msra.mxu0 0
    %3714 = vmatpush.bf16.msra.mxu0 0
    %3715 = vmatpush.bf16.msra.mxu0 0
    %3716 = vmatpush.bf16.msra.mxu0 0
    %3717 = vmatpush.bf16.msra.mxu0 0
    %3718 = vmatpush.bf16.msra.mxu0 %v3706
    %3719 = vmatmul.bf16.gmra.mxu0 %v3709
    %v3720 = vpop.f32.mrf.mxu0
    %v3721 = vadd.f32 0.0, %v3720
    %v3722 = vpop.f32.mrf.mxu0
    %v3723 = vadd.f32 0.0, %v3722
    %3724 = vdwg.mxu0
    %v3726 = vperm.slane %v3560, 0
    %v3728 = vadd.f32 %v3726, %v3721
    %v3729 = vadd.f32 %v3726, %v3723
    %3730 = vrot.lane.b32.xlu0 %v3567, 112
    %v3731 = vpop.permute.xlu0 %3730
    %3732 = vrot.lane.b32.xlu0 %v3567, 48
    %v3733 = vpop.permute.xlu0 %3732
    %v3735 = vsel %vm730, %v3731, 0
    %v3738 = vsel %vm730, %v3733, 0
    %3740 = vmatpush.bf16.xpose.msra.mxu0 0
    %3741 = vmatpush.bf16.xpose.msra.mxu0 0
    %3742 = vmatpush.bf16.xpose.msra.mxu0 0
    %3743 = vmatpush.bf16.xpose.msra.mxu0 0
    %3744 = vmatpush.bf16.xpose.msra.mxu0 0
    %3745 = vmatpush.bf16.xpose.msra.mxu0 0
    %3746 = vmatpush.bf16.xpose.msra.mxu0 0
    %3747 = vmatpush.bf16.xpose.msra.mxu0 %v3738
    %3748 = vmatmul.bf16.gmra.mxu0 %v3735
    %v3749 = vpop.f32.mrf.mxu0
    %v3750 = vadd.f32 0.0, %v3749
    %v3751 = vpop.f32.mrf.mxu0
    %3752 = vdwg.mxu0
    %3753 = vrot.lane.b32.xlu0 %v3591, 112
    %v3754 = vpop.permute.xlu0 %3753
    %3755 = vrot.lane.b32.xlu0 %v3591, 48
    %v3756 = vpop.permute.xlu0 %3755
    %v3758 = vsel %vm730, %v3754, 0
    %v3761 = vsel %vm730, %v3756, 0
    %3763 = vmatpush.bf16.xpose.msra.mxu0 0
    %3764 = vmatpush.bf16.xpose.msra.mxu0 0
    %3765 = vmatpush.bf16.xpose.msra.mxu0 0
    %3766 = vmatpush.bf16.xpose.msra.mxu0 0
    %3767 = vmatpush.bf16.xpose.msra.mxu0 0
    %3768 = vmatpush.bf16.xpose.msra.mxu0 0
    %3769 = vmatpush.bf16.xpose.msra.mxu0 0
    %3770 = vmatpush.bf16.xpose.msra.mxu0 %v3761
    %3771 = vmatmul.bf16.gmra.mxu0 %v3758
    %v3772 = vpop.f32.mrf.mxu0
    %v3773 = vadd.f32 0.0, %v3772
    %v3774 = vpop.f32.mrf.mxu0
    %3775 = vdwg.mxu0
    %v3776 = vsel %vm774, %v3750, -inf
    %3777 = vmax.xlane.f32.xlu0 %v3776
    %v3778 = vpop.xlane.xlu0 %3777
    %v3779 = vsel %vm774, %v3773, -inf
    %3780 = vmax.xlane.f32.xlu0 %v3779
    %v3781 = vpop.xlane.xlu0 %3780
    %v3782 = vsub.f32 %v3750, %v3778
    %v3783 = vsub.f32 %v3773, %v3781
    %v3784 = vmul.f32 %v3782, 1.442695
    %v3785 = vpow.pop %v3784
    %v3786 = vmul.f32 %v3783, 1.442695
    %v3787 = vpow.pop %v3786
    %v3788 = vsel %vm774, %v3785, 0.0
    %3789 = vadd.xlane.f32.xlu0 %v3788
    %v3790 = vpop.xlane.xlu0 %3789
    %v3791 = vsel %vm774, %v3787, 0.0
    %3792 = vadd.xlane.f32.xlu0 %v3791
    %v3793 = vpop.xlane.xlu0 %3792
    %v3794 = vrcp.pop %v3790
    %v3795 = vmul.f32 %v3790, %v3794
    %v3796 = vsub.f32 1.0, %v3795
    %v3797 = vmul.f32 %v3794, %v3796
    %v3798 = vadd.f32 %v3794, %v3797
    %vm3799 = vweird.f32 %v3790
    %vm3800 = vweird.f32 %v3794
    %vm3801 = vmor %vm3799, %vm3800
    %v3802 = vsel %vm3801, %v3794, %v3798
    %v3803 = vand.u32 2147483647, %v3790
    %vm3804 = vcmp.eq.f32.partialorder %v3803, 8.507059e+37
    %v3805 = vand.u32 %v3790, 2147483648
    %v3806 = vor.u32 1.1754944e-38, %v3805
    %v3807 = vsel %vm3804, %v3806, %v3802
    %v3808 = vmul.f32 %v3785, %v3807
    %v3809 = vrcp.pop %v3793
    %v3810 = vmul.f32 %v3793, %v3809
    %v3811 = vsub.f32 1.0, %v3810
    %v3812 = vmul.f32 %v3809, %v3811
    %v3813 = vadd.f32 %v3809, %v3812
    %vm3814 = vweird.f32 %v3793
    %vm3815 = vweird.f32 %v3809
    %vm3816 = vmor %vm3814, %vm3815
    %v3817 = vsel %vm3816, %v3809, %v3813
    %v3818 = vand.u32 2147483647, %v3793
    %vm3819 = vcmp.eq.f32.partialorder %v3818, 8.507059e+37
    %v3820 = vand.u32 %v3793, 2147483648
    %v3821 = vor.u32 1.1754944e-38, %v3820
    %v3822 = vsel %vm3819, %v3821, %v3817
    %v3823 = vmul.f32 %v3787, %v3822
    %v3824 = vpack.c.bf16 %v3808, %v3808
    %v3825 = vpack.c.bf16 %v3823, %v3823
    %v3827 = vunpack.c.l.b16 %v3563
    %v3828 = vpack.c.b16 %v3827, %v3827
    %3829 = vrot.lane.b32.xlu0 %v3828, 112
    %v3830 = vpop.permute.xlu0 %3829
    %v3832 = vsel %vm774, %v3824, 0
    %v3835 = vsel %vm828, %v3830, 0
    %3837 = vmatpush.bf16.msra.mxu0 0
    %3838 = vmatpush.bf16.msra.mxu0 0
    %3839 = vmatpush.bf16.msra.mxu0 0
    %3840 = vmatpush.bf16.msra.mxu0 0
    %3841 = vmatpush.bf16.msra.mxu0 0
    %3842 = vmatpush.bf16.msra.mxu0 0
    %3843 = vmatpush.bf16.msra.mxu0 0
    %3844 = vmatpush.bf16.msra.mxu0 %v3835
    %3845 = vmatmul.bf16.gmra.mxu0 %v3832
    %v3846 = vpop.f32.mrf.mxu0
    %v3847 = vadd.f32 0.0, %v3846
    %v3848 = vpop.f32.mrf.mxu0
    %3849 = vdwg.mxu0
    %v3851 = vunpack.c.l.b16 %v3564
    %v3852 = vpack.c.b16 %v3851, %v3851
    %3853 = vrot.lane.b32.xlu0 %v3852, 112
    %v3854 = vpop.permute.xlu0 %3853
    %v3856 = vsel %vm774, %v3825, 0
    %v3859 = vsel %vm828, %v3854, 0
    %3861 = vmatpush.bf16.msra.mxu0 0
    %3862 = vmatpush.bf16.msra.mxu0 0
    %3863 = vmatpush.bf16.msra.mxu0 0
    %3864 = vmatpush.bf16.msra.mxu0 0
    %3865 = vmatpush.bf16.msra.mxu0 0
    %3866 = vmatpush.bf16.msra.mxu0 0
    %3867 = vmatpush.bf16.msra.mxu0 0
    %3868 = vmatpush.bf16.msra.mxu0 %v3859
    %3869 = vmatmul.bf16.gmra.mxu0 %v3856
    %v3870 = vpop.f32.mrf.mxu0
    %v3871 = vadd.f32 0.0, %v3870
    %v3872 = vpop.f32.mrf.mxu0
    %3873 = vdwg.mxu0
    %v3874 = vpack.c.bf16 %v3871, %v3847
    %v3877 = vunpack.c.l.b16 %v3553
    %v3878 = vunpack.c.l.b16 %v3554
    %v3879 = vpack.c.b16 %v3878, %v3877
    %v3882 = vsel %vm730, %v3874, 0
    %3884 = vmatpush.bf16.msra.mxu0 0
    %3885 = vmatpush.bf16.msra.mxu0 0
    %3886 = vmatpush.bf16.msra.mxu0 0
    %3887 = vmatpush.bf16.msra.mxu0 0
    %3888 = vmatpush.bf16.msra.mxu0 0
    %3889 = vmatpush.bf16.msra.mxu0 0
    %3890 = vmatpush.bf16.msra.mxu0 0
    %3891 = vmatpush.bf16.msra.mxu0 %v3879
    %3892 = vmatmul.bf16.gmra.mxu0 %v3882
    %v3893 = vpop.f32.mrf.mxu0
    %v3894 = vadd.f32 0.0, %v3893
    %v3895 = vpop.f32.mrf.mxu0
    %v3896 = vadd.f32 0.0, %v3895
    %3897 = vdwg.mxu0
    %v3898 = vadd.f32 %v3728, %v3894
    %v3899 = vadd.f32 %v3729, %v3896
    %3900 = vrot.lane.b32.xlu0 %v3567, 96
    %v3901 = vpop.permute.xlu0 %3900
    %3902 = vrot.lane.b32.xlu0 %v3567, 32
    %v3903 = vpop.permute.xlu0 %3902
    %v3905 = vsel %vm730, %v3901, 0
    %v3908 = vsel %vm730, %v3903, 0
    %3910 = vmatpush.bf16.xpose.msra.mxu0 0
    %3911 = vmatpush.bf16.xpose.msra.mxu0 0
    %3912 = vmatpush.bf16.xpose.msra.mxu0 0
    %3913 = vmatpush.bf16.xpose.msra.mxu0 0
    %3914 = vmatpush.bf16.xpose.msra.mxu0 0
    %3915 = vmatpush.bf16.xpose.msra.mxu0 0
    %3916 = vmatpush.bf16.xpose.msra.mxu0 0
    %3917 = vmatpush.bf16.xpose.msra.mxu0 %v3908
    %3918 = vmatmul.bf16.gmra.mxu0 %v3905
    %v3919 = vpop.f32.mrf.mxu0
    %v3920 = vadd.f32 0.0, %v3919
    %v3921 = vpop.f32.mrf.mxu0
    %3922 = vdwg.mxu0
    %3923 = vrot.lane.b32.xlu0 %v3591, 96
    %v3924 = vpop.permute.xlu0 %3923
    %3925 = vrot.lane.b32.xlu0 %v3591, 32
    %v3926 = vpop.permute.xlu0 %3925
    %v3928 = vsel %vm730, %v3924, 0
    %v3931 = vsel %vm730, %v3926, 0
    %3933 = vmatpush.bf16.xpose.msra.mxu0 0
    %3934 = vmatpush.bf16.xpose.msra.mxu0 0
    %3935 = vmatpush.bf16.xpose.msra.mxu0 0
    %3936 = vmatpush.bf16.xpose.msra.mxu0 0
    %3937 = vmatpush.bf16.xpose.msra.mxu0 0
    %3938 = vmatpush.bf16.xpose.msra.mxu0 0
    %3939 = vmatpush.bf16.xpose.msra.mxu0 0
    %3940 = vmatpush.bf16.xpose.msra.mxu0 %v3931
    %3941 = vmatmul.bf16.gmra.mxu0 %v3928
    %v3942 = vpop.f32.mrf.mxu0
    %v3943 = vadd.f32 0.0, %v3942
    %v3944 = vpop.f32.mrf.mxu0
    %3945 = vdwg.mxu0
    %v3946 = vsel %vm774, %v3920, -inf
    %3947 = vmax.xlane.f32.xlu0 %v3946
    %v3948 = vpop.xlane.xlu0 %3947
    %v3949 = vsel %vm774, %v3943, -inf
    %3950 = vmax.xlane.f32.xlu0 %v3949
    %v3951 = vpop.xlane.xlu0 %3950
    %v3952 = vsub.f32 %v3920, %v3948
    %v3953 = vsub.f32 %v3943, %v3951
    %v3954 = vmul.f32 %v3952, 1.442695
    %v3955 = vpow.pop %v3954
    %v3956 = vmul.f32 %v3953, 1.442695
    %v3957 = vpow.pop %v3956
    %v3958 = vsel %vm774, %v3955, 0.0
    %3959 = vadd.xlane.f32.xlu0 %v3958
    %v3960 = vpop.xlane.xlu0 %3959
    %v3961 = vsel %vm774, %v3957, 0.0
    %3962 = vadd.xlane.f32.xlu0 %v3961
    %v3963 = vpop.xlane.xlu0 %3962
    %v3964 = vrcp.pop %v3960
    %v3965 = vmul.f32 %v3960, %v3964
    %v3966 = vsub.f32 1.0, %v3965
    %v3967 = vmul.f32 %v3964, %v3966
    %v3968 = vadd.f32 %v3964, %v3967
    %vm3969 = vweird.f32 %v3960
    %vm3970 = vweird.f32 %v3964
    %vm3971 = vmor %vm3969, %vm3970
    %v3972 = vsel %vm3971, %v3964, %v3968
    %v3973 = vand.u32 2147483647, %v3960
    %vm3974 = vcmp.eq.f32.partialorder %v3973, 8.507059e+37
    %v3975 = vand.u32 %v3960, 2147483648
    %v3976 = vor.u32 1.1754944e-38, %v3975
    %v3977 = vsel %vm3974, %v3976, %v3972
    %v3978 = vmul.f32 %v3955, %v3977
    %v3979 = vrcp.pop %v3963
    %v3980 = vmul.f32 %v3963, %v3979
    %v3981 = vsub.f32 1.0, %v3980
    %v3982 = vmul.f32 %v3979, %v3981
    %v3983 = vadd.f32 %v3979, %v3982
    %vm3984 = vweird.f32 %v3963
    %vm3985 = vweird.f32 %v3979
    %vm3986 = vmor %vm3984, %vm3985
    %v3987 = vsel %vm3986, %v3979, %v3983
    %v3988 = vand.u32 2147483647, %v3963
    %vm3989 = vcmp.eq.f32.partialorder %v3988, 8.507059e+37
    %v3990 = vand.u32 %v3963, 2147483648
    %v3991 = vor.u32 1.1754944e-38, %v3990
    %v3992 = vsel %vm3989, %v3991, %v3987
    %v3993 = vmul.f32 %v3957, %v3992
    %v3994 = vpack.c.bf16 %v3978, %v3978
    %v3995 = vpack.c.bf16 %v3993, %v3993
    %3996 = vrot.lane.b32.xlu0 %v3828, 96
    %v3997 = vpop.permute.xlu0 %3996
    %v3999 = vsel %vm774, %v3994, 0
    %v4002 = vsel %vm828, %v3997, 0
    %4004 = vmatpush.bf16.msra.mxu0 0
    %4005 = vmatpush.bf16.msra.mxu0 0
    %4006 = vmatpush.bf16.msra.mxu0 0
    %4007 = vmatpush.bf16.msra.mxu0 0
    %4008 = vmatpush.bf16.msra.mxu0 0
    %4009 = vmatpush.bf16.msra.mxu0 0
    %4010 = vmatpush.bf16.msra.mxu0 0
    %4011 = vmatpush.bf16.msra.mxu0 %v4002
    %4012 = vmatmul.bf16.gmra.mxu0 %v3999
    %v4013 = vpop.f32.mrf.mxu0
    %v4014 = vadd.f32 0.0, %v4013
    %v4015 = vpop.f32.mrf.mxu0
    %4016 = vdwg.mxu0
    %4017 = vrot.lane.b32.xlu0 %v3852, 96
    %v4018 = vpop.permute.xlu0 %4017
    %v4020 = vsel %vm774, %v3995, 0
    %v4023 = vsel %vm828, %v4018, 0
    %4025 = vmatpush.bf16.msra.mxu0 0
    %4026 = vmatpush.bf16.msra.mxu0 0
    %4027 = vmatpush.bf16.msra.mxu0 0
    %4028 = vmatpush.bf16.msra.mxu0 0
    %4029 = vmatpush.bf16.msra.mxu0 0
    %4030 = vmatpush.bf16.msra.mxu0 0
    %4031 = vmatpush.bf16.msra.mxu0 0
    %4032 = vmatpush.bf16.msra.mxu0 %v4023
    %4033 = vmatmul.bf16.gmra.mxu0 %v4020
    %v4034 = vpop.f32.mrf.mxu0
    %v4035 = vadd.f32 0.0, %v4034
    %v4036 = vpop.f32.mrf.mxu0
    %4037 = vdwg.mxu0
    %v4038 = vpack.c.bf16 %v4035, %v4014
    %v4041 = vunpack.c.l.b16 %v3555
    %v4042 = vunpack.c.l.b16 %v3556
    %v4043 = vpack.c.b16 %v4042, %v4041
    %v4046 = vsel %vm730, %v4038, 0
    %4048 = vmatpush.bf16.msra.mxu0 0
    %4049 = vmatpush.bf16.msra.mxu0 0
    %4050 = vmatpush.bf16.msra.mxu0 0
    %4051 = vmatpush.bf16.msra.mxu0 0
    %4052 = vmatpush.bf16.msra.mxu0 0
    %4053 = vmatpush.bf16.msra.mxu0 0
    %4054 = vmatpush.bf16.msra.mxu0 0
    %4055 = vmatpush.bf16.msra.mxu0 %v4043
    %4056 = vmatmul.bf16.gmra.mxu0 %v4046
    %v4057 = vpop.f32.mrf.mxu0
    %v4058 = vadd.f32 0.0, %v4057
    %v4059 = vpop.f32.mrf.mxu0
    %v4060 = vadd.f32 0.0, %v4059
    %4061 = vdwg.mxu0
    %v4062 = vadd.f32 %v3898, %v4058
    %v4063 = vadd.f32 %v3899, %v4060
    %4064 = vrot.lane.b32.xlu0 %v3567, 80
    %v4065 = vpop.permute.xlu0 %4064
    %4066 = vrot.lane.b32.xlu0 %v3567, 16
    %v4067 = vpop.permute.xlu0 %4066
    %v4069 = vsel %vm730, %v4065, 0
    %v4072 = vsel %vm730, %v4067, 0
    %4074 = vmatpush.bf16.xpose.msra.mxu0 0
    %4075 = vmatpush.bf16.xpose.msra.mxu0 0
    %4076 = vmatpush.bf16.xpose.msra.mxu0 0
    %4077 = vmatpush.bf16.xpose.msra.mxu0 0
    %4078 = vmatpush.bf16.xpose.msra.mxu0 0
    %4079 = vmatpush.bf16.xpose.msra.mxu0 0
    %4080 = vmatpush.bf16.xpose.msra.mxu0 0
    %4081 = vmatpush.bf16.xpose.msra.mxu0 %v4072
    %4082 = vmatmul.bf16.gmra.mxu0 %v4069
    %v4083 = vpop.f32.mrf.mxu0
    %v4084 = vadd.f32 0.0, %v4083
    %v4085 = vpop.f32.mrf.mxu0
    %4086 = vdwg.mxu0
    %4087 = vrot.lane.b32.xlu0 %v3591, 80
    %v4088 = vpop.permute.xlu0 %4087
    %4089 = vrot.lane.b32.xlu0 %v3591, 16
    %v4090 = vpop.permute.xlu0 %4089
    %v4092 = vsel %vm730, %v4088, 0
    %v4095 = vsel %vm730, %v4090, 0
    %4097 = vmatpush.bf16.xpose.msra.mxu0 0
    %4098 = vmatpush.bf16.xpose.msra.mxu0 0
    %4099 = vmatpush.bf16.xpose.msra.mxu0 0
    %4100 = vmatpush.bf16.xpose.msra.mxu0 0
    %4101 = vmatpush.bf16.xpose.msra.mxu0 0
    %4102 = vmatpush.bf16.xpose.msra.mxu0 0
    %4103 = vmatpush.bf16.xpose.msra.mxu0 0
    %4104 = vmatpush.bf16.xpose.msra.mxu0 %v4095
    %4105 = vmatmul.bf16.gmra.mxu0 %v4092
    %v4106 = vpop.f32.mrf.mxu0
    %v4107 = vadd.f32 0.0, %v4106
    %v4108 = vpop.f32.mrf.mxu0
    %4109 = vdwg.mxu0
    %v4110 = vsel %vm774, %v4084, -inf
    %4111 = vmax.xlane.f32.xlu0 %v4110
    %v4112 = vpop.xlane.xlu0 %4111
    %v4113 = vsel %vm774, %v4107, -inf
    %4114 = vmax.xlane.f32.xlu0 %v4113
    %v4115 = vpop.xlane.xlu0 %4114
    %v4116 = vsub.f32 %v4084, %v4112
    %v4117 = vsub.f32 %v4107, %v4115
    %v4118 = vmul.f32 %v4116, 1.442695
    %v4119 = vpow.pop %v4118
    %v4120 = vmul.f32 %v4117, 1.442695
    %v4121 = vpow.pop %v4120
    %v4122 = vsel %vm774, %v4119, 0.0
    %4123 = vadd.xlane.f32.xlu0 %v4122
    %v4124 = vpop.xlane.xlu0 %4123
    %v4125 = vsel %vm774, %v4121, 0.0
    %4126 = vadd.xlane.f32.xlu0 %v4125
    %v4127 = vpop.xlane.xlu0 %4126
    %v4128 = vrcp.pop %v4124
    %v4129 = vmul.f32 %v4124, %v4128
    %v4130 = vsub.f32 1.0, %v4129
    %v4131 = vmul.f32 %v4128, %v4130
    %v4132 = vadd.f32 %v4128, %v4131
    %vm4133 = vweird.f32 %v4124
    %vm4134 = vweird.f32 %v4128
    %vm4135 = vmor %vm4133, %vm4134
    %v4136 = vsel %vm4135, %v4128, %v4132
    %v4137 = vand.u32 2147483647, %v4124
    %vm4138 = vcmp.eq.f32.partialorder %v4137, 8.507059e+37
    %v4139 = vand.u32 %v4124, 2147483648
    %v4140 = vor.u32 1.1754944e-38, %v4139
    %v4141 = vsel %vm4138, %v4140, %v4136
    %v4142 = vmul.f32 %v4119, %v4141
    %v4143 = vrcp.pop %v4127
    %v4144 = vmul.f32 %v4127, %v4143
    %v4145 = vsub.f32 1.0, %v4144
    %v4146 = vmul.f32 %v4143, %v4145
    %v4147 = vadd.f32 %v4143, %v4146
    %vm4148 = vweird.f32 %v4127
    %vm4149 = vweird.f32 %v4143
    %vm4150 = vmor %vm4148, %vm4149
    %v4151 = vsel %vm4150, %v4143, %v4147
    %v4152 = vand.u32 2147483647, %v4127
    %vm4153 = vcmp.eq.f32.partialorder %v4152, 8.507059e+37
    %v4154 = vand.u32 %v4127, 2147483648
    %v4155 = vor.u32 1.1754944e-38, %v4154
    %v4156 = vsel %vm4153, %v4155, %v4151
    %v4157 = vmul.f32 %v4121, %v4156
    %v4158 = vpack.c.bf16 %v4142, %v4142
    %v4159 = vpack.c.bf16 %v4157, %v4157
    %4160 = vrot.lane.b32.xlu0 %v3828, 80
    %v4161 = vpop.permute.xlu0 %4160
    %v4163 = vsel %vm774, %v4158, 0
    %v4166 = vsel %vm828, %v4161, 0
    %4168 = vmatpush.bf16.msra.mxu0 0
    %4169 = vmatpush.bf16.msra.mxu0 0
    %4170 = vmatpush.bf16.msra.mxu0 0
    %4171 = vmatpush.bf16.msra.mxu0 0
    %4172 = vmatpush.bf16.msra.mxu0 0
    %4173 = vmatpush.bf16.msra.mxu0 0
    %4174 = vmatpush.bf16.msra.mxu0 0
    %4175 = vmatpush.bf16.msra.mxu0 %v4166
    %4176 = vmatmul.bf16.gmra.mxu0 %v4163
    %v4177 = vpop.f32.mrf.mxu0
    %v4178 = vadd.f32 0.0, %v4177
    %v4179 = vpop.f32.mrf.mxu0
    %4180 = vdwg.mxu0
    %4181 = vrot.lane.b32.xlu0 %v3852, 80
    %v4182 = vpop.permute.xlu0 %4181
    %v4184 = vsel %vm774, %v4159, 0
    %v4187 = vsel %vm828, %v4182, 0
    %4189 = vmatpush.bf16.msra.mxu0 0
    %4190 = vmatpush.bf16.msra.mxu0 0
    %4191 = vmatpush.bf16.msra.mxu0 0
    %4192 = vmatpush.bf16.msra.mxu0 0
    %4193 = vmatpush.bf16.msra.mxu0 0
    %4194 = vmatpush.bf16.msra.mxu0 0
    %4195 = vmatpush.bf16.msra.mxu0 0
    %4196 = vmatpush.bf16.msra.mxu0 %v4187
    %4197 = vmatmul.bf16.gmra.mxu0 %v4184
    %v4198 = vpop.f32.mrf.mxu0
    %v4199 = vadd.f32 0.0, %v4198
    %v4200 = vpop.f32.mrf.mxu0
    %4201 = vdwg.mxu0
    %v4202 = vpack.c.bf16 %v4199, %v4178
    %v4205 = vunpack.c.l.b16 %v3557
    %v4206 = vunpack.c.l.b16 %v3558
    %v4207 = vpack.c.b16 %v4206, %v4205
    %v4210 = vsel %vm730, %v4202, 0
    %4212 = vmatpush.bf16.msra.mxu0 0
    %4213 = vmatpush.bf16.msra.mxu0 0
    %4214 = vmatpush.bf16.msra.mxu0 0
    %4215 = vmatpush.bf16.msra.mxu0 0
    %4216 = vmatpush.bf16.msra.mxu0 0
    %4217 = vmatpush.bf16.msra.mxu0 0
    %4218 = vmatpush.bf16.msra.mxu0 0
    %4219 = vmatpush.bf16.msra.mxu0 %v4207
    %4220 = vmatmul.bf16.gmra.mxu0 %v4210
    %v4221 = vpop.f32.mrf.mxu0
    %v4222 = vadd.f32 0.0, %v4221
    %v4223 = vpop.f32.mrf.mxu0
    %v4224 = vadd.f32 0.0, %v4223
    %4225 = vdwg.mxu0
    %v4226 = vadd.f32 %v4062, %v4222
    %v4227 = vadd.f32 %v4063, %v4224
    %v4228 = vadd.f32 %v3460, %v4226
    %v4229 = vadd.f32 %v3461, %v4227
    %s4230 = scalar_lea.vmem %s11, 1
    %v4231 = vld [vmem:[%s4230] sm:$0x1]
    %s4232 = scalar_lea.vmem %s12, 1
    %v4233 = vld [vmem:[%s4232] sm:$0x1]
    %v4234 = vsel %vm446, %v4228, 0.0
    %4235 = vadd.xlane.f32.xlu0 %v4234
    %v4236 = vpop.xlane.xlu0 %4235
    %v4237 = vsel %vm446, %v4229, 0.0
    %4238 = vadd.xlane.f32.xlu0 %v4237
    %v4239 = vpop.xlane.xlu0 %4238
    %v4240 = vmul.f32 %v4236, %v1407
    %v4241 = vmul.f32 %v4239, %v1407
    %v4242 = vsub.f32 %v4228, %v4240
    %v4243 = vsub.f32 %v4229, %v4241
    %v4244 = vmul.f32 %v4242, %v4242
    %v4245 = vmul.f32 %v4243, %v4243
    %v4246 = vsel %vm446, %v4244, 0.0
    %4247 = vadd.xlane.f32.xlu0 %v4246
    %v4248 = vpop.xlane.xlu0 %4247
    %v4249 = vsel %vm446, %v4245, 0.0
    %4250 = vadd.xlane.f32.xlu0 %v4249
    %v4251 = vpop.xlane.xlu0 %4250
    %v4252 = vmul.f32 %v4248, %v1407
    %v4253 = vmul.f32 %v4251, %v1407
    %v4254 = vadd.f32 %v4252, 1e-05
    %v4255 = vadd.f32 %v4253, 1e-05
    %v4256 = vrsqrt.pop %v4254
    %v4257 = vmul.f32 %v4256, %v4254
    %v4258 = vmul.f32 %v4257, %v4256
    %v4259 = vmul.f32 0.5, %v4258
    %v4260 = vsub.f32 1.5, %v4259
    %v4261 = vmul.f32 %v4256, %v4260
    %vm4262 = vweird.f32 %v4254
    %vm4263 = vweird.f32 %v4256
    %vm4264 = vmor %vm4262, %vm4263
    %v4265 = vsel %vm4264, %v4256, %v4261
    %v4266 = vrsqrt.pop %v4255
    %v4267 = vmul.f32 %v4266, %v4255
    %v4268 = vmul.f32 %v4267, %v4266
    %v4269 = vmul.f32 0.5, %v4268
    %v4270 = vsub.f32 1.5, %v4269
    %v4271 = vmul.f32 %v4266, %v4270
    %vm4272 = vweird.f32 %v4255
    %vm4273 = vweird.f32 %v4266
    %vm4274 = vmor %vm4272, %vm4273
    %v4275 = vsel %vm4274, %v4266, %v4271
    %v4276 = vmul.f32 %v4242, %v4265
    %v4277 = vmul.f32 %v4243, %v4275
    %v4279 = vperm.slane %v4231, 0
    %v4281 = vmul.f32 %v4276, %v4279
    %v4282 = vmul.f32 %v4277, %v4279
    %v4284 = vperm.slane %v4233, 0
    %v4286 = vadd.f32 %v4281, %v4284
    %v4287 = vadd.f32 %v4282, %v4284
    %s4288 = scalar_lea.vmem %s13, 512
    %v4289 = vld [vmem:[%s4288] sm:$0xff]
    %v4290 = vld [vmem:[%s4288 + $0x8] sm:$0xff]
    %v4291 = vld [vmem:[%s4288 + $0x10] sm:$0xff]
    %v4292 = vld [vmem:[%s4288 + $0x18] sm:$0xff]
    %v4293 = vld [vmem:[%s4288 + $0x20] sm:$0xff]
    %v4294 = vld [vmem:[%s4288 + $0x28] sm:$0xff]
    %v4295 = vld [vmem:[%s4288 + $0x30] sm:$0xff]
    %v4296 = vld [vmem:[%s4288 + $0x38] sm:$0xff]
    %v4297 = vld [vmem:[%s4288 + $0x40] sm:$0xff]
    %v4298 = vld [vmem:[%s4288 + $0x48] sm:$0xff]
    %v4299 = vld [vmem:[%s4288 + $0x50] sm:$0xff]
    %v4300 = vld [vmem:[%s4288 + $0x58] sm:$0xff]
    %v4301 = vld [vmem:[%s4288 + $0x60] sm:$0xff]
    %v4302 = vld [vmem:[%s4288 + $0x68] sm:$0xff]
    %v4303 = vld [vmem:[%s4288 + $0x70] sm:$0xff]
    %v4304 = vld [vmem:[%s4288 + $0x78] sm:$0xff]
    %v4305 = vld [vmem:[%s4288 + $0x80] sm:$0xff]
    %v4306 = vld [vmem:[%s4288 + $0x88] sm:$0xff]
    %v4307 = vld [vmem:[%s4288 + $0x90] sm:$0xff]
    %v4308 = vld [vmem:[%s4288 + $0x98] sm:$0xff]
    %v4309 = vld [vmem:[%s4288 + $0xa0] sm:$0xff]
    %v4310 = vld [vmem:[%s4288 + $0xa8] sm:$0xff]
    %v4311 = vld [vmem:[%s4288 + $0xb0] sm:$0xff]
    %v4312 = vld [vmem:[%s4288 + $0xb8] sm:$0xff]
    %v4313 = vld [vmem:[%s4288 + $0xc0] sm:$0xff]
    %v4314 = vld [vmem:[%s4288 + $0xc8] sm:$0xff]
    %v4315 = vld [vmem:[%s4288 + $0xd0] sm:$0xff]
    %v4316 = vld [vmem:[%s4288 + $0xd8] sm:$0xff]
    %v4317 = vld [vmem:[%s4288 + $0xe0] sm:$0xff]
    %v4318 = vld [vmem:[%s4288 + $0xe8] sm:$0xff]
    %v4319 = vld [vmem:[%s4288 + $0xf0] sm:$0xff]
    %v4320 = vld [vmem:[%s4288 + $0xf8] sm:$0xff]
    %v4321 = vld [vmem:[%s4288 + $0x100] sm:$0xff]
    %v4322 = vld [vmem:[%s4288 + $0x108] sm:$0xff]
    %v4323 = vld [vmem:[%s4288 + $0x110] sm:$0xff]
    %v4324 = vld [vmem:[%s4288 + $0x118] sm:$0xff]
    %v4325 = vld [vmem:[%s4288 + $0x120] sm:$0xff]
    %v4326 = vld [vmem:[%s4288 + $0x128] sm:$0xff]
    %v4327 = vld [vmem:[%s4288 + $0x130] sm:$0xff]
    %v4328 = vld [vmem:[%s4288 + $0x138] sm:$0xff]
    %v4329 = vld [vmem:[%s4288 + $0x140] sm:$0xff]
    %v4330 = vld [vmem:[%s4288 + $0x148] sm:$0xff]
    %v4331 = vld [vmem:[%s4288 + $0x150] sm:$0xff]
    %v4332 = vld [vmem:[%s4288 + $0x158] sm:$0xff]
    %v4333 = vld [vmem:[%s4288 + $0x160] sm:$0xff]
    %v4334 = vld [vmem:[%s4288 + $0x168] sm:$0xff]
    %v4335 = vld [vmem:[%s4288 + $0x170] sm:$0xff]
    %v4336 = vld [vmem:[%s4288 + $0x178] sm:$0xff]
    %v4337 = vld [vmem:[%s4288 + $0x180] sm:$0xff]
    %v4338 = vld [vmem:[%s4288 + $0x188] sm:$0xff]
    %v4339 = vld [vmem:[%s4288 + $0x190] sm:$0xff]
    %v4340 = vld [vmem:[%s4288 + $0x198] sm:$0xff]
    %v4341 = vld [vmem:[%s4288 + $0x1a0] sm:$0xff]
    %v4342 = vld [vmem:[%s4288 + $0x1a8] sm:$0xff]
    %v4343 = vld [vmem:[%s4288 + $0x1b0] sm:$0xff]
    %v4344 = vld [vmem:[%s4288 + $0x1b8] sm:$0xff]
    %v4345 = vld [vmem:[%s4288 + $0x1c0] sm:$0xff]
    %v4346 = vld [vmem:[%s4288 + $0x1c8] sm:$0xff]
    %v4347 = vld [vmem:[%s4288 + $0x1d0] sm:$0xff]
    %v4348 = vld [vmem:[%s4288 + $0x1d8] sm:$0xff]
    %v4349 = vld [vmem:[%s4288 + $0x1e0] sm:$0xff]
    %v4350 = vld [vmem:[%s4288 + $0x1e8] sm:$0xff]
    %v4351 = vld [vmem:[%s4288 + $0x1f0] sm:$0xff]
    %v4352 = vld [vmem:[%s4288 + $0x1f8] sm:$0xff]
    %v4353 = vpack.c.bf16 %v4287, %v4286
    %s4354 = scalar_lea.vmem %s14, 16
    %v4355 = vld [vmem:[%s4354] sm:$0xff]
    %v4356 = vld [vmem:[%s4354 + $0x8] sm:$0xff]
    %v4359 = vperm.slane %v4355, 0
    %v4360 = vperm.slane %v4355, 1
    %v4361 = vperm.slane %v4355, 2
    %v4362 = vperm.slane %v4355, 3
    %v4363 = vperm.slane %v4355, 4
    %v4364 = vperm.slane %v4355, 5
    %v4365 = vperm.slane %v4355, 6
    %v4366 = vperm.slane %v4355, 7
    %v4367 = vperm.slane %v4356, 0
    %v4368 = vperm.slane %v4356, 1
    %v4369 = vperm.slane %v4356, 2
    %v4370 = vperm.slane %v4356, 3
    %v4371 = vperm.slane %v4356, 4
    %v4372 = vperm.slane %v4356, 5
    %v4373 = vperm.slane %v4356, 6
    %v4374 = vperm.slane %v4356, 7
    %v4455 = vunpack.c.l.b16 %v4289
    %v4456 = vunpack.c.h.b16 %v4289
    %v4457 = vunpack.c.l.b16 %v4290
    %v4458 = vunpack.c.h.b16 %v4290
    %v4459 = vunpack.c.l.b16 %v4291
    %v4460 = vunpack.c.h.b16 %v4291
    %v4461 = vunpack.c.l.b16 %v4292
    %v4462 = vunpack.c.h.b16 %v4292
    %v4463 = vunpack.c.l.b16 %v4293
    %v4464 = vunpack.c.h.b16 %v4293
    %v4465 = vunpack.c.l.b16 %v4294
    %v4466 = vunpack.c.h.b16 %v4294
    %v4467 = vunpack.c.l.b16 %v4295
    %v4468 = vunpack.c.h.b16 %v4295
    %v4469 = vunpack.c.l.b16 %v4296
    %v4470 = vunpack.c.h.b16 %v4296
    %v4471 = vunpack.c.l.b16 %v4297
    %v4472 = vunpack.c.h.b16 %v4297
    %v4473 = vunpack.c.l.b16 %v4298
    %v4474 = vunpack.c.h.b16 %v4298
    %v4475 = vunpack.c.l.b16 %v4299
    %v4476 = vunpack.c.h.b16 %v4299
    %v4477 = vunpack.c.l.b16 %v4300
    %v4478 = vunpack.c.h.b16 %v4300
    %v4479 = vunpack.c.l.b16 %v4301
    %v4480 = vunpack.c.h.b16 %v4301
    %v4481 = vunpack.c.l.b16 %v4302
    %v4482 = vunpack.c.h.b16 %v4302
    %v4483 = vunpack.c.l.b16 %v4303
    %v4484 = vunpack.c.h.b16 %v4303
    %v4485 = vunpack.c.l.b16 %v4304
    %v4486 = vunpack.c.h.b16 %v4304
    %v4487 = vunpack.c.l.b16 %v4305
    %v4488 = vunpack.c.h.b16 %v4305
    %v4489 = vunpack.c.l.b16 %v4306
    %v4490 = vunpack.c.h.b16 %v4306
    %v4491 = vunpack.c.l.b16 %v4307
    %v4492 = vunpack.c.h.b16 %v4307
    %v4493 = vunpack.c.l.b16 %v4308
    %v4494 = vunpack.c.h.b16 %v4308
    %v4495 = vunpack.c.l.b16 %v4309
    %v4496 = vunpack.c.h.b16 %v4309
    %v4497 = vunpack.c.l.b16 %v4310
    %v4498 = vunpack.c.h.b16 %v4310
    %v4499 = vunpack.c.l.b16 %v4311
    %v4500 = vunpack.c.h.b16 %v4311
    %v4501 = vunpack.c.l.b16 %v4312
    %v4502 = vunpack.c.h.b16 %v4312
    %v4503 = vunpack.c.l.b16 %v4313
    %v4504 = vunpack.c.h.b16 %v4313
    %v4505 = vunpack.c.l.b16 %v4314
    %v4506 = vunpack.c.h.b16 %v4314
    %v4507 = vunpack.c.l.b16 %v4315
    %v4508 = vunpack.c.h.b16 %v4315
    %v4509 = vunpack.c.l.b16 %v4316
    %v4510 = vunpack.c.h.b16 %v4316
    %v4511 = vunpack.c.l.b16 %v4317
    %v4512 = vunpack.c.h.b16 %v4317
    %v4513 = vunpack.c.l.b16 %v4318
    %v4514 = vunpack.c.h.b16 %v4318
    %v4515 = vunpack.c.l.b16 %v4319
    %v4516 = vunpack.c.h.b16 %v4319
    %v4517 = vunpack.c.l.b16 %v4320
    %v4518 = vunpack.c.h.b16 %v4320
    %v4519 = vunpack.c.l.b16 %v4321
    %v4520 = vunpack.c.h.b16 %v4321
    %v4521 = vunpack.c.l.b16 %v4322
    %v4522 = vunpack.c.h.b16 %v4322
    %v4523 = vunpack.c.l.b16 %v4323
    %v4524 = vunpack.c.h.b16 %v4323
    %v4525 = vunpack.c.l.b16 %v4324
    %v4526 = vunpack.c.h.b16 %v4324
    %v4527 = vunpack.c.l.b16 %v4325
    %v4528 = vunpack.c.h.b16 %v4325
    %v4529 = vunpack.c.l.b16 %v4326
    %v4530 = vunpack.c.h.b16 %v4326
    %v4531 = vunpack.c.l.b16 %v4327
    %v4532 = vunpack.c.h.b16 %v4327
    %v4533 = vunpack.c.l.b16 %v4328
    %v4534 = vunpack.c.h.b16 %v4328
    %v4535 = vunpack.c.l.b16 %v4329
    %v4536 = vunpack.c.h.b16 %v4329
    %v4537 = vunpack.c.l.b16 %v4330
    %v4538 = vunpack.c.h.b16 %v4330
    %v4539 = vunpack.c.l.b16 %v4331
    %v4540 = vunpack.c.h.b16 %v4331
    %v4541 = vunpack.c.l.b16 %v4332
    %v4542 = vunpack.c.h.b16 %v4332
    %v4543 = vunpack.c.l.b16 %v4333
    %v4544 = vunpack.c.h.b16 %v4333
    %v4545 = vunpack.c.l.b16 %v4334
    %v4546 = vunpack.c.h.b16 %v4334
    %v4547 = vunpack.c.l.b16 %v4335
    %v4548 = vunpack.c.h.b16 %v4335
    %v4549 = vunpack.c.l.b16 %v4336
    %v4550 = vunpack.c.h.b16 %v4336
    %v4551 = vunpack.c.l.b16 %v4337
    %v4552 = vunpack.c.h.b16 %v4337
    %v4553 = vunpack.c.l.b16 %v4338
    %v4554 = vunpack.c.h.b16 %v4338
    %v4555 = vunpack.c.l.b16 %v4339
    %v4556 = vunpack.c.h.b16 %v4339
    %v4557 = vunpack.c.l.b16 %v4340
    %v4558 = vunpack.c.h.b16 %v4340
    %v4559 = vunpack.c.l.b16 %v4341
    %v4560 = vunpack.c.h.b16 %v4341
    %v4561 = vunpack.c.l.b16 %v4342
    %v4562 = vunpack.c.h.b16 %v4342
    %v4563 = vunpack.c.l.b16 %v4343
    %v4564 = vunpack.c.h.b16 %v4343
    %v4565 = vunpack.c.l.b16 %v4344
    %v4566 = vunpack.c.h.b16 %v4344
    %v4567 = vunpack.c.l.b16 %v4345
    %v4568 = vunpack.c.h.b16 %v4345
    %v4569 = vunpack.c.l.b16 %v4346
    %v4570 = vunpack.c.h.b16 %v4346
    %v4571 = vunpack.c.l.b16 %v4347
    %v4572 = vunpack.c.h.b16 %v4347
    %v4573 = vunpack.c.l.b16 %v4348
    %v4574 = vunpack.c.h.b16 %v4348
    %v4575 = vunpack.c.l.b16 %v4349
    %v4576 = vunpack.c.h.b16 %v4349
    %v4577 = vunpack.c.l.b16 %v4350
    %v4578 = vunpack.c.h.b16 %v4350
    %v4579 = vunpack.c.l.b16 %v4351
    %v4580 = vunpack.c.h.b16 %v4351
    %v4581 = vunpack.c.l.b16 %v4352
    %v4582 = vunpack.c.h.b16 %v4352
    %v4583 = vpack.c.b16 %v4471, %v4455
    %v4584 = vpack.c.b16 %v4472, %v4456
    %v4585 = vpack.c.b16 %v4473, %v4457
    %v4586 = vpack.c.b16 %v4474, %v4458
    %v4587 = vpack.c.b16 %v4475, %v4459
    %v4588 = vpack.c.b16 %v4476, %v4460
    %v4589 = vpack.c.b16 %v4477, %v4461
    %v4590 = vpack.c.b16 %v4478, %v4462
    %v4591 = vpack.c.b16 %v4479, %v4463
    %v4592 = vpack.c.b16 %v4480, %v4464
    %v4593 = vpack.c.b16 %v4481, %v4465
    %v4594 = vpack.c.b16 %v4482, %v4466
    %v4595 = vpack.c.b16 %v4483, %v4467
    %v4596 = vpack.c.b16 %v4484, %v4468
    %v4597 = vpack.c.b16 %v4485, %v4469
    %v4598 = vpack.c.b16 %v4486, %v4470
    %v4599 = vpack.c.b16 %v4503, %v4487
    %v4600 = vpack.c.b16 %v4504, %v4488
    %v4601 = vpack.c.b16 %v4505, %v4489
    %v4602 = vpack.c.b16 %v4506, %v4490
    %v4603 = vpack.c.b16 %v4507, %v4491
    %v4604 = vpack.c.b16 %v4508, %v4492
    %v4605 = vpack.c.b16 %v4509, %v4493
    %v4606 = vpack.c.b16 %v4510, %v4494
    %v4607 = vpack.c.b16 %v4511, %v4495
    %v4608 = vpack.c.b16 %v4512, %v4496
    %v4609 = vpack.c.b16 %v4513, %v4497
    %v4610 = vpack.c.b16 %v4514, %v4498
    %v4611 = vpack.c.b16 %v4515, %v4499
    %v4612 = vpack.c.b16 %v4516, %v4500
    %v4613 = vpack.c.b16 %v4517, %v4501
    %v4614 = vpack.c.b16 %v4518, %v4502
    %v4615 = vpack.c.b16 %v4535, %v4519
    %v4616 = vpack.c.b16 %v4536, %v4520
    %v4617 = vpack.c.b16 %v4537, %v4521
    %v4618 = vpack.c.b16 %v4538, %v4522
    %v4619 = vpack.c.b16 %v4539, %v4523
    %v4620 = vpack.c.b16 %v4540, %v4524
    %v4621 = vpack.c.b16 %v4541, %v4525
    %v4622 = vpack.c.b16 %v4542, %v4526
    %v4623 = vpack.c.b16 %v4543, %v4527
    %v4624 = vpack.c.b16 %v4544, %v4528
    %v4625 = vpack.c.b16 %v4545, %v4529
    %v4626 = vpack.c.b16 %v4546, %v4530
    %v4627 = vpack.c.b16 %v4547, %v4531
    %v4628 = vpack.c.b16 %v4548, %v4532
    %v4629 = vpack.c.b16 %v4549, %v4533
    %v4630 = vpack.c.b16 %v4550, %v4534
    %v4631 = vpack.c.b16 %v4567, %v4551
    %v4632 = vpack.c.b16 %v4568, %v4552
    %v4633 = vpack.c.b16 %v4569, %v4553
    %v4634 = vpack.c.b16 %v4570, %v4554
    %v4635 = vpack.c.b16 %v4571, %v4555
    %v4636 = vpack.c.b16 %v4572, %v4556
    %v4637 = vpack.c.b16 %v4573, %v4557
    %v4638 = vpack.c.b16 %v4574, %v4558
    %v4639 = vpack.c.b16 %v4575, %v4559
    %v4640 = vpack.c.b16 %v4576, %v4560
    %v4641 = vpack.c.b16 %v4577, %v4561
    %v4642 = vpack.c.b16 %v4578, %v4562
    %v4643 = vpack.c.b16 %v4579, %v4563
    %v4644 = vpack.c.b16 %v4580, %v4564
    %v4645 = vpack.c.b16 %v4581, %v4565
    %v4646 = vpack.c.b16 %v4582, %v4566
    %v4712 = vsel %vm446, %v4353, 0
    %4714 = vmatpush.bf16.msra.mxu0 0
    %4715 = vmatpush.bf16.msra.mxu0 0
    %4716 = vmatpush.bf16.msra.mxu0 0
    %4717 = vmatpush.bf16.msra.mxu0 0
    %4718 = vmatpush.bf16.msra.mxu0 %v4631
    %4719 = vmatpush.bf16.msra.mxu0 %v4615
    %4720 = vmatpush.bf16.msra.mxu0 %v4599
    %4721 = vmatpush.bf16.msra.mxu0 %v4583
    %4722 = vmatmul.bf16.gmra.mxu0 %v4712
    %v4723 = vpop.f32.mrf.mxu0
    %v4724 = vadd.f32 %v4359, %v4723
    %v4725 = vpop.f32.mrf.mxu0
    %v4726 = vadd.f32 %v4359, %v4725
    %4727 = vdwg.mxu0
    %4728 = vmatpush.bf16.msra.mxu0 0
    %4729 = vmatpush.bf16.msra.mxu0 0
    %4730 = vmatpush.bf16.msra.mxu0 0
    %4731 = vmatpush.bf16.msra.mxu0 0
    %4732 = vmatpush.bf16.msra.mxu0 %v4632
    %4733 = vmatpush.bf16.msra.mxu0 %v4616
    %4734 = vmatpush.bf16.msra.mxu0 %v4600
    %4735 = vmatpush.bf16.msra.mxu0 %v4584
    %4736 = vmatmul.bf16.gmra.mxu0 %v4712
    %v4737 = vpop.f32.mrf.mxu0
    %v4738 = vadd.f32 %v4360, %v4737
    %v4739 = vpop.f32.mrf.mxu0
    %v4740 = vadd.f32 %v4360, %v4739
    %4741 = vdwg.mxu0
    %4742 = vmatpush.bf16.msra.mxu0 0
    %4743 = vmatpush.bf16.msra.mxu0 0
    %4744 = vmatpush.bf16.msra.mxu0 0
    %4745 = vmatpush.bf16.msra.mxu0 0
    %4746 = vmatpush.bf16.msra.mxu0 %v4633
    %4747 = vmatpush.bf16.msra.mxu0 %v4617
    %4748 = vmatpush.bf16.msra.mxu0 %v4601
    %4749 = vmatpush.bf16.msra.mxu0 %v4585
    %4750 = vmatmul.bf16.gmra.mxu0 %v4712
    %v4751 = vpop.f32.mrf.mxu0
    %v4752 = vadd.f32 %v4361, %v4751
    %v4753 = vpop.f32.mrf.mxu0
    %v4754 = vadd.f32 %v4361, %v4753
    %4755 = vdwg.mxu0
    %4756 = vmatpush.bf16.msra.mxu0 0
    %4757 = vmatpush.bf16.msra.mxu0 0
    %4758 = vmatpush.bf16.msra.mxu0 0
    %4759 = vmatpush.bf16.msra.mxu0 0
    %4760 = vmatpush.bf16.msra.mxu0 %v4634
    %4761 = vmatpush.bf16.msra.mxu0 %v4618
    %4762 = vmatpush.bf16.msra.mxu0 %v4602
    %4763 = vmatpush.bf16.msra.mxu0 %v4586
    %4764 = vmatmul.bf16.gmra.mxu0 %v4712
    %v4765 = vpop.f32.mrf.mxu0
    %v4766 = vadd.f32 %v4362, %v4765
    %v4767 = vpop.f32.mrf.mxu0
    %v4768 = vadd.f32 %v4362, %v4767
    %4769 = vdwg.mxu0
    %4770 = vmatpush.bf16.msra.mxu0 0
    %4771 = vmatpush.bf16.msra.mxu0 0
    %4772 = vmatpush.bf16.msra.mxu0 0
    %4773 = vmatpush.bf16.msra.mxu0 0
    %4774 = vmatpush.bf16.msra.mxu0 %v4635
    %4775 = vmatpush.bf16.msra.mxu0 %v4619
    %4776 = vmatpush.bf16.msra.mxu0 %v4603
    %4777 = vmatpush.bf16.msra.mxu0 %v4587
    %4778 = vmatmul.bf16.gmra.mxu0 %v4712
    %v4779 = vpop.f32.mrf.mxu0
    %v4780 = vadd.f32 %v4363, %v4779
    %v4781 = vpop.f32.mrf.mxu0
    %v4782 = vadd.f32 %v4363, %v4781
    %4783 = vdwg.mxu0
    %4784 = vmatpush.bf16.msra.mxu0 0
    %4785 = vmatpush.bf16.msra.mxu0 0
    %4786 = vmatpush.bf16.msra.mxu0 0
    %4787 = vmatpush.bf16.msra.mxu0 0
    %4788 = vmatpush.bf16.msra.mxu0 %v4636
    %4789 = vmatpush.bf16.msra.mxu0 %v4620
    %4790 = vmatpush.bf16.msra.mxu0 %v4604
    %4791 = vmatpush.bf16.msra.mxu0 %v4588
    %4792 = vmatmul.bf16.gmra.mxu0 %v4712
    %v4793 = vpop.f32.mrf.mxu0
    %v4794 = vadd.f32 %v4364, %v4793
    %v4795 = vpop.f32.mrf.mxu0
    %v4796 = vadd.f32 %v4364, %v4795
    %4797 = vdwg.mxu0
    %4798 = vmatpush.bf16.msra.mxu0 0
    %4799 = vmatpush.bf16.msra.mxu0 0
    %4800 = vmatpush.bf16.msra.mxu0 0
    %4801 = vmatpush.bf16.msra.mxu0 0
    %4802 = vmatpush.bf16.msra.mxu0 %v4637
    %4803 = vmatpush.bf16.msra.mxu0 %v4621
    %4804 = vmatpush.bf16.msra.mxu0 %v4605
    %4805 = vmatpush.bf16.msra.mxu0 %v4589
    %4806 = vmatmul.bf16.gmra.mxu0 %v4712
    %v4807 = vpop.f32.mrf.mxu0
    %v4808 = vadd.f32 %v4365, %v4807
    %v4809 = vpop.f32.mrf.mxu0
    %v4810 = vadd.f32 %v4365, %v4809
    %4811 = vdwg.mxu0
    %4812 = vmatpush.bf16.msra.mxu0 0
    %4813 = vmatpush.bf16.msra.mxu0 0
    %4814 = vmatpush.bf16.msra.mxu0 0
    %4815 = vmatpush.bf16.msra.mxu0 0
    %4816 = vmatpush.bf16.msra.mxu0 %v4638
    %4817 = vmatpush.bf16.msra.mxu0 %v4622
    %4818 = vmatpush.bf16.msra.mxu0 %v4606
    %4819 = vmatpush.bf16.msra.mxu0 %v4590
    %4820 = vmatmul.bf16.gmra.mxu0 %v4712
    %v4821 = vpop.f32.mrf.mxu0
    %v4822 = vadd.f32 %v4366, %v4821
    %v4823 = vpop.f32.mrf.mxu0
    %v4824 = vadd.f32 %v4366, %v4823
    %4825 = vdwg.mxu0
    %4826 = vmatpush.bf16.msra.mxu0 0
    %4827 = vmatpush.bf16.msra.mxu0 0
    %4828 = vmatpush.bf16.msra.mxu0 0
    %4829 = vmatpush.bf16.msra.mxu0 0
    %4830 = vmatpush.bf16.msra.mxu0 %v4639
    %4831 = vmatpush.bf16.msra.mxu0 %v4623
    %4832 = vmatpush.bf16.msra.mxu0 %v4607
    %4833 = vmatpush.bf16.msra.mxu0 %v4591
    %4834 = vmatmul.bf16.gmra.mxu0 %v4712
    %v4835 = vpop.f32.mrf.mxu0
    %v4836 = vadd.f32 %v4367, %v4835
    %v4837 = vpop.f32.mrf.mxu0
    %v4838 = vadd.f32 %v4367, %v4837
    %4839 = vdwg.mxu0
    %4840 = vmatpush.bf16.msra.mxu0 0
    %4841 = vmatpush.bf16.msra.mxu0 0
    %4842 = vmatpush.bf16.msra.mxu0 0
    %4843 = vmatpush.bf16.msra.mxu0 0
    %4844 = vmatpush.bf16.msra.mxu0 %v4640
    %4845 = vmatpush.bf16.msra.mxu0 %v4624
    %4846 = vmatpush.bf16.msra.mxu0 %v4608
    %4847 = vmatpush.bf16.msra.mxu0 %v4592
    %4848 = vmatmul.bf16.gmra.mxu0 %v4712
    %v4849 = vpop.f32.mrf.mxu0
    %v4850 = vadd.f32 %v4368, %v4849
    %v4851 = vpop.f32.mrf.mxu0
    %v4852 = vadd.f32 %v4368, %v4851
    %4853 = vdwg.mxu0
    %4854 = vmatpush.bf16.msra.mxu0 0
    %4855 = vmatpush.bf16.msra.mxu0 0
    %4856 = vmatpush.bf16.msra.mxu0 0
    %4857 = vmatpush.bf16.msra.mxu0 0
    %4858 = vmatpush.bf16.msra.mxu0 %v4641
    %4859 = vmatpush.bf16.msra.mxu0 %v4625
    %4860 = vmatpush.bf16.msra.mxu0 %v4609
    %4861 = vmatpush.bf16.msra.mxu0 %v4593
    %4862 = vmatmul.bf16.gmra.mxu0 %v4712
    %v4863 = vpop.f32.mrf.mxu0
    %v4864 = vadd.f32 %v4369, %v4863
    %v4865 = vpop.f32.mrf.mxu0
    %v4866 = vadd.f32 %v4369, %v4865
    %4867 = vdwg.mxu0
    %4868 = vmatpush.bf16.msra.mxu0 0
    %4869 = vmatpush.bf16.msra.mxu0 0
    %4870 = vmatpush.bf16.msra.mxu0 0
    %4871 = vmatpush.bf16.msra.mxu0 0
    %4872 = vmatpush.bf16.msra.mxu0 %v4642
    %4873 = vmatpush.bf16.msra.mxu0 %v4626
    %4874 = vmatpush.bf16.msra.mxu0 %v4610
    %4875 = vmatpush.bf16.msra.mxu0 %v4594
    %4876 = vmatmul.bf16.gmra.mxu0 %v4712
    %v4877 = vpop.f32.mrf.mxu0
    %v4878 = vadd.f32 %v4370, %v4877
    %v4879 = vpop.f32.mrf.mxu0
    %v4880 = vadd.f32 %v4370, %v4879
    %4881 = vdwg.mxu0
    %4882 = vmatpush.bf16.msra.mxu0 0
    %4883 = vmatpush.bf16.msra.mxu0 0
    %4884 = vmatpush.bf16.msra.mxu0 0
    %4885 = vmatpush.bf16.msra.mxu0 0
    %4886 = vmatpush.bf16.msra.mxu0 %v4643
    %4887 = vmatpush.bf16.msra.mxu0 %v4627
    %4888 = vmatpush.bf16.msra.mxu0 %v4611
    %4889 = vmatpush.bf16.msra.mxu0 %v4595
    %4890 = vmatmul.bf16.gmra.mxu0 %v4712
    %v4891 = vpop.f32.mrf.mxu0
    %v4892 = vadd.f32 %v4371, %v4891
    %v4893 = vpop.f32.mrf.mxu0
    %v4894 = vadd.f32 %v4371, %v4893
    %4895 = vdwg.mxu0
    %4896 = vmatpush.bf16.msra.mxu0 0
    %4897 = vmatpush.bf16.msra.mxu0 0
    %4898 = vmatpush.bf16.msra.mxu0 0
    %4899 = vmatpush.bf16.msra.mxu0 0
    %4900 = vmatpush.bf16.msra.mxu0 %v4644
    %4901 = vmatpush.bf16.msra.mxu0 %v4628
    %4902 = vmatpush.bf16.msra.mxu0 %v4612
    %4903 = vmatpush.bf16.msra.mxu0 %v4596
    %4904 = vmatmul.bf16.gmra.mxu0 %v4712
    %v4905 = vpop.f32.mrf.mxu0
    %v4906 = vadd.f32 %v4372, %v4905
    %v4907 = vpop.f32.mrf.mxu0
    %v4908 = vadd.f32 %v4372, %v4907
    %4909 = vdwg.mxu0
    %4910 = vmatpush.bf16.msra.mxu0 0
    %4911 = vmatpush.bf16.msra.mxu0 0
    %4912 = vmatpush.bf16.msra.mxu0 0
    %4913 = vmatpush.bf16.msra.mxu0 0
    %4914 = vmatpush.bf16.msra.mxu0 %v4645
    %4915 = vmatpush.bf16.msra.mxu0 %v4629
    %4916 = vmatpush.bf16.msra.mxu0 %v4613
    %4917 = vmatpush.bf16.msra.mxu0 %v4597
    %4918 = vmatmul.bf16.gmra.mxu0 %v4712
    %v4919 = vpop.f32.mrf.mxu0
    %v4920 = vadd.f32 %v4373, %v4919
    %v4921 = vpop.f32.mrf.mxu0
    %v4922 = vadd.f32 %v4373, %v4921
    %4923 = vdwg.mxu0
    %4924 = vmatpush.bf16.msra.mxu0 0
    %4925 = vmatpush.bf16.msra.mxu0 0
    %4926 = vmatpush.bf16.msra.mxu0 0
    %4927 = vmatpush.bf16.msra.mxu0 0
    %4928 = vmatpush.bf16.msra.mxu0 %v4646
    %4929 = vmatpush.bf16.msra.mxu0 %v4630
    %4930 = vmatpush.bf16.msra.mxu0 %v4614
    %4931 = vmatpush.bf16.msra.mxu0 %v4598
    %4932 = vmatmul.bf16.gmra.mxu0 %v4712
    %v4933 = vpop.f32.mrf.mxu0
    %v4934 = vadd.f32 %v4374, %v4933
    %v4935 = vpop.f32.mrf.mxu0
    %v4936 = vadd.f32 %v4374, %v4935
    %4937 = vdwg.mxu0
    %v4938 = vmax.f32 %v4724, 0.0
    %v4939 = vmax.f32 %v4738, 0.0
    %v4940 = vmax.f32 %v4752, 0.0
    %v4941 = vmax.f32 %v4766, 0.0
    %v4942 = vmax.f32 %v4780, 0.0
    %v4943 = vmax.f32 %v4794, 0.0
    %v4944 = vmax.f32 %v4808, 0.0
    %v4945 = vmax.f32 %v4822, 0.0
    %v4946 = vmax.f32 %v4836, 0.0
    %v4947 = vmax.f32 %v4850, 0.0
    %v4948 = vmax.f32 %v4864, 0.0
    %v4949 = vmax.f32 %v4878, 0.0
    %v4950 = vmax.f32 %v4892, 0.0
    %v4951 = vmax.f32 %v4906, 0.0
    %v4952 = vmax.f32 %v4920, 0.0
    %v4953 = vmax.f32 %v4934, 0.0
    %v4954 = vmax.f32 %v4726, 0.0
    %v4955 = vmax.f32 %v4740, 0.0
    %v4956 = vmax.f32 %v4754, 0.0
    %v4957 = vmax.f32 %v4768, 0.0
    %v4958 = vmax.f32 %v4782, 0.0
    %v4959 = vmax.f32 %v4796, 0.0
    %v4960 = vmax.f32 %v4810, 0.0
    %v4961 = vmax.f32 %v4824, 0.0
    %v4962 = vmax.f32 %v4838, 0.0
    %v4963 = vmax.f32 %v4852, 0.0
    %v4964 = vmax.f32 %v4866, 0.0
    %v4965 = vmax.f32 %v4880, 0.0
    %v4966 = vmax.f32 %v4894, 0.0
    %v4967 = vmax.f32 %v4908, 0.0
    %v4968 = vmax.f32 %v4922, 0.0
    %v4969 = vmax.f32 %v4936, 0.0
    %v4970 = vpack.c.bf16 %v4954, %v4938
    %v4971 = vpack.c.bf16 %v4955, %v4939
    %v4972 = vpack.c.bf16 %v4956, %v4940
    %v4973 = vpack.c.bf16 %v4957, %v4941
    %v4974 = vpack.c.bf16 %v4958, %v4942
    %v4975 = vpack.c.bf16 %v4959, %v4943
    %v4976 = vpack.c.bf16 %v4960, %v4944
    %v4977 = vpack.c.bf16 %v4961, %v4945
    %v4978 = vpack.c.bf16 %v4962, %v4946
    %v4979 = vpack.c.bf16 %v4963, %v4947
    %v4980 = vpack.c.bf16 %v4964, %v4948
    %v4981 = vpack.c.bf16 %v4965, %v4949
    %v4982 = vpack.c.bf16 %v4966, %v4950
    %v4983 = vpack.c.bf16 %v4967, %v4951
    %v4984 = vpack.c.bf16 %v4968, %v4952
    %v4985 = vpack.c.bf16 %v4969, %v4953
    %s4986 = scalar_lea.vmem %s15, 1024
    %v4987 = vld [vmem:[%s4986] sm:$0xf]
    %v4988 = vld [vmem:[%s4986 + $0x4] sm:$0xf]
    %v4989 = vld [vmem:[%s4986 + $0x8] sm:$0xf]
    %v4990 = vld [vmem:[%s4986 + $0xc] sm:$0xf]
    %v4991 = vld [vmem:[%s4986 + $0x10] sm:$0xf]
    %v4992 = vld [vmem:[%s4986 + $0x14] sm:$0xf]
    %v4993 = vld [vmem:[%s4986 + $0x18] sm:$0xf]
    %v4994 = vld [vmem:[%s4986 + $0x1c] sm:$0xf]
    %v4995 = vld [vmem:[%s4986 + $0x20] sm:$0xf]
    %v4996 = vld [vmem:[%s4986 + $0x24] sm:$0xf]
    %v4997 = vld [vmem:[%s4986 + $0x28] sm:$0xf]
    %v4998 = vld [vmem:[%s4986 + $0x2c] sm:$0xf]
    %v4999 = vld [vmem:[%s4986 + $0x30] sm:$0xf]
    %v5000 = vld [vmem:[%s4986 + $0x34] sm:$0xf]
    %v5001 = vld [vmem:[%s4986 + $0x38] sm:$0xf]
    %v5002 = vld [vmem:[%s4986 + $0x3c] sm:$0xf]
    %v5003 = vld [vmem:[%s4986 + $0x40] sm:$0xf]
    %v5004 = vld [vmem:[%s4986 + $0x44] sm:$0xf]
    %v5005 = vld [vmem:[%s4986 + $0x48] sm:$0xf]
    %v5006 = vld [vmem:[%s4986 + $0x4c] sm:$0xf]
    %v5007 = vld [vmem:[%s4986 + $0x50] sm:$0xf]
    %v5008 = vld [vmem:[%s4986 + $0x54] sm:$0xf]
    %v5009 = vld [vmem:[%s4986 + $0x58] sm:$0xf]
    %v5010 = vld [vmem:[%s4986 + $0x5c] sm:$0xf]
    %v5011 = vld [vmem:[%s4986 + $0x60] sm:$0xf]
    %v5012 = vld [vmem:[%s4986 + $0x64] sm:$0xf]
    %v5013 = vld [vmem:[%s4986 + $0x68] sm:$0xf]
    %v5014 = vld [vmem:[%s4986 + $0x6c] sm:$0xf]
    %v5015 = vld [vmem:[%s4986 + $0x70] sm:$0xf]
    %v5016 = vld [vmem:[%s4986 + $0x74] sm:$0xf]
    %v5017 = vld [vmem:[%s4986 + $0x78] sm:$0xf]
    %v5018 = vld [vmem:[%s4986 + $0x7c] sm:$0xf]
    %v5019 = vld [vmem:[%s4986 + $0x80] sm:$0xf]
    %v5020 = vld [vmem:[%s4986 + $0x84] sm:$0xf]
    %v5021 = vld [vmem:[%s4986 + $0x88] sm:$0xf]
    %v5022 = vld [vmem:[%s4986 + $0x8c] sm:$0xf]
    %v5023 = vld [vmem:[%s4986 + $0x90] sm:$0xf]
    %v5024 = vld [vmem:[%s4986 + $0x94] sm:$0xf]
    %v5025 = vld [vmem:[%s4986 + $0x98] sm:$0xf]
    %v5026 = vld [vmem:[%s4986 + $0x9c] sm:$0xf]
    %v5027 = vld [vmem:[%s4986 + $0xa0] sm:$0xf]
    %v5028 = vld [vmem:[%s4986 + $0xa4] sm:$0xf]
    %v5029 = vld [vmem:[%s4986 + $0xa8] sm:$0xf]
    %v5030 = vld [vmem:[%s4986 + $0xac] sm:$0xf]
    %v5031 = vld [vmem:[%s4986 + $0xb0] sm:$0xf]
    %v5032 = vld [vmem:[%s4986 + $0xb4] sm:$0xf]
    %v5033 = vld [vmem:[%s4986 + $0xb8] sm:$0xf]
    %v5034 = vld [vmem:[%s4986 + $0xbc] sm:$0xf]
    %v5035 = vld [vmem:[%s4986 + $0xc0] sm:$0xf]
    %v5036 = vld [vmem:[%s4986 + $0xc4] sm:$0xf]
    %v5037 = vld [vmem:[%s4986 + $0xc8] sm:$0xf]
    %v5038 = vld [vmem:[%s4986 + $0xcc] sm:$0xf]
    %v5039 = vld [vmem:[%s4986 + $0xd0] sm:$0xf]
    %v5040 = vld [vmem:[%s4986 + $0xd4] sm:$0xf]
    %v5041 = vld [vmem:[%s4986 + $0xd8] sm:$0xf]
    %v5042 = vld [vmem:[%s4986 + $0xdc] sm:$0xf]
    %v5043 = vld [vmem:[%s4986 + $0xe0] sm:$0xf]
    %v5044 = vld [vmem:[%s4986 + $0xe4] sm:$0xf]
    %v5045 = vld [vmem:[%s4986 + $0xe8] sm:$0xf]
    %v5046 = vld [vmem:[%s4986 + $0xec] sm:$0xf]
    %v5047 = vld [vmem:[%s4986 + $0xf0] sm:$0xf]
    %v5048 = vld [vmem:[%s4986 + $0xf4] sm:$0xf]
    %v5049 = vld [vmem:[%s4986 + $0xf8] sm:$0xf]
    %v5050 = vld [vmem:[%s4986 + $0xfc] sm:$0xf]
    %v5051 = vld [vmem:[%s4986 + $0x100] sm:$0xf]
    %v5052 = vld [vmem:[%s4986 + $0x104] sm:$0xf]
    %v5053 = vld [vmem:[%s4986 + $0x108] sm:$0xf]
    %v5054 = vld [vmem:[%s4986 + $0x10c] sm:$0xf]
    %v5055 = vld [vmem:[%s4986 + $0x110] sm:$0xf]
    %v5056 = vld [vmem:[%s4986 + $0x114] sm:$0xf]
    %v5057 = vld [vmem:[%s4986 + $0x118] sm:$0xf]
    %v5058 = vld [vmem:[%s4986 + $0x11c] sm:$0xf]
    %v5059 = vld [vmem:[%s4986 + $0x120] sm:$0xf]
    %v5060 = vld [vmem:[%s4986 + $0x124] sm:$0xf]
    %v5061 = vld [vmem:[%s4986 + $0x128] sm:$0xf]
    %v5062 = vld [vmem:[%s4986 + $0x12c] sm:$0xf]
    %v5063 = vld [vmem:[%s4986 + $0x130] sm:$0xf]
    %v5064 = vld [vmem:[%s4986 + $0x134] sm:$0xf]
    %v5065 = vld [vmem:[%s4986 + $0x138] sm:$0xf]
    %v5066 = vld [vmem:[%s4986 + $0x13c] sm:$0xf]
    %v5067 = vld [vmem:[%s4986 + $0x140] sm:$0xf]
    %v5068 = vld [vmem:[%s4986 + $0x144] sm:$0xf]
    %v5069 = vld [vmem:[%s4986 + $0x148] sm:$0xf]
    %v5070 = vld [vmem:[%s4986 + $0x14c] sm:$0xf]
    %v5071 = vld [vmem:[%s4986 + $0x150] sm:$0xf]
    %v5072 = vld [vmem:[%s4986 + $0x154] sm:$0xf]
    %v5073 = vld [vmem:[%s4986 + $0x158] sm:$0xf]
    %v5074 = vld [vmem:[%s4986 + $0x15c] sm:$0xf]
    %v5075 = vld [vmem:[%s4986 + $0x160] sm:$0xf]
    %v5076 = vld [vmem:[%s4986 + $0x164] sm:$0xf]
    %v5077 = vld [vmem:[%s4986 + $0x168] sm:$0xf]
    %v5078 = vld [vmem:[%s4986 + $0x16c] sm:$0xf]
    %v5079 = vld [vmem:[%s4986 + $0x170] sm:$0xf]
    %v5080 = vld [vmem:[%s4986 + $0x174] sm:$0xf]
    %v5081 = vld [vmem:[%s4986 + $0x178] sm:$0xf]
    %v5082 = vld [vmem:[%s4986 + $0x17c] sm:$0xf]
    %v5083 = vld [vmem:[%s4986 + $0x180] sm:$0xf]
    %v5084 = vld [vmem:[%s4986 + $0x184] sm:$0xf]
    %v5085 = vld [vmem:[%s4986 + $0x188] sm:$0xf]
    %v5086 = vld [vmem:[%s4986 + $0x18c] sm:$0xf]
    %v5087 = vld [vmem:[%s4986 + $0x190] sm:$0xf]
    %v5088 = vld [vmem:[%s4986 + $0x194] sm:$0xf]
    %v5089 = vld [vmem:[%s4986 + $0x198] sm:$0xf]
    %v5090 = vld [vmem:[%s4986 + $0x19c] sm:$0xf]
    %v5091 = vld [vmem:[%s4986 + $0x1a0] sm:$0xf]
    %v5092 = vld [vmem:[%s4986 + $0x1a4] sm:$0xf]
    %v5093 = vld [vmem:[%s4986 + $0x1a8] sm:$0xf]
    %v5094 = vld [vmem:[%s4986 + $0x1ac] sm:$0xf]
    %v5095 = vld [vmem:[%s4986 + $0x1b0] sm:$0xf]
    %v5096 = vld [vmem:[%s4986 + $0x1b4] sm:$0xf]
    %v5097 = vld [vmem:[%s4986 + $0x1b8] sm:$0xf]
    %v5098 = vld [vmem:[%s4986 + $0x1bc] sm:$0xf]
    %v5099 = vld [vmem:[%s4986 + $0x1c0] sm:$0xf]
    %v5100 = vld [vmem:[%s4986 + $0x1c4] sm:$0xf]
    %v5101 = vld [vmem:[%s4986 + $0x1c8] sm:$0xf]
    %v5102 = vld [vmem:[%s4986 + $0x1cc] sm:$0xf]
    %v5103 = vld [vmem:[%s4986 + $0x1d0] sm:$0xf]
    %v5104 = vld [vmem:[%s4986 + $0x1d4] sm:$0xf]
    %v5105 = vld [vmem:[%s4986 + $0x1d8] sm:$0xf]
    %v5106 = vld [vmem:[%s4986 + $0x1dc] sm:$0xf]
    %v5107 = vld [vmem:[%s4986 + $0x1e0] sm:$0xf]
    %v5108 = vld [vmem:[%s4986 + $0x1e4] sm:$0xf]
    %v5109 = vld [vmem:[%s4986 + $0x1e8] sm:$0xf]
    %v5110 = vld [vmem:[%s4986 + $0x1ec] sm:$0xf]
    %v5111 = vld [vmem:[%s4986 + $0x1f0] sm:$0xf]
    %v5112 = vld [vmem:[%s4986 + $0x1f4] sm:$0xf]
    %v5113 = vld [vmem:[%s4986 + $0x1f8] sm:$0xf]
    %v5114 = vld [vmem:[%s4986 + $0x1fc] sm:$0xf]
    %v5115 = vld [vmem:[%s4986 + $0x200] sm:$0xf]
    %v5116 = vld [vmem:[%s4986 + $0x204] sm:$0xf]
    %v5117 = vld [vmem:[%s4986 + $0x208] sm:$0xf]
    %v5118 = vld [vmem:[%s4986 + $0x20c] sm:$0xf]
    %v5119 = vld [vmem:[%s4986 + $0x210] sm:$0xf]
    %v5120 = vld [vmem:[%s4986 + $0x214] sm:$0xf]
    %v5121 = vld [vmem:[%s4986 + $0x218] sm:$0xf]
    %v5122 = vld [vmem:[%s4986 + $0x21c] sm:$0xf]
    %v5123 = vld [vmem:[%s4986 + $0x220] sm:$0xf]
    %v5124 = vld [vmem:[%s4986 + $0x224] sm:$0xf]
    %v5125 = vld [vmem:[%s4986 + $0x228] sm:$0xf]
    %v5126 = vld [vmem:[%s4986 + $0x22c] sm:$0xf]
    %v5127 = vld [vmem:[%s4986 + $0x230] sm:$0xf]
    %v5128 = vld [vmem:[%s4986 + $0x234] sm:$0xf]
    %v5129 = vld [vmem:[%s4986 + $0x238] sm:$0xf]
    %v5130 = vld [vmem:[%s4986 + $0x23c] sm:$0xf]
    %v5131 = vld [vmem:[%s4986 + $0x240] sm:$0xf]
    %v5132 = vld [vmem:[%s4986 + $0x244] sm:$0xf]
    %v5133 = vld [vmem:[%s4986 + $0x248] sm:$0xf]
    %v5134 = vld [vmem:[%s4986 + $0x24c] sm:$0xf]
    %v5135 = vld [vmem:[%s4986 + $0x250] sm:$0xf]
    %v5136 = vld [vmem:[%s4986 + $0x254] sm:$0xf]
    %v5137 = vld [vmem:[%s4986 + $0x258] sm:$0xf]
    %v5138 = vld [vmem:[%s4986 + $0x25c] sm:$0xf]
    %v5139 = vld [vmem:[%s4986 + $0x260] sm:$0xf]
    %v5140 = vld [vmem:[%s4986 + $0x264] sm:$0xf]
    %v5141 = vld [vmem:[%s4986 + $0x268] sm:$0xf]
    %v5142 = vld [vmem:[%s4986 + $0x26c] sm:$0xf]
    %v5143 = vld [vmem:[%s4986 + $0x270] sm:$0xf]
    %v5144 = vld [vmem:[%s4986 + $0x274] sm:$0xf]
    %v5145 = vld [vmem:[%s4986 + $0x278] sm:$0xf]
    %v5146 = vld [vmem:[%s4986 + $0x27c] sm:$0xf]
    %v5147 = vld [vmem:[%s4986 + $0x280] sm:$0xf]
    %v5148 = vld [vmem:[%s4986 + $0x284] sm:$0xf]
    %v5149 = vld [vmem:[%s4986 + $0x288] sm:$0xf]
    %v5150 = vld [vmem:[%s4986 + $0x28c] sm:$0xf]
    %v5151 = vld [vmem:[%s4986 + $0x290] sm:$0xf]
    %v5152 = vld [vmem:[%s4986 + $0x294] sm:$0xf]
    %v5153 = vld [vmem:[%s4986 + $0x298] sm:$0xf]
    %v5154 = vld [vmem:[%s4986 + $0x29c] sm:$0xf]
    %v5155 = vld [vmem:[%s4986 + $0x2a0] sm:$0xf]
    %v5156 = vld [vmem:[%s4986 + $0x2a4] sm:$0xf]
    %v5157 = vld [vmem:[%s4986 + $0x2a8] sm:$0xf]
    %v5158 = vld [vmem:[%s4986 + $0x2ac] sm:$0xf]
    %v5159 = vld [vmem:[%s4986 + $0x2b0] sm:$0xf]
    %v5160 = vld [vmem:[%s4986 + $0x2b4] sm:$0xf]
    %v5161 = vld [vmem:[%s4986 + $0x2b8] sm:$0xf]
    %v5162 = vld [vmem:[%s4986 + $0x2bc] sm:$0xf]
    %v5163 = vld [vmem:[%s4986 + $0x2c0] sm:$0xf]
    %v5164 = vld [vmem:[%s4986 + $0x2c4] sm:$0xf]
    %v5165 = vld [vmem:[%s4986 + $0x2c8] sm:$0xf]
    %v5166 = vld [vmem:[%s4986 + $0x2cc] sm:$0xf]
    %v5167 = vld [vmem:[%s4986 + $0x2d0] sm:$0xf]
    %v5168 = vld [vmem:[%s4986 + $0x2d4] sm:$0xf]
    %v5169 = vld [vmem:[%s4986 + $0x2d8] sm:$0xf]
    %v5170 = vld [vmem:[%s4986 + $0x2dc] sm:$0xf]
    %v5171 = vld [vmem:[%s4986 + $0x2e0] sm:$0xf]
    %v5172 = vld [vmem:[%s4986 + $0x2e4] sm:$0xf]
    %v5173 = vld [vmem:[%s4986 + $0x2e8] sm:$0xf]
    %v5174 = vld [vmem:[%s4986 + $0x2ec] sm:$0xf]
    %v5175 = vld [vmem:[%s4986 + $0x2f0] sm:$0xf]
    %v5176 = vld [vmem:[%s4986 + $0x2f4] sm:$0xf]
    %v5177 = vld [vmem:[%s4986 + $0x2f8] sm:$0xf]
    %v5178 = vld [vmem:[%s4986 + $0x2fc] sm:$0xf]
    %v5179 = vld [vmem:[%s4986 + $0x300] sm:$0xf]
    %v5180 = vld [vmem:[%s4986 + $0x304] sm:$0xf]
    %v5181 = vld [vmem:[%s4986 + $0x308] sm:$0xf]
    %v5182 = vld [vmem:[%s4986 + $0x30c] sm:$0xf]
    %v5183 = vld [vmem:[%s4986 + $0x310] sm:$0xf]
    %v5184 = vld [vmem:[%s4986 + $0x314] sm:$0xf]
    %v5185 = vld [vmem:[%s4986 + $0x318] sm:$0xf]
    %v5186 = vld [vmem:[%s4986 + $0x31c] sm:$0xf]
    %v5187 = vld [vmem:[%s4986 + $0x320] sm:$0xf]
    %v5188 = vld [vmem:[%s4986 + $0x324] sm:$0xf]
    %v5189 = vld [vmem:[%s4986 + $0x328] sm:$0xf]
    %v5190 = vld [vmem:[%s4986 + $0x32c] sm:$0xf]
    %v5191 = vld [vmem:[%s4986 + $0x330] sm:$0xf]
    %v5192 = vld [vmem:[%s4986 + $0x334] sm:$0xf]
    %v5193 = vld [vmem:[%s4986 + $0x338] sm:$0xf]
    %v5194 = vld [vmem:[%s4986 + $0x33c] sm:$0xf]
    %v5195 = vld [vmem:[%s4986 + $0x340] sm:$0xf]
    %v5196 = vld [vmem:[%s4986 + $0x344] sm:$0xf]
    %v5197 = vld [vmem:[%s4986 + $0x348] sm:$0xf]
    %v5198 = vld [vmem:[%s4986 + $0x34c] sm:$0xf]
    %v5199 = vld [vmem:[%s4986 + $0x350] sm:$0xf]
    %v5200 = vld [vmem:[%s4986 + $0x354] sm:$0xf]
    %v5201 = vld [vmem:[%s4986 + $0x358] sm:$0xf]
    %v5202 = vld [vmem:[%s4986 + $0x35c] sm:$0xf]
    %v5203 = vld [vmem:[%s4986 + $0x360] sm:$0xf]
    %v5204 = vld [vmem:[%s4986 + $0x364] sm:$0xf]
    %v5205 = vld [vmem:[%s4986 + $0x368] sm:$0xf]
    %v5206 = vld [vmem:[%s4986 + $0x36c] sm:$0xf]
    %v5207 = vld [vmem:[%s4986 + $0x370] sm:$0xf]
    %v5208 = vld [vmem:[%s4986 + $0x374] sm:$0xf]
    %v5209 = vld [vmem:[%s4986 + $0x378] sm:$0xf]
    %v5210 = vld [vmem:[%s4986 + $0x37c] sm:$0xf]
    %v5211 = vld [vmem:[%s4986 + $0x380] sm:$0xf]
    %v5212 = vld [vmem:[%s4986 + $0x384] sm:$0xf]
    %v5213 = vld [vmem:[%s4986 + $0x388] sm:$0xf]
    %v5214 = vld [vmem:[%s4986 + $0x38c] sm:$0xf]
    %v5215 = vld [vmem:[%s4986 + $0x390] sm:$0xf]
    %v5216 = vld [vmem:[%s4986 + $0x394] sm:$0xf]
    %v5217 = vld [vmem:[%s4986 + $0x398] sm:$0xf]
    %v5218 = vld [vmem:[%s4986 + $0x39c] sm:$0xf]
    %v5219 = vld [vmem:[%s4986 + $0x3a0] sm:$0xf]
    %v5220 = vld [vmem:[%s4986 + $0x3a4] sm:$0xf]
    %v5221 = vld [vmem:[%s4986 + $0x3a8] sm:$0xf]
    %v5222 = vld [vmem:[%s4986 + $0x3ac] sm:$0xf]
    %v5223 = vld [vmem:[%s4986 + $0x3b0] sm:$0xf]
    %v5224 = vld [vmem:[%s4986 + $0x3b4] sm:$0xf]
    %v5225 = vld [vmem:[%s4986 + $0x3b8] sm:$0xf]
    %v5226 = vld [vmem:[%s4986 + $0x3bc] sm:$0xf]
    %v5227 = vld [vmem:[%s4986 + $0x3c0] sm:$0xf]
    %v5228 = vld [vmem:[%s4986 + $0x3c4] sm:$0xf]
    %v5229 = vld [vmem:[%s4986 + $0x3c8] sm:$0xf]
    %v5230 = vld [vmem:[%s4986 + $0x3cc] sm:$0xf]
    %v5231 = vld [vmem:[%s4986 + $0x3d0] sm:$0xf]
    %v5232 = vld [vmem:[%s4986 + $0x3d4] sm:$0xf]
    %v5233 = vld [vmem:[%s4986 + $0x3d8] sm:$0xf]
    %v5234 = vld [vmem:[%s4986 + $0x3dc] sm:$0xf]
    %v5235 = vld [vmem:[%s4986 + $0x3e0] sm:$0xf]
    %v5236 = vld [vmem:[%s4986 + $0x3e4] sm:$0xf]
    %v5237 = vld [vmem:[%s4986 + $0x3e8] sm:$0xf]
    %v5238 = vld [vmem:[%s4986 + $0x3ec] sm:$0xf]
    %v5239 = vld [vmem:[%s4986 + $0x3f0] sm:$0xf]
    %v5240 = vld [vmem:[%s4986 + $0x3f4] sm:$0xf]
    %v5241 = vld [vmem:[%s4986 + $0x3f8] sm:$0xf]
    %v5242 = vld [vmem:[%s4986 + $0x3fc] sm:$0xf]
    %s5243 = scalar_lea.vmem %s16, 1
    %v5244 = vld [vmem:[%s5243] sm:$0x1]
    %v5246 = vperm.slane %v5244, 0
    %v5504 = vunpack.c.l.b16 %v4987
    %v5505 = vunpack.c.l.b16 %v4988
    %v5506 = vunpack.c.l.b16 %v4989
    %v5507 = vunpack.c.l.b16 %v4990
    %v5508 = vunpack.c.l.b16 %v4991
    %v5509 = vunpack.c.l.b16 %v4992
    %v5510 = vunpack.c.l.b16 %v4993
    %v5511 = vunpack.c.l.b16 %v4994
    %v5512 = vunpack.c.l.b16 %v4995
    %v5513 = vunpack.c.l.b16 %v4996
    %v5514 = vunpack.c.l.b16 %v4997
    %v5515 = vunpack.c.l.b16 %v4998
    %v5516 = vunpack.c.l.b16 %v4999
    %v5517 = vunpack.c.l.b16 %v5000
    %v5518 = vunpack.c.l.b16 %v5001
    %v5519 = vunpack.c.l.b16 %v5002
    %v5520 = vunpack.c.l.b16 %v5003
    %v5521 = vunpack.c.l.b16 %v5004
    %v5522 = vunpack.c.l.b16 %v5005
    %v5523 = vunpack.c.l.b16 %v5006
    %v5524 = vunpack.c.l.b16 %v5007
    %v5525 = vunpack.c.l.b16 %v5008
    %v5526 = vunpack.c.l.b16 %v5009
    %v5527 = vunpack.c.l.b16 %v5010
    %v5528 = vunpack.c.l.b16 %v5011
    %v5529 = vunpack.c.l.b16 %v5012
    %v5530 = vunpack.c.l.b16 %v5013
    %v5531 = vunpack.c.l.b16 %v5014
    %v5532 = vunpack.c.l.b16 %v5015
    %v5533 = vunpack.c.l.b16 %v5016
    %v5534 = vunpack.c.l.b16 %v5017
    %v5535 = vunpack.c.l.b16 %v5018
    %v5536 = vunpack.c.l.b16 %v5019
    %v5537 = vunpack.c.l.b16 %v5020
    %v5538 = vunpack.c.l.b16 %v5021
    %v5539 = vunpack.c.l.b16 %v5022
    %v5540 = vunpack.c.l.b16 %v5023
    %v5541 = vunpack.c.l.b16 %v5024
    %v5542 = vunpack.c.l.b16 %v5025
    %v5543 = vunpack.c.l.b16 %v5026
    %v5544 = vunpack.c.l.b16 %v5027
    %v5545 = vunpack.c.l.b16 %v5028
    %v5546 = vunpack.c.l.b16 %v5029
    %v5547 = vunpack.c.l.b16 %v5030
    %v5548 = vunpack.c.l.b16 %v5031
    %v5549 = vunpack.c.l.b16 %v5032
    %v5550 = vunpack.c.l.b16 %v5033
    %v5551 = vunpack.c.l.b16 %v5034
    %v5552 = vunpack.c.l.b16 %v5035
    %v5553 = vunpack.c.l.b16 %v5036
    %v5554 = vunpack.c.l.b16 %v5037
    %v5555 = vunpack.c.l.b16 %v5038
    %v5556 = vunpack.c.l.b16 %v5039
    %v5557 = vunpack.c.l.b16 %v5040
    %v5558 = vunpack.c.l.b16 %v5041
    %v5559 = vunpack.c.l.b16 %v5042
    %v5560 = vunpack.c.l.b16 %v5043
    %v5561 = vunpack.c.l.b16 %v5044
    %v5562 = vunpack.c.l.b16 %v5045
    %v5563 = vunpack.c.l.b16 %v5046
    %v5564 = vunpack.c.l.b16 %v5047
    %v5565 = vunpack.c.l.b16 %v5048
    %v5566 = vunpack.c.l.b16 %v5049
    %v5567 = vunpack.c.l.b16 %v5050
    %v5568 = vunpack.c.l.b16 %v5051
    %v5569 = vunpack.c.l.b16 %v5052
    %v5570 = vunpack.c.l.b16 %v5053
    %v5571 = vunpack.c.l.b16 %v5054
    %v5572 = vunpack.c.l.b16 %v5055
    %v5573 = vunpack.c.l.b16 %v5056
    %v5574 = vunpack.c.l.b16 %v5057
    %v5575 = vunpack.c.l.b16 %v5058
    %v5576 = vunpack.c.l.b16 %v5059
    %v5577 = vunpack.c.l.b16 %v5060
    %v5578 = vunpack.c.l.b16 %v5061
    %v5579 = vunpack.c.l.b16 %v5062
    %v5580 = vunpack.c.l.b16 %v5063
    %v5581 = vunpack.c.l.b16 %v5064
    %v5582 = vunpack.c.l.b16 %v5065
    %v5583 = vunpack.c.l.b16 %v5066
    %v5584 = vunpack.c.l.b16 %v5067
    %v5585 = vunpack.c.l.b16 %v5068
    %v5586 = vunpack.c.l.b16 %v5069
    %v5587 = vunpack.c.l.b16 %v5070
    %v5588 = vunpack.c.l.b16 %v5071
    %v5589 = vunpack.c.l.b16 %v5072
    %v5590 = vunpack.c.l.b16 %v5073
    %v5591 = vunpack.c.l.b16 %v5074
    %v5592 = vunpack.c.l.b16 %v5075
    %v5593 = vunpack.c.l.b16 %v5076
    %v5594 = vunpack.c.l.b16 %v5077
    %v5595 = vunpack.c.l.b16 %v5078
    %v5596 = vunpack.c.l.b16 %v5079
    %v5597 = vunpack.c.l.b16 %v5080
    %v5598 = vunpack.c.l.b16 %v5081
    %v5599 = vunpack.c.l.b16 %v5082
    %v5600 = vunpack.c.l.b16 %v5083
    %v5601 = vunpack.c.l.b16 %v5084
    %v5602 = vunpack.c.l.b16 %v5085
    %v5603 = vunpack.c.l.b16 %v5086
    %v5604 = vunpack.c.l.b16 %v5087
    %v5605 = vunpack.c.l.b16 %v5088
    %v5606 = vunpack.c.l.b16 %v5089
    %v5607 = vunpack.c.l.b16 %v5090
    %v5608 = vunpack.c.l.b16 %v5091
    %v5609 = vunpack.c.l.b16 %v5092
    %v5610 = vunpack.c.l.b16 %v5093
    %v5611 = vunpack.c.l.b16 %v5094
    %v5612 = vunpack.c.l.b16 %v5095
    %v5613 = vunpack.c.l.b16 %v5096
    %v5614 = vunpack.c.l.b16 %v5097
    %v5615 = vunpack.c.l.b16 %v5098
    %v5616 = vunpack.c.l.b16 %v5099
    %v5617 = vunpack.c.l.b16 %v5100
    %v5618 = vunpack.c.l.b16 %v5101
    %v5619 = vunpack.c.l.b16 %v5102
    %v5620 = vunpack.c.l.b16 %v5103
    %v5621 = vunpack.c.l.b16 %v5104
    %v5622 = vunpack.c.l.b16 %v5105
    %v5623 = vunpack.c.l.b16 %v5106
    %v5624 = vunpack.c.l.b16 %v5107
    %v5625 = vunpack.c.l.b16 %v5108
    %v5626 = vunpack.c.l.b16 %v5109
    %v5627 = vunpack.c.l.b16 %v5110
    %v5628 = vunpack.c.l.b16 %v5111
    %v5629 = vunpack.c.l.b16 %v5112
    %v5630 = vunpack.c.l.b16 %v5113
    %v5631 = vunpack.c.l.b16 %v5114
    %v5632 = vunpack.c.l.b16 %v5115
    %v5633 = vunpack.c.l.b16 %v5116
    %v5634 = vunpack.c.l.b16 %v5117
    %v5635 = vunpack.c.l.b16 %v5118
    %v5636 = vunpack.c.l.b16 %v5119
    %v5637 = vunpack.c.l.b16 %v5120
    %v5638 = vunpack.c.l.b16 %v5121
    %v5639 = vunpack.c.l.b16 %v5122
    %v5640 = vunpack.c.l.b16 %v5123
    %v5641 = vunpack.c.l.b16 %v5124
    %v5642 = vunpack.c.l.b16 %v5125
    %v5643 = vunpack.c.l.b16 %v5126
    %v5644 = vunpack.c.l.b16 %v5127
    %v5645 = vunpack.c.l.b16 %v5128
    %v5646 = vunpack.c.l.b16 %v5129
    %v5647 = vunpack.c.l.b16 %v5130
    %v5648 = vunpack.c.l.b16 %v5131
    %v5649 = vunpack.c.l.b16 %v5132
    %v5650 = vunpack.c.l.b16 %v5133
    %v5651 = vunpack.c.l.b16 %v5134
    %v5652 = vunpack.c.l.b16 %v5135
    %v5653 = vunpack.c.l.b16 %v5136
    %v5654 = vunpack.c.l.b16 %v5137
    %v5655 = vunpack.c.l.b16 %v5138
    %v5656 = vunpack.c.l.b16 %v5139
    %v5657 = vunpack.c.l.b16 %v5140
    %v5658 = vunpack.c.l.b16 %v5141
    %v5659 = vunpack.c.l.b16 %v5142
    %v5660 = vunpack.c.l.b16 %v5143
    %v5661 = vunpack.c.l.b16 %v5144
    %v5662 = vunpack.c.l.b16 %v5145
    %v5663 = vunpack.c.l.b16 %v5146
    %v5664 = vunpack.c.l.b16 %v5147
    %v5665 = vunpack.c.l.b16 %v5148
    %v5666 = vunpack.c.l.b16 %v5149
    %v5667 = vunpack.c.l.b16 %v5150
    %v5668 = vunpack.c.l.b16 %v5151
    %v5669 = vunpack.c.l.b16 %v5152
    %v5670 = vunpack.c.l.b16 %v5153
    %v5671 = vunpack.c.l.b16 %v5154
    %v5672 = vunpack.c.l.b16 %v5155
    %v5673 = vunpack.c.l.b16 %v5156
    %v5674 = vunpack.c.l.b16 %v5157
    %v5675 = vunpack.c.l.b16 %v5158
    %v5676 = vunpack.c.l.b16 %v5159
    %v5677 = vunpack.c.l.b16 %v5160
    %v5678 = vunpack.c.l.b16 %v5161
    %v5679 = vunpack.c.l.b16 %v5162
    %v5680 = vunpack.c.l.b16 %v5163
    %v5681 = vunpack.c.l.b16 %v5164
    %v5682 = vunpack.c.l.b16 %v5165
    %v5683 = vunpack.c.l.b16 %v5166
    %v5684 = vunpack.c.l.b16 %v5167
    %v5685 = vunpack.c.l.b16 %v5168
    %v5686 = vunpack.c.l.b16 %v5169
    %v5687 = vunpack.c.l.b16 %v5170
    %v5688 = vunpack.c.l.b16 %v5171
    %v5689 = vunpack.c.l.b16 %v5172
    %v5690 = vunpack.c.l.b16 %v5173
    %v5691 = vunpack.c.l.b16 %v5174
    %v5692 = vunpack.c.l.b16 %v5175
    %v5693 = vunpack.c.l.b16 %v5176
    %v5694 = vunpack.c.l.b16 %v5177
    %v5695 = vunpack.c.l.b16 %v5178
    %v5696 = vunpack.c.l.b16 %v5179
    %v5697 = vunpack.c.l.b16 %v5180
    %v5698 = vunpack.c.l.b16 %v5181
    %v5699 = vunpack.c.l.b16 %v5182
    %v5700 = vunpack.c.l.b16 %v5183
    %v5701 = vunpack.c.l.b16 %v5184
    %v5702 = vunpack.c.l.b16 %v5185
    %v5703 = vunpack.c.l.b16 %v5186
    %v5704 = vunpack.c.l.b16 %v5187
    %v5705 = vunpack.c.l.b16 %v5188
    %v5706 = vunpack.c.l.b16 %v5189
    %v5707 = vunpack.c.l.b16 %v5190
    %v5708 = vunpack.c.l.b16 %v5191
    %v5709 = vunpack.c.l.b16 %v5192
    %v5710 = vunpack.c.l.b16 %v5193
    %v5711 = vunpack.c.l.b16 %v5194
    %v5712 = vunpack.c.l.b16 %v5195
    %v5713 = vunpack.c.l.b16 %v5196
    %v5714 = vunpack.c.l.b16 %v5197
    %v5715 = vunpack.c.l.b16 %v5198
    %v5716 = vunpack.c.l.b16 %v5199
    %v5717 = vunpack.c.l.b16 %v5200
    %v5718 = vunpack.c.l.b16 %v5201
    %v5719 = vunpack.c.l.b16 %v5202
    %v5720 = vunpack.c.l.b16 %v5203
    %v5721 = vunpack.c.l.b16 %v5204
    %v5722 = vunpack.c.l.b16 %v5205
    %v5723 = vunpack.c.l.b16 %v5206
    %v5724 = vunpack.c.l.b16 %v5207
    %v5725 = vunpack.c.l.b16 %v5208
    %v5726 = vunpack.c.l.b16 %v5209
    %v5727 = vunpack.c.l.b16 %v5210
    %v5728 = vunpack.c.l.b16 %v5211
    %v5729 = vunpack.c.l.b16 %v5212
    %v5730 = vunpack.c.l.b16 %v5213
    %v5731 = vunpack.c.l.b16 %v5214
    %v5732 = vunpack.c.l.b16 %v5215
    %v5733 = vunpack.c.l.b16 %v5216
    %v5734 = vunpack.c.l.b16 %v5217
    %v5735 = vunpack.c.l.b16 %v5218
    %v5736 = vunpack.c.l.b16 %v5219
    %v5737 = vunpack.c.l.b16 %v5220
    %v5738 = vunpack.c.l.b16 %v5221
    %v5739 = vunpack.c.l.b16 %v5222
    %v5740 = vunpack.c.l.b16 %v5223
    %v5741 = vunpack.c.l.b16 %v5224
    %v5742 = vunpack.c.l.b16 %v5225
    %v5743 = vunpack.c.l.b16 %v5226
    %v5744 = vunpack.c.l.b16 %v5227
    %v5745 = vunpack.c.l.b16 %v5228
    %v5746 = vunpack.c.l.b16 %v5229
    %v5747 = vunpack.c.l.b16 %v5230
    %v5748 = vunpack.c.l.b16 %v5231
    %v5749 = vunpack.c.l.b16 %v5232
    %v5750 = vunpack.c.l.b16 %v5233
    %v5751 = vunpack.c.l.b16 %v5234
    %v5752 = vunpack.c.l.b16 %v5235
    %v5753 = vunpack.c.l.b16 %v5236
    %v5754 = vunpack.c.l.b16 %v5237
    %v5755 = vunpack.c.l.b16 %v5238
    %v5756 = vunpack.c.l.b16 %v5239
    %v5757 = vunpack.c.l.b16 %v5240
    %v5758 = vunpack.c.l.b16 %v5241
    %v5759 = vunpack.c.l.b16 %v5242
    %v5760 = vpack.c.b16 %v5505, %v5504
    %v5761 = vpack.c.b16 %v5507, %v5506
    %v5762 = vpack.c.b16 %v5509, %v5508
    %v5763 = vpack.c.b16 %v5511, %v5510
    %v5764 = vpack.c.b16 %v5513, %v5512
    %v5765 = vpack.c.b16 %v5515, %v5514
    %v5766 = vpack.c.b16 %v5517, %v5516
    %v5767 = vpack.c.b16 %v5519, %v5518
    %v5768 = vpack.c.b16 %v5521, %v5520
    %v5769 = vpack.c.b16 %v5523, %v5522
    %v5770 = vpack.c.b16 %v5525, %v5524
    %v5771 = vpack.c.b16 %v5527, %v5526
    %v5772 = vpack.c.b16 %v5529, %v5528
    %v5773 = vpack.c.b16 %v5531, %v5530
    %v5774 = vpack.c.b16 %v5533, %v5532
    %v5775 = vpack.c.b16 %v5535, %v5534
    %v5776 = vpack.c.b16 %v5537, %v5536
    %v5777 = vpack.c.b16 %v5539, %v5538
    %v5778 = vpack.c.b16 %v5541, %v5540
    %v5779 = vpack.c.b16 %v5543, %v5542
    %v5780 = vpack.c.b16 %v5545, %v5544
    %v5781 = vpack.c.b16 %v5547, %v5546
    %v5782 = vpack.c.b16 %v5549, %v5548
    %v5783 = vpack.c.b16 %v5551, %v5550
    %v5784 = vpack.c.b16 %v5553, %v5552
    %v5785 = vpack.c.b16 %v5555, %v5554
    %v5786 = vpack.c.b16 %v5557, %v5556
    %v5787 = vpack.c.b16 %v5559, %v5558
    %v5788 = vpack.c.b16 %v5561, %v5560
    %v5789 = vpack.c.b16 %v5563, %v5562
    %v5790 = vpack.c.b16 %v5565, %v5564
    %v5791 = vpack.c.b16 %v5567, %v5566
    %v5792 = vpack.c.b16 %v5569, %v5568
    %v5793 = vpack.c.b16 %v5571, %v5570
    %v5794 = vpack.c.b16 %v5573, %v5572
    %v5795 = vpack.c.b16 %v5575, %v5574
    %v5796 = vpack.c.b16 %v5577, %v5576
    %v5797 = vpack.c.b16 %v5579, %v5578
    %v5798 = vpack.c.b16 %v5581, %v5580
    %v5799 = vpack.c.b16 %v5583, %v5582
    %v5800 = vpack.c.b16 %v5585, %v5584
    %v5801 = vpack.c.b16 %v5587, %v5586
    %v5802 = vpack.c.b16 %v5589, %v5588
    %v5803 = vpack.c.b16 %v5591, %v5590
    %v5804 = vpack.c.b16 %v5593, %v5592
    %v5805 = vpack.c.b16 %v5595, %v5594
    %v5806 = vpack.c.b16 %v5597, %v5596
    %v5807 = vpack.c.b16 %v5599, %v5598
    %v5808 = vpack.c.b16 %v5601, %v5600
    %v5809 = vpack.c.b16 %v5603, %v5602
    %v5810 = vpack.c.b16 %v5605, %v5604
    %v5811 = vpack.c.b16 %v5607, %v5606
    %v5812 = vpack.c.b16 %v5609, %v5608
    %v5813 = vpack.c.b16 %v5611, %v5610
    %v5814 = vpack.c.b16 %v5613, %v5612
    %v5815 = vpack.c.b16 %v5615, %v5614
    %v5816 = vpack.c.b16 %v5617, %v5616
    %v5817 = vpack.c.b16 %v5619, %v5618
    %v5818 = vpack.c.b16 %v5621, %v5620
    %v5819 = vpack.c.b16 %v5623, %v5622
    %v5820 = vpack.c.b16 %v5625, %v5624
    %v5821 = vpack.c.b16 %v5627, %v5626
    %v5822 = vpack.c.b16 %v5629, %v5628
    %v5823 = vpack.c.b16 %v5631, %v5630
    %v5824 = vpack.c.b16 %v5633, %v5632
    %v5825 = vpack.c.b16 %v5635, %v5634
    %v5826 = vpack.c.b16 %v5637, %v5636
    %v5827 = vpack.c.b16 %v5639, %v5638
    %v5828 = vpack.c.b16 %v5641, %v5640
    %v5829 = vpack.c.b16 %v5643, %v5642
    %v5830 = vpack.c.b16 %v5645, %v5644
    %v5831 = vpack.c.b16 %v5647, %v5646
    %v5832 = vpack.c.b16 %v5649, %v5648
    %v5833 = vpack.c.b16 %v5651, %v5650
    %v5834 = vpack.c.b16 %v5653, %v5652
    %v5835 = vpack.c.b16 %v5655, %v5654
    %v5836 = vpack.c.b16 %v5657, %v5656
    %v5837 = vpack.c.b16 %v5659, %v5658
    %v5838 = vpack.c.b16 %v5661, %v5660
    %v5839 = vpack.c.b16 %v5663, %v5662
    %v5840 = vpack.c.b16 %v5665, %v5664
    %v5841 = vpack.c.b16 %v5667, %v5666
    %v5842 = vpack.c.b16 %v5669, %v5668
    %v5843 = vpack.c.b16 %v5671, %v5670
    %v5844 = vpack.c.b16 %v5673, %v5672
    %v5845 = vpack.c.b16 %v5675, %v5674
    %v5846 = vpack.c.b16 %v5677, %v5676
    %v5847 = vpack.c.b16 %v5679, %v5678
    %v5848 = vpack.c.b16 %v5681, %v5680
    %v5849 = vpack.c.b16 %v5683, %v5682
    %v5850 = vpack.c.b16 %v5685, %v5684
    %v5851 = vpack.c.b16 %v5687, %v5686
    %v5852 = vpack.c.b16 %v5689, %v5688
    %v5853 = vpack.c.b16 %v5691, %v5690
    %v5854 = vpack.c.b16 %v5693, %v5692
    %v5855 = vpack.c.b16 %v5695, %v5694
    %v5856 = vpack.c.b16 %v5697, %v5696
    %v5857 = vpack.c.b16 %v5699, %v5698
    %v5858 = vpack.c.b16 %v5701, %v5700
    %v5859 = vpack.c.b16 %v5703, %v5702
    %v5860 = vpack.c.b16 %v5705, %v5704
    %v5861 = vpack.c.b16 %v5707, %v5706
    %v5862 = vpack.c.b16 %v5709, %v5708
    %v5863 = vpack.c.b16 %v5711, %v5710
    %v5864 = vpack.c.b16 %v5713, %v5712
    %v5865 = vpack.c.b16 %v5715, %v5714
    %v5866 = vpack.c.b16 %v5717, %v5716
    %v5867 = vpack.c.b16 %v5719, %v5718
    %v5868 = vpack.c.b16 %v5721, %v5720
    %v5869 = vpack.c.b16 %v5723, %v5722
    %v5870 = vpack.c.b16 %v5725, %v5724
    %v5871 = vpack.c.b16 %v5727, %v5726
    %v5872 = vpack.c.b16 %v5729, %v5728
    %v5873 = vpack.c.b16 %v5731, %v5730
    %v5874 = vpack.c.b16 %v5733, %v5732
    %v5875 = vpack.c.b16 %v5735, %v5734
    %v5876 = vpack.c.b16 %v5737, %v5736
    %v5877 = vpack.c.b16 %v5739, %v5738
    %v5878 = vpack.c.b16 %v5741, %v5740
    %v5879 = vpack.c.b16 %v5743, %v5742
    %v5880 = vpack.c.b16 %v5745, %v5744
    %v5881 = vpack.c.b16 %v5747, %v5746
    %v5882 = vpack.c.b16 %v5749, %v5748
    %v5883 = vpack.c.b16 %v5751, %v5750
    %v5884 = vpack.c.b16 %v5753, %v5752
    %v5885 = vpack.c.b16 %v5755, %v5754
    %v5886 = vpack.c.b16 %v5757, %v5756
    %v5887 = vpack.c.b16 %v5759, %v5758
    %6016 = vmatpush.bf16.msra.mxu0 %v5767
    %6017 = vmatpush.bf16.msra.mxu0 %v5766
    %6018 = vmatpush.bf16.msra.mxu0 %v5765
    %6019 = vmatpush.bf16.msra.mxu0 %v5764
    %6020 = vmatpush.bf16.msra.mxu0 %v5763
    %6021 = vmatpush.bf16.msra.mxu0 %v5762
    %6022 = vmatpush.bf16.msra.mxu0 %v5761
    %6023 = vmatpush.bf16.msra.mxu0 %v5760
    %6024 = vmatmul.bf16.gmra.mxu0 %v4970
    %v6025 = vpop.f32.mrf.mxu0
    %v6026 = vadd.f32 %v5246, %v6025
    %v6027 = vpop.f32.mrf.mxu0
    %v6028 = vadd.f32 %v5246, %v6027
    %6029 = vdwg.mxu0
    %6030 = vmatpush.bf16.msra.mxu0 %v5775
    %6031 = vmatpush.bf16.msra.mxu0 %v5774
    %6032 = vmatpush.bf16.msra.mxu0 %v5773
    %6033 = vmatpush.bf16.msra.mxu0 %v5772
    %6034 = vmatpush.bf16.msra.mxu0 %v5771
    %6035 = vmatpush.bf16.msra.mxu0 %v5770
    %6036 = vmatpush.bf16.msra.mxu0 %v5769
    %6037 = vmatpush.bf16.msra.mxu0 %v5768
    %6038 = vmatmul.bf16.gmra.mxu0 %v4971
    %v6039 = vpop.f32.mrf.mxu0
    %v6040 = vadd.f32 %v6026, %v6039
    %v6041 = vpop.f32.mrf.mxu0
    %v6042 = vadd.f32 %v6028, %v6041
    %6043 = vdwg.mxu0
    %6044 = vmatpush.bf16.msra.mxu0 %v5783
    %6045 = vmatpush.bf16.msra.mxu0 %v5782
    %6046 = vmatpush.bf16.msra.mxu0 %v5781
    %6047 = vmatpush.bf16.msra.mxu0 %v5780
    %6048 = vmatpush.bf16.msra.mxu0 %v5779
    %6049 = vmatpush.bf16.msra.mxu0 %v5778
    %6050 = vmatpush.bf16.msra.mxu0 %v5777
    %6051 = vmatpush.bf16.msra.mxu0 %v5776
    %6052 = vmatmul.bf16.gmra.mxu0 %v4972
    %v6053 = vpop.f32.mrf.mxu0
    %v6054 = vadd.f32 %v6040, %v6053
    %v6055 = vpop.f32.mrf.mxu0
    %v6056 = vadd.f32 %v6042, %v6055
    %6057 = vdwg.mxu0
    %6058 = vmatpush.bf16.msra.mxu0 %v5791
    %6059 = vmatpush.bf16.msra.mxu0 %v5790
    %6060 = vmatpush.bf16.msra.mxu0 %v5789
    %6061 = vmatpush.bf16.msra.mxu0 %v5788
    %6062 = vmatpush.bf16.msra.mxu0 %v5787
    %6063 = vmatpush.bf16.msra.mxu0 %v5786
    %6064 = vmatpush.bf16.msra.mxu0 %v5785
    %6065 = vmatpush.bf16.msra.mxu0 %v5784
    %6066 = vmatmul.bf16.gmra.mxu0 %v4973
    %v6067 = vpop.f32.mrf.mxu0
    %v6068 = vadd.f32 %v6054, %v6067
    %v6069 = vpop.f32.mrf.mxu0
    %v6070 = vadd.f32 %v6056, %v6069
    %6071 = vdwg.mxu0
    %6072 = vmatpush.bf16.msra.mxu0 %v5799
    %6073 = vmatpush.bf16.msra.mxu0 %v5798
    %6074 = vmatpush.bf16.msra.mxu0 %v5797
    %6075 = vmatpush.bf16.msra.mxu0 %v5796
    %6076 = vmatpush.bf16.msra.mxu0 %v5795
    %6077 = vmatpush.bf16.msra.mxu0 %v5794
    %6078 = vmatpush.bf16.msra.mxu0 %v5793
    %6079 = vmatpush.bf16.msra.mxu0 %v5792
    %6080 = vmatmul.bf16.gmra.mxu0 %v4974
    %v6081 = vpop.f32.mrf.mxu0
    %v6082 = vadd.f32 %v6068, %v6081
    %v6083 = vpop.f32.mrf.mxu0
    %v6084 = vadd.f32 %v6070, %v6083
    %6085 = vdwg.mxu0
    %6086 = vmatpush.bf16.msra.mxu0 %v5807
    %6087 = vmatpush.bf16.msra.mxu0 %v5806
    %6088 = vmatpush.bf16.msra.mxu0 %v5805
    %6089 = vmatpush.bf16.msra.mxu0 %v5804
    %6090 = vmatpush.bf16.msra.mxu0 %v5803
    %6091 = vmatpush.bf16.msra.mxu0 %v5802
    %6092 = vmatpush.bf16.msra.mxu0 %v5801
    %6093 = vmatpush.bf16.msra.mxu0 %v5800
    %6094 = vmatmul.bf16.gmra.mxu0 %v4975
    %v6095 = vpop.f32.mrf.mxu0
    %v6096 = vadd.f32 %v6082, %v6095
    %v6097 = vpop.f32.mrf.mxu0
    %v6098 = vadd.f32 %v6084, %v6097
    %6099 = vdwg.mxu0
    %6100 = vmatpush.bf16.msra.mxu0 %v5815
    %6101 = vmatpush.bf16.msra.mxu0 %v5814
    %6102 = vmatpush.bf16.msra.mxu0 %v5813
    %6103 = vmatpush.bf16.msra.mxu0 %v5812
    %6104 = vmatpush.bf16.msra.mxu0 %v5811
    %6105 = vmatpush.bf16.msra.mxu0 %v5810
    %6106 = vmatpush.bf16.msra.mxu0 %v5809
    %6107 = vmatpush.bf16.msra.mxu0 %v5808
    %6108 = vmatmul.bf16.gmra.mxu0 %v4976
    %v6109 = vpop.f32.mrf.mxu0
    %v6110 = vadd.f32 %v6096, %v6109
    %v6111 = vpop.f32.mrf.mxu0
    %v6112 = vadd.f32 %v6098, %v6111
    %6113 = vdwg.mxu0
    %6114 = vmatpush.bf16.msra.mxu0 %v5823
    %6115 = vmatpush.bf16.msra.mxu0 %v5822
    %6116 = vmatpush.bf16.msra.mxu0 %v5821
    %6117 = vmatpush.bf16.msra.mxu0 %v5820
    %6118 = vmatpush.bf16.msra.mxu0 %v5819
    %6119 = vmatpush.bf16.msra.mxu0 %v5818
    %6120 = vmatpush.bf16.msra.mxu0 %v5817
    %6121 = vmatpush.bf16.msra.mxu0 %v5816
    %6122 = vmatmul.bf16.gmra.mxu0 %v4977
    %v6123 = vpop.f32.mrf.mxu0
    %v6124 = vadd.f32 %v6110, %v6123
    %v6125 = vpop.f32.mrf.mxu0
    %v6126 = vadd.f32 %v6112, %v6125
    %6127 = vdwg.mxu0
    %6128 = vmatpush.bf16.msra.mxu0 %v5831
    %6129 = vmatpush.bf16.msra.mxu0 %v5830
    %6130 = vmatpush.bf16.msra.mxu0 %v5829
    %6131 = vmatpush.bf16.msra.mxu0 %v5828
    %6132 = vmatpush.bf16.msra.mxu0 %v5827
    %6133 = vmatpush.bf16.msra.mxu0 %v5826
    %6134 = vmatpush.bf16.msra.mxu0 %v5825
    %6135 = vmatpush.bf16.msra.mxu0 %v5824
    %6136 = vmatmul.bf16.gmra.mxu0 %v4978
    %v6137 = vpop.f32.mrf.mxu0
    %v6138 = vadd.f32 %v6124, %v6137
    %v6139 = vpop.f32.mrf.mxu0
    %v6140 = vadd.f32 %v6126, %v6139
    %6141 = vdwg.mxu0
    %6142 = vmatpush.bf16.msra.mxu0 %v5839
    %6143 = vmatpush.bf16.msra.mxu0 %v5838
    %6144 = vmatpush.bf16.msra.mxu0 %v5837
    %6145 = vmatpush.bf16.msra.mxu0 %v5836
    %6146 = vmatpush.bf16.msra.mxu0 %v5835
    %6147 = vmatpush.bf16.msra.mxu0 %v5834
    %6148 = vmatpush.bf16.msra.mxu0 %v5833
    %6149 = vmatpush.bf16.msra.mxu0 %v5832
    %6150 = vmatmul.bf16.gmra.mxu0 %v4979
    %v6151 = vpop.f32.mrf.mxu0
    %v6152 = vadd.f32 %v6138, %v6151
    %v6153 = vpop.f32.mrf.mxu0
    %v6154 = vadd.f32 %v6140, %v6153
    %6155 = vdwg.mxu0
    %6156 = vmatpush.bf16.msra.mxu0 %v5847
    %6157 = vmatpush.bf16.msra.mxu0 %v5846
    %6158 = vmatpush.bf16.msra.mxu0 %v5845
    %6159 = vmatpush.bf16.msra.mxu0 %v5844
    %6160 = vmatpush.bf16.msra.mxu0 %v5843
    %6161 = vmatpush.bf16.msra.mxu0 %v5842
    %6162 = vmatpush.bf16.msra.mxu0 %v5841
    %6163 = vmatpush.bf16.msra.mxu0 %v5840
    %6164 = vmatmul.bf16.gmra.mxu0 %v4980
    %v6165 = vpop.f32.mrf.mxu0
    %v6166 = vadd.f32 %v6152, %v6165
    %v6167 = vpop.f32.mrf.mxu0
    %v6168 = vadd.f32 %v6154, %v6167
    %6169 = vdwg.mxu0
    %6170 = vmatpush.bf16.msra.mxu0 %v5855
    %6171 = vmatpush.bf16.msra.mxu0 %v5854
    %6172 = vmatpush.bf16.msra.mxu0 %v5853
    %6173 = vmatpush.bf16.msra.mxu0 %v5852
    %6174 = vmatpush.bf16.msra.mxu0 %v5851
    %6175 = vmatpush.bf16.msra.mxu0 %v5850
    %6176 = vmatpush.bf16.msra.mxu0 %v5849
    %6177 = vmatpush.bf16.msra.mxu0 %v5848
    %6178 = vmatmul.bf16.gmra.mxu0 %v4981
    %v6179 = vpop.f32.mrf.mxu0
    %v6180 = vadd.f32 %v6166, %v6179
    %v6181 = vpop.f32.mrf.mxu0
    %v6182 = vadd.f32 %v6168, %v6181
    %6183 = vdwg.mxu0
    %6184 = vmatpush.bf16.msra.mxu0 %v5863
    %6185 = vmatpush.bf16.msra.mxu0 %v5862
    %6186 = vmatpush.bf16.msra.mxu0 %v5861
    %6187 = vmatpush.bf16.msra.mxu0 %v5860
    %6188 = vmatpush.bf16.msra.mxu0 %v5859
    %6189 = vmatpush.bf16.msra.mxu0 %v5858
    %6190 = vmatpush.bf16.msra.mxu0 %v5857
    %6191 = vmatpush.bf16.msra.mxu0 %v5856
    %6192 = vmatmul.bf16.gmra.mxu0 %v4982
    %v6193 = vpop.f32.mrf.mxu0
    %v6194 = vadd.f32 %v6180, %v6193
    %v6195 = vpop.f32.mrf.mxu0
    %v6196 = vadd.f32 %v6182, %v6195
    %6197 = vdwg.mxu0
    %6198 = vmatpush.bf16.msra.mxu0 %v5871
    %6199 = vmatpush.bf16.msra.mxu0 %v5870
    %6200 = vmatpush.bf16.msra.mxu0 %v5869
    %6201 = vmatpush.bf16.msra.mxu0 %v5868
    %6202 = vmatpush.bf16.msra.mxu0 %v5867
    %6203 = vmatpush.bf16.msra.mxu0 %v5866
    %6204 = vmatpush.bf16.msra.mxu0 %v5865
    %6205 = vmatpush.bf16.msra.mxu0 %v5864
    %6206 = vmatmul.bf16.gmra.mxu0 %v4983
    %v6207 = vpop.f32.mrf.mxu0
    %v6208 = vadd.f32 %v6194, %v6207
    %v6209 = vpop.f32.mrf.mxu0
    %v6210 = vadd.f32 %v6196, %v6209
    %6211 = vdwg.mxu0
    %6212 = vmatpush.bf16.msra.mxu0 %v5879
    %6213 = vmatpush.bf16.msra.mxu0 %v5878
    %6214 = vmatpush.bf16.msra.mxu0 %v5877
    %6215 = vmatpush.bf16.msra.mxu0 %v5876
    %6216 = vmatpush.bf16.msra.mxu0 %v5875
    %6217 = vmatpush.bf16.msra.mxu0 %v5874
    %6218 = vmatpush.bf16.msra.mxu0 %v5873
    %6219 = vmatpush.bf16.msra.mxu0 %v5872
    %6220 = vmatmul.bf16.gmra.mxu0 %v4984
    %v6221 = vpop.f32.mrf.mxu0
    %v6222 = vadd.f32 %v6208, %v6221
    %v6223 = vpop.f32.mrf.mxu0
    %v6224 = vadd.f32 %v6210, %v6223
    %6225 = vdwg.mxu0
    %6226 = vmatpush.bf16.msra.mxu0 %v5887
    %6227 = vmatpush.bf16.msra.mxu0 %v5886
    %6228 = vmatpush.bf16.msra.mxu0 %v5885
    %6229 = vmatpush.bf16.msra.mxu0 %v5884
    %6230 = vmatpush.bf16.msra.mxu0 %v5883
    %6231 = vmatpush.bf16.msra.mxu0 %v5882
    %6232 = vmatpush.bf16.msra.mxu0 %v5881
    %6233 = vmatpush.bf16.msra.mxu0 %v5880
    %6234 = vmatmul.bf16.gmra.mxu0 %v4985
    %v6235 = vpop.f32.mrf.mxu0
    %v6236 = vadd.f32 %v6222, %v6235
    %v6237 = vpop.f32.mrf.mxu0
    %v6238 = vadd.f32 %v6224, %v6237
    %6239 = vdwg.mxu0
    %v6240 = vadd.f32 %v4286, %v6236
    %v6241 = vadd.f32 %v4287, %v6238
    %s6242 = scalar_lea.vmem %s17, 1
    %v6243 = vld [vmem:[%s6242] sm:$0x1]
    %s6244 = scalar_lea.vmem %s18, 1
    %v6245 = vld [vmem:[%s6244] sm:$0x1]
    %v6246 = vsel %vm446, %v6240, 0.0
    %6247 = vadd.xlane.f32.xlu0 %v6246
    %v6248 = vpop.xlane.xlu0 %6247
    %v6249 = vsel %vm446, %v6241, 0.0
    %6250 = vadd.xlane.f32.xlu0 %v6249
    %v6251 = vpop.xlane.xlu0 %6250
    %v6252 = vmul.f32 %v6248, %v1407
    %v6253 = vmul.f32 %v6251, %v1407
    %v6254 = vsub.f32 %v6240, %v6252
    %v6255 = vsub.f32 %v6241, %v6253
    %v6256 = vmul.f32 %v6254, %v6254
    %v6257 = vmul.f32 %v6255, %v6255
    %v6258 = vsel %vm446, %v6256, 0.0
    %6259 = vadd.xlane.f32.xlu0 %v6258
    %v6260 = vpop.xlane.xlu0 %6259
    %v6261 = vsel %vm446, %v6257, 0.0
    %6262 = vadd.xlane.f32.xlu0 %v6261
    %v6263 = vpop.xlane.xlu0 %6262
    %v6264 = vmul.f32 %v6260, %v1407
    %v6265 = vmul.f32 %v6263, %v1407
    %v6266 = vadd.f32 %v6264, 1e-05
    %v6267 = vadd.f32 %v6265, 1e-05
    %v6268 = vrsqrt.pop %v6266
    %v6269 = vmul.f32 %v6268, %v6266
    %v6270 = vmul.f32 %v6269, %v6268
    %v6271 = vmul.f32 0.5, %v6270
    %v6272 = vsub.f32 1.5, %v6271
    %v6273 = vmul.f32 %v6268, %v6272
    %vm6274 = vweird.f32 %v6266
    %vm6275 = vweird.f32 %v6268
    %vm6276 = vmor %vm6274, %vm6275
    %v6277 = vsel %vm6276, %v6268, %v6273
    %v6278 = vrsqrt.pop %v6267
    %v6279 = vmul.f32 %v6278, %v6267
    %v6280 = vmul.f32 %v6279, %v6278
    %v6281 = vmul.f32 0.5, %v6280
    %v6282 = vsub.f32 1.5, %v6281
    %v6283 = vmul.f32 %v6278, %v6282
    %vm6284 = vweird.f32 %v6267
    %vm6285 = vweird.f32 %v6278
    %vm6286 = vmor %vm6284, %vm6285
    %v6287 = vsel %vm6286, %v6278, %v6283
    %v6288 = vmul.f32 %v6254, %v6277
    %v6289 = vmul.f32 %v6255, %v6287
    %v6291 = vperm.slane %v6243, 0
    %v6293 = vmul.f32 %v6288, %v6291
    %v6294 = vmul.f32 %v6289, %v6291
    %v6296 = vperm.slane %v6245, 0
    %v6298 = vadd.f32 %v6293, %v6296
    %v6299 = vadd.f32 %v6294, %v6296
    %v6300 = vsel %vm446, %v6298, 0.0
    %v6301 = vrot.slane %v6300, 4
    %v6302 = vadd.f32 %v6300, %v6301
    %v6303 = vrot.slane %v6302, 2
    %v6304 = vadd.f32 %v6302, %v6303
    %v6305 = vrot.slane %v6304, 1
    %v6306 = vadd.f32 %v6304, %v6305
    %v6307 = vsel %vm446, %v6299, 0.0
    %v6308 = vrot.slane %v6307, 4
    %v6309 = vadd.f32 %v6307, %v6308
    %v6310 = vrot.slane %v6309, 2
    %v6311 = vadd.f32 %v6309, %v6310
    %v6312 = vrot.slane %v6311, 1
    %v6313 = vadd.f32 %v6311, %v6312
    %v6314 = vmul.f32 %v6306, %v593
    %v6315 = vmul.f32 %v6313, %v593
    %v6316 = vld [vmem:[%s19] sm:$0xf]
    %v6317 = vld [vmem:[%s19 + $0x4] sm:$0xf]
    %v6318 = vld [vmem:[%s19 + $0x8] sm:$0xf]
    %v6319 = vld [vmem:[%s19 + $0xc] sm:$0xf]
    %v6320 = vld [vmem:[%s19 + $0x10] sm:$0xf]
    %v6321 = vld [vmem:[%s19 + $0x14] sm:$0xf]
    %v6322 = vld [vmem:[%s19 + $0x18] sm:$0xf]
    %v6323 = vld [vmem:[%s19 + $0x1c] sm:$0xf]
    %v6324 = vld [vmem:[%s19 + $0x20] sm:$0xf]
    %v6325 = vld [vmem:[%s19 + $0x24] sm:$0xf]
    %v6326 = vld [vmem:[%s19 + $0x28] sm:$0xf]
    %v6327 = vld [vmem:[%s19 + $0x2c] sm:$0xf]
    %v6328 = vld [vmem:[%s19 + $0x30] sm:$0xf]
    %v6329 = vld [vmem:[%s19 + $0x34] sm:$0xf]
    %v6330 = vld [vmem:[%s19 + $0x38] sm:$0xf]
    %v6331 = vld [vmem:[%s19 + $0x3c] sm:$0xf]
    %v6332 = vpack.c.bf16 %v594, %v594
    %v6333 = vpack.c.bf16 %v595, %v595
    %v6334 = vld [vmem:[%s20] sm:$0x1]
    %v6336 = vperm.slane %v6334, 0
    %v6340 = vunpack.c.l.b16 %v6332
    %v6341 = vunpack.c.l.b16 %v6333
    %vm6342 = vcmask 1041409
    %v6343 = vsel %vm6342, %v6341, %v6340
    %v6344 = vpack.c.b16 %v6343, %v6343
    %v6362 = vunpack.c.l.b16 %v6316
    %v6363 = vunpack.c.l.b16 %v6317
    %v6364 = vunpack.c.l.b16 %v6318
    %v6365 = vunpack.c.l.b16 %v6319
    %v6366 = vunpack.c.l.b16 %v6320
    %v6367 = vunpack.c.l.b16 %v6321
    %v6368 = vunpack.c.l.b16 %v6322
    %v6369 = vunpack.c.l.b16 %v6323
    %v6370 = vunpack.c.l.b16 %v6324
    %v6371 = vunpack.c.l.b16 %v6325
    %v6372 = vunpack.c.l.b16 %v6326
    %v6373 = vunpack.c.l.b16 %v6327
    %v6374 = vunpack.c.l.b16 %v6328
    %v6375 = vunpack.c.l.b16 %v6329
    %v6376 = vunpack.c.l.b16 %v6330
    %v6377 = vunpack.c.l.b16 %v6331
    %v6378 = vpack.c.b16 %v6363, %v6362
    %v6379 = vpack.c.b16 %v6365, %v6364
    %v6380 = vpack.c.b16 %v6367, %v6366
    %v6381 = vpack.c.b16 %v6369, %v6368
    %v6382 = vpack.c.b16 %v6371, %v6370
    %v6383 = vpack.c.b16 %v6373, %v6372
    %v6384 = vpack.c.b16 %v6375, %v6374
    %v6385 = vpack.c.b16 %v6377, %v6376
    %6394 = vmatpush.bf16.msra.mxu0 %v6385
    %6395 = vmatpush.bf16.msra.mxu0 %v6384
    %6396 = vmatpush.bf16.msra.mxu0 %v6383
    %6397 = vmatpush.bf16.msra.mxu0 %v6382
    %6398 = vmatpush.bf16.msra.mxu0 %v6381
    %6399 = vmatpush.bf16.msra.mxu0 %v6380
    %6400 = vmatpush.bf16.msra.mxu0 %v6379
    %6401 = vmatpush.bf16.msra.mxu0 %v6378
    %6402 = vmatmul.bf16.gmra.mxu0 %v6344
    %v6403 = vpop.f32.mrf.mxu0
    %v6404 = vadd.f32 %v6336, %v6403
    %v6405 = vpop.f32.mrf.mxu0
    %6406 = vdwg.mxu0
    %v6407 = vld [vmem:[%s21] sm:$0xf]
    %v6408 = vld [vmem:[%s21 + $0x4] sm:$0xf]
    %v6409 = vld [vmem:[%s21 + $0x8] sm:$0xf]
    %v6410 = vld [vmem:[%s21 + $0xc] sm:$0xf]
    %v6411 = vld [vmem:[%s21 + $0x10] sm:$0xf]
    %v6412 = vld [vmem:[%s21 + $0x14] sm:$0xf]
    %v6413 = vld [vmem:[%s21 + $0x18] sm:$0xf]
    %v6414 = vld [vmem:[%s21 + $0x1c] sm:$0xf]
    %v6415 = vpack.c.bf16 %v6314, %v6314
    %v6416 = vpack.c.bf16 %v6315, %v6315
    %v6417 = vld [vmem:[%s22] sm:$0x1]
    %v6419 = vperm.slane %v6417, 0
    %v6423 = vunpack.c.l.b16 %v6415
    %v6424 = vunpack.c.l.b16 %v6416
    %v6425 = vsel %vm6342, %v6424, %v6423
    %v6426 = vpack.c.b16 %v6425, %v6425
    %v6435 = vunpack.c.l.b16 %v6407
    %v6436 = vunpack.c.l.b16 %v6408
    %v6437 = vunpack.c.l.b16 %v6409
    %v6438 = vunpack.c.l.b16 %v6410
    %v6439 = vunpack.c.l.b16 %v6411
    %v6440 = vunpack.c.l.b16 %v6412
    %v6441 = vunpack.c.l.b16 %v6413
    %v6442 = vunpack.c.l.b16 %v6414
    %v6443 = vpack.c.b16 %v6436, %v6435
    %v6444 = vpack.c.b16 %v6438, %v6437
    %v6445 = vpack.c.b16 %v6440, %v6439
    %v6446 = vpack.c.b16 %v6442, %v6441
    %v6452 = vsel %vm446, %v6426, 0
    %6454 = vmatpush.bf16.msra.mxu0 0
    %6455 = vmatpush.bf16.msra.mxu0 0
    %6456 = vmatpush.bf16.msra.mxu0 0
    %6457 = vmatpush.bf16.msra.mxu0 0
    %6458 = vmatpush.bf16.msra.mxu0 %v6446
    %6459 = vmatpush.bf16.msra.mxu0 %v6445
    %6460 = vmatpush.bf16.msra.mxu0 %v6444
    %6461 = vmatpush.bf16.msra.mxu0 %v6443
    %6462 = vmatmul.bf16.gmra.mxu0 %v6452
    %v6463 = vpop.f32.mrf.mxu0
    %v6464 = vadd.f32 %v6419, %v6463
    %v6465 = vpop.f32.mrf.mxu0
    %6466 = vdwg.mxu0
    %v6467 = vld [vmem:[%s23] sm:$0xf]
    %v6468 = vld [vmem:[%s23 + $0x4] sm:$0xf]
    %v6469 = vld [vmem:[%s23 + $0x8] sm:$0xf]
    %v6470 = vld [vmem:[%s23 + $0xc] sm:$0xf]
    %v6471 = vld [vmem:[%s23 + $0x10] sm:$0xf]
    %v6472 = vld [vmem:[%s23 + $0x14] sm:$0xf]
    %v6473 = vld [vmem:[%s23 + $0x18] sm:$0xf]
    %v6474 = vld [vmem:[%s23 + $0x1c] sm:$0xf]
    %v6475 = vld [vmem:[%s23 + $0x20] sm:$0xf]
    %v6476 = vld [vmem:[%s23 + $0x24] sm:$0xf]
    %v6477 = vld [vmem:[%s23 + $0x28] sm:$0xf]
    %v6478 = vld [vmem:[%s23 + $0x2c] sm:$0xf]
    %v6479 = vld [vmem:[%s23 + $0x30] sm:$0xf]
    %v6480 = vld [vmem:[%s23 + $0x34] sm:$0xf]
    %v6481 = vld [vmem:[%s23 + $0x38] sm:$0xf]
    %v6482 = vld [vmem:[%s23 + $0x3c] sm:$0xf]
    %v6483 = vld [vmem:[%s23 + $0x40] sm:$0xf]
    %v6484 = vld [vmem:[%s23 + $0x44] sm:$0xf]
    %v6485 = vld [vmem:[%s23 + $0x48] sm:$0xf]
    %v6486 = vld [vmem:[%s23 + $0x4c] sm:$0xf]
    %v6487 = vld [vmem:[%s23 + $0x50] sm:$0xf]
    %v6488 = vld [vmem:[%s23 + $0x54] sm:$0xf]
    %v6489 = vld [vmem:[%s23 + $0x58] sm:$0xf]
    %v6490 = vld [vmem:[%s23 + $0x5c] sm:$0xf]
    %v6499 = vunpack.c.l.b16 %v6483
    %v6500 = vunpack.c.l.b16 %v6484
    %v6501 = vunpack.c.l.b16 %v6485
    %v6502 = vunpack.c.l.b16 %v6486
    %v6503 = vunpack.c.l.b16 %v6487
    %v6504 = vunpack.c.l.b16 %v6488
    %v6505 = vunpack.c.l.b16 %v6489
    %v6506 = vunpack.c.l.b16 %v6490
    %v6507 = vpack.c.b16 %v6500, %v6499
    %v6508 = vpack.c.b16 %v6502, %v6501
    %v6509 = vpack.c.b16 %v6504, %v6503
    %v6510 = vpack.c.b16 %v6506, %v6505
    %6515 = vmatpush.bf16.msra.mxu0 0
    %6516 = vmatpush.bf16.msra.mxu0 0
    %6517 = vmatpush.bf16.msra.mxu0 0
    %6518 = vmatpush.bf16.msra.mxu0 0
    %6519 = vmatpush.bf16.msra.mxu0 %v6510
    %6520 = vmatpush.bf16.msra.mxu0 %v6509
    %6521 = vmatpush.bf16.msra.mxu0 %v6508
    %6522 = vmatpush.bf16.msra.mxu0 %v6507
    %6523 = vmatmul.bf16.gmra.mxu0 %v6452
    %v6524 = vpop.f32.mrf.mxu0
    %v6525 = vadd.f32 0.0, %v6524
    %v6526 = vpop.f32.mrf.mxu0
    %6527 = vdwg.mxu0
    %v6544 = vunpack.c.l.b16 %v6467
    %v6545 = vunpack.c.l.b16 %v6468
    %v6546 = vunpack.c.l.b16 %v6469
    %v6547 = vunpack.c.l.b16 %v6470
    %v6548 = vunpack.c.l.b16 %v6471
    %v6549 = vunpack.c.l.b16 %v6472
    %v6550 = vunpack.c.l.b16 %v6473
    %v6551 = vunpack.c.l.b16 %v6474
    %v6552 = vunpack.c.l.b16 %v6475
    %v6553 = vunpack.c.l.b16 %v6476
    %v6554 = vunpack.c.l.b16 %v6477
    %v6555 = vunpack.c.l.b16 %v6478
    %v6556 = vunpack.c.l.b16 %v6479
    %v6557 = vunpack.c.l.b16 %v6480
    %v6558 = vunpack.c.l.b16 %v6481
    %v6559 = vunpack.c.l.b16 %v6482
    %v6560 = vpack.c.b16 %v6545, %v6544
    %v6561 = vpack.c.b16 %v6547, %v6546
    %v6562 = vpack.c.b16 %v6549, %v6548
    %v6563 = vpack.c.b16 %v6551, %v6550
    %v6564 = vpack.c.b16 %v6553, %v6552
    %v6565 = vpack.c.b16 %v6555, %v6554
    %v6566 = vpack.c.b16 %v6557, %v6556
    %v6567 = vpack.c.b16 %v6559, %v6558
    %6576 = vmatpush.bf16.msra.mxu0 %v6567
    %6577 = vmatpush.bf16.msra.mxu0 %v6566
    %6578 = vmatpush.bf16.msra.mxu0 %v6565
    %6579 = vmatpush.bf16.msra.mxu0 %v6564
    %6580 = vmatpush.bf16.msra.mxu0 %v6563
    %6581 = vmatpush.bf16.msra.mxu0 %v6562
    %6582 = vmatpush.bf16.msra.mxu0 %v6561
    %6583 = vmatpush.bf16.msra.mxu0 %v6560
    %6584 = vmatmul.bf16.gmra.mxu0 %v6344
    %v6585 = vpop.f32.mrf.mxu0
    %v6586 = vadd.f32 %v6525, %v6585
    %v6587 = vpop.f32.mrf.mxu0
    %6588 = vdwg.mxu0
    %v6589 = vld [vmem:[%s24] sm:$0x1]
    %v6591 = vperm.slane %v6589, 0
    %v6593 = vadd.f32 %v6586, %v6591
    %v6594 = vmax.f32 %v6593, 0.0
    %v6595 = vld [vmem:[%s25] sm:$0xf]
    %v6596 = vld [vmem:[%s25 + $0x4] sm:$0xf]
    %v6597 = vld [vmem:[%s25 + $0x8] sm:$0xf]
    %v6598 = vld [vmem:[%s25 + $0xc] sm:$0xf]
    %v6599 = vld [vmem:[%s25 + $0x10] sm:$0xf]
    %v6600 = vld [vmem:[%s25 + $0x14] sm:$0xf]
    %v6601 = vld [vmem:[%s25 + $0x18] sm:$0xf]
    %v6602 = vld [vmem:[%s25 + $0x1c] sm:$0xf]
    %v6603 = vpack.c.bf16 %v6594, %v6594
    %v6604 = vld [vmem:[%s26] sm:$0x1]
    %v6606 = vperm.slane %v6604, 0
    %v6616 = vunpack.c.l.b16 %v6595
    %v6617 = vunpack.c.l.b16 %v6596
    %v6618 = vunpack.c.l.b16 %v6597
    %v6619 = vunpack.c.l.b16 %v6598
    %v6620 = vunpack.c.l.b16 %v6599
    %v6621 = vunpack.c.l.b16 %v6600
    %v6622 = vunpack.c.l.b16 %v6601
    %v6623 = vunpack.c.l.b16 %v6602
    %v6624 = vpack.c.b16 %v6617, %v6616
    %v6625 = vpack.c.b16 %v6619, %v6618
    %v6626 = vpack.c.b16 %v6621, %v6620
    %v6627 = vpack.c.b16 %v6623, %v6622
    %v6633 = vsel %vm446, %v6603, 0
    %6635 = vmatpush.bf16.msra.mxu0 0
    %6636 = vmatpush.bf16.msra.mxu0 0
    %6637 = vmatpush.bf16.msra.mxu0 0
    %6638 = vmatpush.bf16.msra.mxu0 0
    %6639 = vmatpush.bf16.msra.mxu0 %v6627
    %6640 = vmatpush.bf16.msra.mxu0 %v6626
    %6641 = vmatpush.bf16.msra.mxu0 %v6625
    %6642 = vmatpush.bf16.msra.mxu0 %v6624
    %6643 = vmatmul.bf16.gmra.mxu0 %v6633
    %v6644 = vpop.f32.mrf.mxu0
    %v6645 = vadd.f32 %v6606, %v6644
    %v6646 = vpop.f32.mrf.mxu0
    %6647 = vdwg.mxu0
    %v6648 = vxor.u32 %v6645, 2147483648
    %v6649 = vmul.f32 %v6648, 1.442695
    %v6650 = vpow.pop %v6649
    %v6651 = vadd.f32 %v6650, 1.0
    %v6652 = vrcp.pop %v6651
    %v6653 = vmul.f32 %v6651, %v6652
    %v6654 = vsub.f32 1.0, %v6653
    %v6655 = vmul.f32 %v6652, %v6654
    %v6656 = vadd.f32 %v6652, %v6655
    %vm6657 = vweird.f32 %v6651
    %vm6658 = vweird.f32 %v6652
    %vm6659 = vmor %vm6657, %vm6658
    %v6660 = vsel %vm6659, %v6652, %v6656
    %v6661 = vand.u32 2147483647, %v6651
    %vm6662 = vcmp.eq.f32.partialorder %v6661, 8.507059e+37
    %v6663 = vand.u32 %v6651, 2147483648
    %v6664 = vor.u32 1.1754944e-38, %v6663
    %v6665 = vsel %vm6662, %v6664, %v6660
    %v6666 = vmul.f32 1.0, %v6665
    %v6667 = vmul.f32 %v6666, %v6404
    %v6668 = vsub.f32 1.0, %v6666
    %v6669 = vmul.f32 %v6668, %v6464
    %v6670 = vadd.f32 %v6667, %v6669
    %6671 = vst [vmem:[#allocation2] sm:$0x3] %v6670
    %6672 = vst [vmem:[#allocation4] sm:$0x3] %v6666
    // Predicated region
    $region110: #{hybrid_gated_net.1} parent=1 // pred_check
      _
    $region111: #{hybrid_gated_net.1} parent=1 // pred_check_branch
      %6674 = sbr.rel (0) target = $region113
    $region112: #{hybrid_gated_net.1} parent=1 // pred_region
      %6676 = vsyncadd [#allocation3], 0
      %s6678 = sshll.u32 [#allocation2], 4
      %s6679 = int_to_ptr.vmem [resolvable:$true] %s6678
      %s6680 = sshll.u32 %s27, 4
      %s6681 = int_to_ptr.hbm [resolvable:$true] %s6680
      %6683 = dma.vmem_to_hbm [thread:$0]  %s6679, 32, %s6681, [#allocation3]
    $region113: #{hybrid_gated_net.1} parent=1 // pred_fallthru
      _
    // Predicated region
    $region114: #{hybrid_gated_net.1} parent=1 // pred_check
      _
    $region115: #{hybrid_gated_net.1} parent=1 // pred_check_branch
      %6685 = sbr.rel (0) target = $region117
    $region116: #{hybrid_gated_net.1} parent=1 // pred_region
      %6687 = vsyncadd [#allocation5], 0
      %s6689 = sshll.u32 [#allocation4], 4
      %s6690 = int_to_ptr.vmem [resolvable:$true] %s6689
      %s6691 = sshll.u32 %s28, 4
      %s6692 = int_to_ptr.hbm [resolvable:$true] %s6691
      %6694 = dma.vmem_to_hbm [thread:$0]  %s6690, 32, %s6692, [#allocation5]
    $region117: #{hybrid_gated_net.1} parent=1 // pred_fallthru
      _
    // Predicated region
    $region118: #{hybrid_gated_net.1} parent=1 // pred_check
      _
    $region119: #{hybrid_gated_net.1} parent=1 // pred_check_branch
      %6696 = sbr.rel (0) target = $region121
    $region120: #{hybrid_gated_net.1} parent=1 // pred_region
      %6698 = dma.done [#allocation3], 32
    $region121: #{hybrid_gated_net.1} parent=1 // pred_fallthru
      _
    // Predicated region
    $region122: #{hybrid_gated_net.1} parent=1 // pred_check
      _
    $region123: #{hybrid_gated_net.1} parent=1 // pred_check_branch
      %6700 = sbr.rel (0) target = $region125
    $region124: #{hybrid_gated_net.1} parent=1 // pred_region
      %6702 = dma.done [#allocation5], 32
    $region125: #{hybrid_gated_net.1} parent=1 // pred_fallthru
      _
    %6703 = vsyncpa [#allocation3], 1
    %6704 = vsyncpa [#allocation5], 1

</llo_original>
